<compile_context>
chip_gen: v6e
topology: v6e:2x2x1
jax: 0.10.0
libtpu: 0.0.40
codegen_flags: <defaults>
</compile_context>

<pallas_src>
import jax
import jax.numpy as jnp
from jax.experimental import pallas as pl
from jax.experimental.pallas import tpu as pltpu

N_MFCC = 16
HIDDEN = 40
NUM_LAYERS = 4
HP = 128          # padded feature / hidden width (one full lane group)
GP = 128          # per-gate padded width
NG = 4            # gates: i, f, o, g  (sigmoid gates grouped first)
GW = NG * GP      # 512


def rnn_kernel(x_ref, wih_ref, whh_ref, b_ref, wfc_ref, bfc_ref, out_ref,
               seq_ref, gx_ref):
    # x_ref:   (T, B, HP)   layer-0 input, features zero-padded 16 -> 128
    # wih_ref: (L, HP, GW)  input->hidden weights, bf16, gate blocks 128-aligned
    # whh_ref: (L, HP, GW)  hidden->hidden weights, bf16
    # b_ref:   (L, 1, GW)   combined bias (b_ih + b_hh), f32, padded cols zero
    # wfc_ref: (HP, 1)      final linear weight (rows >= 40 zero)
    # bfc_ref: (1, 1)
    # out_ref: (B, 1)
    # seq_ref: (T, B, HP)   VMEM scratch: per-layer hidden-state sequence
    # gx_ref:  (T, B, GW)   VMEM scratch: precomputed x @ W_ih + b for a layer
    T, B, _ = x_ref.shape
    num_layers = wih_ref.shape[0]

    for l in range(num_layers):
        # ---- hoisted input-to-hidden matmul (no recurrence dependency) ----
        inp = x_ref[...] if l == 0 else seq_ref[...]
        inp2d = inp.reshape(T * B, HP).astype(jnp.bfloat16)
        gx = jnp.dot(inp2d, wih_ref[l],
                     preferred_element_type=jnp.float32) + b_ref[l]
        gx_ref[...] = gx.reshape(T, B, GW)

        whh = whh_ref[l]                                    # (HP, GW) bf16

        def step(t, carry):
            h, c = carry                                    # (B, HP) f32
            gates = gx_ref[t] + jnp.dot(h.astype(jnp.bfloat16), whh,
                                        preferred_element_type=jnp.float32)
            # 128-aligned gate blocks: sigmoid gates (i, f, o) are contiguous.
            sig = jax.nn.sigmoid(gates[:, :3 * GP])
            i_g = sig[:, 0 * GP:1 * GP]
            f_g = sig[:, 1 * GP:2 * GP]
            o_g = sig[:, 2 * GP:3 * GP]
            g_g = jnp.tanh(gates[:, 3 * GP:4 * GP])
            c = f_g * c + i_g * g_g
            h = o_g * jnp.tanh(c)
            seq_ref[t] = h                                  # bound live ranges
            return h, c

        h0 = jnp.zeros((B, HP), jnp.float32)
        c0 = jnp.zeros((B, HP), jnp.float32)
        jax.lax.fori_loop(0, T, step, (h0, c0), unroll=True)

    # AdaptiveAvgPool1d(1) over time -> (B, HP); padded lanes/rows are inert.
    pooled = jnp.mean(seq_ref[...], axis=0)
    logits = jnp.dot(pooled, wfc_ref[...],
                     preferred_element_type=jnp.float32) + bfc_ref[...]
    out_ref[...] = jax.nn.sigmoid(logits)


def _pack_gate_matrix(w, in_dim, hidden):
    """(4*hidden, in_dim) PyTorch order (i,f,g,o) -> (HP, GW),
    gate blocks 128-lane aligned, reordered to (i, f, o, g), zero padded."""
    out = jnp.zeros((HP, GW), jnp.float32)
    src_for_block = (0, 1, 3, 2)          # blocks i,f,o,g <- pytorch i,f,g,o
    for blk, src in enumerate(src_for_block):
        g = w[src * hidden:(src + 1) * hidden, :].T         # (in_dim, hidden)
        out = out.at[:in_dim, blk * GP:blk * GP + hidden].set(g)
    return out


def _pack_gate_bias(b, hidden):
    out = jnp.zeros((1, GW), jnp.float32)
    src_for_block = (0, 1, 3, 2)
    for blk, src in enumerate(src_for_block):
        out = out.at[0, blk * GP:blk * GP + hidden].set(
            b[src * hidden:(src + 1) * hidden])
    return out


def init_params(key, n_mfcc=N_MFCC, hidden=HIDDEN, num_layers=NUM_LAYERS):
    """Deterministic synthetic parameters with PyTorch-like uniform init."""
    k = 1.0 / jnp.sqrt(hidden)
    keys = jax.random.split(key, num_layers * 4 + 2)
    wih_list, whh_list, b_list = [], [], []
    ki = 0
    for l in range(num_layers):
        in_dim = n_mfcc if l == 0 else hidden
        w_ih = jax.random.uniform(keys[ki], (4 * hidden, in_dim), jnp.float32, -k, k); ki += 1
        w_hh = jax.random.uniform(keys[ki], (4 * hidden, hidden), jnp.float32, -k, k); ki += 1
        b_ih = jax.random.uniform(keys[ki], (4 * hidden,), jnp.float32, -k, k); ki += 1
        b_hh = jax.random.uniform(keys[ki], (4 * hidden,), jnp.float32, -k, k); ki += 1
        wih_list.append(_pack_gate_matrix(w_ih, in_dim, hidden))
        whh_list.append(_pack_gate_matrix(w_hh, hidden, hidden))
        b_list.append(_pack_gate_bias(b_ih + b_hh, hidden))
    w_fc = jax.random.uniform(keys[ki], (1, hidden), jnp.float32, -k, k); ki += 1
    b_fc = jax.random.uniform(keys[ki], (1,), jnp.float32, -k, k)
    wfc = jnp.zeros((HP, 1), jnp.float32).at[:hidden, 0].set(w_fc[0])
    return {
        "wih": jnp.stack(wih_list, axis=0).astype(jnp.bfloat16),   # (L, HP, GW)
        "whh": jnp.stack(whh_list, axis=0).astype(jnp.bfloat16),   # (L, HP, GW)
        "b":   jnp.stack(b_list, axis=0),                          # (L, 1, GW)
        "wfc": wfc,                                                # (HP, 1)
        "bfc": b_fc[None, :],                                      # (1, 1)
    }


def rnn_forward(x, params):
    B, T, F = x.shape
    b_pad = max(8, ((B + 7) // 8) * 8)                    # sublane-aligned batch
    # (B, T, F) -> (T, B_pad, HP), zero padded on batch and feature axes.
    x_t = jnp.transpose(x.astype(jnp.float32), (1, 0, 2))
    x_pad = jnp.zeros((T, b_pad, HP), jnp.float32).at[:, :B, :F].set(x_t)

    vmem = pl.BlockSpec(memory_space=pltpu.MemorySpace.VMEM)
    out = pl.pallas_call(
        rnn_kernel,
        out_shape=jax.ShapeDtypeStruct((b_pad, 1), jnp.float32),
        in_specs=[vmem] * 6,
        out_specs=vmem,
        scratch_shapes=[
            pltpu.VMEM((T, b_pad, HP), jnp.float32),      # hidden-state sequence
            pltpu.VMEM((T, b_pad, GW), jnp.float32),      # hoisted x @ W_ih + b
        ],
    )(x_pad, params["wih"], params["whh"], params["b"],
      params["wfc"], params["bfc"])
    return out[:B]


if __name__ == "__main__":
    key = jax.random.PRNGKey(0)
    k_x, k_p = jax.random.split(key)

    B, T = 2, 8
    x = jax.random.normal(k_x, (B, T, N_MFCC), jnp.float32)   # (batch, seq, n_mfcc)
    params = init_params(k_p)

    emotion = rnn_forward(x, params)
    jax.block_until_ready(emotion)
    assert emotion.shape == (B, 1)
    print("KERNEL_OK")
</pallas_src>

<mosaic_0001>
module attributes {stable_mosaic.version = 11 : i64} {
  func.func @rnn_kernel(%arg0: memref<8x8x128xf32, #tpu.memory_space<vmem>>, %arg1: memref<4x128x512xbf16, #tpu.memory_space<vmem>>, %arg2: memref<4x128x512xbf16, #tpu.memory_space<vmem>>, %arg3: memref<4x1x512xf32, #tpu.memory_space<vmem>>, %arg4: memref<128x1xf32, #tpu.memory_space<vmem>>, %arg5: memref<1x1xf32, #tpu.memory_space<vmem>>, %arg6: memref<8x1xf32, #tpu.memory_space<vmem>>, %arg7: memref<8x8x128xf32, #tpu.memory_space<vmem>>, %arg8: memref<8x8x512xf32, #tpu.memory_space<vmem>>) attributes {dimension_semantics = [], scalar_prefetch = 0 : i64, scratch_operands = 2 : i64, tpu.core_type = #tpu.core_type<tc>} {
    %c0 = arith.constant 0 : index
    %c0_0 = arith.constant 0 : index
    %c0_1 = arith.constant 0 : index
    %0 = vector.load %arg0[%c0, %c0_0, %c0_1] : memref<8x8x128xf32, #tpu.memory_space<vmem>>, vector<8x8x128xf32>
    %1 = vector.shape_cast %0 : vector<8x8x128xf32> to vector<64x128xf32>
    %2 = arith.truncf %1 : vector<64x128xf32> to vector<64x128xbf16>
    %c0_2 = arith.constant 0 : index
    %c0_3 = arith.constant 0 : index
    %c0_4 = arith.constant 0 : index
    %3 = vector.load %arg1[%c0_2, %c0_3, %c0_4] : memref<4x128x512xbf16, #tpu.memory_space<vmem>>, vector<1x128x512xbf16>
    %4 = vector.shape_cast %3 : vector<1x128x512xbf16> to vector<128x512xbf16>
    %cst = arith.constant dense<0.000000e+00> : vector<64x512xf32>
    %5 = tpu.matmul %2, %4, %cst {dimension_numbers = #tpu.dot_dimension_numbers<[1], [0], [0], [1], [0, 0, 1, 1], [], []>} : vector<64x128xbf16>, vector<128x512xbf16>, vector<64x512xf32> -> vector<64x512xf32>
    %c0_5 = arith.constant 0 : index
    %c0_6 = arith.constant 0 : index
    %c0_7 = arith.constant 0 : index
    %6 = vector.load %arg3[%c0_5, %c0_6, %c0_7] : memref<4x1x512xf32, #tpu.memory_space<vmem>>, vector<1x1x512xf32>
    %7 = vector.shape_cast %6 : vector<1x1x512xf32> to vector<1x512xf32>
    %8 = vector.broadcast %7 : vector<1x512xf32> to vector<64x512xf32>
    %9 = arith.addf %5, %8 : vector<64x512xf32>
    %10 = vector.shape_cast %9 : vector<64x512xf32> to vector<8x8x512xf32>
    %c0_8 = arith.constant 0 : index
    %c0_9 = arith.constant 0 : index
    %c0_10 = arith.constant 0 : index
    %11 = vector.load %arg8[%c0_8, %c0_9, %c0_10] : memref<8x8x512xf32, #tpu.memory_space<vmem>>, vector<8x8x512xf32>
    tpu.vector_store %arg8[%c0_8, %c0_9, %c0_10], %10 {strides = array<i32>} : memref<8x8x512xf32, #tpu.memory_space<vmem>>, vector<8x8x512xf32>,
    %c0_11 = arith.constant 0 : index
    %c0_12 = arith.constant 0 : index
    %c0_13 = arith.constant 0 : index
    %12 = vector.load %arg2[%c0_11, %c0_12, %c0_13] : memref<4x128x512xbf16, #tpu.memory_space<vmem>>, vector<1x128x512xbf16>
    %13 = vector.shape_cast %12 : vector<1x128x512xbf16> to vector<128x512xbf16>
    %cst_14 = arith.constant 0.000000e+00 : f32
    %14 = vector.broadcast %cst_14 : f32 to vector<8x128xf32>
    %cst_15 = arith.constant 0.000000e+00 : f32
    %15 = vector.broadcast %cst_15 : f32 to vector<8x128xf32>
    %c0_i32 = arith.constant 0 : i32
    %16 = arith.index_cast %c0_i32 : i32 to index
    %c0_16 = arith.constant 0 : index
    %c0_17 = arith.constant 0 : index
    %17 = vector.load %arg8[%16, %c0_16, %c0_17] : memref<8x8x512xf32, #tpu.memory_space<vmem>>, vector<1x8x512xf32>
    %18 = vector.shape_cast %17 : vector<1x8x512xf32> to vector<8x512xf32>
    %19 = arith.truncf %14 : vector<8x128xf32> to vector<8x128xbf16>
    %cst_18 = arith.constant dense<0.000000e+00> : vector<8x512xf32>
    %20 = tpu.matmul %19, %13, %cst_18 {dimension_numbers = #tpu.dot_dimension_numbers<[1], [0], [0], [1], [0, 0, 1, 1], [], []>} : vector<8x128xbf16>, vector<128x512xbf16>, vector<8x512xf32> -> vector<8x512xf32>
    %21 = arith.addf %18, %20 : vector<8x512xf32>
    %22 = vector.extract_strided_slice %21 {offsets = [0, 0], sizes = [8, 384], strides = [1, 1]} : vector<8x512xf32> to vector<8x384xf32>
    %23 = arith.negf %22 : vector<8x384xf32>
    %24 = math.exp %23 : vector<8x384xf32>
    %cst_19 = arith.constant 1.000000e+00 : f32
    %25 = vector.broadcast %cst_19 : f32 to vector<8x384xf32>
    %26 = arith.addf %25, %24 : vector<8x384xf32>
    %27 = arith.divf %25, %26 : vector<8x384xf32>
    %28 = vector.extract_strided_slice %27 {offsets = [0, 0], sizes = [8, 128], strides = [1, 1]} : vector<8x384xf32> to vector<8x128xf32>
    %29 = vector.extract_strided_slice %27 {offsets = [0, 128], sizes = [8, 128], strides = [1, 1]} : vector<8x384xf32> to vector<8x128xf32>
    %30 = vector.extract_strided_slice %27 {offsets = [0, 256], sizes = [8, 128], strides = [1, 1]} : vector<8x384xf32> to vector<8x128xf32>
    %31 = vector.extract_strided_slice %21 {offsets = [0, 384], sizes = [8, 128], strides = [1, 1]} : vector<8x512xf32> to vector<8x128xf32>
    %32 = math.tanh %31 : vector<8x128xf32>
    %33 = arith.mulf %29, %15 : vector<8x128xf32>
    %34 = arith.mulf %28, %32 : vector<8x128xf32>
    %35 = arith.addf %33, %34 : vector<8x128xf32>
    %36 = math.tanh %35 : vector<8x128xf32>
    %37 = arith.mulf %30, %36 : vector<8x128xf32>
    %38 = arith.index_cast %c0_i32 : i32 to index
    %c0_20 = arith.constant 0 : index
    %c0_21 = arith.constant 0 : index
    %39 = vector.load %arg7[%38, %c0_20, %c0_21] : memref<8x8x128xf32, #tpu.memory_space<vmem>>, vector<1x8x128xf32>
    %40 = vector.shape_cast %39 : vector<1x8x128xf32> to vector<8x128xf32>
    %41 = vector.shape_cast %37 : vector<8x128xf32> to vector<1x8x128xf32>
    tpu.vector_store %arg7[%38, %c0_20, %c0_21], %41 {strides = array<i32>} : memref<8x8x128xf32, #tpu.memory_space<vmem>>, vector<1x8x128xf32>,
    %c1_i32 = arith.constant 1 : i32
    %42 = arith.index_cast %c1_i32 : i32 to index
    %c0_22 = arith.constant 0 : index
    %c0_23 = arith.constant 0 : index
    %43 = vector.load %arg8[%42, %c0_22, %c0_23] : memref<8x8x512xf32, #tpu.memory_space<vmem>>, vector<1x8x512xf32>
    %44 = vector.shape_cast %43 : vector<1x8x512xf32> to vector<8x512xf32>
    %45 = arith.truncf %37 : vector<8x128xf32> to vector<8x128xbf16>
    %cst_24 = arith.constant dense<0.000000e+00> : vector<8x512xf32>
    %46 = tpu.matmul %45, %13, %cst_24 {dimension_numbers = #tpu.dot_dimension_numbers<[1], [0], [0], [1], [0, 0, 1, 1], [], []>} : vector<8x128xbf16>, vector<128x512xbf16>, vector<8x512xf32> -> vector<8x512xf32>
    %47 = arith.addf %44, %46 : vector<8x512xf32>
    %48 = vector.extract_strided_slice %47 {offsets = [0, 0], sizes = [8, 384], strides = [1, 1]} : vector<8x512xf32> to vector<8x384xf32>
    %49 = arith.negf %48 : vector<8x384xf32>
    %50 = math.exp %49 : vector<8x384xf32>
    %cst_25 = arith.constant 1.000000e+00 : f32
    %51 = vector.broadcast %cst_25 : f32 to vector<8x384xf32>
    %52 = arith.addf %51, %50 : vector<8x384xf32>
    %53 = arith.divf %51, %52 : vector<8x384xf32>
    %54 = vector.extract_strided_slice %53 {offsets = [0, 0], sizes = [8, 128], strides = [1, 1]} : vector<8x384xf32> to vector<8x128xf32>
    %55 = vector.extract_strided_slice %53 {offsets = [0, 128], sizes = [8, 128], strides = [1, 1]} : vector<8x384xf32> to vector<8x128xf32>
    %56 = vector.extract_strided_slice %53 {offsets = [0, 256], sizes = [8, 128], strides = [1, 1]} : vector<8x384xf32> to vector<8x128xf32>
    %57 = vector.extract_strided_slice %47 {offsets = [0, 384], sizes = [8, 128], strides = [1, 1]} : vector<8x512xf32> to vector<8x128xf32>
    %58 = math.tanh %57 : vector<8x128xf32>
    %59 = arith.mulf %55, %35 : vector<8x128xf32>
    %60 = arith.mulf %54, %58 : vector<8x128xf32>
    %61 = arith.addf %59, %60 : vector<8x128xf32>
    %62 = math.tanh %61 : vector<8x128xf32>
    %63 = arith.mulf %56, %62 : vector<8x128xf32>
    %64 = arith.index_cast %c1_i32 : i32 to index
    %c0_26 = arith.constant 0 : index
    %c0_27 = arith.constant 0 : index
    %65 = vector.load %arg7[%64, %c0_26, %c0_27] : memref<8x8x128xf32, #tpu.memory_space<vmem>>, vector<1x8x128xf32>
    %66 = vector.shape_cast %65 : vector<1x8x128xf32> to vector<8x128xf32>
    %67 = vector.shape_cast %63 : vector<8x128xf32> to vector<1x8x128xf32>
    tpu.vector_store %arg7[%64, %c0_26, %c0_27], %67 {strides = array<i32>} : memref<8x8x128xf32, #tpu.memory_space<vmem>>, vector<1x8x128xf32>,
    %c2_i32 = arith.constant 2 : i32
    %68 = arith.index_cast %c2_i32 : i32 to index
    %c0_28 = arith.constant 0 : index
    %c0_29 = arith.constant 0 : index
    %69 = vector.load %arg8[%68, %c0_28, %c0_29] : memref<8x8x512xf32, #tpu.memory_space<vmem>>, vector<1x8x512xf32>
    %70 = vector.shape_cast %69 : vector<1x8x512xf32> to vector<8x512xf32>
    %71 = arith.truncf %63 : vector<8x128xf32> to vector<8x128xbf16>
    %cst_30 = arith.constant dense<0.000000e+00> : vector<8x512xf32>
    %72 = tpu.matmul %71, %13, %cst_30 {dimension_numbers = #tpu.dot_dimension_numbers<[1], [0], [0], [1], [0, 0, 1, 1], [], []>} : vector<8x128xbf16>, vector<128x512xbf16>, vector<8x512xf32> -> vector<8x512xf32>
    %73 = arith.addf %70, %72 : vector<8x512xf32>
    %74 = vector.extract_strided_slice %73 {offsets = [0, 0], sizes = [8, 384], strides = [1, 1]} : vector<8x512xf32> to vector<8x384xf32>
    %75 = arith.negf %74 : vector<8x384xf32>
    %76 = math.exp %75 : vector<8x384xf32>
    %cst_31 = arith.constant 1.000000e+00 : f32
    %77 = vector.broadcast %cst_31 : f32 to vector<8x384xf32>
    %78 = arith.addf %77, %76 : vector<8x384xf32>
    %79 = arith.divf %77, %78 : vector<8x384xf32>
    %80 = vector.extract_strided_slice %79 {offsets = [0, 0], sizes = [8, 128], strides = [1, 1]} : vector<8x384xf32> to vector<8x128xf32>
    %81 = vector.extract_strided_slice %79 {offsets = [0, 128], sizes = [8, 128], strides = [1, 1]} : vector<8x384xf32> to vector<8x128xf32>
    %82 = vector.extract_strided_slice %79 {offsets = [0, 256], sizes = [8, 128], strides = [1, 1]} : vector<8x384xf32> to vector<8x128xf32>
    %83 = vector.extract_strided_slice %73 {offsets = [0, 384], sizes = [8, 128], strides = [1, 1]} : vector<8x512xf32> to vector<8x128xf32>
    %84 = math.tanh %83 : vector<8x128xf32>
    %85 = arith.mulf %81, %61 : vector<8x128xf32>
    %86 = arith.mulf %80, %84 : vector<8x128xf32>
    %87 = arith.addf %85, %86 : vector<8x128xf32>
    %88 = math.tanh %87 : vector<8x128xf32>
    %89 = arith.mulf %82, %88 : vector<8x128xf32>
    %90 = arith.index_cast %c2_i32 : i32 to index
    %c0_32 = arith.constant 0 : index
    %c0_33 = arith.constant 0 : index
    %91 = vector.load %arg7[%90, %c0_32, %c0_33] : memref<8x8x128xf32, #tpu.memory_space<vmem>>, vector<1x8x128xf32>
    %92 = vector.shape_cast %91 : vector<1x8x128xf32> to vector<8x128xf32>
    %93 = vector.shape_cast %89 : vector<8x128xf32> to vector<1x8x128xf32>
    tpu.vector_store %arg7[%90, %c0_32, %c0_33], %93 {strides = array<i32>} : memref<8x8x128xf32, #tpu.memory_space<vmem>>, vector<1x8x128xf32>,
    %c3_i32 = arith.constant 3 : i32
    %94 = arith.index_cast %c3_i32 : i32 to index
    %c0_34 = arith.constant 0 : index
    %c0_35 = arith.constant 0 : index
    %95 = vector.load %arg8[%94, %c0_34, %c0_35] : memref<8x8x512xf32, #tpu.memory_space<vmem>>, vector<1x8x512xf32>
    %96 = vector.shape_cast %95 : vector<1x8x512xf32> to vector<8x512xf32>
    %97 = arith.truncf %89 : vector<8x128xf32> to vector<8x128xbf16>
    %cst_36 = arith.constant dense<0.000000e+00> : vector<8x512xf32>
    %98 = tpu.matmul %97, %13, %cst_36 {dimension_numbers = #tpu.dot_dimension_numbers<[1], [0], [0], [1], [0, 0, 1, 1], [], []>} : vector<8x128xbf16>, vector<128x512xbf16>, vector<8x512xf32> -> vector<8x512xf32>
    %99 = arith.addf %96, %98 : vector<8x512xf32>
    %100 = vector.extract_strided_slice %99 {offsets = [0, 0], sizes = [8, 384], strides = [1, 1]} : vector<8x512xf32> to vector<8x384xf32>
    %101 = arith.negf %100 : vector<8x384xf32>
    %102 = math.exp %101 : vector<8x384xf32>
    %cst_37 = arith.constant 1.000000e+00 : f32
    %103 = vector.broadcast %cst_37 : f32 to vector<8x384xf32>
    %104 = arith.addf %103, %102 : vector<8x384xf32>
    %105 = arith.divf %103, %104 : vector<8x384xf32>
    %106 = vector.extract_strided_slice %105 {offsets = [0, 0], sizes = [8, 128], strides = [1, 1]} : vector<8x384xf32> to vector<8x128xf32>
    %107 = vector.extract_strided_slice %105 {offsets = [0, 128], sizes = [8, 128], strides = [1, 1]} : vector<8x384xf32> to vector<8x128xf32>
    %108 = vector.extract_strided_slice %105 {offsets = [0, 256], sizes = [8, 128], strides = [1, 1]} : vector<8x384xf32> to vector<8x128xf32>
    %109 = vector.extract_strided_slice %99 {offsets = [0, 384], sizes = [8, 128], strides = [1, 1]} : vector<8x512xf32> to vector<8x128xf32>
    %110 = math.tanh %109 : vector<8x128xf32>
    %111 = arith.mulf %107, %87 : vector<8x128xf32>
    %112 = arith.mulf %106, %110 : vector<8x128xf32>
    %113 = arith.addf %111, %112 : vector<8x128xf32>
    %114 = math.tanh %113 : vector<8x128xf32>
    %115 = arith.mulf %108, %114 : vector<8x128xf32>
    %116 = arith.index_cast %c3_i32 : i32 to index
    %c0_38 = arith.constant 0 : index
    %c0_39 = arith.constant 0 : index
    %117 = vector.load %arg7[%116, %c0_38, %c0_39] : memref<8x8x128xf32, #tpu.memory_space<vmem>>, vector<1x8x128xf32>
    %118 = vector.shape_cast %117 : vector<1x8x128xf32> to vector<8x128xf32>
    %119 = vector.shape_cast %115 : vector<8x128xf32> to vector<1x8x128xf32>
    tpu.vector_store %arg7[%116, %c0_38, %c0_39], %119 {strides = array<i32>} : memref<8x8x128xf32, #tpu.memory_space<vmem>>, vector<1x8x128xf32>,
    %c4_i32 = arith.constant 4 : i32
    %120 = arith.index_cast %c4_i32 : i32 to index
    %c0_40 = arith.constant 0 : index
    %c0_41 = arith.constant 0 : index
    %121 = vector.load %arg8[%120, %c0_40, %c0_41] : memref<8x8x512xf32, #tpu.memory_space<vmem>>, vector<1x8x512xf32>
    %122 = vector.shape_cast %121 : vector<1x8x512xf32> to vector<8x512xf32>
    %123 = arith.truncf %115 : vector<8x128xf32> to vector<8x128xbf16>
    %cst_42 = arith.constant dense<0.000000e+00> : vector<8x512xf32>
    %124 = tpu.matmul %123, %13, %cst_42 {dimension_numbers = #tpu.dot_dimension_numbers<[1], [0], [0], [1], [0, 0, 1, 1], [], []>} : vector<8x128xbf16>, vector<128x512xbf16>, vector<8x512xf32> -> vector<8x512xf32>
    %125 = arith.addf %122, %124 : vector<8x512xf32>
    %126 = vector.extract_strided_slice %125 {offsets = [0, 0], sizes = [8, 384], strides = [1, 1]} : vector<8x512xf32> to vector<8x384xf32>
    %127 = arith.negf %126 : vector<8x384xf32>
    %128 = math.exp %127 : vector<8x384xf32>
    %cst_43 = arith.constant 1.000000e+00 : f32
    %129 = vector.broadcast %cst_43 : f32 to vector<8x384xf32>
    %130 = arith.addf %129, %128 : vector<8x384xf32>
    %131 = arith.divf %129, %130 : vector<8x384xf32>
    %132 = vector.extract_strided_slice %131 {offsets = [0, 0], sizes = [8, 128], strides = [1, 1]} : vector<8x384xf32> to vector<8x128xf32>
    %133 = vector.extract_strided_slice %131 {offsets = [0, 128], sizes = [8, 128], strides = [1, 1]} : vector<8x384xf32> to vector<8x128xf32>
    %134 = vector.extract_strided_slice %131 {offsets = [0, 256], sizes = [8, 128], strides = [1, 1]} : vector<8x384xf32> to vector<8x128xf32>
    %135 = vector.extract_strided_slice %125 {offsets = [0, 384], sizes = [8, 128], strides = [1, 1]} : vector<8x512xf32> to vector<8x128xf32>
    %136 = math.tanh %135 : vector<8x128xf32>
    %137 = arith.mulf %133, %113 : vector<8x128xf32>
    %138 = arith.mulf %132, %136 : vector<8x128xf32>
    %139 = arith.addf %137, %138 : vector<8x128xf32>
    %140 = math.tanh %139 : vector<8x128xf32>
    %141 = arith.mulf %134, %140 : vector<8x128xf32>
    %142 = arith.index_cast %c4_i32 : i32 to index
    %c0_44 = arith.constant 0 : index
    %c0_45 = arith.constant 0 : index
    %143 = vector.load %arg7[%142, %c0_44, %c0_45] : memref<8x8x128xf32, #tpu.memory_space<vmem>>, vector<1x8x128xf32>
    %144 = vector.shape_cast %143 : vector<1x8x128xf32> to vector<8x128xf32>
    %145 = vector.shape_cast %141 : vector<8x128xf32> to vector<1x8x128xf32>
    tpu.vector_store %arg7[%142, %c0_44, %c0_45], %145 {strides = array<i32>} : memref<8x8x128xf32, #tpu.memory_space<vmem>>, vector<1x8x128xf32>,
    %c5_i32 = arith.constant 5 : i32
    %146 = arith.index_cast %c5_i32 : i32 to index
    %c0_46 = arith.constant 0 : index
    %c0_47 = arith.constant 0 : index
    %147 = vector.load %arg8[%146, %c0_46, %c0_47] : memref<8x8x512xf32, #tpu.memory_space<vmem>>, vector<1x8x512xf32>
    %148 = vector.shape_cast %147 : vector<1x8x512xf32> to vector<8x512xf32>
    %149 = arith.truncf %141 : vector<8x128xf32> to vector<8x128xbf16>
    %cst_48 = arith.constant dense<0.000000e+00> : vector<8x512xf32>
    %150 = tpu.matmul %149, %13, %cst_48 {dimension_numbers = #tpu.dot_dimension_numbers<[1], [0], [0], [1], [0, 0, 1, 1], [], []>} : vector<8x128xbf16>, vector<128x512xbf16>, vector<8x512xf32> -> vector<8x512xf32>
    %151 = arith.addf %148, %150 : vector<8x512xf32>
    %152 = vector.extract_strided_slice %151 {offsets = [0, 0], sizes = [8, 384], strides = [1, 1]} : vector<8x512xf32> to vector<8x384xf32>
    %153 = arith.negf %152 : vector<8x384xf32>
    %154 = math.exp %153 : vector<8x384xf32>
    %cst_49 = arith.constant 1.000000e+00 : f32
    %155 = vector.broadcast %cst_49 : f32 to vector<8x384xf32>
    %156 = arith.addf %155, %154 : vector<8x384xf32>
    %157 = arith.divf %155, %156 : vector<8x384xf32>
    %158 = vector.extract_strided_slice %157 {offsets = [0, 0], sizes = [8, 128], strides = [1, 1]} : vector<8x384xf32> to vector<8x128xf32>
    %159 = vector.extract_strided_slice %157 {offsets = [0, 128], sizes = [8, 128], strides = [1, 1]} : vector<8x384xf32> to vector<8x128xf32>
    %160 = vector.extract_strided_slice %157 {offsets = [0, 256], sizes = [8, 128], strides = [1, 1]} : vector<8x384xf32> to vector<8x128xf32>
    %161 = vector.extract_strided_slice %151 {offsets = [0, 384], sizes = [8, 128], strides = [1, 1]} : vector<8x512xf32> to vector<8x128xf32>
    %162 = math.tanh %161 : vector<8x128xf32>
    %163 = arith.mulf %159, %139 : vector<8x128xf32>
    %164 = arith.mulf %158, %162 : vector<8x128xf32>
    %165 = arith.addf %163, %164 : vector<8x128xf32>
    %166 = math.tanh %165 : vector<8x128xf32>
    %167 = arith.mulf %160, %166 : vector<8x128xf32>
    %168 = arith.index_cast %c5_i32 : i32 to index
    %c0_50 = arith.constant 0 : index
    %c0_51 = arith.constant 0 : index
    %169 = vector.load %arg7[%168, %c0_50, %c0_51] : memref<8x8x128xf32, #tpu.memory_space<vmem>>, vector<1x8x128xf32>
    %170 = vector.shape_cast %169 : vector<1x8x128xf32> to vector<8x128xf32>
    %171 = vector.shape_cast %167 : vector<8x128xf32> to vector<1x8x128xf32>
    tpu.vector_store %arg7[%168, %c0_50, %c0_51], %171 {strides = array<i32>} : memref<8x8x128xf32, #tpu.memory_space<vmem>>, vector<1x8x128xf32>,
    %c6_i32 = arith.constant 6 : i32
    %172 = arith.index_cast %c6_i32 : i32 to index
    %c0_52 = arith.constant 0 : index
    %c0_53 = arith.constant 0 : index
    %173 = vector.load %arg8[%172, %c0_52, %c0_53] : memref<8x8x512xf32, #tpu.memory_space<vmem>>, vector<1x8x512xf32>
    %174 = vector.shape_cast %173 : vector<1x8x512xf32> to vector<8x512xf32>
    %175 = arith.truncf %167 : vector<8x128xf32> to vector<8x128xbf16>
    %cst_54 = arith.constant dense<0.000000e+00> : vector<8x512xf32>
    %176 = tpu.matmul %175, %13, %cst_54 {dimension_numbers = #tpu.dot_dimension_numbers<[1], [0], [0], [1], [0, 0, 1, 1], [], []>} : vector<8x128xbf16>, vector<128x512xbf16>, vector<8x512xf32> -> vector<8x512xf32>
    %177 = arith.addf %174, %176 : vector<8x512xf32>
    %178 = vector.extract_strided_slice %177 {offsets = [0, 0], sizes = [8, 384], strides = [1, 1]} : vector<8x512xf32> to vector<8x384xf32>
    %179 = arith.negf %178 : vector<8x384xf32>
    %180 = math.exp %179 : vector<8x384xf32>
    %cst_55 = arith.constant 1.000000e+00 : f32
    %181 = vector.broadcast %cst_55 : f32 to vector<8x384xf32>
    %182 = arith.addf %181, %180 : vector<8x384xf32>
    %183 = arith.divf %181, %182 : vector<8x384xf32>
    %184 = vector.extract_strided_slice %183 {offsets = [0, 0], sizes = [8, 128], strides = [1, 1]} : vector<8x384xf32> to vector<8x128xf32>
    %185 = vector.extract_strided_slice %183 {offsets = [0, 128], sizes = [8, 128], strides = [1, 1]} : vector<8x384xf32> to vector<8x128xf32>
    %186 = vector.extract_strided_slice %183 {offsets = [0, 256], sizes = [8, 128], strides = [1, 1]} : vector<8x384xf32> to vector<8x128xf32>
    %187 = vector.extract_strided_slice %177 {offsets = [0, 384], sizes = [8, 128], strides = [1, 1]} : vector<8x512xf32> to vector<8x128xf32>
    %188 = math.tanh %187 : vector<8x128xf32>
    %189 = arith.mulf %185, %165 : vector<8x128xf32>
    %190 = arith.mulf %184, %188 : vector<8x128xf32>
    %191 = arith.addf %189, %190 : vector<8x128xf32>
    %192 = math.tanh %191 : vector<8x128xf32>
    %193 = arith.mulf %186, %192 : vector<8x128xf32>
    %194 = arith.index_cast %c6_i32 : i32 to index
    %c0_56 = arith.constant 0 : index
    %c0_57 = arith.constant 0 : index
    %195 = vector.load %arg7[%194, %c0_56, %c0_57] : memref<8x8x128xf32, #tpu.memory_space<vmem>>, vector<1x8x128xf32>
    %196 = vector.shape_cast %195 : vector<1x8x128xf32> to vector<8x128xf32>
    %197 = vector.shape_cast %193 : vector<8x128xf32> to vector<1x8x128xf32>
    tpu.vector_store %arg7[%194, %c0_56, %c0_57], %197 {strides = array<i32>} : memref<8x8x128xf32, #tpu.memory_space<vmem>>, vector<1x8x128xf32>,
    %c7_i32 = arith.constant 7 : i32
    %198 = arith.index_cast %c7_i32 : i32 to index
    %c0_58 = arith.constant 0 : index
    %c0_59 = arith.constant 0 : index
    %199 = vector.load %arg8[%198, %c0_58, %c0_59] : memref<8x8x512xf32, #tpu.memory_space<vmem>>, vector<1x8x512xf32>
    %200 = vector.shape_cast %199 : vector<1x8x512xf32> to vector<8x512xf32>
    %201 = arith.truncf %193 : vector<8x128xf32> to vector<8x128xbf16>
    %cst_60 = arith.constant dense<0.000000e+00> : vector<8x512xf32>
    %202 = tpu.matmul %201, %13, %cst_60 {dimension_numbers = #tpu.dot_dimension_numbers<[1], [0], [0], [1], [0, 0, 1, 1], [], []>} : vector<8x128xbf16>, vector<128x512xbf16>, vector<8x512xf32> -> vector<8x512xf32>
    %203 = arith.addf %200, %202 : vector<8x512xf32>
    %204 = vector.extract_strided_slice %203 {offsets = [0, 0], sizes = [8, 384], strides = [1, 1]} : vector<8x512xf32> to vector<8x384xf32>
    %205 = arith.negf %204 : vector<8x384xf32>
    %206 = math.exp %205 : vector<8x384xf32>
    %cst_61 = arith.constant 1.000000e+00 : f32
    %207 = vector.broadcast %cst_61 : f32 to vector<8x384xf32>
    %208 = arith.addf %207, %206 : vector<8x384xf32>
    %209 = arith.divf %207, %208 : vector<8x384xf32>
    %210 = vector.extract_strided_slice %209 {offsets = [0, 0], sizes = [8, 128], strides = [1, 1]} : vector<8x384xf32> to vector<8x128xf32>
    %211 = vector.extract_strided_slice %209 {offsets = [0, 128], sizes = [8, 128], strides = [1, 1]} : vector<8x384xf32> to vector<8x128xf32>
    %212 = vector.extract_strided_slice %209 {offsets = [0, 256], sizes = [8, 128], strides = [1, 1]} : vector<8x384xf32> to vector<8x128xf32>
    %213 = vector.extract_strided_slice %203 {offsets = [0, 384], sizes = [8, 128], strides = [1, 1]} : vector<8x512xf32> to vector<8x128xf32>
    %214 = math.tanh %213 : vector<8x128xf32>
    %215 = arith.mulf %211, %191 : vector<8x128xf32>
    %216 = arith.mulf %210, %214 : vector<8x128xf32>
    %217 = arith.addf %215, %216 : vector<8x128xf32>
    %218 = math.tanh %217 : vector<8x128xf32>
    %219 = arith.mulf %212, %218 : vector<8x128xf32>
    %220 = arith.index_cast %c7_i32 : i32 to index
    %c0_62 = arith.constant 0 : index
    %c0_63 = arith.constant 0 : index
    %221 = vector.load %arg7[%220, %c0_62, %c0_63] : memref<8x8x128xf32, #tpu.memory_space<vmem>>, vector<1x8x128xf32>
    %222 = vector.shape_cast %221 : vector<1x8x128xf32> to vector<8x128xf32>
    %223 = vector.shape_cast %219 : vector<8x128xf32> to vector<1x8x128xf32>
    tpu.vector_store %arg7[%220, %c0_62, %c0_63], %223 {strides = array<i32>} : memref<8x8x128xf32, #tpu.memory_space<vmem>>, vector<1x8x128xf32>,
    %c8_i32 = arith.constant 8 : i32
    %c0_64 = arith.constant 0 : index
    %c0_65 = arith.constant 0 : index
    %c0_66 = arith.constant 0 : index
    %224 = vector.load %arg7[%c0_64, %c0_65, %c0_66] : memref<8x8x128xf32, #tpu.memory_space<vmem>>, vector<8x8x128xf32>
    %225 = vector.shape_cast %224 : vector<8x8x128xf32> to vector<64x128xf32>
    %226 = arith.truncf %225 : vector<64x128xf32> to vector<64x128xbf16>
    %c1 = arith.constant 1 : index
    %c0_67 = arith.constant 0 : index
    %c0_68 = arith.constant 0 : index
    %227 = vector.load %arg1[%c1, %c0_67, %c0_68] : memref<4x128x512xbf16, #tpu.memory_space<vmem>>, vector<1x128x512xbf16>
    %228 = vector.shape_cast %227 : vector<1x128x512xbf16> to vector<128x512xbf16>
    %cst_69 = arith.constant dense<0.000000e+00> : vector<64x512xf32>
    %229 = tpu.matmul %226, %228, %cst_69 {dimension_numbers = #tpu.dot_dimension_numbers<[1], [0], [0], [1], [0, 0, 1, 1], [], []>} : vector<64x128xbf16>, vector<128x512xbf16>, vector<64x512xf32> -> vector<64x512xf32>
    %c1_70 = arith.constant 1 : index
    %c0_71 = arith.constant 0 : index
    %c0_72 = arith.constant 0 : index
    %230 = vector.load %arg3[%c1_70, %c0_71, %c0_72] : memref<4x1x512xf32, #tpu.memory_space<vmem>>, vector<1x1x512xf32>
    %231 = vector.shape_cast %230 : vector<1x1x512xf32> to vector<1x512xf32>
    %232 = vector.broadcast %231 : vector<1x512xf32> to vector<64x512xf32>
    %233 = arith.addf %229, %232 : vector<64x512xf32>
    %234 = vector.shape_cast %233 : vector<64x512xf32> to vector<8x8x512xf32>
    %c0_73 = arith.constant 0 : index
    %c0_74 = arith.constant 0 : index
    %c0_75 = arith.constant 0 : index
    %235 = vector.load %arg8[%c0_73, %c0_74, %c0_75] : memref<8x8x512xf32, #tpu.memory_space<vmem>>, vector<8x8x512xf32>
    tpu.vector_store %arg8[%c0_73, %c0_74, %c0_75], %234 {strides = array<i32>} : memref<8x8x512xf32, #tpu.memory_space<vmem>>, vector<8x8x512xf32>,
    %c1_76 = arith.constant 1 : index
    %c0_77 = arith.constant 0 : index
    %c0_78 = arith.constant 0 : index
    %236 = vector.load %arg2[%c1_76, %c0_77, %c0_78] : memref<4x128x512xbf16, #tpu.memory_space<vmem>>, vector<1x128x512xbf16>
    %237 = vector.shape_cast %236 : vector<1x128x512xbf16> to vector<128x512xbf16>
    %cst_79 = arith.constant 0.000000e+00 : f32
    %238 = vector.broadcast %cst_79 : f32 to vector<8x128xf32>
    %cst_80 = arith.constant 0.000000e+00 : f32
    %239 = vector.broadcast %cst_80 : f32 to vector<8x128xf32>
    %c0_i32_81 = arith.constant 0 : i32
    %240 = arith.index_cast %c0_i32_81 : i32 to index
    %c0_82 = arith.constant 0 : index
    %c0_83 = arith.constant 0 : index
    %241 = vector.load %arg8[%240, %c0_82, %c0_83] : memref<8x8x512xf32, #tpu.memory_space<vmem>>, vector<1x8x512xf32>
    %242 = vector.shape_cast %241 : vector<1x8x512xf32> to vector<8x512xf32>
    %243 = arith.truncf %238 : vector<8x128xf32> to vector<8x128xbf16>
    %cst_84 = arith.constant dense<0.000000e+00> : vector<8x512xf32>
    %244 = tpu.matmul %243, %237, %cst_84 {dimension_numbers = #tpu.dot_dimension_numbers<[1], [0], [0], [1], [0, 0, 1, 1], [], []>} : vector<8x128xbf16>, vector<128x512xbf16>, vector<8x512xf32> -> vector<8x512xf32>
    %245 = arith.addf %242, %244 : vector<8x512xf32>
    %246 = vector.extract_strided_slice %245 {offsets = [0, 0], sizes = [8, 384], strides = [1, 1]} : vector<8x512xf32> to vector<8x384xf32>
    %247 = arith.negf %246 : vector<8x384xf32>
    %248 = math.exp %247 : vector<8x384xf32>
    %cst_85 = arith.constant 1.000000e+00 : f32
    %249 = vector.broadcast %cst_85 : f32 to vector<8x384xf32>
    %250 = arith.addf %249, %248 : vector<8x384xf32>
    %251 = arith.divf %249, %250 : vector<8x384xf32>
    %252 = vector.extract_strided_slice %251 {offsets = [0, 0], sizes = [8, 128], strides = [1, 1]} : vector<8x384xf32> to vector<8x128xf32>
    %253 = vector.extract_strided_slice %251 {offsets = [0, 128], sizes = [8, 128], strides = [1, 1]} : vector<8x384xf32> to vector<8x128xf32>
    %254 = vector.extract_strided_slice %251 {offsets = [0, 256], sizes = [8, 128], strides = [1, 1]} : vector<8x384xf32> to vector<8x128xf32>
    %255 = vector.extract_strided_slice %245 {offsets = [0, 384], sizes = [8, 128], strides = [1, 1]} : vector<8x512xf32> to vector<8x128xf32>
    %256 = math.tanh %255 : vector<8x128xf32>
    %257 = arith.mulf %253, %239 : vector<8x128xf32>
    %258 = arith.mulf %252, %256 : vector<8x128xf32>
    %259 = arith.addf %257, %258 : vector<8x128xf32>
    %260 = math.tanh %259 : vector<8x128xf32>
    %261 = arith.mulf %254, %260 : vector<8x128xf32>
    %262 = arith.index_cast %c0_i32_81 : i32 to index
    %c0_86 = arith.constant 0 : index
    %c0_87 = arith.constant 0 : index
    %263 = vector.load %arg7[%262, %c0_86, %c0_87] : memref<8x8x128xf32, #tpu.memory_space<vmem>>, vector<1x8x128xf32>
    %264 = vector.shape_cast %263 : vector<1x8x128xf32> to vector<8x128xf32>
    %265 = vector.shape_cast %261 : vector<8x128xf32> to vector<1x8x128xf32>
    tpu.vector_store %arg7[%262, %c0_86, %c0_87], %265 {strides = array<i32>} : memref<8x8x128xf32, #tpu.memory_space<vmem>>, vector<1x8x128xf32>,
    %c1_i32_88 = arith.constant 1 : i32
    %266 = arith.index_cast %c1_i32_88 : i32 to index
    %c0_89 = arith.constant 0 : index
    %c0_90 = arith.constant 0 : index
    %267 = vector.load %arg8[%266, %c0_89, %c0_90] : memref<8x8x512xf32, #tpu.memory_space<vmem>>, vector<1x8x512xf32>
    %268 = vector.shape_cast %267 : vector<1x8x512xf32> to vector<8x512xf32>
    %269 = arith.truncf %261 : vector<8x128xf32> to vector<8x128xbf16>
    %cst_91 = arith.constant dense<0.000000e+00> : vector<8x512xf32>
    %270 = tpu.matmul %269, %237, %cst_91 {dimension_numbers = #tpu.dot_dimension_numbers<[1], [0], [0], [1], [0, 0, 1, 1], [], []>} : vector<8x128xbf16>, vector<128x512xbf16>, vector<8x512xf32> -> vector<8x512xf32>
    %271 = arith.addf %268, %270 : vector<8x512xf32>
    %272 = vector.extract_strided_slice %271 {offsets = [0, 0], sizes = [8, 384], strides = [1, 1]} : vector<8x512xf32> to vector<8x384xf32>
    %273 = arith.negf %272 : vector<8x384xf32>
    %274 = math.exp %273 : vector<8x384xf32>
    %cst_92 = arith.constant 1.000000e+00 : f32
    %275 = vector.broadcast %cst_92 : f32 to vector<8x384xf32>
    %276 = arith.addf %275, %274 : vector<8x384xf32>
    %277 = arith.divf %275, %276 : vector<8x384xf32>
    %278 = vector.extract_strided_slice %277 {offsets = [0, 0], sizes = [8, 128], strides = [1, 1]} : vector<8x384xf32> to vector<8x128xf32>
    %279 = vector.extract_strided_slice %277 {offsets = [0, 128], sizes = [8, 128], strides = [1, 1]} : vector<8x384xf32> to vector<8x128xf32>
    %280 = vector.extract_strided_slice %277 {offsets = [0, 256], sizes = [8, 128], strides = [1, 1]} : vector<8x384xf32> to vector<8x128xf32>
    %281 = vector.extract_strided_slice %271 {offsets = [0, 384], sizes = [8, 128], strides = [1, 1]} : vector<8x512xf32> to vector<8x128xf32>
    %282 = math.tanh %281 : vector<8x128xf32>
    %283 = arith.mulf %279, %259 : vector<8x128xf32>
    %284 = arith.mulf %278, %282 : vector<8x128xf32>
    %285 = arith.addf %283, %284 : vector<8x128xf32>
    %286 = math.tanh %285 : vector<8x128xf32>
    %287 = arith.mulf %280, %286 : vector<8x128xf32>
    %288 = arith.index_cast %c1_i32_88 : i32 to index
    %c0_93 = arith.constant 0 : index
    %c0_94 = arith.constant 0 : index
    %289 = vector.load %arg7[%288, %c0_93, %c0_94] : memref<8x8x128xf32, #tpu.memory_space<vmem>>, vector<1x8x128xf32>
    %290 = vector.shape_cast %289 : vector<1x8x128xf32> to vector<8x128xf32>
    %291 = vector.shape_cast %287 : vector<8x128xf32> to vector<1x8x128xf32>
    tpu.vector_store %arg7[%288, %c0_93, %c0_94], %291 {strides = array<i32>} : memref<8x8x128xf32, #tpu.memory_space<vmem>>, vector<1x8x128xf32>,
    %c2_i32_95 = arith.constant 2 : i32
    %292 = arith.index_cast %c2_i32_95 : i32 to index
    %c0_96 = arith.constant 0 : index
    %c0_97 = arith.constant 0 : index
    %293 = vector.load %arg8[%292, %c0_96, %c0_97] : memref<8x8x512xf32, #tpu.memory_space<vmem>>, vector<1x8x512xf32>
    %294 = vector.shape_cast %293 : vector<1x8x512xf32> to vector<8x512xf32>
    %295 = arith.truncf %287 : vector<8x128xf32> to vector<8x128xbf16>
    %cst_98 = arith.constant dense<0.000000e+00> : vector<8x512xf32>
    %296 = tpu.matmul %295, %237, %cst_98 {dimension_numbers = #tpu.dot_dimension_numbers<[1], [0], [0], [1], [0, 0, 1, 1], [], []>} : vector<8x128xbf16>, vector<128x512xbf16>, vector<8x512xf32> -> vector<8x512xf32>
    %297 = arith.addf %294, %296 : vector<8x512xf32>
    %298 = vector.extract_strided_slice %297 {offsets = [0, 0], sizes = [8, 384], strides = [1, 1]} : vector<8x512xf32> to vector<8x384xf32>
    %299 = arith.negf %298 : vector<8x384xf32>
    %300 = math.exp %299 : vector<8x384xf32>
    %cst_99 = arith.constant 1.000000e+00 : f32
    %301 = vector.broadcast %cst_99 : f32 to vector<8x384xf32>
    %302 = arith.addf %301, %300 : vector<8x384xf32>
    %303 = arith.divf %301, %302 : vector<8x384xf32>
    %304 = vector.extract_strided_slice %303 {offsets = [0, 0], sizes = [8, 128], strides = [1, 1]} : vector<8x384xf32> to vector<8x128xf32>
    %305 = vector.extract_strided_slice %303 {offsets = [0, 128], sizes = [8, 128], strides = [1, 1]} : vector<8x384xf32> to vector<8x128xf32>
    %306 = vector.extract_strided_slice %303 {offsets = [0, 256], sizes = [8, 128], strides = [1, 1]} : vector<8x384xf32> to vector<8x128xf32>
    %307 = vector.extract_strided_slice %297 {offsets = [0, 384], sizes = [8, 128], strides = [1, 1]} : vector<8x512xf32> to vector<8x128xf32>
    %308 = math.tanh %307 : vector<8x128xf32>
    %309 = arith.mulf %305, %285 : vector<8x128xf32>
    %310 = arith.mulf %304, %308 : vector<8x128xf32>
    %311 = arith.addf %309, %310 : vector<8x128xf32>
    %312 = math.tanh %311 : vector<8x128xf32>
    %313 = arith.mulf %306, %312 : vector<8x128xf32>
    %314 = arith.index_cast %c2_i32_95 : i32 to index
    %c0_100 = arith.constant 0 : index
    %c0_101 = arith.constant 0 : index
    %315 = vector.load %arg7[%314, %c0_100, %c0_101] : memref<8x8x128xf32, #tpu.memory_space<vmem>>, vector<1x8x128xf32>
    %316 = vector.shape_cast %315 : vector<1x8x128xf32> to vector<8x128xf32>
    %317 = vector.shape_cast %313 : vector<8x128xf32> to vector<1x8x128xf32>
    tpu.vector_store %arg7[%314, %c0_100, %c0_101], %317 {strides = array<i32>} : memref<8x8x128xf32, #tpu.memory_space<vmem>>, vector<1x8x128xf32>,
    %c3_i32_102 = arith.constant 3 : i32
    %318 = arith.index_cast %c3_i32_102 : i32 to index
    %c0_103 = arith.constant 0 : index
    %c0_104 = arith.constant 0 : index
    %319 = vector.load %arg8[%318, %c0_103, %c0_104] : memref<8x8x512xf32, #tpu.memory_space<vmem>>, vector<1x8x512xf32>
    %320 = vector.shape_cast %319 : vector<1x8x512xf32> to vector<8x512xf32>
    %321 = arith.truncf %313 : vector<8x128xf32> to vector<8x128xbf16>
    %cst_105 = arith.constant dense<0.000000e+00> : vector<8x512xf32>
    %322 = tpu.matmul %321, %237, %cst_105 {dimension_numbers = #tpu.dot_dimension_numbers<[1], [0], [0], [1], [0, 0, 1, 1], [], []>} : vector<8x128xbf16>, vector<128x512xbf16>, vector<8x512xf32> -> vector<8x512xf32>
    %323 = arith.addf %320, %322 : vector<8x512xf32>
    %324 = vector.extract_strided_slice %323 {offsets = [0, 0], sizes = [8, 384], strides = [1, 1]} : vector<8x512xf32> to vector<8x384xf32>
    %325 = arith.negf %324 : vector<8x384xf32>
    %326 = math.exp %325 : vector<8x384xf32>
    %cst_106 = arith.constant 1.000000e+00 : f32
    %327 = vector.broadcast %cst_106 : f32 to vector<8x384xf32>
    %328 = arith.addf %327, %326 : vector<8x384xf32>
    %329 = arith.divf %327, %328 : vector<8x384xf32>
    %330 = vector.extract_strided_slice %329 {offsets = [0, 0], sizes = [8, 128], strides = [1, 1]} : vector<8x384xf32> to vector<8x128xf32>
    %331 = vector.extract_strided_slice %329 {offsets = [0, 128], sizes = [8, 128], strides = [1, 1]} : vector<8x384xf32> to vector<8x128xf32>
    %332 = vector.extract_strided_slice %329 {offsets = [0, 256], sizes = [8, 128], strides = [1, 1]} : vector<8x384xf32> to vector<8x128xf32>
    %333 = vector.extract_strided_slice %323 {offsets = [0, 384], sizes = [8, 128], strides = [1, 1]} : vector<8x512xf32> to vector<8x128xf32>
    %334 = math.tanh %333 : vector<8x128xf32>
    %335 = arith.mulf %331, %311 : vector<8x128xf32>
    %336 = arith.mulf %330, %334 : vector<8x128xf32>
    %337 = arith.addf %335, %336 : vector<8x128xf32>
    %338 = math.tanh %337 : vector<8x128xf32>
    %339 = arith.mulf %332, %338 : vector<8x128xf32>
    %340 = arith.index_cast %c3_i32_102 : i32 to index
    %c0_107 = arith.constant 0 : index
    %c0_108 = arith.constant 0 : index
    %341 = vector.load %arg7[%340, %c0_107, %c0_108] : memref<8x8x128xf32, #tpu.memory_space<vmem>>, vector<1x8x128xf32>
    %342 = vector.shape_cast %341 : vector<1x8x128xf32> to vector<8x128xf32>
    %343 = vector.shape_cast %339 : vector<8x128xf32> to vector<1x8x128xf32>
    tpu.vector_store %arg7[%340, %c0_107, %c0_108], %343 {strides = array<i32>} : memref<8x8x128xf32, #tpu.memory_space<vmem>>, vector<1x8x128xf32>,
    %c4_i32_109 = arith.constant 4 : i32
    %344 = arith.index_cast %c4_i32_109 : i32 to index
    %c0_110 = arith.constant 0 : index
    %c0_111 = arith.constant 0 : index
    %345 = vector.load %arg8[%344, %c0_110, %c0_111] : memref<8x8x512xf32, #tpu.memory_space<vmem>>, vector<1x8x512xf32>
    %346 = vector.shape_cast %345 : vector<1x8x512xf32> to vector<8x512xf32>
    %347 = arith.truncf %339 : vector<8x128xf32> to vector<8x128xbf16>
    %cst_112 = arith.constant dense<0.000000e+00> : vector<8x512xf32>
    %348 = tpu.matmul %347, %237, %cst_112 {dimension_numbers = #tpu.dot_dimension_numbers<[1], [0], [0], [1], [0, 0, 1, 1], [], []>} : vector<8x128xbf16>, vector<128x512xbf16>, vector<8x512xf32> -> vector<8x512xf32>
    %349 = arith.addf %346, %348 : vector<8x512xf32>
    %350 = vector.extract_strided_slice %349 {offsets = [0, 0], sizes = [8, 384], strides = [1, 1]} : vector<8x512xf32> to vector<8x384xf32>
    %351 = arith.negf %350 : vector<8x384xf32>
    %352 = math.exp %351 : vector<8x384xf32>
    %cst_113 = arith.constant 1.000000e+00 : f32
    %353 = vector.broadcast %cst_113 : f32 to vector<8x384xf32>
    %354 = arith.addf %353, %352 : vector<8x384xf32>
    %355 = arith.divf %353, %354 : vector<8x384xf32>
    %356 = vector.extract_strided_slice %355 {offsets = [0, 0], sizes = [8, 128], strides = [1, 1]} : vector<8x384xf32> to vector<8x128xf32>
    %357 = vector.extract_strided_slice %355 {offsets = [0, 128], sizes = [8, 128], strides = [1, 1]} : vector<8x384xf32> to vector<8x128xf32>
    %358 = vector.extract_strided_slice %355 {offsets = [0, 256], sizes = [8, 128], strides = [1, 1]} : vector<8x384xf32> to vector<8x128xf32>
    %359 = vector.extract_strided_slice %349 {offsets = [0, 384], sizes = [8, 128], strides = [1, 1]} : vector<8x512xf32> to vector<8x128xf32>
    %360 = math.tanh %359 : vector<8x128xf32>
    %361 = arith.mulf %357, %337 : vector<8x128xf32>
    %362 = arith.mulf %356, %360 : vector<8x128xf32>
    %363 = arith.addf %361, %362 : vector<8x128xf32>
    %364 = math.tanh %363 : vector<8x128xf32>
    %365 = arith.mulf %358, %364 : vector<8x128xf32>
    %366 = arith.index_cast %c4_i32_109 : i32 to index
    %c0_114 = arith.constant 0 : index
    %c0_115 = arith.constant 0 : index
    %367 = vector.load %arg7[%366, %c0_114, %c0_115] : memref<8x8x128xf32, #tpu.memory_space<vmem>>, vector<1x8x128xf32>
    %368 = vector.shape_cast %367 : vector<1x8x128xf32> to vector<8x128xf32>
    %369 = vector.shape_cast %365 : vector<8x128xf32> to vector<1x8x128xf32>
    tpu.vector_store %arg7[%366, %c0_114, %c0_115], %369 {strides = array<i32>} : memref<8x8x128xf32, #tpu.memory_space<vmem>>, vector<1x8x128xf32>,
    %c5_i32_116 = arith.constant 5 : i32
    %370 = arith.index_cast %c5_i32_116 : i32 to index
    %c0_117 = arith.constant 0 : index
    %c0_118 = arith.constant 0 : index
    %371 = vector.load %arg8[%370, %c0_117, %c0_118] : memref<8x8x512xf32, #tpu.memory_space<vmem>>, vector<1x8x512xf32>
    %372 = vector.shape_cast %371 : vector<1x8x512xf32> to vector<8x512xf32>
    %373 = arith.truncf %365 : vector<8x128xf32> to vector<8x128xbf16>
    %cst_119 = arith.constant dense<0.000000e+00> : vector<8x512xf32>
    %374 = tpu.matmul %373, %237, %cst_119 {dimension_numbers = #tpu.dot_dimension_numbers<[1], [0], [0], [1], [0, 0, 1, 1], [], []>} : vector<8x128xbf16>, vector<128x512xbf16>, vector<8x512xf32> -> vector<8x512xf32>
    %375 = arith.addf %372, %374 : vector<8x512xf32>
    %376 = vector.extract_strided_slice %375 {offsets = [0, 0], sizes = [8, 384], strides = [1, 1]} : vector<8x512xf32> to vector<8x384xf32>
    %377 = arith.negf %376 : vector<8x384xf32>
    %378 = math.exp %377 : vector<8x384xf32>
    %cst_120 = arith.constant 1.000000e+00 : f32
    %379 = vector.broadcast %cst_120 : f32 to vector<8x384xf32>
    %380 = arith.addf %379, %378 : vector<8x384xf32>
    %381 = arith.divf %379, %380 : vector<8x384xf32>
    %382 = vector.extract_strided_slice %381 {offsets = [0, 0], sizes = [8, 128], strides = [1, 1]} : vector<8x384xf32> to vector<8x128xf32>
    %383 = vector.extract_strided_slice %381 {offsets = [0, 128], sizes = [8, 128], strides = [1, 1]} : vector<8x384xf32> to vector<8x128xf32>
    %384 = vector.extract_strided_slice %381 {offsets = [0, 256], sizes = [8, 128], strides = [1, 1]} : vector<8x384xf32> to vector<8x128xf32>
    %385 = vector.extract_strided_slice %375 {offsets = [0, 384], sizes = [8, 128], strides = [1, 1]} : vector<8x512xf32> to vector<8x128xf32>
    %386 = math.tanh %385 : vector<8x128xf32>
    %387 = arith.mulf %383, %363 : vector<8x128xf32>
    %388 = arith.mulf %382, %386 : vector<8x128xf32>
    %389 = arith.addf %387, %388 : vector<8x128xf32>
    %390 = math.tanh %389 : vector<8x128xf32>
    %391 = arith.mulf %384, %390 : vector<8x128xf32>
    %392 = arith.index_cast %c5_i32_116 : i32 to index
    %c0_121 = arith.constant 0 : index
    %c0_122 = arith.constant 0 : index
    %393 = vector.load %arg7[%392, %c0_121, %c0_122] : memref<8x8x128xf32, #tpu.memory_space<vmem>>, vector<1x8x128xf32>
    %394 = vector.shape_cast %393 : vector<1x8x128xf32> to vector<8x128xf32>
    %395 = vector.shape_cast %391 : vector<8x128xf32> to vector<1x8x128xf32>
    tpu.vector_store %arg7[%392, %c0_121, %c0_122], %395 {strides = array<i32>} : memref<8x8x128xf32, #tpu.memory_space<vmem>>, vector<1x8x128xf32>,
    %c6_i32_123 = arith.constant 6 : i32
    %396 = arith.index_cast %c6_i32_123 : i32 to index
    %c0_124 = arith.constant 0 : index
    %c0_125 = arith.constant 0 : index
    %397 = vector.load %arg8[%396, %c0_124, %c0_125] : memref<8x8x512xf32, #tpu.memory_space<vmem>>, vector<1x8x512xf32>
    %398 = vector.shape_cast %397 : vector<1x8x512xf32> to vector<8x512xf32>
    %399 = arith.truncf %391 : vector<8x128xf32> to vector<8x128xbf16>
    %cst_126 = arith.constant dense<0.000000e+00> : vector<8x512xf32>
    %400 = tpu.matmul %399, %237, %cst_126 {dimension_numbers = #tpu.dot_dimension_numbers<[1], [0], [0], [1], [0, 0, 1, 1], [], []>} : vector<8x128xbf16>, vector<128x512xbf16>, vector<8x512xf32> -> vector<8x512xf32>
    %401 = arith.addf %398, %400 : vector<8x512xf32>
    %402 = vector.extract_strided_slice %401 {offsets = [0, 0], sizes = [8, 384], strides = [1, 1]} : vector<8x512xf32> to vector<8x384xf32>
    %403 = arith.negf %402 : vector<8x384xf32>
    %404 = math.exp %403 : vector<8x384xf32>
    %cst_127 = arith.constant 1.000000e+00 : f32
    %405 = vector.broadcast %cst_127 : f32 to vector<8x384xf32>
    %406 = arith.addf %405, %404 : vector<8x384xf32>
    %407 = arith.divf %405, %406 : vector<8x384xf32>
    %408 = vector.extract_strided_slice %407 {offsets = [0, 0], sizes = [8, 128], strides = [1, 1]} : vector<8x384xf32> to vector<8x128xf32>
    %409 = vector.extract_strided_slice %407 {offsets = [0, 128], sizes = [8, 128], strides = [1, 1]} : vector<8x384xf32> to vector<8x128xf32>
    %410 = vector.extract_strided_slice %407 {offsets = [0, 256], sizes = [8, 128], strides = [1, 1]} : vector<8x384xf32> to vector<8x128xf32>
    %411 = vector.extract_strided_slice %401 {offsets = [0, 384], sizes = [8, 128], strides = [1, 1]} : vector<8x512xf32> to vector<8x128xf32>
    %412 = math.tanh %411 : vector<8x128xf32>
    %413 = arith.mulf %409, %389 : vector<8x128xf32>
    %414 = arith.mulf %408, %412 : vector<8x128xf32>
    %415 = arith.addf %413, %414 : vector<8x128xf32>
    %416 = math.tanh %415 : vector<8x128xf32>
    %417 = arith.mulf %410, %416 : vector<8x128xf32>
    %418 = arith.index_cast %c6_i32_123 : i32 to index
    %c0_128 = arith.constant 0 : index
    %c0_129 = arith.constant 0 : index
    %419 = vector.load %arg7[%418, %c0_128, %c0_129] : memref<8x8x128xf32, #tpu.memory_space<vmem>>, vector<1x8x128xf32>
    %420 = vector.shape_cast %419 : vector<1x8x128xf32> to vector<8x128xf32>
    %421 = vector.shape_cast %417 : vector<8x128xf32> to vector<1x8x128xf32>
    tpu.vector_store %arg7[%418, %c0_128, %c0_129], %421 {strides = array<i32>} : memref<8x8x128xf32, #tpu.memory_space<vmem>>, vector<1x8x128xf32>,
    %c7_i32_130 = arith.constant 7 : i32
    %422 = arith.index_cast %c7_i32_130 : i32 to index
    %c0_131 = arith.constant 0 : index
    %c0_132 = arith.constant 0 : index
    %423 = vector.load %arg8[%422, %c0_131, %c0_132] : memref<8x8x512xf32, #tpu.memory_space<vmem>>, vector<1x8x512xf32>
    %424 = vector.shape_cast %423 : vector<1x8x512xf32> to vector<8x512xf32>
    %425 = arith.truncf %417 : vector<8x128xf32> to vector<8x128xbf16>
    %cst_133 = arith.constant dense<0.000000e+00> : vector<8x512xf32>
    %426 = tpu.matmul %425, %237, %cst_133 {dimension_numbers = #tpu.dot_dimension_numbers<[1], [0], [0], [1], [0, 0, 1, 1], [], []>} : vector<8x128xbf16>, vector<128x512xbf16>, vector<8x512xf32> -> vector<8x512xf32>
    %427 = arith.addf %424, %426 : vector<8x512xf32>
    %428 = vector.extract_strided_slice %427 {offsets = [0, 0], sizes = [8, 384], strides = [1, 1]} : vector<8x512xf32> to vector<8x384xf32>
    %429 = arith.negf %428 : vector<8x384xf32>
    %430 = math.exp %429 : vector<8x384xf32>
    %cst_134 = arith.constant 1.000000e+00 : f32
    %431 = vector.broadcast %cst_134 : f32 to vector<8x384xf32>
    %432 = arith.addf %431, %430 : vector<8x384xf32>
    %433 = arith.divf %431, %432 : vector<8x384xf32>
    %434 = vector.extract_strided_slice %433 {offsets = [0, 0], sizes = [8, 128], strides = [1, 1]} : vector<8x384xf32> to vector<8x128xf32>
    %435 = vector.extract_strided_slice %433 {offsets = [0, 128], sizes = [8, 128], strides = [1, 1]} : vector<8x384xf32> to vector<8x128xf32>
    %436 = vector.extract_strided_slice %433 {offsets = [0, 256], sizes = [8, 128], strides = [1, 1]} : vector<8x384xf32> to vector<8x128xf32>
    %437 = vector.extract_strided_slice %427 {offsets = [0, 384], sizes = [8, 128], strides = [1, 1]} : vector<8x512xf32> to vector<8x128xf32>
    %438 = math.tanh %437 : vector<8x128xf32>
    %439 = arith.mulf %435, %415 : vector<8x128xf32>
    %440 = arith.mulf %434, %438 : vector<8x128xf32>
    %441 = arith.addf %439, %440 : vector<8x128xf32>
    %442 = math.tanh %441 : vector<8x128xf32>
    %443 = arith.mulf %436, %442 : vector<8x128xf32>
    %444 = arith.index_cast %c7_i32_130 : i32 to index
    %c0_135 = arith.constant 0 : index
    %c0_136 = arith.constant 0 : index
    %445 = vector.load %arg7[%444, %c0_135, %c0_136] : memref<8x8x128xf32, #tpu.memory_space<vmem>>, vector<1x8x128xf32>
    %446 = vector.shape_cast %445 : vector<1x8x128xf32> to vector<8x128xf32>
    %447 = vector.shape_cast %443 : vector<8x128xf32> to vector<1x8x128xf32>
    tpu.vector_store %arg7[%444, %c0_135, %c0_136], %447 {strides = array<i32>} : memref<8x8x128xf32, #tpu.memory_space<vmem>>, vector<1x8x128xf32>,
    %c8_i32_137 = arith.constant 8 : i32
    %c0_138 = arith.constant 0 : index
    %c0_139 = arith.constant 0 : index
    %c0_140 = arith.constant 0 : index
    %448 = vector.load %arg7[%c0_138, %c0_139, %c0_140] : memref<8x8x128xf32, #tpu.memory_space<vmem>>, vector<8x8x128xf32>
    %449 = vector.shape_cast %448 : vector<8x8x128xf32> to vector<64x128xf32>
    %450 = arith.truncf %449 : vector<64x128xf32> to vector<64x128xbf16>
    %c2 = arith.constant 2 : index
    %c0_141 = arith.constant 0 : index
    %c0_142 = arith.constant 0 : index
    %451 = vector.load %arg1[%c2, %c0_141, %c0_142] : memref<4x128x512xbf16, #tpu.memory_space<vmem>>, vector<1x128x512xbf16>
    %452 = vector.shape_cast %451 : vector<1x128x512xbf16> to vector<128x512xbf16>
    %cst_143 = arith.constant dense<0.000000e+00> : vector<64x512xf32>
    %453 = tpu.matmul %450, %452, %cst_143 {dimension_numbers = #tpu.dot_dimension_numbers<[1], [0], [0], [1], [0, 0, 1, 1], [], []>} : vector<64x128xbf16>, vector<128x512xbf16>, vector<64x512xf32> -> vector<64x512xf32>
    %c2_144 = arith.constant 2 : index
    %c0_145 = arith.constant 0 : index
    %c0_146 = arith.constant 0 : index
    %454 = vector.load %arg3[%c2_144, %c0_145, %c0_146] : memref<4x1x512xf32, #tpu.memory_space<vmem>>, vector<1x1x512xf32>
    %455 = vector.shape_cast %454 : vector<1x1x512xf32> to vector<1x512xf32>
    %456 = vector.broadcast %455 : vector<1x512xf32> to vector<64x512xf32>
    %457 = arith.addf %453, %456 : vector<64x512xf32>
    %458 = vector.shape_cast %457 : vector<64x512xf32> to vector<8x8x512xf32>
    %c0_147 = arith.constant 0 : index
    %c0_148 = arith.constant 0 : index
    %c0_149 = arith.constant 0 : index
    %459 = vector.load %arg8[%c0_147, %c0_148, %c0_149] : memref<8x8x512xf32, #tpu.memory_space<vmem>>, vector<8x8x512xf32>
    tpu.vector_store %arg8[%c0_147, %c0_148, %c0_149], %458 {strides = array<i32>} : memref<8x8x512xf32, #tpu.memory_space<vmem>>, vector<8x8x512xf32>,
    %c2_150 = arith.constant 2 : index
    %c0_151 = arith.constant 0 : index
    %c0_152 = arith.constant 0 : index
    %460 = vector.load %arg2[%c2_150, %c0_151, %c0_152] : memref<4x128x512xbf16, #tpu.memory_space<vmem>>, vector<1x128x512xbf16>
    %461 = vector.shape_cast %460 : vector<1x128x512xbf16> to vector<128x512xbf16>
    %cst_153 = arith.constant 0.000000e+00 : f32
    %462 = vector.broadcast %cst_153 : f32 to vector<8x128xf32>
    %cst_154 = arith.constant 0.000000e+00 : f32
    %463 = vector.broadcast %cst_154 : f32 to vector<8x128xf32>
    %c0_i32_155 = arith.constant 0 : i32
    %464 = arith.index_cast %c0_i32_155 : i32 to index
    %c0_156 = arith.constant 0 : index
    %c0_157 = arith.constant 0 : index
    %465 = vector.load %arg8[%464, %c0_156, %c0_157] : memref<8x8x512xf32, #tpu.memory_space<vmem>>, vector<1x8x512xf32>
    %466 = vector.shape_cast %465 : vector<1x8x512xf32> to vector<8x512xf32>
    %467 = arith.truncf %462 : vector<8x128xf32> to vector<8x128xbf16>
    %cst_158 = arith.constant dense<0.000000e+00> : vector<8x512xf32>
    %468 = tpu.matmul %467, %461, %cst_158 {dimension_numbers = #tpu.dot_dimension_numbers<[1], [0], [0], [1], [0, 0, 1, 1], [], []>} : vector<8x128xbf16>, vector<128x512xbf16>, vector<8x512xf32> -> vector<8x512xf32>
    %469 = arith.addf %466, %468 : vector<8x512xf32>
    %470 = vector.extract_strided_slice %469 {offsets = [0, 0], sizes = [8, 384], strides = [1, 1]} : vector<8x512xf32> to vector<8x384xf32>
    %471 = arith.negf %470 : vector<8x384xf32>
    %472 = math.exp %471 : vector<8x384xf32>
    %cst_159 = arith.constant 1.000000e+00 : f32
    %473 = vector.broadcast %cst_159 : f32 to vector<8x384xf32>
    %474 = arith.addf %473, %472 : vector<8x384xf32>
    %475 = arith.divf %473, %474 : vector<8x384xf32>
    %476 = vector.extract_strided_slice %475 {offsets = [0, 0], sizes = [8, 128], strides = [1, 1]} : vector<8x384xf32> to vector<8x128xf32>
    %477 = vector.extract_strided_slice %475 {offsets = [0, 128], sizes = [8, 128], strides = [1, 1]} : vector<8x384xf32> to vector<8x128xf32>
    %478 = vector.extract_strided_slice %475 {offsets = [0, 256], sizes = [8, 128], strides = [1, 1]} : vector<8x384xf32> to vector<8x128xf32>
    %479 = vector.extract_strided_slice %469 {offsets = [0, 384], sizes = [8, 128], strides = [1, 1]} : vector<8x512xf32> to vector<8x128xf32>
    %480 = math.tanh %479 : vector<8x128xf32>
    %481 = arith.mulf %477, %463 : vector<8x128xf32>
    %482 = arith.mulf %476, %480 : vector<8x128xf32>
    %483 = arith.addf %481, %482 : vector<8x128xf32>
    %484 = math.tanh %483 : vector<8x128xf32>
    %485 = arith.mulf %478, %484 : vector<8x128xf32>
    %486 = arith.index_cast %c0_i32_155 : i32 to index
    %c0_160 = arith.constant 0 : index
    %c0_161 = arith.constant 0 : index
    %487 = vector.load %arg7[%486, %c0_160, %c0_161] : memref<8x8x128xf32, #tpu.memory_space<vmem>>, vector<1x8x128xf32>
    %488 = vector.shape_cast %487 : vector<1x8x128xf32> to vector<8x128xf32>
    %489 = vector.shape_cast %485 : vector<8x128xf32> to vector<1x8x128xf32>
    tpu.vector_store %arg7[%486, %c0_160, %c0_161], %489 {strides = array<i32>} : memref<8x8x128xf32, #tpu.memory_space<vmem>>, vector<1x8x128xf32>,
    %c1_i32_162 = arith.constant 1 : i32
    %490 = arith.index_cast %c1_i32_162 : i32 to index
    %c0_163 = arith.constant 0 : index
    %c0_164 = arith.constant 0 : index
    %491 = vector.load %arg8[%490, %c0_163, %c0_164] : memref<8x8x512xf32, #tpu.memory_space<vmem>>, vector<1x8x512xf32>
    %492 = vector.shape_cast %491 : vector<1x8x512xf32> to vector<8x512xf32>
    %493 = arith.truncf %485 : vector<8x128xf32> to vector<8x128xbf16>
    %cst_165 = arith.constant dense<0.000000e+00> : vector<8x512xf32>
    %494 = tpu.matmul %493, %461, %cst_165 {dimension_numbers = #tpu.dot_dimension_numbers<[1], [0], [0], [1], [0, 0, 1, 1], [], []>} : vector<8x128xbf16>, vector<128x512xbf16>, vector<8x512xf32> -> vector<8x512xf32>
    %495 = arith.addf %492, %494 : vector<8x512xf32>
    %496 = vector.extract_strided_slice %495 {offsets = [0, 0], sizes = [8, 384], strides = [1, 1]} : vector<8x512xf32> to vector<8x384xf32>
    %497 = arith.negf %496 : vector<8x384xf32>
    %498 = math.exp %497 : vector<8x384xf32>
    %cst_166 = arith.constant 1.000000e+00 : f32
    %499 = vector.broadcast %cst_166 : f32 to vector<8x384xf32>
    %500 = arith.addf %499, %498 : vector<8x384xf32>
    %501 = arith.divf %499, %500 : vector<8x384xf32>
    %502 = vector.extract_strided_slice %501 {offsets = [0, 0], sizes = [8, 128], strides = [1, 1]} : vector<8x384xf32> to vector<8x128xf32>
    %503 = vector.extract_strided_slice %501 {offsets = [0, 128], sizes = [8, 128], strides = [1, 1]} : vector<8x384xf32> to vector<8x128xf32>
    %504 = vector.extract_strided_slice %501 {offsets = [0, 256], sizes = [8, 128], strides = [1, 1]} : vector<8x384xf32> to vector<8x128xf32>
    %505 = vector.extract_strided_slice %495 {offsets = [0, 384], sizes = [8, 128], strides = [1, 1]} : vector<8x512xf32> to vector<8x128xf32>
    %506 = math.tanh %505 : vector<8x128xf32>
    %507 = arith.mulf %503, %483 : vector<8x128xf32>
    %508 = arith.mulf %502, %506 : vector<8x128xf32>
    %509 = arith.addf %507, %508 : vector<8x128xf32>
    %510 = math.tanh %509 : vector<8x128xf32>
    %511 = arith.mulf %504, %510 : vector<8x128xf32>
    %512 = arith.index_cast %c1_i32_162 : i32 to index
    %c0_167 = arith.constant 0 : index
    %c0_168 = arith.constant 0 : index
    %513 = vector.load %arg7[%512, %c0_167, %c0_168] : memref<8x8x128xf32, #tpu.memory_space<vmem>>, vector<1x8x128xf32>
    %514 = vector.shape_cast %513 : vector<1x8x128xf32> to vector<8x128xf32>
    %515 = vector.shape_cast %511 : vector<8x128xf32> to vector<1x8x128xf32>
    tpu.vector_store %arg7[%512, %c0_167, %c0_168], %515 {strides = array<i32>} : memref<8x8x128xf32, #tpu.memory_space<vmem>>, vector<1x8x128xf32>,
    %c2_i32_169 = arith.constant 2 : i32
    %516 = arith.index_cast %c2_i32_169 : i32 to index
    %c0_170 = arith.constant 0 : index
    %c0_171 = arith.constant 0 : index
    %517 = vector.load %arg8[%516, %c0_170, %c0_171] : memref<8x8x512xf32, #tpu.memory_space<vmem>>, vector<1x8x512xf32>
    %518 = vector.shape_cast %517 : vector<1x8x512xf32> to vector<8x512xf32>
    %519 = arith.truncf %511 : vector<8x128xf32> to vector<8x128xbf16>
    %cst_172 = arith.constant dense<0.000000e+00> : vector<8x512xf32>
    %520 = tpu.matmul %519, %461, %cst_172 {dimension_numbers = #tpu.dot_dimension_numbers<[1], [0], [0], [1], [0, 0, 1, 1], [], []>} : vector<8x128xbf16>, vector<128x512xbf16>, vector<8x512xf32> -> vector<8x512xf32>
    %521 = arith.addf %518, %520 : vector<8x512xf32>
    %522 = vector.extract_strided_slice %521 {offsets = [0, 0], sizes = [8, 384], strides = [1, 1]} : vector<8x512xf32> to vector<8x384xf32>
    %523 = arith.negf %522 : vector<8x384xf32>
    %524 = math.exp %523 : vector<8x384xf32>
    %cst_173 = arith.constant 1.000000e+00 : f32
    %525 = vector.broadcast %cst_173 : f32 to vector<8x384xf32>
    %526 = arith.addf %525, %524 : vector<8x384xf32>
    %527 = arith.divf %525, %526 : vector<8x384xf32>
    %528 = vector.extract_strided_slice %527 {offsets = [0, 0], sizes = [8, 128], strides = [1, 1]} : vector<8x384xf32> to vector<8x128xf32>
    %529 = vector.extract_strided_slice %527 {offsets = [0, 128], sizes = [8, 128], strides = [1, 1]} : vector<8x384xf32> to vector<8x128xf32>
    %530 = vector.extract_strided_slice %527 {offsets = [0, 256], sizes = [8, 128], strides = [1, 1]} : vector<8x384xf32> to vector<8x128xf32>
    %531 = vector.extract_strided_slice %521 {offsets = [0, 384], sizes = [8, 128], strides = [1, 1]} : vector<8x512xf32> to vector<8x128xf32>
    %532 = math.tanh %531 : vector<8x128xf32>
    %533 = arith.mulf %529, %509 : vector<8x128xf32>
    %534 = arith.mulf %528, %532 : vector<8x128xf32>
    %535 = arith.addf %533, %534 : vector<8x128xf32>
    %536 = math.tanh %535 : vector<8x128xf32>
    %537 = arith.mulf %530, %536 : vector<8x128xf32>
    %538 = arith.index_cast %c2_i32_169 : i32 to index
    %c0_174 = arith.constant 0 : index
    %c0_175 = arith.constant 0 : index
    %539 = vector.load %arg7[%538, %c0_174, %c0_175] : memref<8x8x128xf32, #tpu.memory_space<vmem>>, vector<1x8x128xf32>
    %540 = vector.shape_cast %539 : vector<1x8x128xf32> to vector<8x128xf32>
    %541 = vector.shape_cast %537 : vector<8x128xf32> to vector<1x8x128xf32>
    tpu.vector_store %arg7[%538, %c0_174, %c0_175], %541 {strides = array<i32>} : memref<8x8x128xf32, #tpu.memory_space<vmem>>, vector<1x8x128xf32>,
    %c3_i32_176 = arith.constant 3 : i32
    %542 = arith.index_cast %c3_i32_176 : i32 to index
    %c0_177 = arith.constant 0 : index
    %c0_178 = arith.constant 0 : index
    %543 = vector.load %arg8[%542, %c0_177, %c0_178] : memref<8x8x512xf32, #tpu.memory_space<vmem>>, vector<1x8x512xf32>
    %544 = vector.shape_cast %543 : vector<1x8x512xf32> to vector<8x512xf32>
    %545 = arith.truncf %537 : vector<8x128xf32> to vector<8x128xbf16>
    %cst_179 = arith.constant dense<0.000000e+00> : vector<8x512xf32>
    %546 = tpu.matmul %545, %461, %cst_179 {dimension_numbers = #tpu.dot_dimension_numbers<[1], [0], [0], [1], [0, 0, 1, 1], [], []>} : vector<8x128xbf16>, vector<128x512xbf16>, vector<8x512xf32> -> vector<8x512xf32>
    %547 = arith.addf %544, %546 : vector<8x512xf32>
    %548 = vector.extract_strided_slice %547 {offsets = [0, 0], sizes = [8, 384], strides = [1, 1]} : vector<8x512xf32> to vector<8x384xf32>
    %549 = arith.negf %548 : vector<8x384xf32>
    %550 = math.exp %549 : vector<8x384xf32>
    %cst_180 = arith.constant 1.000000e+00 : f32
    %551 = vector.broadcast %cst_180 : f32 to vector<8x384xf32>
    %552 = arith.addf %551, %550 : vector<8x384xf32>
    %553 = arith.divf %551, %552 : vector<8x384xf32>
    %554 = vector.extract_strided_slice %553 {offsets = [0, 0], sizes = [8, 128], strides = [1, 1]} : vector<8x384xf32> to vector<8x128xf32>
    %555 = vector.extract_strided_slice %553 {offsets = [0, 128], sizes = [8, 128], strides = [1, 1]} : vector<8x384xf32> to vector<8x128xf32>
    %556 = vector.extract_strided_slice %553 {offsets = [0, 256], sizes = [8, 128], strides = [1, 1]} : vector<8x384xf32> to vector<8x128xf32>
    %557 = vector.extract_strided_slice %547 {offsets = [0, 384], sizes = [8, 128], strides = [1, 1]} : vector<8x512xf32> to vector<8x128xf32>
    %558 = math.tanh %557 : vector<8x128xf32>
    %559 = arith.mulf %555, %535 : vector<8x128xf32>
    %560 = arith.mulf %554, %558 : vector<8x128xf32>
    %561 = arith.addf %559, %560 : vector<8x128xf32>
    %562 = math.tanh %561 : vector<8x128xf32>
    %563 = arith.mulf %556, %562 : vector<8x128xf32>
    %564 = arith.index_cast %c3_i32_176 : i32 to index
    %c0_181 = arith.constant 0 : index
    %c0_182 = arith.constant 0 : index
    %565 = vector.load %arg7[%564, %c0_181, %c0_182] : memref<8x8x128xf32, #tpu.memory_space<vmem>>, vector<1x8x128xf32>
    %566 = vector.shape_cast %565 : vector<1x8x128xf32> to vector<8x128xf32>
    %567 = vector.shape_cast %563 : vector<8x128xf32> to vector<1x8x128xf32>
    tpu.vector_store %arg7[%564, %c0_181, %c0_182], %567 {strides = array<i32>} : memref<8x8x128xf32, #tpu.memory_space<vmem>>, vector<1x8x128xf32>,
    %c4_i32_183 = arith.constant 4 : i32
    %568 = arith.index_cast %c4_i32_183 : i32 to index
    %c0_184 = arith.constant 0 : index
    %c0_185 = arith.constant 0 : index
    %569 = vector.load %arg8[%568, %c0_184, %c0_185] : memref<8x8x512xf32, #tpu.memory_space<vmem>>, vector<1x8x512xf32>
    %570 = vector.shape_cast %569 : vector<1x8x512xf32> to vector<8x512xf32>
    %571 = arith.truncf %563 : vector<8x128xf32> to vector<8x128xbf16>
    %cst_186 = arith.constant dense<0.000000e+00> : vector<8x512xf32>
    %572 = tpu.matmul %571, %461, %cst_186 {dimension_numbers = #tpu.dot_dimension_numbers<[1], [0], [0], [1], [0, 0, 1, 1], [], []>} : vector<8x128xbf16>, vector<128x512xbf16>, vector<8x512xf32> -> vector<8x512xf32>
    %573 = arith.addf %570, %572 : vector<8x512xf32>
    %574 = vector.extract_strided_slice %573 {offsets = [0, 0], sizes = [8, 384], strides = [1, 1]} : vector<8x512xf32> to vector<8x384xf32>
    %575 = arith.negf %574 : vector<8x384xf32>
    %576 = math.exp %575 : vector<8x384xf32>
    %cst_187 = arith.constant 1.000000e+00 : f32
    %577 = vector.broadcast %cst_187 : f32 to vector<8x384xf32>
    %578 = arith.addf %577, %576 : vector<8x384xf32>
    %579 = arith.divf %577, %578 : vector<8x384xf32>
    %580 = vector.extract_strided_slice %579 {offsets = [0, 0], sizes = [8, 128], strides = [1, 1]} : vector<8x384xf32> to vector<8x128xf32>
    %581 = vector.extract_strided_slice %579 {offsets = [0, 128], sizes = [8, 128], strides = [1, 1]} : vector<8x384xf32> to vector<8x128xf32>
    %582 = vector.extract_strided_slice %579 {offsets = [0, 256], sizes = [8, 128], strides = [1, 1]} : vector<8x384xf32> to vector<8x128xf32>
    %583 = vector.extract_strided_slice %573 {offsets = [0, 384], sizes = [8, 128], strides = [1, 1]} : vector<8x512xf32> to vector<8x128xf32>
    %584 = math.tanh %583 : vector<8x128xf32>
    %585 = arith.mulf %581, %561 : vector<8x128xf32>
    %586 = arith.mulf %580, %584 : vector<8x128xf32>
    %587 = arith.addf %585, %586 : vector<8x128xf32>
    %588 = math.tanh %587 : vector<8x128xf32>
    %589 = arith.mulf %582, %588 : vector<8x128xf32>
    %590 = arith.index_cast %c4_i32_183 : i32 to index
    %c0_188 = arith.constant 0 : index
    %c0_189 = arith.constant 0 : index
    %591 = vector.load %arg7[%590, %c0_188, %c0_189] : memref<8x8x128xf32, #tpu.memory_space<vmem>>, vector<1x8x128xf32>
    %592 = vector.shape_cast %591 : vector<1x8x128xf32> to vector<8x128xf32>
    %593 = vector.shape_cast %589 : vector<8x128xf32> to vector<1x8x128xf32>
    tpu.vector_store %arg7[%590, %c0_188, %c0_189], %593 {strides = array<i32>} : memref<8x8x128xf32, #tpu.memory_space<vmem>>, vector<1x8x128xf32>,
    %c5_i32_190 = arith.constant 5 : i32
    %594 = arith.index_cast %c5_i32_190 : i32 to index
    %c0_191 = arith.constant 0 : index
    %c0_192 = arith.constant 0 : index
    %595 = vector.load %arg8[%594, %c0_191, %c0_192] : memref<8x8x512xf32, #tpu.memory_space<vmem>>, vector<1x8x512xf32>
    %596 = vector.shape_cast %595 : vector<1x8x512xf32> to vector<8x512xf32>
    %597 = arith.truncf %589 : vector<8x128xf32> to vector<8x128xbf16>
    %cst_193 = arith.constant dense<0.000000e+00> : vector<8x512xf32>
    %598 = tpu.matmul %597, %461, %cst_193 {dimension_numbers = #tpu.dot_dimension_numbers<[1], [0], [0], [1], [0, 0, 1, 1], [], []>} : vector<8x128xbf16>, vector<128x512xbf16>, vector<8x512xf32> -> vector<8x512xf32>
    %599 = arith.addf %596, %598 : vector<8x512xf32>
    %600 = vector.extract_strided_slice %599 {offsets = [0, 0], sizes = [8, 384], strides = [1, 1]} : vector<8x512xf32> to vector<8x384xf32>
    %601 = arith.negf %600 : vector<8x384xf32>
    %602 = math.exp %601 : vector<8x384xf32>
    %cst_194 = arith.constant 1.000000e+00 : f32
    %603 = vector.broadcast %cst_194 : f32 to vector<8x384xf32>
    %604 = arith.addf %603, %602 : vector<8x384xf32>
    %605 = arith.divf %603, %604 : vector<8x384xf32>
    %606 = vector.extract_strided_slice %605 {offsets = [0, 0], sizes = [8, 128], strides = [1, 1]} : vector<8x384xf32> to vector<8x128xf32>
    %607 = vector.extract_strided_slice %605 {offsets = [0, 128], sizes = [8, 128], strides = [1, 1]} : vector<8x384xf32> to vector<8x128xf32>
    %608 = vector.extract_strided_slice %605 {offsets = [0, 256], sizes = [8, 128], strides = [1, 1]} : vector<8x384xf32> to vector<8x128xf32>
    %609 = vector.extract_strided_slice %599 {offsets = [0, 384], sizes = [8, 128], strides = [1, 1]} : vector<8x512xf32> to vector<8x128xf32>
    %610 = math.tanh %609 : vector<8x128xf32>
    %611 = arith.mulf %607, %587 : vector<8x128xf32>
    %612 = arith.mulf %606, %610 : vector<8x128xf32>
    %613 = arith.addf %611, %612 : vector<8x128xf32>
    %614 = math.tanh %613 : vector<8x128xf32>
    %615 = arith.mulf %608, %614 : vector<8x128xf32>
    %616 = arith.index_cast %c5_i32_190 : i32 to index
    %c0_195 = arith.constant 0 : index
    %c0_196 = arith.constant 0 : index
    %617 = vector.load %arg7[%616, %c0_195, %c0_196] : memref<8x8x128xf32, #tpu.memory_space<vmem>>, vector<1x8x128xf32>
    %618 = vector.shape_cast %617 : vector<1x8x128xf32> to vector<8x128xf32>
    %619 = vector.shape_cast %615 : vector<8x128xf32> to vector<1x8x128xf32>
    tpu.vector_store %arg7[%616, %c0_195, %c0_196], %619 {strides = array<i32>} : memref<8x8x128xf32, #tpu.memory_space<vmem>>, vector<1x8x128xf32>,
    %c6_i32_197 = arith.constant 6 : i32
    %620 = arith.index_cast %c6_i32_197 : i32 to index
    %c0_198 = arith.constant 0 : index
    %c0_199 = arith.constant 0 : index
    %621 = vector.load %arg8[%620, %c0_198, %c0_199] : memref<8x8x512xf32, #tpu.memory_space<vmem>>, vector<1x8x512xf32>
    %622 = vector.shape_cast %621 : vector<1x8x512xf32> to vector<8x512xf32>
    %623 = arith.truncf %615 : vector<8x128xf32> to vector<8x128xbf16>
    %cst_200 = arith.constant dense<0.000000e+00> : vector<8x512xf32>
    %624 = tpu.matmul %623, %461, %cst_200 {dimension_numbers = #tpu.dot_dimension_numbers<[1], [0], [0], [1], [0, 0, 1, 1], [], []>} : vector<8x128xbf16>, vector<128x512xbf16>, vector<8x512xf32> -> vector<8x512xf32>
    %625 = arith.addf %622, %624 : vector<8x512xf32>
    %626 = vector.extract_strided_slice %625 {offsets = [0, 0], sizes = [8, 384], strides = [1, 1]} : vector<8x512xf32> to vector<8x384xf32>
    %627 = arith.negf %626 : vector<8x384xf32>
    %628 = math.exp %627 : vector<8x384xf32>
    %cst_201 = arith.constant 1.000000e+00 : f32
    %629 = vector.broadcast %cst_201 : f32 to vector<8x384xf32>
    %630 = arith.addf %629, %628 : vector<8x384xf32>
    %631 = arith.divf %629, %630 : vector<8x384xf32>
    %632 = vector.extract_strided_slice %631 {offsets = [0, 0], sizes = [8, 128], strides = [1, 1]} : vector<8x384xf32> to vector<8x128xf32>
    %633 = vector.extract_strided_slice %631 {offsets = [0, 128], sizes = [8, 128], strides = [1, 1]} : vector<8x384xf32> to vector<8x128xf32>
    %634 = vector.extract_strided_slice %631 {offsets = [0, 256], sizes = [8, 128], strides = [1, 1]} : vector<8x384xf32> to vector<8x128xf32>
    %635 = vector.extract_strided_slice %625 {offsets = [0, 384], sizes = [8, 128], strides = [1, 1]} : vector<8x512xf32> to vector<8x128xf32>
    %636 = math.tanh %635 : vector<8x128xf32>
    %637 = arith.mulf %633, %613 : vector<8x128xf32>
    %638 = arith.mulf %632, %636 : vector<8x128xf32>
    %639 = arith.addf %637, %638 : vector<8x128xf32>
    %640 = math.tanh %639 : vector<8x128xf32>
    %641 = arith.mulf %634, %640 : vector<8x128xf32>
    %642 = arith.index_cast %c6_i32_197 : i32 to index
    %c0_202 = arith.constant 0 : index
    %c0_203 = arith.constant 0 : index
    %643 = vector.load %arg7[%642, %c0_202, %c0_203] : memref<8x8x128xf32, #tpu.memory_space<vmem>>, vector<1x8x128xf32>
    %644 = vector.shape_cast %643 : vector<1x8x128xf32> to vector<8x128xf32>
    %645 = vector.shape_cast %641 : vector<8x128xf32> to vector<1x8x128xf32>
    tpu.vector_store %arg7[%642, %c0_202, %c0_203], %645 {strides = array<i32>} : memref<8x8x128xf32, #tpu.memory_space<vmem>>, vector<1x8x128xf32>,
    %c7_i32_204 = arith.constant 7 : i32
    %646 = arith.index_cast %c7_i32_204 : i32 to index
    %c0_205 = arith.constant 0 : index
    %c0_206 = arith.constant 0 : index
    %647 = vector.load %arg8[%646, %c0_205, %c0_206] : memref<8x8x512xf32, #tpu.memory_space<vmem>>, vector<1x8x512xf32>
    %648 = vector.shape_cast %647 : vector<1x8x512xf32> to vector<8x512xf32>
    %649 = arith.truncf %641 : vector<8x128xf32> to vector<8x128xbf16>
    %cst_207 = arith.constant dense<0.000000e+00> : vector<8x512xf32>
    %650 = tpu.matmul %649, %461, %cst_207 {dimension_numbers = #tpu.dot_dimension_numbers<[1], [0], [0], [1], [0, 0, 1, 1], [], []>} : vector<8x128xbf16>, vector<128x512xbf16>, vector<8x512xf32> -> vector<8x512xf32>
    %651 = arith.addf %648, %650 : vector<8x512xf32>
    %652 = vector.extract_strided_slice %651 {offsets = [0, 0], sizes = [8, 384], strides = [1, 1]} : vector<8x512xf32> to vector<8x384xf32>
    %653 = arith.negf %652 : vector<8x384xf32>
    %654 = math.exp %653 : vector<8x384xf32>
    %cst_208 = arith.constant 1.000000e+00 : f32
    %655 = vector.broadcast %cst_208 : f32 to vector<8x384xf32>
    %656 = arith.addf %655, %654 : vector<8x384xf32>
    %657 = arith.divf %655, %656 : vector<8x384xf32>
    %658 = vector.extract_strided_slice %657 {offsets = [0, 0], sizes = [8, 128], strides = [1, 1]} : vector<8x384xf32> to vector<8x128xf32>
    %659 = vector.extract_strided_slice %657 {offsets = [0, 128], sizes = [8, 128], strides = [1, 1]} : vector<8x384xf32> to vector<8x128xf32>
    %660 = vector.extract_strided_slice %657 {offsets = [0, 256], sizes = [8, 128], strides = [1, 1]} : vector<8x384xf32> to vector<8x128xf32>
    %661 = vector.extract_strided_slice %651 {offsets = [0, 384], sizes = [8, 128], strides = [1, 1]} : vector<8x512xf32> to vector<8x128xf32>
    %662 = math.tanh %661 : vector<8x128xf32>
    %663 = arith.mulf %659, %639 : vector<8x128xf32>
    %664 = arith.mulf %658, %662 : vector<8x128xf32>
    %665 = arith.addf %663, %664 : vector<8x128xf32>
    %666 = math.tanh %665 : vector<8x128xf32>
    %667 = arith.mulf %660, %666 : vector<8x128xf32>
    %668 = arith.index_cast %c7_i32_204 : i32 to index
    %c0_209 = arith.constant 0 : index
    %c0_210 = arith.constant 0 : index
    %669 = vector.load %arg7[%668, %c0_209, %c0_210] : memref<8x8x128xf32, #tpu.memory_space<vmem>>, vector<1x8x128xf32>
    %670 = vector.shape_cast %669 : vector<1x8x128xf32> to vector<8x128xf32>
    %671 = vector.shape_cast %667 : vector<8x128xf32> to vector<1x8x128xf32>
    tpu.vector_store %arg7[%668, %c0_209, %c0_210], %671 {strides = array<i32>} : memref<8x8x128xf32, #tpu.memory_space<vmem>>, vector<1x8x128xf32>,
    %c8_i32_211 = arith.constant 8 : i32
    %c0_212 = arith.constant 0 : index
    %c0_213 = arith.constant 0 : index
    %c0_214 = arith.constant 0 : index
    %672 = vector.load %arg7[%c0_212, %c0_213, %c0_214] : memref<8x8x128xf32, #tpu.memory_space<vmem>>, vector<8x8x128xf32>
    %673 = vector.shape_cast %672 : vector<8x8x128xf32> to vector<64x128xf32>
    %674 = arith.truncf %673 : vector<64x128xf32> to vector<64x128xbf16>
    %c3 = arith.constant 3 : index
    %c0_215 = arith.constant 0 : index
    %c0_216 = arith.constant 0 : index
    %675 = vector.load %arg1[%c3, %c0_215, %c0_216] : memref<4x128x512xbf16, #tpu.memory_space<vmem>>, vector<1x128x512xbf16>
    %676 = vector.shape_cast %675 : vector<1x128x512xbf16> to vector<128x512xbf16>
    %cst_217 = arith.constant dense<0.000000e+00> : vector<64x512xf32>
    %677 = tpu.matmul %674, %676, %cst_217 {dimension_numbers = #tpu.dot_dimension_numbers<[1], [0], [0], [1], [0, 0, 1, 1], [], []>} : vector<64x128xbf16>, vector<128x512xbf16>, vector<64x512xf32> -> vector<64x512xf32>
    %c3_218 = arith.constant 3 : index
    %c0_219 = arith.constant 0 : index
    %c0_220 = arith.constant 0 : index
    %678 = vector.load %arg3[%c3_218, %c0_219, %c0_220] : memref<4x1x512xf32, #tpu.memory_space<vmem>>, vector<1x1x512xf32>
    %679 = vector.shape_cast %678 : vector<1x1x512xf32> to vector<1x512xf32>
    %680 = vector.broadcast %679 : vector<1x512xf32> to vector<64x512xf32>
    %681 = arith.addf %677, %680 : vector<64x512xf32>
    %682 = vector.shape_cast %681 : vector<64x512xf32> to vector<8x8x512xf32>
    %c0_221 = arith.constant 0 : index
    %c0_222 = arith.constant 0 : index
    %c0_223 = arith.constant 0 : index
    %683 = vector.load %arg8[%c0_221, %c0_222, %c0_223] : memref<8x8x512xf32, #tpu.memory_space<vmem>>, vector<8x8x512xf32>
    tpu.vector_store %arg8[%c0_221, %c0_222, %c0_223], %682 {strides = array<i32>} : memref<8x8x512xf32, #tpu.memory_space<vmem>>, vector<8x8x512xf32>,
    %c3_224 = arith.constant 3 : index
    %c0_225 = arith.constant 0 : index
    %c0_226 = arith.constant 0 : index
    %684 = vector.load %arg2[%c3_224, %c0_225, %c0_226] : memref<4x128x512xbf16, #tpu.memory_space<vmem>>, vector<1x128x512xbf16>
    %685 = vector.shape_cast %684 : vector<1x128x512xbf16> to vector<128x512xbf16>
    %cst_227 = arith.constant 0.000000e+00 : f32
    %686 = vector.broadcast %cst_227 : f32 to vector<8x128xf32>
    %cst_228 = arith.constant 0.000000e+00 : f32
    %687 = vector.broadcast %cst_228 : f32 to vector<8x128xf32>
    %c0_i32_229 = arith.constant 0 : i32
    %688 = arith.index_cast %c0_i32_229 : i32 to index
    %c0_230 = arith.constant 0 : index
    %c0_231 = arith.constant 0 : index
    %689 = vector.load %arg8[%688, %c0_230, %c0_231] : memref<8x8x512xf32, #tpu.memory_space<vmem>>, vector<1x8x512xf32>
    %690 = vector.shape_cast %689 : vector<1x8x512xf32> to vector<8x512xf32>
    %691 = arith.truncf %686 : vector<8x128xf32> to vector<8x128xbf16>
    %cst_232 = arith.constant dense<0.000000e+00> : vector<8x512xf32>
    %692 = tpu.matmul %691, %685, %cst_232 {dimension_numbers = #tpu.dot_dimension_numbers<[1], [0], [0], [1], [0, 0, 1, 1], [], []>} : vector<8x128xbf16>, vector<128x512xbf16>, vector<8x512xf32> -> vector<8x512xf32>
    %693 = arith.addf %690, %692 : vector<8x512xf32>
    %694 = vector.extract_strided_slice %693 {offsets = [0, 0], sizes = [8, 384], strides = [1, 1]} : vector<8x512xf32> to vector<8x384xf32>
    %695 = arith.negf %694 : vector<8x384xf32>
    %696 = math.exp %695 : vector<8x384xf32>
    %cst_233 = arith.constant 1.000000e+00 : f32
    %697 = vector.broadcast %cst_233 : f32 to vector<8x384xf32>
    %698 = arith.addf %697, %696 : vector<8x384xf32>
    %699 = arith.divf %697, %698 : vector<8x384xf32>
    %700 = vector.extract_strided_slice %699 {offsets = [0, 0], sizes = [8, 128], strides = [1, 1]} : vector<8x384xf32> to vector<8x128xf32>
    %701 = vector.extract_strided_slice %699 {offsets = [0, 128], sizes = [8, 128], strides = [1, 1]} : vector<8x384xf32> to vector<8x128xf32>
    %702 = vector.extract_strided_slice %699 {offsets = [0, 256], sizes = [8, 128], strides = [1, 1]} : vector<8x384xf32> to vector<8x128xf32>
    %703 = vector.extract_strided_slice %693 {offsets = [0, 384], sizes = [8, 128], strides = [1, 1]} : vector<8x512xf32> to vector<8x128xf32>
    %704 = math.tanh %703 : vector<8x128xf32>
    %705 = arith.mulf %701, %687 : vector<8x128xf32>
    %706 = arith.mulf %700, %704 : vector<8x128xf32>
    %707 = arith.addf %705, %706 : vector<8x128xf32>
    %708 = math.tanh %707 : vector<8x128xf32>
    %709 = arith.mulf %702, %708 : vector<8x128xf32>
    %710 = arith.index_cast %c0_i32_229 : i32 to index
    %c0_234 = arith.constant 0 : index
    %c0_235 = arith.constant 0 : index
    %711 = vector.load %arg7[%710, %c0_234, %c0_235] : memref<8x8x128xf32, #tpu.memory_space<vmem>>, vector<1x8x128xf32>
    %712 = vector.shape_cast %711 : vector<1x8x128xf32> to vector<8x128xf32>
    %713 = vector.shape_cast %709 : vector<8x128xf32> to vector<1x8x128xf32>
    tpu.vector_store %arg7[%710, %c0_234, %c0_235], %713 {strides = array<i32>} : memref<8x8x128xf32, #tpu.memory_space<vmem>>, vector<1x8x128xf32>,
    %c1_i32_236 = arith.constant 1 : i32
    %714 = arith.index_cast %c1_i32_236 : i32 to index
    %c0_237 = arith.constant 0 : index
    %c0_238 = arith.constant 0 : index
    %715 = vector.load %arg8[%714, %c0_237, %c0_238] : memref<8x8x512xf32, #tpu.memory_space<vmem>>, vector<1x8x512xf32>
    %716 = vector.shape_cast %715 : vector<1x8x512xf32> to vector<8x512xf32>
    %717 = arith.truncf %709 : vector<8x128xf32> to vector<8x128xbf16>
    %cst_239 = arith.constant dense<0.000000e+00> : vector<8x512xf32>
    %718 = tpu.matmul %717, %685, %cst_239 {dimension_numbers = #tpu.dot_dimension_numbers<[1], [0], [0], [1], [0, 0, 1, 1], [], []>} : vector<8x128xbf16>, vector<128x512xbf16>, vector<8x512xf32> -> vector<8x512xf32>
    %719 = arith.addf %716, %718 : vector<8x512xf32>
    %720 = vector.extract_strided_slice %719 {offsets = [0, 0], sizes = [8, 384], strides = [1, 1]} : vector<8x512xf32> to vector<8x384xf32>
    %721 = arith.negf %720 : vector<8x384xf32>
    %722 = math.exp %721 : vector<8x384xf32>
    %cst_240 = arith.constant 1.000000e+00 : f32
    %723 = vector.broadcast %cst_240 : f32 to vector<8x384xf32>
    %724 = arith.addf %723, %722 : vector<8x384xf32>
    %725 = arith.divf %723, %724 : vector<8x384xf32>
    %726 = vector.extract_strided_slice %725 {offsets = [0, 0], sizes = [8, 128], strides = [1, 1]} : vector<8x384xf32> to vector<8x128xf32>
    %727 = vector.extract_strided_slice %725 {offsets = [0, 128], sizes = [8, 128], strides = [1, 1]} : vector<8x384xf32> to vector<8x128xf32>
    %728 = vector.extract_strided_slice %725 {offsets = [0, 256], sizes = [8, 128], strides = [1, 1]} : vector<8x384xf32> to vector<8x128xf32>
    %729 = vector.extract_strided_slice %719 {offsets = [0, 384], sizes = [8, 128], strides = [1, 1]} : vector<8x512xf32> to vector<8x128xf32>
    %730 = math.tanh %729 : vector<8x128xf32>
    %731 = arith.mulf %727, %707 : vector<8x128xf32>
    %732 = arith.mulf %726, %730 : vector<8x128xf32>
    %733 = arith.addf %731, %732 : vector<8x128xf32>
    %734 = math.tanh %733 : vector<8x128xf32>
    %735 = arith.mulf %728, %734 : vector<8x128xf32>
    %736 = arith.index_cast %c1_i32_236 : i32 to index
    %c0_241 = arith.constant 0 : index
    %c0_242 = arith.constant 0 : index
    %737 = vector.load %arg7[%736, %c0_241, %c0_242] : memref<8x8x128xf32, #tpu.memory_space<vmem>>, vector<1x8x128xf32>
    %738 = vector.shape_cast %737 : vector<1x8x128xf32> to vector<8x128xf32>
    %739 = vector.shape_cast %735 : vector<8x128xf32> to vector<1x8x128xf32>
    tpu.vector_store %arg7[%736, %c0_241, %c0_242], %739 {strides = array<i32>} : memref<8x8x128xf32, #tpu.memory_space<vmem>>, vector<1x8x128xf32>,
    %c2_i32_243 = arith.constant 2 : i32
    %740 = arith.index_cast %c2_i32_243 : i32 to index
    %c0_244 = arith.constant 0 : index
    %c0_245 = arith.constant 0 : index
    %741 = vector.load %arg8[%740, %c0_244, %c0_245] : memref<8x8x512xf32, #tpu.memory_space<vmem>>, vector<1x8x512xf32>
    %742 = vector.shape_cast %741 : vector<1x8x512xf32> to vector<8x512xf32>
    %743 = arith.truncf %735 : vector<8x128xf32> to vector<8x128xbf16>
    %cst_246 = arith.constant dense<0.000000e+00> : vector<8x512xf32>
    %744 = tpu.matmul %743, %685, %cst_246 {dimension_numbers = #tpu.dot_dimension_numbers<[1], [0], [0], [1], [0, 0, 1, 1], [], []>} : vector<8x128xbf16>, vector<128x512xbf16>, vector<8x512xf32> -> vector<8x512xf32>
    %745 = arith.addf %742, %744 : vector<8x512xf32>
    %746 = vector.extract_strided_slice %745 {offsets = [0, 0], sizes = [8, 384], strides = [1, 1]} : vector<8x512xf32> to vector<8x384xf32>
    %747 = arith.negf %746 : vector<8x384xf32>
    %748 = math.exp %747 : vector<8x384xf32>
    %cst_247 = arith.constant 1.000000e+00 : f32
    %749 = vector.broadcast %cst_247 : f32 to vector<8x384xf32>
    %750 = arith.addf %749, %748 : vector<8x384xf32>
    %751 = arith.divf %749, %750 : vector<8x384xf32>
    %752 = vector.extract_strided_slice %751 {offsets = [0, 0], sizes = [8, 128], strides = [1, 1]} : vector<8x384xf32> to vector<8x128xf32>
    %753 = vector.extract_strided_slice %751 {offsets = [0, 128], sizes = [8, 128], strides = [1, 1]} : vector<8x384xf32> to vector<8x128xf32>
    %754 = vector.extract_strided_slice %751 {offsets = [0, 256], sizes = [8, 128], strides = [1, 1]} : vector<8x384xf32> to vector<8x128xf32>
    %755 = vector.extract_strided_slice %745 {offsets = [0, 384], sizes = [8, 128], strides = [1, 1]} : vector<8x512xf32> to vector<8x128xf32>
    %756 = math.tanh %755 : vector<8x128xf32>
    %757 = arith.mulf %753, %733 : vector<8x128xf32>
    %758 = arith.mulf %752, %756 : vector<8x128xf32>
    %759 = arith.addf %757, %758 : vector<8x128xf32>
    %760 = math.tanh %759 : vector<8x128xf32>
    %761 = arith.mulf %754, %760 : vector<8x128xf32>
    %762 = arith.index_cast %c2_i32_243 : i32 to index
    %c0_248 = arith.constant 0 : index
    %c0_249 = arith.constant 0 : index
    %763 = vector.load %arg7[%762, %c0_248, %c0_249] : memref<8x8x128xf32, #tpu.memory_space<vmem>>, vector<1x8x128xf32>
    %764 = vector.shape_cast %763 : vector<1x8x128xf32> to vector<8x128xf32>
    %765 = vector.shape_cast %761 : vector<8x128xf32> to vector<1x8x128xf32>
    tpu.vector_store %arg7[%762, %c0_248, %c0_249], %765 {strides = array<i32>} : memref<8x8x128xf32, #tpu.memory_space<vmem>>, vector<1x8x128xf32>,
    %c3_i32_250 = arith.constant 3 : i32
    %766 = arith.index_cast %c3_i32_250 : i32 to index
    %c0_251 = arith.constant 0 : index
    %c0_252 = arith.constant 0 : index
    %767 = vector.load %arg8[%766, %c0_251, %c0_252] : memref<8x8x512xf32, #tpu.memory_space<vmem>>, vector<1x8x512xf32>
    %768 = vector.shape_cast %767 : vector<1x8x512xf32> to vector<8x512xf32>
    %769 = arith.truncf %761 : vector<8x128xf32> to vector<8x128xbf16>
    %cst_253 = arith.constant dense<0.000000e+00> : vector<8x512xf32>
    %770 = tpu.matmul %769, %685, %cst_253 {dimension_numbers = #tpu.dot_dimension_numbers<[1], [0], [0], [1], [0, 0, 1, 1], [], []>} : vector<8x128xbf16>, vector<128x512xbf16>, vector<8x512xf32> -> vector<8x512xf32>
    %771 = arith.addf %768, %770 : vector<8x512xf32>
    %772 = vector.extract_strided_slice %771 {offsets = [0, 0], sizes = [8, 384], strides = [1, 1]} : vector<8x512xf32> to vector<8x384xf32>
    %773 = arith.negf %772 : vector<8x384xf32>
    %774 = math.exp %773 : vector<8x384xf32>
    %cst_254 = arith.constant 1.000000e+00 : f32
    %775 = vector.broadcast %cst_254 : f32 to vector<8x384xf32>
    %776 = arith.addf %775, %774 : vector<8x384xf32>
    %777 = arith.divf %775, %776 : vector<8x384xf32>
    %778 = vector.extract_strided_slice %777 {offsets = [0, 0], sizes = [8, 128], strides = [1, 1]} : vector<8x384xf32> to vector<8x128xf32>
    %779 = vector.extract_strided_slice %777 {offsets = [0, 128], sizes = [8, 128], strides = [1, 1]} : vector<8x384xf32> to vector<8x128xf32>
    %780 = vector.extract_strided_slice %777 {offsets = [0, 256], sizes = [8, 128], strides = [1, 1]} : vector<8x384xf32> to vector<8x128xf32>
    %781 = vector.extract_strided_slice %771 {offsets = [0, 384], sizes = [8, 128], strides = [1, 1]} : vector<8x512xf32> to vector<8x128xf32>
    %782 = math.tanh %781 : vector<8x128xf32>
    %783 = arith.mulf %779, %759 : vector<8x128xf32>
    %784 = arith.mulf %778, %782 : vector<8x128xf32>
    %785 = arith.addf %783, %784 : vector<8x128xf32>
    %786 = math.tanh %785 : vector<8x128xf32>
    %787 = arith.mulf %780, %786 : vector<8x128xf32>
    %788 = arith.index_cast %c3_i32_250 : i32 to index
    %c0_255 = arith.constant 0 : index
    %c0_256 = arith.constant 0 : index
    %789 = vector.load %arg7[%788, %c0_255, %c0_256] : memref<8x8x128xf32, #tpu.memory_space<vmem>>, vector<1x8x128xf32>
    %790 = vector.shape_cast %789 : vector<1x8x128xf32> to vector<8x128xf32>
    %791 = vector.shape_cast %787 : vector<8x128xf32> to vector<1x8x128xf32>
    tpu.vector_store %arg7[%788, %c0_255, %c0_256], %791 {strides = array<i32>} : memref<8x8x128xf32, #tpu.memory_space<vmem>>, vector<1x8x128xf32>,
    %c4_i32_257 = arith.constant 4 : i32
    %792 = arith.index_cast %c4_i32_257 : i32 to index
    %c0_258 = arith.constant 0 : index
    %c0_259 = arith.constant 0 : index
    %793 = vector.load %arg8[%792, %c0_258, %c0_259] : memref<8x8x512xf32, #tpu.memory_space<vmem>>, vector<1x8x512xf32>
    %794 = vector.shape_cast %793 : vector<1x8x512xf32> to vector<8x512xf32>
    %795 = arith.truncf %787 : vector<8x128xf32> to vector<8x128xbf16>
    %cst_260 = arith.constant dense<0.000000e+00> : vector<8x512xf32>
    %796 = tpu.matmul %795, %685, %cst_260 {dimension_numbers = #tpu.dot_dimension_numbers<[1], [0], [0], [1], [0, 0, 1, 1], [], []>} : vector<8x128xbf16>, vector<128x512xbf16>, vector<8x512xf32> -> vector<8x512xf32>
    %797 = arith.addf %794, %796 : vector<8x512xf32>
    %798 = vector.extract_strided_slice %797 {offsets = [0, 0], sizes = [8, 384], strides = [1, 1]} : vector<8x512xf32> to vector<8x384xf32>
    %799 = arith.negf %798 : vector<8x384xf32>
    %800 = math.exp %799 : vector<8x384xf32>
    %cst_261 = arith.constant 1.000000e+00 : f32
    %801 = vector.broadcast %cst_261 : f32 to vector<8x384xf32>
    %802 = arith.addf %801, %800 : vector<8x384xf32>
    %803 = arith.divf %801, %802 : vector<8x384xf32>
    %804 = vector.extract_strided_slice %803 {offsets = [0, 0], sizes = [8, 128], strides = [1, 1]} : vector<8x384xf32> to vector<8x128xf32>
    %805 = vector.extract_strided_slice %803 {offsets = [0, 128], sizes = [8, 128], strides = [1, 1]} : vector<8x384xf32> to vector<8x128xf32>
    %806 = vector.extract_strided_slice %803 {offsets = [0, 256], sizes = [8, 128], strides = [1, 1]} : vector<8x384xf32> to vector<8x128xf32>
    %807 = vector.extract_strided_slice %797 {offsets = [0, 384], sizes = [8, 128], strides = [1, 1]} : vector<8x512xf32> to vector<8x128xf32>
    %808 = math.tanh %807 : vector<8x128xf32>
    %809 = arith.mulf %805, %785 : vector<8x128xf32>
    %810 = arith.mulf %804, %808 : vector<8x128xf32>
    %811 = arith.addf %809, %810 : vector<8x128xf32>
    %812 = math.tanh %811 : vector<8x128xf32>
    %813 = arith.mulf %806, %812 : vector<8x128xf32>
    %814 = arith.index_cast %c4_i32_257 : i32 to index
    %c0_262 = arith.constant 0 : index
    %c0_263 = arith.constant 0 : index
    %815 = vector.load %arg7[%814, %c0_262, %c0_263] : memref<8x8x128xf32, #tpu.memory_space<vmem>>, vector<1x8x128xf32>
    %816 = vector.shape_cast %815 : vector<1x8x128xf32> to vector<8x128xf32>
    %817 = vector.shape_cast %813 : vector<8x128xf32> to vector<1x8x128xf32>
    tpu.vector_store %arg7[%814, %c0_262, %c0_263], %817 {strides = array<i32>} : memref<8x8x128xf32, #tpu.memory_space<vmem>>, vector<1x8x128xf32>,
    %c5_i32_264 = arith.constant 5 : i32
    %818 = arith.index_cast %c5_i32_264 : i32 to index
    %c0_265 = arith.constant 0 : index
    %c0_266 = arith.constant 0 : index
    %819 = vector.load %arg8[%818, %c0_265, %c0_266] : memref<8x8x512xf32, #tpu.memory_space<vmem>>, vector<1x8x512xf32>
    %820 = vector.shape_cast %819 : vector<1x8x512xf32> to vector<8x512xf32>
    %821 = arith.truncf %813 : vector<8x128xf32> to vector<8x128xbf16>
    %cst_267 = arith.constant dense<0.000000e+00> : vector<8x512xf32>
    %822 = tpu.matmul %821, %685, %cst_267 {dimension_numbers = #tpu.dot_dimension_numbers<[1], [0], [0], [1], [0, 0, 1, 1], [], []>} : vector<8x128xbf16>, vector<128x512xbf16>, vector<8x512xf32> -> vector<8x512xf32>
    %823 = arith.addf %820, %822 : vector<8x512xf32>
    %824 = vector.extract_strided_slice %823 {offsets = [0, 0], sizes = [8, 384], strides = [1, 1]} : vector<8x512xf32> to vector<8x384xf32>
    %825 = arith.negf %824 : vector<8x384xf32>
    %826 = math.exp %825 : vector<8x384xf32>
    %cst_268 = arith.constant 1.000000e+00 : f32
    %827 = vector.broadcast %cst_268 : f32 to vector<8x384xf32>
    %828 = arith.addf %827, %826 : vector<8x384xf32>
    %829 = arith.divf %827, %828 : vector<8x384xf32>
    %830 = vector.extract_strided_slice %829 {offsets = [0, 0], sizes = [8, 128], strides = [1, 1]} : vector<8x384xf32> to vector<8x128xf32>
    %831 = vector.extract_strided_slice %829 {offsets = [0, 128], sizes = [8, 128], strides = [1, 1]} : vector<8x384xf32> to vector<8x128xf32>
    %832 = vector.extract_strided_slice %829 {offsets = [0, 256], sizes = [8, 128], strides = [1, 1]} : vector<8x384xf32> to vector<8x128xf32>
    %833 = vector.extract_strided_slice %823 {offsets = [0, 384], sizes = [8, 128], strides = [1, 1]} : vector<8x512xf32> to vector<8x128xf32>
    %834 = math.tanh %833 : vector<8x128xf32>
    %835 = arith.mulf %831, %811 : vector<8x128xf32>
    %836 = arith.mulf %830, %834 : vector<8x128xf32>
    %837 = arith.addf %835, %836 : vector<8x128xf32>
    %838 = math.tanh %837 : vector<8x128xf32>
    %839 = arith.mulf %832, %838 : vector<8x128xf32>
    %840 = arith.index_cast %c5_i32_264 : i32 to index
    %c0_269 = arith.constant 0 : index
    %c0_270 = arith.constant 0 : index
    %841 = vector.load %arg7[%840, %c0_269, %c0_270] : memref<8x8x128xf32, #tpu.memory_space<vmem>>, vector<1x8x128xf32>
    %842 = vector.shape_cast %841 : vector<1x8x128xf32> to vector<8x128xf32>
    %843 = vector.shape_cast %839 : vector<8x128xf32> to vector<1x8x128xf32>
    tpu.vector_store %arg7[%840, %c0_269, %c0_270], %843 {strides = array<i32>} : memref<8x8x128xf32, #tpu.memory_space<vmem>>, vector<1x8x128xf32>,
    %c6_i32_271 = arith.constant 6 : i32
    %844 = arith.index_cast %c6_i32_271 : i32 to index
    %c0_272 = arith.constant 0 : index
    %c0_273 = arith.constant 0 : index
    %845 = vector.load %arg8[%844, %c0_272, %c0_273] : memref<8x8x512xf32, #tpu.memory_space<vmem>>, vector<1x8x512xf32>
    %846 = vector.shape_cast %845 : vector<1x8x512xf32> to vector<8x512xf32>
    %847 = arith.truncf %839 : vector<8x128xf32> to vector<8x128xbf16>
    %cst_274 = arith.constant dense<0.000000e+00> : vector<8x512xf32>
    %848 = tpu.matmul %847, %685, %cst_274 {dimension_numbers = #tpu.dot_dimension_numbers<[1], [0], [0], [1], [0, 0, 1, 1], [], []>} : vector<8x128xbf16>, vector<128x512xbf16>, vector<8x512xf32> -> vector<8x512xf32>
    %849 = arith.addf %846, %848 : vector<8x512xf32>
    %850 = vector.extract_strided_slice %849 {offsets = [0, 0], sizes = [8, 384], strides = [1, 1]} : vector<8x512xf32> to vector<8x384xf32>
    %851 = arith.negf %850 : vector<8x384xf32>
    %852 = math.exp %851 : vector<8x384xf32>
    %cst_275 = arith.constant 1.000000e+00 : f32
    %853 = vector.broadcast %cst_275 : f32 to vector<8x384xf32>
    %854 = arith.addf %853, %852 : vector<8x384xf32>
    %855 = arith.divf %853, %854 : vector<8x384xf32>
    %856 = vector.extract_strided_slice %855 {offsets = [0, 0], sizes = [8, 128], strides = [1, 1]} : vector<8x384xf32> to vector<8x128xf32>
    %857 = vector.extract_strided_slice %855 {offsets = [0, 128], sizes = [8, 128], strides = [1, 1]} : vector<8x384xf32> to vector<8x128xf32>
    %858 = vector.extract_strided_slice %855 {offsets = [0, 256], sizes = [8, 128], strides = [1, 1]} : vector<8x384xf32> to vector<8x128xf32>
    %859 = vector.extract_strided_slice %849 {offsets = [0, 384], sizes = [8, 128], strides = [1, 1]} : vector<8x512xf32> to vector<8x128xf32>
    %860 = math.tanh %859 : vector<8x128xf32>
    %861 = arith.mulf %857, %837 : vector<8x128xf32>
    %862 = arith.mulf %856, %860 : vector<8x128xf32>
    %863 = arith.addf %861, %862 : vector<8x128xf32>
    %864 = math.tanh %863 : vector<8x128xf32>
    %865 = arith.mulf %858, %864 : vector<8x128xf32>
    %866 = arith.index_cast %c6_i32_271 : i32 to index
    %c0_276 = arith.constant 0 : index
    %c0_277 = arith.constant 0 : index
    %867 = vector.load %arg7[%866, %c0_276, %c0_277] : memref<8x8x128xf32, #tpu.memory_space<vmem>>, vector<1x8x128xf32>
    %868 = vector.shape_cast %867 : vector<1x8x128xf32> to vector<8x128xf32>
    %869 = vector.shape_cast %865 : vector<8x128xf32> to vector<1x8x128xf32>
    tpu.vector_store %arg7[%866, %c0_276, %c0_277], %869 {strides = array<i32>} : memref<8x8x128xf32, #tpu.memory_space<vmem>>, vector<1x8x128xf32>,
    %c7_i32_278 = arith.constant 7 : i32
    %870 = arith.index_cast %c7_i32_278 : i32 to index
    %c0_279 = arith.constant 0 : index
    %c0_280 = arith.constant 0 : index
    %871 = vector.load %arg8[%870, %c0_279, %c0_280] : memref<8x8x512xf32, #tpu.memory_space<vmem>>, vector<1x8x512xf32>
    %872 = vector.shape_cast %871 : vector<1x8x512xf32> to vector<8x512xf32>
    %873 = arith.truncf %865 : vector<8x128xf32> to vector<8x128xbf16>
    %cst_281 = arith.constant dense<0.000000e+00> : vector<8x512xf32>
    %874 = tpu.matmul %873, %685, %cst_281 {dimension_numbers = #tpu.dot_dimension_numbers<[1], [0], [0], [1], [0, 0, 1, 1], [], []>} : vector<8x128xbf16>, vector<128x512xbf16>, vector<8x512xf32> -> vector<8x512xf32>
    %875 = arith.addf %872, %874 : vector<8x512xf32>
    %876 = vector.extract_strided_slice %875 {offsets = [0, 0], sizes = [8, 384], strides = [1, 1]} : vector<8x512xf32> to vector<8x384xf32>
    %877 = arith.negf %876 : vector<8x384xf32>
    %878 = math.exp %877 : vector<8x384xf32>
    %cst_282 = arith.constant 1.000000e+00 : f32
    %879 = vector.broadcast %cst_282 : f32 to vector<8x384xf32>
    %880 = arith.addf %879, %878 : vector<8x384xf32>
    %881 = arith.divf %879, %880 : vector<8x384xf32>
    %882 = vector.extract_strided_slice %881 {offsets = [0, 0], sizes = [8, 128], strides = [1, 1]} : vector<8x384xf32> to vector<8x128xf32>
    %883 = vector.extract_strided_slice %881 {offsets = [0, 128], sizes = [8, 128], strides = [1, 1]} : vector<8x384xf32> to vector<8x128xf32>
    %884 = vector.extract_strided_slice %881 {offsets = [0, 256], sizes = [8, 128], strides = [1, 1]} : vector<8x384xf32> to vector<8x128xf32>
    %885 = vector.extract_strided_slice %875 {offsets = [0, 384], sizes = [8, 128], strides = [1, 1]} : vector<8x512xf32> to vector<8x128xf32>
    %886 = math.tanh %885 : vector<8x128xf32>
    %887 = arith.mulf %883, %863 : vector<8x128xf32>
    %888 = arith.mulf %882, %886 : vector<8x128xf32>
    %889 = arith.addf %887, %888 : vector<8x128xf32>
    %890 = math.tanh %889 : vector<8x128xf32>
    %891 = arith.mulf %884, %890 : vector<8x128xf32>
    %892 = arith.index_cast %c7_i32_278 : i32 to index
    %c0_283 = arith.constant 0 : index
    %c0_284 = arith.constant 0 : index
    %893 = vector.load %arg7[%892, %c0_283, %c0_284] : memref<8x8x128xf32, #tpu.memory_space<vmem>>, vector<1x8x128xf32>
    %894 = vector.shape_cast %893 : vector<1x8x128xf32> to vector<8x128xf32>
    %895 = vector.shape_cast %891 : vector<8x128xf32> to vector<1x8x128xf32>
    tpu.vector_store %arg7[%892, %c0_283, %c0_284], %895 {strides = array<i32>} : memref<8x8x128xf32, #tpu.memory_space<vmem>>, vector<1x8x128xf32>,
    %c8_i32_285 = arith.constant 8 : i32
    %c0_286 = arith.constant 0 : index
    %c0_287 = arith.constant 0 : index
    %c0_288 = arith.constant 0 : index
    %896 = vector.load %arg7[%c0_286, %c0_287, %c0_288] : memref<8x8x128xf32, #tpu.memory_space<vmem>>, vector<8x8x128xf32>
    %cst_289 = arith.constant dense<0.000000e+00> : vector<8x128xf32>
    %897 = vector.multi_reduction <add>, %896, %cst_289 [0] : vector<8x8x128xf32> to vector<8x128xf32>
    %cst_290 = arith.constant 8.000000e+00 : f32
    %898 = vector.broadcast %cst_290 : f32 to vector<8x128xf32>
    %899 = arith.divf %897, %898 : vector<8x128xf32>
    %c0_291 = arith.constant 0 : index
    %c0_292 = arith.constant 0 : index
    %900 = vector.load %arg4[%c0_291, %c0_292] : memref<128x1xf32, #tpu.memory_space<vmem>>, vector<128x1xf32>
    %cst_293 = arith.constant dense<0.000000e+00> : vector<8x1xf32>
    %901 = tpu.matmul %899, %900, %cst_293 {dimension_numbers = #tpu.dot_dimension_numbers<[1], [0], [0], [1], [0, 0, 1, 1], [], []>} : vector<8x128xf32>, vector<128x1xf32>, vector<8x1xf32> -> vector<8x1xf32>
    %c0_294 = arith.constant 0 : index
    %c0_295 = arith.constant 0 : index
    %902 = vector.load %arg5[%c0_294, %c0_295] : memref<1x1xf32, #tpu.memory_space<vmem>>, vector<1x1xf32>
    %903 = vector.broadcast %902 : vector<1x1xf32> to vector<8x1xf32>
    %904 = arith.addf %901, %903 : vector<8x1xf32>
    %905 = arith.negf %904 : vector<8x1xf32>
    %906 = math.exp %905 : vector<8x1xf32>
    %cst_296 = arith.constant 1.000000e+00 : f32
    %907 = vector.broadcast %cst_296 : f32 to vector<8x1xf32>
    %908 = arith.addf %907, %906 : vector<8x1xf32>
    %909 = arith.divf %907, %908 : vector<8x1xf32>
    %c0_297 = arith.constant 0 : index
    %c0_298 = arith.constant 0 : index
    %910 = vector.load %arg6[%c0_297, %c0_298] : memref<8x1xf32, #tpu.memory_space<vmem>>, vector<8x1xf32>
    tpu.vector_store %arg6[%c0_297, %c0_298], %909 {strides = array<i32>} : memref<8x1xf32, #tpu.memory_space<vmem>>, vector<8x1xf32>,
    return
  }
}

</mosaic_0001>

<llo_original>
// kernel: tpu_custom_call.1
$region0: #{tpu_custom_call.1}
  #allocation0 [shape = 'u32[]', space=smem, size = 0x4, offset = 0x4, fixed_abs, tag = 'smem constant byte address 0x4 - core index']
  #allocation1 [shape = 'u32[144,128]{1,0:T(1,128)}', space=vmem, size = 0x12000, scoped, tag = 'internal scratch']
  #allocation2 [shape = 'f32[8,8,128]{2,1,0:T(8,128)}', space=vmem, size = 0x8000, scoped, tag = 'scratch operand']
  #allocation3 [shape = 'f32[8,8,512]{2,1,0:T(8,128)}', space=vmem, size = 0x20000, scoped, tag = 'scratch operand']
  #allocation4 [shape = 'f32[1,1]{1,0:T(1,128)S(1)}', space=vmem, size = 0x200, scoped, tag = 'scoped memory for tpu_custom_call.1']
  %s0 = inlined_call_operand.vmem [shape: f32[8,8,128], index: 0, kind: input, shape index: {}]
  %s1 = inlined_call_operand.hbm [shape: bf16[4,128,512], index: 1, kind: input, shape index: {}]
  %s2 = inlined_call_operand.hbm [shape: bf16[4,128,512], index: 2, kind: input, shape index: {}]
  %s3 = inlined_call_operand.vmem [shape: f32[4,1,512], index: 3, kind: input, shape index: {}]
  %s4 = inlined_call_operand.vmem [shape: f32[128,1], index: 4, kind: input, shape index: {}]
  %s5 = inlined_call_operand.<no memory space> [shape: f32[1,1], index: 5, kind: input, shape index: {}]
  %s6 = inlined_call_operand.vmem [shape: f32[8,1], index: 6, kind: output, shape index: {}]
  %s7 = sld [smem:[#allocation0]]
  $region42: #{tpu_custom_call.1} parent=0
    _
  %s9 = ssub.s32 1, %s7
  %s10 = scalar_select 0, %s9, %s7
  %v11 = vstv %s5
  %12 = vst [vmem:[#allocation4] sm:$0x1] %v11
  $region1: #{tpu_custom_call.1} parent=0
    #allocation5 [shape = 'u8[524288]{0}', space=vmem, size = 0x80000, scoped, tag = 'input window, operand 1, single buffered']
    #allocation6 [shape = 's32[1]{0}', space=sflag, size = 0x4, scoped, tag = 'scoped memory for tpu_custom_call.1']
    #allocation7 [shape = 'u8[524288]{0}', space=vmem, size = 0x80000, scoped, tag = 'input window, operand 2, single buffered']
    #allocation8 [shape = 's32[1]{0}', space=sflag, size = 0x4, scoped, tag = 'scoped memory for tpu_custom_call.1']
    %13 = vsyncpa [#allocation6], 0
    %14 = vsyncpa [#allocation8], 0
    // Predicated region
    $region2: #{tpu_custom_call.1} parent=1 // pred_check
      _
    $region3: #{tpu_custom_call.1} parent=1 // pred_check_branch
      %16 = sbr.rel (0) target = $region5
    $region4: #{tpu_custom_call.1} parent=1 // pred_region
      _
    $region5: #{tpu_custom_call.1} parent=1 // pred_fallthru
      _
    // Predicated region
    $region6: #{tpu_custom_call.1} parent=1 // pred_check
      _
    $region7: #{tpu_custom_call.1} parent=1 // pred_check_branch
      %18 = sbr.rel (0) target = $region9
    $region8: #{tpu_custom_call.1} parent=1 // pred_region
      %s20 = ssub.s32 16384, 16384
      %21 = vsyncadd [#allocation6], %s20
      %s22 = sshll.u32 [#allocation5], 4
      %s23 = int_to_ptr.vmem [resolvable:$true] %s22
      %28 = dma.hbm_to_vmem [thread:$0]  %s1, 16384, %s23, [#allocation6], 256, 256, 16
    $region9: #{tpu_custom_call.1} parent=1 // pred_fallthru
      _
    // Predicated region
    $region10: #{tpu_custom_call.1} parent=1 // pred_check
      _
    $region11: #{tpu_custom_call.1} parent=1 // pred_check_branch
      %30 = sbr.rel (0) target = $region13
    $region12: #{tpu_custom_call.1} parent=1 // pred_region
      %s32 = ssub.s32 16384, 16384
      %33 = vsyncadd [#allocation8], %s32
      %s34 = sshll.u32 [#allocation7], 4
      %s35 = int_to_ptr.vmem [resolvable:$true] %s34
      %40 = dma.hbm_to_vmem [thread:$0]  %s2, 16384, %s35, [#allocation8], 256, 256, 16
    $region13: #{tpu_custom_call.1} parent=1 // pred_fallthru
      _
    // Predicated region
    $region14: #{tpu_custom_call.1} parent=1 // pred_check
      _
    $region15: #{tpu_custom_call.1} parent=1 // pred_check_branch
      %42 = sbr.rel (0) target = $region17
    $region16: #{tpu_custom_call.1} parent=1 // pred_region
      _
    $region17: #{tpu_custom_call.1} parent=1 // pred_fallthru
      _
    // Predicated region
    $region18: #{tpu_custom_call.1} parent=1 // pred_check
      _
    $region19: #{tpu_custom_call.1} parent=1 // pred_check_branch
      %44 = sbr.rel (0) target = $region21
    $region20: #{tpu_custom_call.1} parent=1 // pred_region
      _
    $region21: #{tpu_custom_call.1} parent=1 // pred_fallthru
      _
    // Predicated region
    $region22: #{tpu_custom_call.1} parent=1 // pred_check
      _
    $region23: #{tpu_custom_call.1} parent=1 // pred_check_branch
      %46 = sbr.rel (0) target = $region25
    $region24: #{tpu_custom_call.1} parent=1 // pred_region
      _
    $region25: #{tpu_custom_call.1} parent=1 // pred_fallthru
      _
    // Predicated region
    $region26: #{tpu_custom_call.1} parent=1 // pred_check
      _
    $region27: #{tpu_custom_call.1} parent=1 // pred_check_branch
      %48 = sbr.rel (0) target = $region29
    $region28: #{tpu_custom_call.1} parent=1 // pred_region
      %49 = dma.done [#allocation6], 16384
    $region29: #{tpu_custom_call.1} parent=1 // pred_fallthru
      _
    // Predicated region
    $region30: #{tpu_custom_call.1} parent=1 // pred_check
      _
    $region31: #{tpu_custom_call.1} parent=1 // pred_check_branch
      %51 = sbr.rel (0) target = $region33
    $region32: #{tpu_custom_call.1} parent=1 // pred_region
      %52 = dma.done [#allocation8], 16384
    $region33: #{tpu_custom_call.1} parent=1 // pred_fallthru
      _
    %v54 = vld [vmem:[%s0] sm:$0xff]
    %v55 = vld [vmem:[%s0 + $0x8] sm:$0xff]
    %v56 = vld [vmem:[%s0 + $0x10] sm:$0xff]
    %v57 = vld [vmem:[%s0 + $0x18] sm:$0xff]
    %v58 = vld [vmem:[%s0 + $0x20] sm:$0xff]
    %v59 = vld [vmem:[%s0 + $0x28] sm:$0xff]
    %v60 = vld [vmem:[%s0 + $0x30] sm:$0xff]
    %v61 = vld [vmem:[%s0 + $0x38] sm:$0xff]
    %v62 = vpack.c.bf16 %v55, %v54
    %v63 = vpack.c.bf16 %v57, %v56
    %v64 = vpack.c.bf16 %v59, %v58
    %v65 = vpack.c.bf16 %v61, %v60
    %v66 = vld [vmem:[#allocation5] sm:$0xff]
    %v67 = vld [vmem:[#allocation5 + $0x8] sm:$0xff]
    %v68 = vld [vmem:[#allocation5 + $0x10] sm:$0xff]
    %v69 = vld [vmem:[#allocation5 + $0x18] sm:$0xff]
    %v70 = vld [vmem:[#allocation5 + $0x20] sm:$0xff]
    %v71 = vld [vmem:[#allocation5 + $0x28] sm:$0xff]
    %v72 = vld [vmem:[#allocation5 + $0x30] sm:$0xff]
    %v73 = vld [vmem:[#allocation5 + $0x38] sm:$0xff]
    %v74 = vld [vmem:[#allocation5 + $0x40] sm:$0xff]
    %v75 = vld [vmem:[#allocation5 + $0x48] sm:$0xff]
    %v76 = vld [vmem:[#allocation5 + $0x50] sm:$0xff]
    %v77 = vld [vmem:[#allocation5 + $0x58] sm:$0xff]
    %v78 = vld [vmem:[#allocation5 + $0x60] sm:$0xff]
    %v79 = vld [vmem:[#allocation5 + $0x68] sm:$0xff]
    %v80 = vld [vmem:[#allocation5 + $0x70] sm:$0xff]
    %v81 = vld [vmem:[#allocation5 + $0x78] sm:$0xff]
    %v82 = vld [vmem:[#allocation5 + $0x80] sm:$0xff]
    %v83 = vld [vmem:[#allocation5 + $0x88] sm:$0xff]
    %v84 = vld [vmem:[#allocation5 + $0x90] sm:$0xff]
    %v85 = vld [vmem:[#allocation5 + $0x98] sm:$0xff]
    %v86 = vld [vmem:[#allocation5 + $0xa0] sm:$0xff]
    %v87 = vld [vmem:[#allocation5 + $0xa8] sm:$0xff]
    %v88 = vld [vmem:[#allocation5 + $0xb0] sm:$0xff]
    %v89 = vld [vmem:[#allocation5 + $0xb8] sm:$0xff]
    %v90 = vld [vmem:[#allocation5 + $0xc0] sm:$0xff]
    %v91 = vld [vmem:[#allocation5 + $0xc8] sm:$0xff]
    %v92 = vld [vmem:[#allocation5 + $0xd0] sm:$0xff]
    %v93 = vld [vmem:[#allocation5 + $0xd8] sm:$0xff]
    %v94 = vld [vmem:[#allocation5 + $0xe0] sm:$0xff]
    %v95 = vld [vmem:[#allocation5 + $0xe8] sm:$0xff]
    %v96 = vld [vmem:[#allocation5 + $0xf0] sm:$0xff]
    %v97 = vld [vmem:[#allocation5 + $0xf8] sm:$0xff]
    %v98 = vld [vmem:[%s3] sm:$0xf]
    %v100 = vlaneseq
    %v101 = vshrl.u32 %v100, 7
    %v102 = vsub.s32 0, %v101
    %v103 = vrot.slane %v98, %v102
    %v104 = vlaneseq
    %v105 = vshrl.u32 %v104, 7
    %v106 = vsub.s32 1, %v105
    %v107 = vrot.slane %v98, %v106
    %v108 = vlaneseq
    %v109 = vshrl.u32 %v108, 7
    %v110 = vsub.s32 2, %v109
    %v111 = vrot.slane %v98, %v110
    %v112 = vlaneseq
    %v113 = vshrl.u32 %v112, 7
    %v114 = vsub.s32 3, %v113
    %v115 = vrot.slane %v98, %v114
    %v152 = vunpack.c.l.b16 %v66
    %v153 = vunpack.c.h.b16 %v66
    %v154 = vunpack.c.l.b16 %v67
    %v155 = vunpack.c.h.b16 %v67
    %v156 = vunpack.c.l.b16 %v68
    %v157 = vunpack.c.h.b16 %v68
    %v158 = vunpack.c.l.b16 %v69
    %v159 = vunpack.c.h.b16 %v69
    %v160 = vunpack.c.l.b16 %v70
    %v161 = vunpack.c.h.b16 %v70
    %v162 = vunpack.c.l.b16 %v71
    %v163 = vunpack.c.h.b16 %v71
    %v164 = vunpack.c.l.b16 %v72
    %v165 = vunpack.c.h.b16 %v72
    %v166 = vunpack.c.l.b16 %v73
    %v167 = vunpack.c.h.b16 %v73
    %v168 = vunpack.c.l.b16 %v74
    %v169 = vunpack.c.h.b16 %v74
    %v170 = vunpack.c.l.b16 %v75
    %v171 = vunpack.c.h.b16 %v75
    %v172 = vunpack.c.l.b16 %v76
    %v173 = vunpack.c.h.b16 %v76
    %v174 = vunpack.c.l.b16 %v77
    %v175 = vunpack.c.h.b16 %v77
    %v176 = vunpack.c.l.b16 %v78
    %v177 = vunpack.c.h.b16 %v78
    %v178 = vunpack.c.l.b16 %v79
    %v179 = vunpack.c.h.b16 %v79
    %v180 = vunpack.c.l.b16 %v80
    %v181 = vunpack.c.h.b16 %v80
    %v182 = vunpack.c.l.b16 %v81
    %v183 = vunpack.c.h.b16 %v81
    %v184 = vunpack.c.l.b16 %v82
    %v185 = vunpack.c.h.b16 %v82
    %v186 = vunpack.c.l.b16 %v83
    %v187 = vunpack.c.h.b16 %v83
    %v188 = vunpack.c.l.b16 %v84
    %v189 = vunpack.c.h.b16 %v84
    %v190 = vunpack.c.l.b16 %v85
    %v191 = vunpack.c.h.b16 %v85
    %v192 = vunpack.c.l.b16 %v86
    %v193 = vunpack.c.h.b16 %v86
    %v194 = vunpack.c.l.b16 %v87
    %v195 = vunpack.c.h.b16 %v87
    %v196 = vunpack.c.l.b16 %v88
    %v197 = vunpack.c.h.b16 %v88
    %v198 = vunpack.c.l.b16 %v89
    %v199 = vunpack.c.h.b16 %v89
    %v200 = vunpack.c.l.b16 %v90
    %v201 = vunpack.c.h.b16 %v90
    %v202 = vunpack.c.l.b16 %v91
    %v203 = vunpack.c.h.b16 %v91
    %v204 = vunpack.c.l.b16 %v92
    %v205 = vunpack.c.h.b16 %v92
    %v206 = vunpack.c.l.b16 %v93
    %v207 = vunpack.c.h.b16 %v93
    %v208 = vunpack.c.l.b16 %v94
    %v209 = vunpack.c.h.b16 %v94
    %v210 = vunpack.c.l.b16 %v95
    %v211 = vunpack.c.h.b16 %v95
    %v212 = vunpack.c.l.b16 %v96
    %v213 = vunpack.c.h.b16 %v96
    %v214 = vunpack.c.l.b16 %v97
    %v215 = vunpack.c.h.b16 %v97
    %v216 = vpack.c.b16 %v156, %v152
    %v217 = vpack.c.b16 %v157, %v153
    %v218 = vpack.c.b16 %v158, %v154
    %v219 = vpack.c.b16 %v159, %v155
    %v220 = vpack.c.b16 %v164, %v160
    %v221 = vpack.c.b16 %v165, %v161
    %v222 = vpack.c.b16 %v166, %v162
    %v223 = vpack.c.b16 %v167, %v163
    %v224 = vpack.c.b16 %v172, %v168
    %v225 = vpack.c.b16 %v173, %v169
    %v226 = vpack.c.b16 %v174, %v170
    %v227 = vpack.c.b16 %v175, %v171
    %v228 = vpack.c.b16 %v180, %v176
    %v229 = vpack.c.b16 %v181, %v177
    %v230 = vpack.c.b16 %v182, %v178
    %v231 = vpack.c.b16 %v183, %v179
    %v232 = vpack.c.b16 %v188, %v184
    %v233 = vpack.c.b16 %v189, %v185
    %v234 = vpack.c.b16 %v190, %v186
    %v235 = vpack.c.b16 %v191, %v187
    %v236 = vpack.c.b16 %v196, %v192
    %v237 = vpack.c.b16 %v197, %v193
    %v238 = vpack.c.b16 %v198, %v194
    %v239 = vpack.c.b16 %v199, %v195
    %v240 = vpack.c.b16 %v204, %v200
    %v241 = vpack.c.b16 %v205, %v201
    %v242 = vpack.c.b16 %v206, %v202
    %v243 = vpack.c.b16 %v207, %v203
    %v244 = vpack.c.b16 %v212, %v208
    %v245 = vpack.c.b16 %v213, %v209
    %v246 = vpack.c.b16 %v214, %v210
    %v247 = vpack.c.b16 %v215, %v211
    %280 = vmatprep.subr.bf16.mxu0 %v245
    %281 = vmatpush1.bf16.msra.mxu0 %v244
    %282 = vmatprep.subr.bf16.mxu0 %v241
    %283 = vmatpush1.bf16.msra.mxu0 %v240
    %284 = vmatprep.subr.bf16.mxu0 %v237
    %285 = vmatpush1.bf16.msra.mxu0 %v236
    %286 = vmatprep.subr.bf16.mxu0 %v233
    %287 = vmatpush1.bf16.msra.mxu0 %v232
    %288 = vmatprep.subr.bf16.mxu0 %v229
    %289 = vmatpush1.bf16.msra.mxu0 %v228
    %290 = vmatprep.subr.bf16.mxu0 %v225
    %291 = vmatpush1.bf16.msra.mxu0 %v224
    %292 = vmatprep.subr.bf16.mxu0 %v221
    %293 = vmatpush1.bf16.msra.mxu0 %v220
    %294 = vmatprep.subr.bf16.mxu0 %v217
    %295 = vmatpush1.bf16.msra.mxu0 %v216
    %296 = vmatprep.subr.bf16.mxu0 0
    %297 = vmatpush2.bf16.msra.mxu0 0
    %298 = vmatprep.subr.bf16.mxu0 0
    %299 = vmatpush2.bf16.msra.mxu0 0
    %300 = vmatprep.subr.bf16.mxu0 0
    %301 = vmatpush2.bf16.msra.mxu0 0
    %302 = vmatprep.subr.bf16.mxu0 0
    %303 = vmatpush2.bf16.msra.mxu0 0
    %304 = vmatprep.subr.bf16.mxu0 0
    %305 = vmatpush2.bf16.msra.mxu0 0
    %306 = vmatprep.subr.bf16.mxu0 0
    %307 = vmatpush2.bf16.msra.mxu0 0
    %308 = vmatprep.subr.bf16.mxu0 0
    %309 = vmatpush2.bf16.msra.mxu0 0
    %310 = vmatprep.subr.bf16.mxu0 0
    %311 = vmatpush2.bf16.msra.mxu0 0
    %312 = vmatprep.mubr.bf16.mxu0 0
    %313 = vmatmul.mubr.bf16.gmra.mxu0 %v62
    %v314 = vpop.f32.mrf.mxu0
    %v315 = vadd.f32 %v103, %v314
    %v316 = vpop.f32.mrf.mxu0
    %v317 = vadd.f32 %v107, %v316
    %v318 = vpop.f32.mrf.mxu0
    %v319 = vadd.f32 %v103, %v318
    %v320 = vpop.f32.mrf.mxu0
    %v321 = vadd.f32 %v107, %v320
    %322 = vmatprep.mubr.bf16.mxu0 0
    %323 = vmatmul.mubr.bf16.gmra.mxu0 %v63
    %v324 = vpop.f32.mrf.mxu0
    %v325 = vadd.f32 %v103, %v324
    %v326 = vpop.f32.mrf.mxu0
    %v327 = vadd.f32 %v107, %v326
    %v328 = vpop.f32.mrf.mxu0
    %v329 = vadd.f32 %v103, %v328
    %v330 = vpop.f32.mrf.mxu0
    %v331 = vadd.f32 %v107, %v330
    %332 = vmatprep.mubr.bf16.mxu0 0
    %333 = vmatmul.mubr.bf16.gmra.mxu0 %v64
    %v334 = vpop.f32.mrf.mxu0
    %v335 = vadd.f32 %v103, %v334
    %v336 = vpop.f32.mrf.mxu0
    %v337 = vadd.f32 %v107, %v336
    %v338 = vpop.f32.mrf.mxu0
    %v339 = vadd.f32 %v103, %v338
    %v340 = vpop.f32.mrf.mxu0
    %v341 = vadd.f32 %v107, %v340
    %342 = vmatprep.mubr.bf16.mxu0 0
    %343 = vmatmul.mubr.bf16.gmra.mxu0 %v65
    %v344 = vpop.f32.mrf.mxu0
    %v345 = vadd.f32 %v103, %v344
    %v346 = vpop.f32.mrf.mxu0
    %v347 = vadd.f32 %v107, %v346
    %v348 = vpop.f32.mrf.mxu0
    %v349 = vadd.f32 %v103, %v348
    %v350 = vpop.f32.mrf.mxu0
    %v351 = vadd.f32 %v107, %v350
    %352 = vdwg.mxu0
    %353 = vmatprep.subr.bf16.mxu0 %v247
    %354 = vmatpush1.bf16.msra.mxu0 %v246
    %355 = vmatprep.subr.bf16.mxu0 %v243
    %356 = vmatpush1.bf16.msra.mxu0 %v242
    %357 = vmatprep.subr.bf16.mxu0 %v239
    %358 = vmatpush1.bf16.msra.mxu0 %v238
    %359 = vmatprep.subr.bf16.mxu0 %v235
    %360 = vmatpush1.bf16.msra.mxu0 %v234
    %361 = vmatprep.subr.bf16.mxu0 %v231
    %362 = vmatpush1.bf16.msra.mxu0 %v230
    %363 = vmatprep.subr.bf16.mxu0 %v227
    %364 = vmatpush1.bf16.msra.mxu0 %v226
    %365 = vmatprep.subr.bf16.mxu0 %v223
    %366 = vmatpush1.bf16.msra.mxu0 %v222
    %367 = vmatprep.subr.bf16.mxu0 %v219
    %368 = vmatpush1.bf16.msra.mxu0 %v218
    %369 = vmatprep.subr.bf16.mxu0 0
    %370 = vmatpush2.bf16.msra.mxu0 0
    %371 = vmatprep.subr.bf16.mxu0 0
    %372 = vmatpush2.bf16.msra.mxu0 0
    %373 = vmatprep.subr.bf16.mxu0 0
    %374 = vmatpush2.bf16.msra.mxu0 0
    %375 = vmatprep.subr.bf16.mxu0 0
    %376 = vmatpush2.bf16.msra.mxu0 0
    %377 = vmatprep.subr.bf16.mxu0 0
    %378 = vmatpush2.bf16.msra.mxu0 0
    %379 = vmatprep.subr.bf16.mxu0 0
    %380 = vmatpush2.bf16.msra.mxu0 0
    %381 = vmatprep.subr.bf16.mxu0 0
    %382 = vmatpush2.bf16.msra.mxu0 0
    %383 = vmatprep.subr.bf16.mxu0 0
    %384 = vmatpush2.bf16.msra.mxu0 0
    %385 = vmatprep.mubr.bf16.mxu0 0
    %386 = vmatmul.mubr.bf16.gmra.mxu0 %v62
    %v387 = vpop.f32.mrf.mxu0
    %v388 = vadd.f32 %v111, %v387
    %v389 = vpop.f32.mrf.mxu0
    %v390 = vadd.f32 %v115, %v389
    %v391 = vpop.f32.mrf.mxu0
    %v392 = vadd.f32 %v111, %v391
    %v393 = vpop.f32.mrf.mxu0
    %v394 = vadd.f32 %v115, %v393
    %395 = vmatprep.mubr.bf16.mxu0 0
    %396 = vmatmul.mubr.bf16.gmra.mxu0 %v63
    %v397 = vpop.f32.mrf.mxu0
    %v398 = vadd.f32 %v111, %v397
    %v399 = vpop.f32.mrf.mxu0
    %v400 = vadd.f32 %v115, %v399
    %v401 = vpop.f32.mrf.mxu0
    %v402 = vadd.f32 %v111, %v401
    %v403 = vpop.f32.mrf.mxu0
    %v404 = vadd.f32 %v115, %v403
    %405 = vmatprep.mubr.bf16.mxu0 0
    %406 = vmatmul.mubr.bf16.gmra.mxu0 %v64
    %v407 = vpop.f32.mrf.mxu0
    %v408 = vadd.f32 %v111, %v407
    %v409 = vpop.f32.mrf.mxu0
    %v410 = vadd.f32 %v115, %v409
    %v411 = vpop.f32.mrf.mxu0
    %v412 = vadd.f32 %v111, %v411
    %v413 = vpop.f32.mrf.mxu0
    %v414 = vadd.f32 %v115, %v413
    %415 = vmatprep.mubr.bf16.mxu0 0
    %416 = vmatmul.mubr.bf16.gmra.mxu0 %v65
    %v417 = vpop.f32.mrf.mxu0
    %v418 = vadd.f32 %v111, %v417
    %v419 = vpop.f32.mrf.mxu0
    %v420 = vadd.f32 %v115, %v419
    %v421 = vpop.f32.mrf.mxu0
    %v422 = vadd.f32 %v111, %v421
    %v423 = vpop.f32.mrf.mxu0
    %v424 = vadd.f32 %v115, %v423
    %425 = vdwg.mxu0
    %426 = vst [vmem:[#allocation3] sm:$0xff] %v315
    %427 = vst [vmem:[#allocation3 + $0x8] sm:$0xff] %v317
    %428 = vst [vmem:[#allocation3 + $0x10] sm:$0xff] %v388
    %429 = vst [vmem:[#allocation3 + $0x18] sm:$0xff] %v390
    %430 = vst [vmem:[#allocation3 + $0x20] sm:$0xff] %v319
    %431 = vst [vmem:[#allocation3 + $0x28] sm:$0xff] %v321
    %432 = vst [vmem:[#allocation3 + $0x30] sm:$0xff] %v392
    %433 = vst [vmem:[#allocation3 + $0x38] sm:$0xff] %v394
    %434 = vst [vmem:[#allocation3 + $0x40] sm:$0xff] %v325
    %435 = vst [vmem:[#allocation3 + $0x48] sm:$0xff] %v327
    %436 = vst [vmem:[#allocation3 + $0x50] sm:$0xff] %v398
    %437 = vst [vmem:[#allocation3 + $0x58] sm:$0xff] %v400
    %438 = vst [vmem:[#allocation3 + $0x60] sm:$0xff] %v329
    %439 = vst [vmem:[#allocation3 + $0x68] sm:$0xff] %v331
    %440 = vst [vmem:[#allocation3 + $0x70] sm:$0xff] %v402
    %441 = vst [vmem:[#allocation3 + $0x78] sm:$0xff] %v404
    %442 = vst [vmem:[#allocation3 + $0x80] sm:$0xff] %v335
    %443 = vst [vmem:[#allocation3 + $0x88] sm:$0xff] %v337
    %444 = vst [vmem:[#allocation3 + $0x90] sm:$0xff] %v408
    %445 = vst [vmem:[#allocation3 + $0x98] sm:$0xff] %v410
    %446 = vst [vmem:[#allocation3 + $0xa0] sm:$0xff] %v339
    %447 = vst [vmem:[#allocation3 + $0xa8] sm:$0xff] %v341
    %448 = vst [vmem:[#allocation3 + $0xb0] sm:$0xff] %v412
    %449 = vst [vmem:[#allocation3 + $0xb8] sm:$0xff] %v414
    %450 = vst [vmem:[#allocation3 + $0xc0] sm:$0xff] %v345
    %451 = vst [vmem:[#allocation3 + $0xc8] sm:$0xff] %v347
    %452 = vst [vmem:[#allocation3 + $0xd0] sm:$0xff] %v418
    %453 = vst [vmem:[#allocation3 + $0xd8] sm:$0xff] %v420
    %454 = vst [vmem:[#allocation3 + $0xe0] sm:$0xff] %v349
    %455 = vst [vmem:[#allocation3 + $0xe8] sm:$0xff] %v351
    %456 = vst [vmem:[#allocation3 + $0xf0] sm:$0xff] %v422
    %457 = vst [vmem:[#allocation3 + $0xf8] sm:$0xff] %v424
    %v458 = vld [vmem:[#allocation7] sm:$0xff]
    %v459 = vld [vmem:[#allocation7 + $0x8] sm:$0xff]
    %v460 = vld [vmem:[#allocation7 + $0x10] sm:$0xff]
    %v461 = vld [vmem:[#allocation7 + $0x18] sm:$0xff]
    %v462 = vld [vmem:[#allocation7 + $0x20] sm:$0xff]
    %v463 = vld [vmem:[#allocation7 + $0x28] sm:$0xff]
    %v464 = vld [vmem:[#allocation7 + $0x30] sm:$0xff]
    %v465 = vld [vmem:[#allocation7 + $0x38] sm:$0xff]
    %v466 = vld [vmem:[#allocation7 + $0x40] sm:$0xff]
    %v467 = vld [vmem:[#allocation7 + $0x48] sm:$0xff]
    %v468 = vld [vmem:[#allocation7 + $0x50] sm:$0xff]
    %v469 = vld [vmem:[#allocation7 + $0x58] sm:$0xff]
    %v470 = vld [vmem:[#allocation7 + $0x60] sm:$0xff]
    %v471 = vld [vmem:[#allocation7 + $0x68] sm:$0xff]
    %v472 = vld [vmem:[#allocation7 + $0x70] sm:$0xff]
    %v473 = vld [vmem:[#allocation7 + $0x78] sm:$0xff]
    %v474 = vld [vmem:[#allocation7 + $0x80] sm:$0xff]
    %v475 = vld [vmem:[#allocation7 + $0x88] sm:$0xff]
    %v476 = vld [vmem:[#allocation7 + $0x90] sm:$0xff]
    %v477 = vld [vmem:[#allocation7 + $0x98] sm:$0xff]
    %v478 = vld [vmem:[#allocation7 + $0xa0] sm:$0xff]
    %v479 = vld [vmem:[#allocation7 + $0xa8] sm:$0xff]
    %v480 = vld [vmem:[#allocation7 + $0xb0] sm:$0xff]
    %v481 = vld [vmem:[#allocation7 + $0xb8] sm:$0xff]
    %v482 = vld [vmem:[#allocation7 + $0xc0] sm:$0xff]
    %v483 = vld [vmem:[#allocation7 + $0xc8] sm:$0xff]
    %v484 = vld [vmem:[#allocation7 + $0xd0] sm:$0xff]
    %v485 = vld [vmem:[#allocation7 + $0xd8] sm:$0xff]
    %v486 = vld [vmem:[#allocation7 + $0xe0] sm:$0xff]
    %v487 = vld [vmem:[#allocation7 + $0xe8] sm:$0xff]
    %v488 = vld [vmem:[#allocation7 + $0xf0] sm:$0xff]
    %v489 = vld [vmem:[#allocation7 + $0xf8] sm:$0xff]
    %v490 = vld [vmem:[#allocation3] sm:$0xff]
    %v491 = vld [vmem:[#allocation3 + $0x8] sm:$0xff]
    %v492 = vld [vmem:[#allocation3 + $0x10] sm:$0xff]
    %v493 = vld [vmem:[#allocation3 + $0x18] sm:$0xff]
    %v526 = vunpack.c.l.b16 %v458
    %v527 = vunpack.c.h.b16 %v458
    %v528 = vunpack.c.l.b16 %v459
    %v529 = vunpack.c.h.b16 %v459
    %v530 = vunpack.c.l.b16 %v460
    %v531 = vunpack.c.h.b16 %v460
    %v532 = vunpack.c.l.b16 %v461
    %v533 = vunpack.c.h.b16 %v461
    %v534 = vunpack.c.l.b16 %v462
    %v535 = vunpack.c.h.b16 %v462
    %v536 = vunpack.c.l.b16 %v463
    %v537 = vunpack.c.h.b16 %v463
    %v538 = vunpack.c.l.b16 %v464
    %v539 = vunpack.c.h.b16 %v464
    %v540 = vunpack.c.l.b16 %v465
    %v541 = vunpack.c.h.b16 %v465
    %v542 = vunpack.c.l.b16 %v466
    %v543 = vunpack.c.h.b16 %v466
    %v544 = vunpack.c.l.b16 %v467
    %v545 = vunpack.c.h.b16 %v467
    %v546 = vunpack.c.l.b16 %v468
    %v547 = vunpack.c.h.b16 %v468
    %v548 = vunpack.c.l.b16 %v469
    %v549 = vunpack.c.h.b16 %v469
    %v550 = vunpack.c.l.b16 %v470
    %v551 = vunpack.c.h.b16 %v470
    %v552 = vunpack.c.l.b16 %v471
    %v553 = vunpack.c.h.b16 %v471
    %v554 = vunpack.c.l.b16 %v472
    %v555 = vunpack.c.h.b16 %v472
    %v556 = vunpack.c.l.b16 %v473
    %v557 = vunpack.c.h.b16 %v473
    %v558 = vunpack.c.l.b16 %v474
    %v559 = vunpack.c.h.b16 %v474
    %v560 = vunpack.c.l.b16 %v475
    %v561 = vunpack.c.h.b16 %v475
    %v562 = vunpack.c.l.b16 %v476
    %v563 = vunpack.c.h.b16 %v476
    %v564 = vunpack.c.l.b16 %v477
    %v565 = vunpack.c.h.b16 %v477
    %v566 = vunpack.c.l.b16 %v478
    %v567 = vunpack.c.h.b16 %v478
    %v568 = vunpack.c.l.b16 %v479
    %v569 = vunpack.c.h.b16 %v479
    %v570 = vunpack.c.l.b16 %v480
    %v571 = vunpack.c.h.b16 %v480
    %v572 = vunpack.c.l.b16 %v481
    %v573 = vunpack.c.h.b16 %v481
    %v574 = vunpack.c.l.b16 %v482
    %v575 = vunpack.c.h.b16 %v482
    %v576 = vunpack.c.l.b16 %v483
    %v577 = vunpack.c.h.b16 %v483
    %v578 = vunpack.c.l.b16 %v484
    %v579 = vunpack.c.h.b16 %v484
    %v580 = vunpack.c.l.b16 %v485
    %v581 = vunpack.c.h.b16 %v485
    %v582 = vunpack.c.l.b16 %v486
    %v583 = vunpack.c.h.b16 %v486
    %v584 = vunpack.c.l.b16 %v487
    %v585 = vunpack.c.h.b16 %v487
    %v586 = vunpack.c.l.b16 %v488
    %v587 = vunpack.c.h.b16 %v488
    %v588 = vunpack.c.l.b16 %v489
    %v589 = vunpack.c.h.b16 %v489
    %v590 = vpack.c.b16 %v530, %v526
    %v591 = vpack.c.b16 %v531, %v527
    %v592 = vpack.c.b16 %v532, %v528
    %v593 = vpack.c.b16 %v533, %v529
    %v594 = vpack.c.b16 %v538, %v534
    %v595 = vpack.c.b16 %v539, %v535
    %v596 = vpack.c.b16 %v540, %v536
    %v597 = vpack.c.b16 %v541, %v537
    %v598 = vpack.c.b16 %v546, %v542
    %v599 = vpack.c.b16 %v547, %v543
    %v600 = vpack.c.b16 %v548, %v544
    %v601 = vpack.c.b16 %v549, %v545
    %v602 = vpack.c.b16 %v554, %v550
    %v603 = vpack.c.b16 %v555, %v551
    %v604 = vpack.c.b16 %v556, %v552
    %v605 = vpack.c.b16 %v557, %v553
    %v606 = vpack.c.b16 %v562, %v558
    %v607 = vpack.c.b16 %v563, %v559
    %v608 = vpack.c.b16 %v564, %v560
    %v609 = vpack.c.b16 %v565, %v561
    %v610 = vpack.c.b16 %v570, %v566
    %v611 = vpack.c.b16 %v571, %v567
    %v612 = vpack.c.b16 %v572, %v568
    %v613 = vpack.c.b16 %v573, %v569
    %v614 = vpack.c.b16 %v578, %v574
    %v615 = vpack.c.b16 %v579, %v575
    %v616 = vpack.c.b16 %v580, %v576
    %v617 = vpack.c.b16 %v581, %v577
    %v618 = vpack.c.b16 %v586, %v582
    %v619 = vpack.c.b16 %v587, %v583
    %v620 = vpack.c.b16 %v588, %v584
    %v621 = vpack.c.b16 %v589, %v585
    %654 = vmatprep.subr.bf16.mxu0 %v619
    %655 = vmatpush1.bf16.msra.mxu0 %v618
    %656 = vmatprep.subr.bf16.mxu0 %v615
    %657 = vmatpush1.bf16.msra.mxu0 %v614
    %658 = vmatprep.subr.bf16.mxu0 %v611
    %659 = vmatpush1.bf16.msra.mxu0 %v610
    %660 = vmatprep.subr.bf16.mxu0 %v607
    %661 = vmatpush1.bf16.msra.mxu0 %v606
    %662 = vmatprep.subr.bf16.mxu0 %v603
    %663 = vmatpush1.bf16.msra.mxu0 %v602
    %664 = vmatprep.subr.bf16.mxu0 %v599
    %665 = vmatpush1.bf16.msra.mxu0 %v598
    %666 = vmatprep.subr.bf16.mxu0 %v595
    %667 = vmatpush1.bf16.msra.mxu0 %v594
    %668 = vmatprep.subr.bf16.mxu0 %v591
    %669 = vmatpush1.bf16.msra.mxu0 %v590
    %670 = vmatprep.subr.bf16.mxu0 0
    %671 = vmatpush2.bf16.msra.mxu0 0
    %672 = vmatprep.subr.bf16.mxu0 0
    %673 = vmatpush2.bf16.msra.mxu0 0
    %674 = vmatprep.subr.bf16.mxu0 0
    %675 = vmatpush2.bf16.msra.mxu0 0
    %676 = vmatprep.subr.bf16.mxu0 0
    %677 = vmatpush2.bf16.msra.mxu0 0
    %678 = vmatprep.subr.bf16.mxu0 0
    %679 = vmatpush2.bf16.msra.mxu0 0
    %680 = vmatprep.subr.bf16.mxu0 0
    %681 = vmatpush2.bf16.msra.mxu0 0
    %682 = vmatprep.subr.bf16.mxu0 0
    %683 = vmatpush2.bf16.msra.mxu0 0
    %684 = vmatprep.subr.bf16.mxu0 0
    %685 = vmatpush2.bf16.msra.mxu0 0
    %686 = vmatprep.mubr.bf16.mxu0 0
    %687 = vmatmul.mubr.bf16.gmra.mxu0 0
    %v688 = vpop.f32.mrf.mxu0
    %v689 = vadd.f32 0.0, %v688
    %v690 = vpop.f32.mrf.mxu0
    %v691 = vadd.f32 0.0, %v690
    %v692 = vpop.f32.mrf.mxu0
    %v693 = vpop.f32.mrf.mxu0
    %694 = vdwg.mxu0
    %695 = vmatprep.subr.bf16.mxu0 %v621
    %696 = vmatpush1.bf16.msra.mxu0 %v620
    %697 = vmatprep.subr.bf16.mxu0 %v617
    %698 = vmatpush1.bf16.msra.mxu0 %v616
    %699 = vmatprep.subr.bf16.mxu0 %v613
    %700 = vmatpush1.bf16.msra.mxu0 %v612
    %701 = vmatprep.subr.bf16.mxu0 %v609
    %702 = vmatpush1.bf16.msra.mxu0 %v608
    %703 = vmatprep.subr.bf16.mxu0 %v605
    %704 = vmatpush1.bf16.msra.mxu0 %v604
    %705 = vmatprep.subr.bf16.mxu0 %v601
    %706 = vmatpush1.bf16.msra.mxu0 %v600
    %707 = vmatprep.subr.bf16.mxu0 %v597
    %708 = vmatpush1.bf16.msra.mxu0 %v596
    %709 = vmatprep.subr.bf16.mxu0 %v593
    %710 = vmatpush1.bf16.msra.mxu0 %v592
    %711 = vmatprep.subr.bf16.mxu0 0
    %712 = vmatpush2.bf16.msra.mxu0 0
    %713 = vmatprep.subr.bf16.mxu0 0
    %714 = vmatpush2.bf16.msra.mxu0 0
    %715 = vmatprep.subr.bf16.mxu0 0
    %716 = vmatpush2.bf16.msra.mxu0 0
    %717 = vmatprep.subr.bf16.mxu0 0
    %718 = vmatpush2.bf16.msra.mxu0 0
    %719 = vmatprep.subr.bf16.mxu0 0
    %720 = vmatpush2.bf16.msra.mxu0 0
    %721 = vmatprep.subr.bf16.mxu0 0
    %722 = vmatpush2.bf16.msra.mxu0 0
    %723 = vmatprep.subr.bf16.mxu0 0
    %724 = vmatpush2.bf16.msra.mxu0 0
    %725 = vmatprep.subr.bf16.mxu0 0
    %726 = vmatpush2.bf16.msra.mxu0 0
    %727 = vmatprep.mubr.bf16.mxu0 0
    %728 = vmatmul.mubr.bf16.gmra.mxu0 0
    %v729 = vpop.f32.mrf.mxu0
    %v730 = vadd.f32 0.0, %v729
    %v731 = vpop.f32.mrf.mxu0
    %v732 = vadd.f32 0.0, %v731
    %v733 = vpop.f32.mrf.mxu0
    %v734 = vpop.f32.mrf.mxu0
    %735 = vdwg.mxu0
    %v736 = vadd.f32 %v490, %v689
    %v737 = vadd.f32 %v491, %v691
    %v738 = vadd.f32 %v492, %v730
    %v739 = vadd.f32 %v493, %v732
    %v740 = vxor.u32 %v736, 2147483648
    %v741 = vxor.u32 %v737, 2147483648
    %v742 = vxor.u32 %v738, 2147483648
    %v743 = vmul.f32 %v740, 1.442695
    %v744 = vpow.pop %v743
    %v745 = vmul.f32 %v741, 1.442695
    %v746 = vpow.pop %v745
    %v747 = vmul.f32 %v742, 1.442695
    %v748 = vpow.pop %v747
    %v749 = vadd.f32 %v744, 1.0
    %v750 = vadd.f32 %v746, 1.0
    %v751 = vadd.f32 %v748, 1.0
    %v752 = vrcp.pop %v749
    %v753 = vmul.f32 1.0, %v752
    %v754 = vrcp.pop %v750
    %v755 = vmul.f32 1.0, %v754
    %v756 = vrcp.pop %v751
    %v757 = vmul.f32 1.0, %v756
    %v758 = vtanh.pop %v739
    %v759 = vmul.f32 %v755, 0.0
    %v760 = vmul.f32 %v753, %v758
    %v761 = vadd.f32 %v759, %v760
    %v762 = vtanh.pop %v761
    %v763 = vmul.f32 %v757, %v762
    %764 = vst [vmem:[#allocation2] sm:$0xff] %v763
    %s765 = scalar_lea.vmem [#allocation3], 32
    %v766 = vld [vmem:[%s765] sm:$0xff]
    %v767 = vld [vmem:[%s765 + $0x8] sm:$0xff]
    %v768 = vld [vmem:[%s765 + $0x10] sm:$0xff]
    %v769 = vld [vmem:[%s765 + $0x18] sm:$0xff]
    %v770 = vpack.c.bf16 %v763, %v763
    %771 = vmatprep.subr.bf16.mxu0 %v619
    %772 = vmatpush1.bf16.msra.mxu0 %v618
    %773 = vmatprep.subr.bf16.mxu0 %v615
    %774 = vmatpush1.bf16.msra.mxu0 %v614
    %775 = vmatprep.subr.bf16.mxu0 %v611
    %776 = vmatpush1.bf16.msra.mxu0 %v610
    %777 = vmatprep.subr.bf16.mxu0 %v607
    %778 = vmatpush1.bf16.msra.mxu0 %v606
    %779 = vmatprep.subr.bf16.mxu0 %v603
    %780 = vmatpush1.bf16.msra.mxu0 %v602
    %781 = vmatprep.subr.bf16.mxu0 %v599
    %782 = vmatpush1.bf16.msra.mxu0 %v598
    %783 = vmatprep.subr.bf16.mxu0 %v595
    %784 = vmatpush1.bf16.msra.mxu0 %v594
    %785 = vmatprep.subr.bf16.mxu0 %v591
    %786 = vmatpush1.bf16.msra.mxu0 %v590
    %787 = vmatprep.subr.bf16.mxu0 0
    %788 = vmatpush2.bf16.msra.mxu0 0
    %789 = vmatprep.subr.bf16.mxu0 0
    %790 = vmatpush2.bf16.msra.mxu0 0
    %791 = vmatprep.subr.bf16.mxu0 0
    %792 = vmatpush2.bf16.msra.mxu0 0
    %793 = vmatprep.subr.bf16.mxu0 0
    %794 = vmatpush2.bf16.msra.mxu0 0
    %795 = vmatprep.subr.bf16.mxu0 0
    %796 = vmatpush2.bf16.msra.mxu0 0
    %797 = vmatprep.subr.bf16.mxu0 0
    %798 = vmatpush2.bf16.msra.mxu0 0
    %799 = vmatprep.subr.bf16.mxu0 0
    %800 = vmatpush2.bf16.msra.mxu0 0
    %801 = vmatprep.subr.bf16.mxu0 0
    %802 = vmatpush2.bf16.msra.mxu0 0
    %803 = vmatprep.mubr.bf16.mxu0 0
    %804 = vmatmul.mubr.bf16.gmra.mxu0 %v770
    %v805 = vpop.f32.mrf.mxu0
    %v806 = vadd.f32 0.0, %v805
    %v807 = vpop.f32.mrf.mxu0
    %v808 = vadd.f32 0.0, %v807
    %v809 = vpop.f32.mrf.mxu0
    %v810 = vpop.f32.mrf.mxu0
    %811 = vdwg.mxu0
    %812 = vmatprep.subr.bf16.mxu0 %v621
    %813 = vmatpush1.bf16.msra.mxu0 %v620
    %814 = vmatprep.subr.bf16.mxu0 %v617
    %815 = vmatpush1.bf16.msra.mxu0 %v616
    %816 = vmatprep.subr.bf16.mxu0 %v613
    %817 = vmatpush1.bf16.msra.mxu0 %v612
    %818 = vmatprep.subr.bf16.mxu0 %v609
    %819 = vmatpush1.bf16.msra.mxu0 %v608
    %820 = vmatprep.subr.bf16.mxu0 %v605
    %821 = vmatpush1.bf16.msra.mxu0 %v604
    %822 = vmatprep.subr.bf16.mxu0 %v601
    %823 = vmatpush1.bf16.msra.mxu0 %v600
    %824 = vmatprep.subr.bf16.mxu0 %v597
    %825 = vmatpush1.bf16.msra.mxu0 %v596
    %826 = vmatprep.subr.bf16.mxu0 %v593
    %827 = vmatpush1.bf16.msra.mxu0 %v592
    %828 = vmatprep.subr.bf16.mxu0 0
    %829 = vmatpush2.bf16.msra.mxu0 0
    %830 = vmatprep.subr.bf16.mxu0 0
    %831 = vmatpush2.bf16.msra.mxu0 0
    %832 = vmatprep.subr.bf16.mxu0 0
    %833 = vmatpush2.bf16.msra.mxu0 0
    %834 = vmatprep.subr.bf16.mxu0 0
    %835 = vmatpush2.bf16.msra.mxu0 0
    %836 = vmatprep.subr.bf16.mxu0 0
    %837 = vmatpush2.bf16.msra.mxu0 0
    %838 = vmatprep.subr.bf16.mxu0 0
    %839 = vmatpush2.bf16.msra.mxu0 0
    %840 = vmatprep.subr.bf16.mxu0 0
    %841 = vmatpush2.bf16.msra.mxu0 0
    %842 = vmatprep.subr.bf16.mxu0 0
    %843 = vmatpush2.bf16.msra.mxu0 0
    %844 = vmatprep.mubr.bf16.mxu0 0
    %845 = vmatmul.mubr.bf16.gmra.mxu0 %v770
    %v846 = vpop.f32.mrf.mxu0
    %v847 = vadd.f32 0.0, %v846
    %v848 = vpop.f32.mrf.mxu0
    %v849 = vadd.f32 0.0, %v848
    %v850 = vpop.f32.mrf.mxu0
    %v851 = vpop.f32.mrf.mxu0
    %852 = vdwg.mxu0
    %v853 = vadd.f32 %v766, %v806
    %v854 = vadd.f32 %v767, %v808
    %v855 = vadd.f32 %v768, %v847
    %v856 = vadd.f32 %v769, %v849
    %v857 = vxor.u32 %v853, 2147483648
    %v858 = vxor.u32 %v854, 2147483648
    %v859 = vxor.u32 %v855, 2147483648
    %v860 = vmul.f32 %v857, 1.442695
    %v861 = vpow.pop %v860
    %v862 = vmul.f32 %v858, 1.442695
    %v863 = vpow.pop %v862
    %v864 = vmul.f32 %v859, 1.442695
    %v865 = vpow.pop %v864
    %v866 = vadd.f32 %v861, 1.0
    %v867 = vadd.f32 %v863, 1.0
    %v868 = vadd.f32 %v865, 1.0
    %v869 = vrcp.pop %v866
    %v870 = vmul.f32 1.0, %v869
    %v871 = vrcp.pop %v867
    %v872 = vmul.f32 1.0, %v871
    %v873 = vrcp.pop %v868
    %v874 = vmul.f32 1.0, %v873
    %v875 = vtanh.pop %v856
    %v876 = vmul.f32 %v872, %v761
    %v877 = vmul.f32 %v870, %v875
    %v878 = vadd.f32 %v876, %v877
    %v879 = vtanh.pop %v878
    %v880 = vmul.f32 %v874, %v879
    %s881 = scalar_lea.vmem [#allocation2], 8
    %882 = vst [vmem:[%s881] sm:$0xff] %v880
    %s883 = scalar_lea.vmem [#allocation3], 64
    %v884 = vld [vmem:[%s883] sm:$0xff]
    %v885 = vld [vmem:[%s883 + $0x8] sm:$0xff]
    %v886 = vld [vmem:[%s883 + $0x10] sm:$0xff]
    %v887 = vld [vmem:[%s883 + $0x18] sm:$0xff]
    %v888 = vpack.c.bf16 %v880, %v880
    %889 = vmatprep.subr.bf16.mxu0 %v619
    %890 = vmatpush1.bf16.msra.mxu0 %v618
    %891 = vmatprep.subr.bf16.mxu0 %v615
    %892 = vmatpush1.bf16.msra.mxu0 %v614
    %893 = vmatprep.subr.bf16.mxu0 %v611
    %894 = vmatpush1.bf16.msra.mxu0 %v610
    %895 = vmatprep.subr.bf16.mxu0 %v607
    %896 = vmatpush1.bf16.msra.mxu0 %v606
    %897 = vmatprep.subr.bf16.mxu0 %v603
    %898 = vmatpush1.bf16.msra.mxu0 %v602
    %899 = vmatprep.subr.bf16.mxu0 %v599
    %900 = vmatpush1.bf16.msra.mxu0 %v598
    %901 = vmatprep.subr.bf16.mxu0 %v595
    %902 = vmatpush1.bf16.msra.mxu0 %v594
    %903 = vmatprep.subr.bf16.mxu0 %v591
    %904 = vmatpush1.bf16.msra.mxu0 %v590
    %905 = vmatprep.subr.bf16.mxu0 0
    %906 = vmatpush2.bf16.msra.mxu0 0
    %907 = vmatprep.subr.bf16.mxu0 0
    %908 = vmatpush2.bf16.msra.mxu0 0
    %909 = vmatprep.subr.bf16.mxu0 0
    %910 = vmatpush2.bf16.msra.mxu0 0
    %911 = vmatprep.subr.bf16.mxu0 0
    %912 = vmatpush2.bf16.msra.mxu0 0
    %913 = vmatprep.subr.bf16.mxu0 0
    %914 = vmatpush2.bf16.msra.mxu0 0
    %915 = vmatprep.subr.bf16.mxu0 0
    %916 = vmatpush2.bf16.msra.mxu0 0
    %917 = vmatprep.subr.bf16.mxu0 0
    %918 = vmatpush2.bf16.msra.mxu0 0
    %919 = vmatprep.subr.bf16.mxu0 0
    %920 = vmatpush2.bf16.msra.mxu0 0
    %921 = vmatprep.mubr.bf16.mxu0 0
    %922 = vmatmul.mubr.bf16.gmra.mxu0 %v888
    %v923 = vpop.f32.mrf.mxu0
    %v924 = vadd.f32 0.0, %v923
    %v925 = vpop.f32.mrf.mxu0
    %v926 = vadd.f32 0.0, %v925
    %v927 = vpop.f32.mrf.mxu0
    %v928 = vpop.f32.mrf.mxu0
    %929 = vdwg.mxu0
    %930 = vmatprep.subr.bf16.mxu0 %v621
    %931 = vmatpush1.bf16.msra.mxu0 %v620
    %932 = vmatprep.subr.bf16.mxu0 %v617
    %933 = vmatpush1.bf16.msra.mxu0 %v616
    %934 = vmatprep.subr.bf16.mxu0 %v613
    %935 = vmatpush1.bf16.msra.mxu0 %v612
    %936 = vmatprep.subr.bf16.mxu0 %v609
    %937 = vmatpush1.bf16.msra.mxu0 %v608
    %938 = vmatprep.subr.bf16.mxu0 %v605
    %939 = vmatpush1.bf16.msra.mxu0 %v604
    %940 = vmatprep.subr.bf16.mxu0 %v601
    %941 = vmatpush1.bf16.msra.mxu0 %v600
    %942 = vmatprep.subr.bf16.mxu0 %v597
    %943 = vmatpush1.bf16.msra.mxu0 %v596
    %944 = vmatprep.subr.bf16.mxu0 %v593
    %945 = vmatpush1.bf16.msra.mxu0 %v592
    %946 = vmatprep.subr.bf16.mxu0 0
    %947 = vmatpush2.bf16.msra.mxu0 0
    %948 = vmatprep.subr.bf16.mxu0 0
    %949 = vmatpush2.bf16.msra.mxu0 0
    %950 = vmatprep.subr.bf16.mxu0 0
    %951 = vmatpush2.bf16.msra.mxu0 0
    %952 = vmatprep.subr.bf16.mxu0 0
    %953 = vmatpush2.bf16.msra.mxu0 0
    %954 = vmatprep.subr.bf16.mxu0 0
    %955 = vmatpush2.bf16.msra.mxu0 0
    %956 = vmatprep.subr.bf16.mxu0 0
    %957 = vmatpush2.bf16.msra.mxu0 0
    %958 = vmatprep.subr.bf16.mxu0 0
    %959 = vmatpush2.bf16.msra.mxu0 0
    %960 = vmatprep.subr.bf16.mxu0 0
    %961 = vmatpush2.bf16.msra.mxu0 0
    %962 = vmatprep.mubr.bf16.mxu0 0
    %963 = vmatmul.mubr.bf16.gmra.mxu0 %v888
    %v964 = vpop.f32.mrf.mxu0
    %v965 = vadd.f32 0.0, %v964
    %v966 = vpop.f32.mrf.mxu0
    %v967 = vadd.f32 0.0, %v966
    %v968 = vpop.f32.mrf.mxu0
    %v969 = vpop.f32.mrf.mxu0
    %970 = vdwg.mxu0
    %v971 = vadd.f32 %v884, %v924
    %v972 = vadd.f32 %v885, %v926
    %v973 = vadd.f32 %v886, %v965
    %v974 = vadd.f32 %v887, %v967
    %v975 = vxor.u32 %v971, 2147483648
    %v976 = vxor.u32 %v972, 2147483648
    %v977 = vxor.u32 %v973, 2147483648
    %v978 = vmul.f32 %v975, 1.442695
    %v979 = vpow.pop %v978
    %v980 = vmul.f32 %v976, 1.442695
    %v981 = vpow.pop %v980
    %v982 = vmul.f32 %v977, 1.442695
    %v983 = vpow.pop %v982
    %v984 = vadd.f32 %v979, 1.0
    %v985 = vadd.f32 %v981, 1.0
    %v986 = vadd.f32 %v983, 1.0
    %v987 = vrcp.pop %v984
    %v988 = vmul.f32 1.0, %v987
    %v989 = vrcp.pop %v985
    %v990 = vmul.f32 1.0, %v989
    %v991 = vrcp.pop %v986
    %v992 = vmul.f32 1.0, %v991
    %v993 = vtanh.pop %v974
    %v994 = vmul.f32 %v990, %v878
    %v995 = vmul.f32 %v988, %v993
    %v996 = vadd.f32 %v994, %v995
    %v997 = vtanh.pop %v996
    %v998 = vmul.f32 %v992, %v997
    %s999 = scalar_lea.vmem [#allocation2], 16
    %1000 = vst [vmem:[%s999] sm:$0xff] %v998
    %s1001 = scalar_lea.vmem [#allocation3], 96
    %v1002 = vld [vmem:[%s1001] sm:$0xff]
    %v1003 = vld [vmem:[%s1001 + $0x8] sm:$0xff]
    %v1004 = vld [vmem:[%s1001 + $0x10] sm:$0xff]
    %v1005 = vld [vmem:[%s1001 + $0x18] sm:$0xff]
    %v1006 = vpack.c.bf16 %v998, %v998
    %1007 = vmatprep.subr.bf16.mxu0 %v619
    %1008 = vmatpush1.bf16.msra.mxu0 %v618
    %1009 = vmatprep.subr.bf16.mxu0 %v615
    %1010 = vmatpush1.bf16.msra.mxu0 %v614
    %1011 = vmatprep.subr.bf16.mxu0 %v611
    %1012 = vmatpush1.bf16.msra.mxu0 %v610
    %1013 = vmatprep.subr.bf16.mxu0 %v607
    %1014 = vmatpush1.bf16.msra.mxu0 %v606
    %1015 = vmatprep.subr.bf16.mxu0 %v603
    %1016 = vmatpush1.bf16.msra.mxu0 %v602
    %1017 = vmatprep.subr.bf16.mxu0 %v599
    %1018 = vmatpush1.bf16.msra.mxu0 %v598
    %1019 = vmatprep.subr.bf16.mxu0 %v595
    %1020 = vmatpush1.bf16.msra.mxu0 %v594
    %1021 = vmatprep.subr.bf16.mxu0 %v591
    %1022 = vmatpush1.bf16.msra.mxu0 %v590
    %1023 = vmatprep.subr.bf16.mxu0 0
    %1024 = vmatpush2.bf16.msra.mxu0 0
    %1025 = vmatprep.subr.bf16.mxu0 0
    %1026 = vmatpush2.bf16.msra.mxu0 0
    %1027 = vmatprep.subr.bf16.mxu0 0
    %1028 = vmatpush2.bf16.msra.mxu0 0
    %1029 = vmatprep.subr.bf16.mxu0 0
    %1030 = vmatpush2.bf16.msra.mxu0 0
    %1031 = vmatprep.subr.bf16.mxu0 0
    %1032 = vmatpush2.bf16.msra.mxu0 0
    %1033 = vmatprep.subr.bf16.mxu0 0
    %1034 = vmatpush2.bf16.msra.mxu0 0
    %1035 = vmatprep.subr.bf16.mxu0 0
    %1036 = vmatpush2.bf16.msra.mxu0 0
    %1037 = vmatprep.subr.bf16.mxu0 0
    %1038 = vmatpush2.bf16.msra.mxu0 0
    %1039 = vmatprep.mubr.bf16.mxu0 0
    %1040 = vmatmul.mubr.bf16.gmra.mxu0 %v1006
    %v1041 = vpop.f32.mrf.mxu0
    %v1042 = vadd.f32 0.0, %v1041
    %v1043 = vpop.f32.mrf.mxu0
    %v1044 = vadd.f32 0.0, %v1043
    %v1045 = vpop.f32.mrf.mxu0
    %v1046 = vpop.f32.mrf.mxu0
    %1047 = vdwg.mxu0
    %1048 = vmatprep.subr.bf16.mxu0 %v621
    %1049 = vmatpush1.bf16.msra.mxu0 %v620
    %1050 = vmatprep.subr.bf16.mxu0 %v617
    %1051 = vmatpush1.bf16.msra.mxu0 %v616
    %1052 = vmatprep.subr.bf16.mxu0 %v613
    %1053 = vmatpush1.bf16.msra.mxu0 %v612
    %1054 = vmatprep.subr.bf16.mxu0 %v609
    %1055 = vmatpush1.bf16.msra.mxu0 %v608
    %1056 = vmatprep.subr.bf16.mxu0 %v605
    %1057 = vmatpush1.bf16.msra.mxu0 %v604
    %1058 = vmatprep.subr.bf16.mxu0 %v601
    %1059 = vmatpush1.bf16.msra.mxu0 %v600
    %1060 = vmatprep.subr.bf16.mxu0 %v597
    %1061 = vmatpush1.bf16.msra.mxu0 %v596
    %1062 = vmatprep.subr.bf16.mxu0 %v593
    %1063 = vmatpush1.bf16.msra.mxu0 %v592
    %1064 = vmatprep.subr.bf16.mxu0 0
    %1065 = vmatpush2.bf16.msra.mxu0 0
    %1066 = vmatprep.subr.bf16.mxu0 0
    %1067 = vmatpush2.bf16.msra.mxu0 0
    %1068 = vmatprep.subr.bf16.mxu0 0
    %1069 = vmatpush2.bf16.msra.mxu0 0
    %1070 = vmatprep.subr.bf16.mxu0 0
    %1071 = vmatpush2.bf16.msra.mxu0 0
    %1072 = vmatprep.subr.bf16.mxu0 0
    %1073 = vmatpush2.bf16.msra.mxu0 0
    %1074 = vmatprep.subr.bf16.mxu0 0
    %1075 = vmatpush2.bf16.msra.mxu0 0
    %1076 = vmatprep.subr.bf16.mxu0 0
    %1077 = vmatpush2.bf16.msra.mxu0 0
    %1078 = vmatprep.subr.bf16.mxu0 0
    %1079 = vmatpush2.bf16.msra.mxu0 0
    %1080 = vmatprep.mubr.bf16.mxu0 0
    %1081 = vmatmul.mubr.bf16.gmra.mxu0 %v1006
    %v1082 = vpop.f32.mrf.mxu0
    %v1083 = vadd.f32 0.0, %v1082
    %v1084 = vpop.f32.mrf.mxu0
    %v1085 = vadd.f32 0.0, %v1084
    %v1086 = vpop.f32.mrf.mxu0
    %v1087 = vpop.f32.mrf.mxu0
    %1088 = vdwg.mxu0
    %v1089 = vadd.f32 %v1002, %v1042
    %v1090 = vadd.f32 %v1003, %v1044
    %v1091 = vadd.f32 %v1004, %v1083
    %v1092 = vadd.f32 %v1005, %v1085
    %v1093 = vxor.u32 %v1089, 2147483648
    %v1094 = vxor.u32 %v1090, 2147483648
    %v1095 = vxor.u32 %v1091, 2147483648
    %v1096 = vmul.f32 %v1093, 1.442695
    %v1097 = vpow.pop %v1096
    %v1098 = vmul.f32 %v1094, 1.442695
    %v1099 = vpow.pop %v1098
    %v1100 = vmul.f32 %v1095, 1.442695
    %v1101 = vpow.pop %v1100
    %v1102 = vadd.f32 %v1097, 1.0
    %v1103 = vadd.f32 %v1099, 1.0
    %v1104 = vadd.f32 %v1101, 1.0
    %v1105 = vrcp.pop %v1102
    %v1106 = vmul.f32 1.0, %v1105
    %v1107 = vrcp.pop %v1103
    %v1108 = vmul.f32 1.0, %v1107
    %v1109 = vrcp.pop %v1104
    %v1110 = vmul.f32 1.0, %v1109
    %v1111 = vtanh.pop %v1092
    %v1112 = vmul.f32 %v1108, %v996
    %v1113 = vmul.f32 %v1106, %v1111
    %v1114 = vadd.f32 %v1112, %v1113
    %v1115 = vtanh.pop %v1114
    %v1116 = vmul.f32 %v1110, %v1115
    %s1117 = scalar_lea.vmem [#allocation2], 24
    %1118 = vst [vmem:[%s1117] sm:$0xff] %v1116
    %s1119 = scalar_lea.vmem [#allocation3], 128
    %v1120 = vld [vmem:[%s1119] sm:$0xff]
    %v1121 = vld [vmem:[%s1119 + $0x8] sm:$0xff]
    %v1122 = vld [vmem:[%s1119 + $0x10] sm:$0xff]
    %v1123 = vld [vmem:[%s1119 + $0x18] sm:$0xff]
    %v1124 = vpack.c.bf16 %v1116, %v1116
    %1125 = vmatprep.subr.bf16.mxu0 %v619
    %1126 = vmatpush1.bf16.msra.mxu0 %v618
    %1127 = vmatprep.subr.bf16.mxu0 %v615
    %1128 = vmatpush1.bf16.msra.mxu0 %v614
    %1129 = vmatprep.subr.bf16.mxu0 %v611
    %1130 = vmatpush1.bf16.msra.mxu0 %v610
    %1131 = vmatprep.subr.bf16.mxu0 %v607
    %1132 = vmatpush1.bf16.msra.mxu0 %v606
    %1133 = vmatprep.subr.bf16.mxu0 %v603
    %1134 = vmatpush1.bf16.msra.mxu0 %v602
    %1135 = vmatprep.subr.bf16.mxu0 %v599
    %1136 = vmatpush1.bf16.msra.mxu0 %v598
    %1137 = vmatprep.subr.bf16.mxu0 %v595
    %1138 = vmatpush1.bf16.msra.mxu0 %v594
    %1139 = vmatprep.subr.bf16.mxu0 %v591
    %1140 = vmatpush1.bf16.msra.mxu0 %v590
    %1141 = vmatprep.subr.bf16.mxu0 0
    %1142 = vmatpush2.bf16.msra.mxu0 0
    %1143 = vmatprep.subr.bf16.mxu0 0
    %1144 = vmatpush2.bf16.msra.mxu0 0
    %1145 = vmatprep.subr.bf16.mxu0 0
    %1146 = vmatpush2.bf16.msra.mxu0 0
    %1147 = vmatprep.subr.bf16.mxu0 0
    %1148 = vmatpush2.bf16.msra.mxu0 0
    %1149 = vmatprep.subr.bf16.mxu0 0
    %1150 = vmatpush2.bf16.msra.mxu0 0
    %1151 = vmatprep.subr.bf16.mxu0 0
    %1152 = vmatpush2.bf16.msra.mxu0 0
    %1153 = vmatprep.subr.bf16.mxu0 0
    %1154 = vmatpush2.bf16.msra.mxu0 0
    %1155 = vmatprep.subr.bf16.mxu0 0
    %1156 = vmatpush2.bf16.msra.mxu0 0
    %1157 = vmatprep.mubr.bf16.mxu0 0
    %1158 = vmatmul.mubr.bf16.gmra.mxu0 %v1124
    %v1159 = vpop.f32.mrf.mxu0
    %v1160 = vadd.f32 0.0, %v1159
    %v1161 = vpop.f32.mrf.mxu0
    %v1162 = vadd.f32 0.0, %v1161
    %v1163 = vpop.f32.mrf.mxu0
    %v1164 = vpop.f32.mrf.mxu0
    %1165 = vdwg.mxu0
    %1166 = vmatprep.subr.bf16.mxu0 %v621
    %1167 = vmatpush1.bf16.msra.mxu0 %v620
    %1168 = vmatprep.subr.bf16.mxu0 %v617
    %1169 = vmatpush1.bf16.msra.mxu0 %v616
    %1170 = vmatprep.subr.bf16.mxu0 %v613
    %1171 = vmatpush1.bf16.msra.mxu0 %v612
    %1172 = vmatprep.subr.bf16.mxu0 %v609
    %1173 = vmatpush1.bf16.msra.mxu0 %v608
    %1174 = vmatprep.subr.bf16.mxu0 %v605
    %1175 = vmatpush1.bf16.msra.mxu0 %v604
    %1176 = vmatprep.subr.bf16.mxu0 %v601
    %1177 = vmatpush1.bf16.msra.mxu0 %v600
    %1178 = vmatprep.subr.bf16.mxu0 %v597
    %1179 = vmatpush1.bf16.msra.mxu0 %v596
    %1180 = vmatprep.subr.bf16.mxu0 %v593
    %1181 = vmatpush1.bf16.msra.mxu0 %v592
    %1182 = vmatprep.subr.bf16.mxu0 0
    %1183 = vmatpush2.bf16.msra.mxu0 0
    %1184 = vmatprep.subr.bf16.mxu0 0
    %1185 = vmatpush2.bf16.msra.mxu0 0
    %1186 = vmatprep.subr.bf16.mxu0 0
    %1187 = vmatpush2.bf16.msra.mxu0 0
    %1188 = vmatprep.subr.bf16.mxu0 0
    %1189 = vmatpush2.bf16.msra.mxu0 0
    %1190 = vmatprep.subr.bf16.mxu0 0
    %1191 = vmatpush2.bf16.msra.mxu0 0
    %1192 = vmatprep.subr.bf16.mxu0 0
    %1193 = vmatpush2.bf16.msra.mxu0 0
    %1194 = vmatprep.subr.bf16.mxu0 0
    %1195 = vmatpush2.bf16.msra.mxu0 0
    %1196 = vmatprep.subr.bf16.mxu0 0
    %1197 = vmatpush2.bf16.msra.mxu0 0
    %1198 = vmatprep.mubr.bf16.mxu0 0
    %1199 = vmatmul.mubr.bf16.gmra.mxu0 %v1124
    %v1200 = vpop.f32.mrf.mxu0
    %v1201 = vadd.f32 0.0, %v1200
    %v1202 = vpop.f32.mrf.mxu0
    %v1203 = vadd.f32 0.0, %v1202
    %v1204 = vpop.f32.mrf.mxu0
    %v1205 = vpop.f32.mrf.mxu0
    %1206 = vdwg.mxu0
    %v1207 = vadd.f32 %v1120, %v1160
    %v1208 = vadd.f32 %v1121, %v1162
    %v1209 = vadd.f32 %v1122, %v1201
    %v1210 = vadd.f32 %v1123, %v1203
    %v1211 = vxor.u32 %v1207, 2147483648
    %v1212 = vxor.u32 %v1208, 2147483648
    %v1213 = vxor.u32 %v1209, 2147483648
    %v1214 = vmul.f32 %v1211, 1.442695
    %v1215 = vpow.pop %v1214
    %v1216 = vmul.f32 %v1212, 1.442695
    %v1217 = vpow.pop %v1216
    %v1218 = vmul.f32 %v1213, 1.442695
    %v1219 = vpow.pop %v1218
    %v1220 = vadd.f32 %v1215, 1.0
    %v1221 = vadd.f32 %v1217, 1.0
    %v1222 = vadd.f32 %v1219, 1.0
    %v1223 = vrcp.pop %v1220
    %v1224 = vmul.f32 1.0, %v1223
    %v1225 = vrcp.pop %v1221
    %v1226 = vmul.f32 1.0, %v1225
    %v1227 = vrcp.pop %v1222
    %v1228 = vmul.f32 1.0, %v1227
    %v1229 = vtanh.pop %v1210
    %v1230 = vmul.f32 %v1226, %v1114
    %v1231 = vmul.f32 %v1224, %v1229
    %v1232 = vadd.f32 %v1230, %v1231
    %v1233 = vtanh.pop %v1232
    %v1234 = vmul.f32 %v1228, %v1233
    %s1235 = scalar_lea.vmem [#allocation2], 32
    %1236 = vst [vmem:[%s1235] sm:$0xff] %v1234
    %s1237 = scalar_lea.vmem [#allocation3], 160
    %v1238 = vld [vmem:[%s1237] sm:$0xff]
    %v1239 = vld [vmem:[%s1237 + $0x8] sm:$0xff]
    %v1240 = vld [vmem:[%s1237 + $0x10] sm:$0xff]
    %v1241 = vld [vmem:[%s1237 + $0x18] sm:$0xff]
    %v1242 = vpack.c.bf16 %v1234, %v1234
    %1243 = vmatprep.subr.bf16.mxu0 %v619
    %1244 = vmatpush1.bf16.msra.mxu0 %v618
    %1245 = vmatprep.subr.bf16.mxu0 %v615
    %1246 = vmatpush1.bf16.msra.mxu0 %v614
    %1247 = vmatprep.subr.bf16.mxu0 %v611
    %1248 = vmatpush1.bf16.msra.mxu0 %v610
    %1249 = vmatprep.subr.bf16.mxu0 %v607
    %1250 = vmatpush1.bf16.msra.mxu0 %v606
    %1251 = vmatprep.subr.bf16.mxu0 %v603
    %1252 = vmatpush1.bf16.msra.mxu0 %v602
    %1253 = vmatprep.subr.bf16.mxu0 %v599
    %1254 = vmatpush1.bf16.msra.mxu0 %v598
    %1255 = vmatprep.subr.bf16.mxu0 %v595
    %1256 = vmatpush1.bf16.msra.mxu0 %v594
    %1257 = vmatprep.subr.bf16.mxu0 %v591
    %1258 = vmatpush1.bf16.msra.mxu0 %v590
    %1259 = vmatprep.subr.bf16.mxu0 0
    %1260 = vmatpush2.bf16.msra.mxu0 0
    %1261 = vmatprep.subr.bf16.mxu0 0
    %1262 = vmatpush2.bf16.msra.mxu0 0
    %1263 = vmatprep.subr.bf16.mxu0 0
    %1264 = vmatpush2.bf16.msra.mxu0 0
    %1265 = vmatprep.subr.bf16.mxu0 0
    %1266 = vmatpush2.bf16.msra.mxu0 0
    %1267 = vmatprep.subr.bf16.mxu0 0
    %1268 = vmatpush2.bf16.msra.mxu0 0
    %1269 = vmatprep.subr.bf16.mxu0 0
    %1270 = vmatpush2.bf16.msra.mxu0 0
    %1271 = vmatprep.subr.bf16.mxu0 0
    %1272 = vmatpush2.bf16.msra.mxu0 0
    %1273 = vmatprep.subr.bf16.mxu0 0
    %1274 = vmatpush2.bf16.msra.mxu0 0
    %1275 = vmatprep.mubr.bf16.mxu0 0
    %1276 = vmatmul.mubr.bf16.gmra.mxu0 %v1242
    %v1277 = vpop.f32.mrf.mxu0
    %v1278 = vadd.f32 0.0, %v1277
    %v1279 = vpop.f32.mrf.mxu0
    %v1280 = vadd.f32 0.0, %v1279
    %v1281 = vpop.f32.mrf.mxu0
    %v1282 = vpop.f32.mrf.mxu0
    %1283 = vdwg.mxu0
    %1284 = vmatprep.subr.bf16.mxu0 %v621
    %1285 = vmatpush1.bf16.msra.mxu0 %v620
    %1286 = vmatprep.subr.bf16.mxu0 %v617
    %1287 = vmatpush1.bf16.msra.mxu0 %v616
    %1288 = vmatprep.subr.bf16.mxu0 %v613
    %1289 = vmatpush1.bf16.msra.mxu0 %v612
    %1290 = vmatprep.subr.bf16.mxu0 %v609
    %1291 = vmatpush1.bf16.msra.mxu0 %v608
    %1292 = vmatprep.subr.bf16.mxu0 %v605
    %1293 = vmatpush1.bf16.msra.mxu0 %v604
    %1294 = vmatprep.subr.bf16.mxu0 %v601
    %1295 = vmatpush1.bf16.msra.mxu0 %v600
    %1296 = vmatprep.subr.bf16.mxu0 %v597
    %1297 = vmatpush1.bf16.msra.mxu0 %v596
    %1298 = vmatprep.subr.bf16.mxu0 %v593
    %1299 = vmatpush1.bf16.msra.mxu0 %v592
    %1300 = vmatprep.subr.bf16.mxu0 0
    %1301 = vmatpush2.bf16.msra.mxu0 0
    %1302 = vmatprep.subr.bf16.mxu0 0
    %1303 = vmatpush2.bf16.msra.mxu0 0
    %1304 = vmatprep.subr.bf16.mxu0 0
    %1305 = vmatpush2.bf16.msra.mxu0 0
    %1306 = vmatprep.subr.bf16.mxu0 0
    %1307 = vmatpush2.bf16.msra.mxu0 0
    %1308 = vmatprep.subr.bf16.mxu0 0
    %1309 = vmatpush2.bf16.msra.mxu0 0
    %1310 = vmatprep.subr.bf16.mxu0 0
    %1311 = vmatpush2.bf16.msra.mxu0 0
    %1312 = vmatprep.subr.bf16.mxu0 0
    %1313 = vmatpush2.bf16.msra.mxu0 0
    %1314 = vmatprep.subr.bf16.mxu0 0
    %1315 = vmatpush2.bf16.msra.mxu0 0
    %1316 = vmatprep.mubr.bf16.mxu0 0
    %1317 = vmatmul.mubr.bf16.gmra.mxu0 %v1242
    %v1318 = vpop.f32.mrf.mxu0
    %v1319 = vadd.f32 0.0, %v1318
    %v1320 = vpop.f32.mrf.mxu0
    %v1321 = vadd.f32 0.0, %v1320
    %v1322 = vpop.f32.mrf.mxu0
    %v1323 = vpop.f32.mrf.mxu0
    %1324 = vdwg.mxu0
    %v1325 = vadd.f32 %v1238, %v1278
    %v1326 = vadd.f32 %v1239, %v1280
    %v1327 = vadd.f32 %v1240, %v1319
    %v1328 = vadd.f32 %v1241, %v1321
    %v1329 = vxor.u32 %v1325, 2147483648
    %v1330 = vxor.u32 %v1326, 2147483648
    %v1331 = vxor.u32 %v1327, 2147483648
    %v1332 = vmul.f32 %v1329, 1.442695
    %v1333 = vpow.pop %v1332
    %v1334 = vmul.f32 %v1330, 1.442695
    %v1335 = vpow.pop %v1334
    %v1336 = vmul.f32 %v1331, 1.442695
    %v1337 = vpow.pop %v1336
    %v1338 = vadd.f32 %v1333, 1.0
    %v1339 = vadd.f32 %v1335, 1.0
    %v1340 = vadd.f32 %v1337, 1.0
    %v1341 = vrcp.pop %v1338
    %v1342 = vmul.f32 1.0, %v1341
    %v1343 = vrcp.pop %v1339
    %v1344 = vmul.f32 1.0, %v1343
    %v1345 = vrcp.pop %v1340
    %v1346 = vmul.f32 1.0, %v1345
    %v1347 = vtanh.pop %v1328
    %v1348 = vmul.f32 %v1344, %v1232
    %v1349 = vmul.f32 %v1342, %v1347
    %v1350 = vadd.f32 %v1348, %v1349
    %v1351 = vtanh.pop %v1350
    %v1352 = vmul.f32 %v1346, %v1351
    %s1353 = scalar_lea.vmem [#allocation2], 40
    %1354 = vst [vmem:[%s1353] sm:$0xff] %v1352
    %s1355 = scalar_lea.vmem [#allocation3], 192
    %v1356 = vld [vmem:[%s1355] sm:$0xff]
    %v1357 = vld [vmem:[%s1355 + $0x8] sm:$0xff]
    %v1358 = vld [vmem:[%s1355 + $0x10] sm:$0xff]
    %v1359 = vld [vmem:[%s1355 + $0x18] sm:$0xff]
    %v1360 = vpack.c.bf16 %v1352, %v1352
    %1361 = vmatprep.subr.bf16.mxu0 %v619
    %1362 = vmatpush1.bf16.msra.mxu0 %v618
    %1363 = vmatprep.subr.bf16.mxu0 %v615
    %1364 = vmatpush1.bf16.msra.mxu0 %v614
    %1365 = vmatprep.subr.bf16.mxu0 %v611
    %1366 = vmatpush1.bf16.msra.mxu0 %v610
    %1367 = vmatprep.subr.bf16.mxu0 %v607
    %1368 = vmatpush1.bf16.msra.mxu0 %v606
    %1369 = vmatprep.subr.bf16.mxu0 %v603
    %1370 = vmatpush1.bf16.msra.mxu0 %v602
    %1371 = vmatprep.subr.bf16.mxu0 %v599
    %1372 = vmatpush1.bf16.msra.mxu0 %v598
    %1373 = vmatprep.subr.bf16.mxu0 %v595
    %1374 = vmatpush1.bf16.msra.mxu0 %v594
    %1375 = vmatprep.subr.bf16.mxu0 %v591
    %1376 = vmatpush1.bf16.msra.mxu0 %v590
    %1377 = vmatprep.subr.bf16.mxu0 0
    %1378 = vmatpush2.bf16.msra.mxu0 0
    %1379 = vmatprep.subr.bf16.mxu0 0
    %1380 = vmatpush2.bf16.msra.mxu0 0
    %1381 = vmatprep.subr.bf16.mxu0 0
    %1382 = vmatpush2.bf16.msra.mxu0 0
    %1383 = vmatprep.subr.bf16.mxu0 0
    %1384 = vmatpush2.bf16.msra.mxu0 0
    %1385 = vmatprep.subr.bf16.mxu0 0
    %1386 = vmatpush2.bf16.msra.mxu0 0
    %1387 = vmatprep.subr.bf16.mxu0 0
    %1388 = vmatpush2.bf16.msra.mxu0 0
    %1389 = vmatprep.subr.bf16.mxu0 0
    %1390 = vmatpush2.bf16.msra.mxu0 0
    %1391 = vmatprep.subr.bf16.mxu0 0
    %1392 = vmatpush2.bf16.msra.mxu0 0
    %1393 = vmatprep.mubr.bf16.mxu0 0
    %1394 = vmatmul.mubr.bf16.gmra.mxu0 %v1360
    %v1395 = vpop.f32.mrf.mxu0
    %v1396 = vadd.f32 0.0, %v1395
    %v1397 = vpop.f32.mrf.mxu0
    %v1398 = vadd.f32 0.0, %v1397
    %v1399 = vpop.f32.mrf.mxu0
    %v1400 = vpop.f32.mrf.mxu0
    %1401 = vdwg.mxu0
    %1402 = vmatprep.subr.bf16.mxu0 %v621
    %1403 = vmatpush1.bf16.msra.mxu0 %v620
    %1404 = vmatprep.subr.bf16.mxu0 %v617
    %1405 = vmatpush1.bf16.msra.mxu0 %v616
    %1406 = vmatprep.subr.bf16.mxu0 %v613
    %1407 = vmatpush1.bf16.msra.mxu0 %v612
    %1408 = vmatprep.subr.bf16.mxu0 %v609
    %1409 = vmatpush1.bf16.msra.mxu0 %v608
    %1410 = vmatprep.subr.bf16.mxu0 %v605
    %1411 = vmatpush1.bf16.msra.mxu0 %v604
    %1412 = vmatprep.subr.bf16.mxu0 %v601
    %1413 = vmatpush1.bf16.msra.mxu0 %v600
    %1414 = vmatprep.subr.bf16.mxu0 %v597
    %1415 = vmatpush1.bf16.msra.mxu0 %v596
    %1416 = vmatprep.subr.bf16.mxu0 %v593
    %1417 = vmatpush1.bf16.msra.mxu0 %v592
    %1418 = vmatprep.subr.bf16.mxu0 0
    %1419 = vmatpush2.bf16.msra.mxu0 0
    %1420 = vmatprep.subr.bf16.mxu0 0
    %1421 = vmatpush2.bf16.msra.mxu0 0
    %1422 = vmatprep.subr.bf16.mxu0 0
    %1423 = vmatpush2.bf16.msra.mxu0 0
    %1424 = vmatprep.subr.bf16.mxu0 0
    %1425 = vmatpush2.bf16.msra.mxu0 0
    %1426 = vmatprep.subr.bf16.mxu0 0
    %1427 = vmatpush2.bf16.msra.mxu0 0
    %1428 = vmatprep.subr.bf16.mxu0 0
    %1429 = vmatpush2.bf16.msra.mxu0 0
    %1430 = vmatprep.subr.bf16.mxu0 0
    %1431 = vmatpush2.bf16.msra.mxu0 0
    %1432 = vmatprep.subr.bf16.mxu0 0
    %1433 = vmatpush2.bf16.msra.mxu0 0
    %1434 = vmatprep.mubr.bf16.mxu0 0
    %1435 = vmatmul.mubr.bf16.gmra.mxu0 %v1360
    %v1436 = vpop.f32.mrf.mxu0
    %v1437 = vadd.f32 0.0, %v1436
    %v1438 = vpop.f32.mrf.mxu0
    %v1439 = vadd.f32 0.0, %v1438
    %v1440 = vpop.f32.mrf.mxu0
    %v1441 = vpop.f32.mrf.mxu0
    %1442 = vdwg.mxu0
    %v1443 = vadd.f32 %v1356, %v1396
    %v1444 = vadd.f32 %v1357, %v1398
    %v1445 = vadd.f32 %v1358, %v1437
    %v1446 = vadd.f32 %v1359, %v1439
    %v1447 = vxor.u32 %v1443, 2147483648
    %v1448 = vxor.u32 %v1444, 2147483648
    %v1449 = vxor.u32 %v1445, 2147483648
    %v1450 = vmul.f32 %v1447, 1.442695
    %v1451 = vpow.pop %v1450
    %v1452 = vmul.f32 %v1448, 1.442695
    %v1453 = vpow.pop %v1452
    %v1454 = vmul.f32 %v1449, 1.442695
    %v1455 = vpow.pop %v1454
    %v1456 = vadd.f32 %v1451, 1.0
    %v1457 = vadd.f32 %v1453, 1.0
    %v1458 = vadd.f32 %v1455, 1.0
    %v1459 = vrcp.pop %v1456
    %v1460 = vmul.f32 1.0, %v1459
    %v1461 = vrcp.pop %v1457
    %v1462 = vmul.f32 1.0, %v1461
    %v1463 = vrcp.pop %v1458
    %v1464 = vmul.f32 1.0, %v1463
    %v1465 = vtanh.pop %v1446
    %v1466 = vmul.f32 %v1462, %v1350
    %v1467 = vmul.f32 %v1460, %v1465
    %v1468 = vadd.f32 %v1466, %v1467
    %v1469 = vtanh.pop %v1468
    %v1470 = vmul.f32 %v1464, %v1469
    %s1471 = scalar_lea.vmem [#allocation2], 48
    %1472 = vst [vmem:[%s1471] sm:$0xff] %v1470
    %s1473 = scalar_lea.vmem [#allocation3], 224
    %v1474 = vld [vmem:[%s1473] sm:$0xff]
    %v1475 = vld [vmem:[%s1473 + $0x8] sm:$0xff]
    %v1476 = vld [vmem:[%s1473 + $0x10] sm:$0xff]
    %v1477 = vld [vmem:[%s1473 + $0x18] sm:$0xff]
    %v1478 = vpack.c.bf16 %v1470, %v1470
    %1479 = vmatprep.subr.bf16.mxu0 %v619
    %1480 = vmatpush1.bf16.msra.mxu0 %v618
    %1481 = vmatprep.subr.bf16.mxu0 %v615
    %1482 = vmatpush1.bf16.msra.mxu0 %v614
    %1483 = vmatprep.subr.bf16.mxu0 %v611
    %1484 = vmatpush1.bf16.msra.mxu0 %v610
    %1485 = vmatprep.subr.bf16.mxu0 %v607
    %1486 = vmatpush1.bf16.msra.mxu0 %v606
    %1487 = vmatprep.subr.bf16.mxu0 %v603
    %1488 = vmatpush1.bf16.msra.mxu0 %v602
    %1489 = vmatprep.subr.bf16.mxu0 %v599
    %1490 = vmatpush1.bf16.msra.mxu0 %v598
    %1491 = vmatprep.subr.bf16.mxu0 %v595
    %1492 = vmatpush1.bf16.msra.mxu0 %v594
    %1493 = vmatprep.subr.bf16.mxu0 %v591
    %1494 = vmatpush1.bf16.msra.mxu0 %v590
    %1495 = vmatprep.subr.bf16.mxu0 0
    %1496 = vmatpush2.bf16.msra.mxu0 0
    %1497 = vmatprep.subr.bf16.mxu0 0
    %1498 = vmatpush2.bf16.msra.mxu0 0
    %1499 = vmatprep.subr.bf16.mxu0 0
    %1500 = vmatpush2.bf16.msra.mxu0 0
    %1501 = vmatprep.subr.bf16.mxu0 0
    %1502 = vmatpush2.bf16.msra.mxu0 0
    %1503 = vmatprep.subr.bf16.mxu0 0
    %1504 = vmatpush2.bf16.msra.mxu0 0
    %1505 = vmatprep.subr.bf16.mxu0 0
    %1506 = vmatpush2.bf16.msra.mxu0 0
    %1507 = vmatprep.subr.bf16.mxu0 0
    %1508 = vmatpush2.bf16.msra.mxu0 0
    %1509 = vmatprep.subr.bf16.mxu0 0
    %1510 = vmatpush2.bf16.msra.mxu0 0
    %1511 = vmatprep.mubr.bf16.mxu0 0
    %1512 = vmatmul.mubr.bf16.gmra.mxu0 %v1478
    %v1513 = vpop.f32.mrf.mxu0
    %v1514 = vadd.f32 0.0, %v1513
    %v1515 = vpop.f32.mrf.mxu0
    %v1516 = vadd.f32 0.0, %v1515
    %v1517 = vpop.f32.mrf.mxu0
    %v1518 = vpop.f32.mrf.mxu0
    %1519 = vdwg.mxu0
    %1520 = vmatprep.subr.bf16.mxu0 %v621
    %1521 = vmatpush1.bf16.msra.mxu0 %v620
    %1522 = vmatprep.subr.bf16.mxu0 %v617
    %1523 = vmatpush1.bf16.msra.mxu0 %v616
    %1524 = vmatprep.subr.bf16.mxu0 %v613
    %1525 = vmatpush1.bf16.msra.mxu0 %v612
    %1526 = vmatprep.subr.bf16.mxu0 %v609
    %1527 = vmatpush1.bf16.msra.mxu0 %v608
    %1528 = vmatprep.subr.bf16.mxu0 %v605
    %1529 = vmatpush1.bf16.msra.mxu0 %v604
    %1530 = vmatprep.subr.bf16.mxu0 %v601
    %1531 = vmatpush1.bf16.msra.mxu0 %v600
    %1532 = vmatprep.subr.bf16.mxu0 %v597
    %1533 = vmatpush1.bf16.msra.mxu0 %v596
    %1534 = vmatprep.subr.bf16.mxu0 %v593
    %1535 = vmatpush1.bf16.msra.mxu0 %v592
    %1536 = vmatprep.subr.bf16.mxu0 0
    %1537 = vmatpush2.bf16.msra.mxu0 0
    %1538 = vmatprep.subr.bf16.mxu0 0
    %1539 = vmatpush2.bf16.msra.mxu0 0
    %1540 = vmatprep.subr.bf16.mxu0 0
    %1541 = vmatpush2.bf16.msra.mxu0 0
    %1542 = vmatprep.subr.bf16.mxu0 0
    %1543 = vmatpush2.bf16.msra.mxu0 0
    %1544 = vmatprep.subr.bf16.mxu0 0
    %1545 = vmatpush2.bf16.msra.mxu0 0
    %1546 = vmatprep.subr.bf16.mxu0 0
    %1547 = vmatpush2.bf16.msra.mxu0 0
    %1548 = vmatprep.subr.bf16.mxu0 0
    %1549 = vmatpush2.bf16.msra.mxu0 0
    %1550 = vmatprep.subr.bf16.mxu0 0
    %1551 = vmatpush2.bf16.msra.mxu0 0
    %1552 = vmatprep.mubr.bf16.mxu0 0
    %1553 = vmatmul.mubr.bf16.gmra.mxu0 %v1478
    %v1554 = vpop.f32.mrf.mxu0
    %v1555 = vadd.f32 0.0, %v1554
    %v1556 = vpop.f32.mrf.mxu0
    %v1557 = vadd.f32 0.0, %v1556
    %v1558 = vpop.f32.mrf.mxu0
    %v1559 = vpop.f32.mrf.mxu0
    %1560 = vdwg.mxu0
    %v1561 = vadd.f32 %v1474, %v1514
    %v1562 = vadd.f32 %v1475, %v1516
    %v1563 = vadd.f32 %v1476, %v1555
    %v1564 = vadd.f32 %v1477, %v1557
    %v1565 = vxor.u32 %v1561, 2147483648
    %v1566 = vxor.u32 %v1562, 2147483648
    %v1567 = vxor.u32 %v1563, 2147483648
    %v1568 = vmul.f32 %v1565, 1.442695
    %v1569 = vpow.pop %v1568
    %v1570 = vmul.f32 %v1566, 1.442695
    %v1571 = vpow.pop %v1570
    %v1572 = vmul.f32 %v1567, 1.442695
    %v1573 = vpow.pop %v1572
    %v1574 = vadd.f32 %v1569, 1.0
    %v1575 = vadd.f32 %v1571, 1.0
    %v1576 = vadd.f32 %v1573, 1.0
    %v1577 = vrcp.pop %v1574
    %v1578 = vmul.f32 1.0, %v1577
    %v1579 = vrcp.pop %v1575
    %v1580 = vmul.f32 1.0, %v1579
    %v1581 = vrcp.pop %v1576
    %v1582 = vmul.f32 1.0, %v1581
    %v1583 = vtanh.pop %v1564
    %v1584 = vmul.f32 %v1580, %v1468
    %v1585 = vmul.f32 %v1578, %v1583
    %v1586 = vadd.f32 %v1584, %v1585
    %v1587 = vtanh.pop %v1586
    %v1588 = vmul.f32 %v1582, %v1587
    %s1589 = scalar_lea.vmem [#allocation2], 56
    %1590 = vst [vmem:[%s1589] sm:$0xff] %v1588
    %v1591 = vld [vmem:[#allocation2] sm:$0xff]
    %v1592 = vld [vmem:[#allocation2 + $0x8] sm:$0xff]
    %v1593 = vld [vmem:[#allocation2 + $0x10] sm:$0xff]
    %v1594 = vld [vmem:[#allocation2 + $0x18] sm:$0xff]
    %v1595 = vld [vmem:[#allocation2 + $0x20] sm:$0xff]
    %v1596 = vld [vmem:[#allocation2 + $0x28] sm:$0xff]
    %v1597 = vld [vmem:[#allocation2 + $0x30] sm:$0xff]
    %v1598 = vld [vmem:[#allocation2 + $0x38] sm:$0xff]
    %v1599 = vpack.c.bf16 %v1592, %v1591
    %v1600 = vpack.c.bf16 %v1594, %v1593
    %v1601 = vpack.c.bf16 %v1596, %v1595
    %v1602 = vpack.c.bf16 %v1598, %v1597
    %s1603 = scalar_lea.vmem [#allocation5], 256
    %v1604 = vld [vmem:[%s1603] sm:$0xff]
    %v1605 = vld [vmem:[%s1603 + $0x8] sm:$0xff]
    %v1606 = vld [vmem:[%s1603 + $0x10] sm:$0xff]
    %v1607 = vld [vmem:[%s1603 + $0x18] sm:$0xff]
    %v1608 = vld [vmem:[%s1603 + $0x20] sm:$0xff]
    %v1609 = vld [vmem:[%s1603 + $0x28] sm:$0xff]
    %v1610 = vld [vmem:[%s1603 + $0x30] sm:$0xff]
    %v1611 = vld [vmem:[%s1603 + $0x38] sm:$0xff]
    %v1612 = vld [vmem:[%s1603 + $0x40] sm:$0xff]
    %v1613 = vld [vmem:[%s1603 + $0x48] sm:$0xff]
    %v1614 = vld [vmem:[%s1603 + $0x50] sm:$0xff]
    %v1615 = vld [vmem:[%s1603 + $0x58] sm:$0xff]
    %v1616 = vld [vmem:[%s1603 + $0x60] sm:$0xff]
    %v1617 = vld [vmem:[%s1603 + $0x68] sm:$0xff]
    %v1618 = vld [vmem:[%s1603 + $0x70] sm:$0xff]
    %v1619 = vld [vmem:[%s1603 + $0x78] sm:$0xff]
    %v1620 = vld [vmem:[%s1603 + $0x80] sm:$0xff]
    %v1621 = vld [vmem:[%s1603 + $0x88] sm:$0xff]
    %v1622 = vld [vmem:[%s1603 + $0x90] sm:$0xff]
    %v1623 = vld [vmem:[%s1603 + $0x98] sm:$0xff]
    %v1624 = vld [vmem:[%s1603 + $0xa0] sm:$0xff]
    %v1625 = vld [vmem:[%s1603 + $0xa8] sm:$0xff]
    %v1626 = vld [vmem:[%s1603 + $0xb0] sm:$0xff]
    %v1627 = vld [vmem:[%s1603 + $0xb8] sm:$0xff]
    %v1628 = vld [vmem:[%s1603 + $0xc0] sm:$0xff]
    %v1629 = vld [vmem:[%s1603 + $0xc8] sm:$0xff]
    %v1630 = vld [vmem:[%s1603 + $0xd0] sm:$0xff]
    %v1631 = vld [vmem:[%s1603 + $0xd8] sm:$0xff]
    %v1632 = vld [vmem:[%s1603 + $0xe0] sm:$0xff]
    %v1633 = vld [vmem:[%s1603 + $0xe8] sm:$0xff]
    %v1634 = vld [vmem:[%s1603 + $0xf0] sm:$0xff]
    %v1635 = vld [vmem:[%s1603 + $0xf8] sm:$0xff]
    %s1636 = scalar_lea.vmem %s3, 4
    %v1637 = vld [vmem:[%s1636] sm:$0xf]
    %v1639 = vlaneseq
    %v1640 = vshrl.u32 %v1639, 7
    %v1641 = vsub.s32 0, %v1640
    %v1642 = vrot.slane %v1637, %v1641
    %v1643 = vlaneseq
    %v1644 = vshrl.u32 %v1643, 7
    %v1645 = vsub.s32 1, %v1644
    %v1646 = vrot.slane %v1637, %v1645
    %v1647 = vlaneseq
    %v1648 = vshrl.u32 %v1647, 7
    %v1649 = vsub.s32 2, %v1648
    %v1650 = vrot.slane %v1637, %v1649
    %v1651 = vlaneseq
    %v1652 = vshrl.u32 %v1651, 7
    %v1653 = vsub.s32 3, %v1652
    %v1654 = vrot.slane %v1637, %v1653
    %v1691 = vunpack.c.l.b16 %v1604
    %v1692 = vunpack.c.h.b16 %v1604
    %v1693 = vunpack.c.l.b16 %v1605
    %v1694 = vunpack.c.h.b16 %v1605
    %v1695 = vunpack.c.l.b16 %v1606
    %v1696 = vunpack.c.h.b16 %v1606
    %v1697 = vunpack.c.l.b16 %v1607
    %v1698 = vunpack.c.h.b16 %v1607
    %v1699 = vunpack.c.l.b16 %v1608
    %v1700 = vunpack.c.h.b16 %v1608
    %v1701 = vunpack.c.l.b16 %v1609
    %v1702 = vunpack.c.h.b16 %v1609
    %v1703 = vunpack.c.l.b16 %v1610
    %v1704 = vunpack.c.h.b16 %v1610
    %v1705 = vunpack.c.l.b16 %v1611
    %v1706 = vunpack.c.h.b16 %v1611
    %v1707 = vunpack.c.l.b16 %v1612
    %v1708 = vunpack.c.h.b16 %v1612
    %v1709 = vunpack.c.l.b16 %v1613
    %v1710 = vunpack.c.h.b16 %v1613
    %v1711 = vunpack.c.l.b16 %v1614
    %v1712 = vunpack.c.h.b16 %v1614
    %v1713 = vunpack.c.l.b16 %v1615
    %v1714 = vunpack.c.h.b16 %v1615
    %v1715 = vunpack.c.l.b16 %v1616
    %v1716 = vunpack.c.h.b16 %v1616
    %v1717 = vunpack.c.l.b16 %v1617
    %v1718 = vunpack.c.h.b16 %v1617
    %v1719 = vunpack.c.l.b16 %v1618
    %v1720 = vunpack.c.h.b16 %v1618
    %v1721 = vunpack.c.l.b16 %v1619
    %v1722 = vunpack.c.h.b16 %v1619
    %v1723 = vunpack.c.l.b16 %v1620
    %v1724 = vunpack.c.h.b16 %v1620
    %v1725 = vunpack.c.l.b16 %v1621
    %v1726 = vunpack.c.h.b16 %v1621
    %v1727 = vunpack.c.l.b16 %v1622
    %v1728 = vunpack.c.h.b16 %v1622
    %v1729 = vunpack.c.l.b16 %v1623
    %v1730 = vunpack.c.h.b16 %v1623
    %v1731 = vunpack.c.l.b16 %v1624
    %v1732 = vunpack.c.h.b16 %v1624
    %v1733 = vunpack.c.l.b16 %v1625
    %v1734 = vunpack.c.h.b16 %v1625
    %v1735 = vunpack.c.l.b16 %v1626
    %v1736 = vunpack.c.h.b16 %v1626
    %v1737 = vunpack.c.l.b16 %v1627
    %v1738 = vunpack.c.h.b16 %v1627
    %v1739 = vunpack.c.l.b16 %v1628
    %v1740 = vunpack.c.h.b16 %v1628
    %v1741 = vunpack.c.l.b16 %v1629
    %v1742 = vunpack.c.h.b16 %v1629
    %v1743 = vunpack.c.l.b16 %v1630
    %v1744 = vunpack.c.h.b16 %v1630
    %v1745 = vunpack.c.l.b16 %v1631
    %v1746 = vunpack.c.h.b16 %v1631
    %v1747 = vunpack.c.l.b16 %v1632
    %v1748 = vunpack.c.h.b16 %v1632
    %v1749 = vunpack.c.l.b16 %v1633
    %v1750 = vunpack.c.h.b16 %v1633
    %v1751 = vunpack.c.l.b16 %v1634
    %v1752 = vunpack.c.h.b16 %v1634
    %v1753 = vunpack.c.l.b16 %v1635
    %v1754 = vunpack.c.h.b16 %v1635
    %v1755 = vpack.c.b16 %v1695, %v1691
    %v1756 = vpack.c.b16 %v1696, %v1692
    %v1757 = vpack.c.b16 %v1697, %v1693
    %v1758 = vpack.c.b16 %v1698, %v1694
    %v1759 = vpack.c.b16 %v1703, %v1699
    %v1760 = vpack.c.b16 %v1704, %v1700
    %v1761 = vpack.c.b16 %v1705, %v1701
    %v1762 = vpack.c.b16 %v1706, %v1702
    %v1763 = vpack.c.b16 %v1711, %v1707
    %v1764 = vpack.c.b16 %v1712, %v1708
    %v1765 = vpack.c.b16 %v1713, %v1709
    %v1766 = vpack.c.b16 %v1714, %v1710
    %v1767 = vpack.c.b16 %v1719, %v1715
    %v1768 = vpack.c.b16 %v1720, %v1716
    %v1769 = vpack.c.b16 %v1721, %v1717
    %v1770 = vpack.c.b16 %v1722, %v1718
    %v1771 = vpack.c.b16 %v1727, %v1723
    %v1772 = vpack.c.b16 %v1728, %v1724
    %v1773 = vpack.c.b16 %v1729, %v1725
    %v1774 = vpack.c.b16 %v1730, %v1726
    %v1775 = vpack.c.b16 %v1735, %v1731
    %v1776 = vpack.c.b16 %v1736, %v1732
    %v1777 = vpack.c.b16 %v1737, %v1733
    %v1778 = vpack.c.b16 %v1738, %v1734
    %v1779 = vpack.c.b16 %v1743, %v1739
    %v1780 = vpack.c.b16 %v1744, %v1740
    %v1781 = vpack.c.b16 %v1745, %v1741
    %v1782 = vpack.c.b16 %v1746, %v1742
    %v1783 = vpack.c.b16 %v1751, %v1747
    %v1784 = vpack.c.b16 %v1752, %v1748
    %v1785 = vpack.c.b16 %v1753, %v1749
    %v1786 = vpack.c.b16 %v1754, %v1750
    %1819 = vmatprep.subr.bf16.mxu0 %v1784
    %1820 = vmatpush1.bf16.msra.mxu0 %v1783
    %1821 = vmatprep.subr.bf16.mxu0 %v1780
    %1822 = vmatpush1.bf16.msra.mxu0 %v1779
    %1823 = vmatprep.subr.bf16.mxu0 %v1776
    %1824 = vmatpush1.bf16.msra.mxu0 %v1775
    %1825 = vmatprep.subr.bf16.mxu0 %v1772
    %1826 = vmatpush1.bf16.msra.mxu0 %v1771
    %1827 = vmatprep.subr.bf16.mxu0 %v1768
    %1828 = vmatpush1.bf16.msra.mxu0 %v1767
    %1829 = vmatprep.subr.bf16.mxu0 %v1764
    %1830 = vmatpush1.bf16.msra.mxu0 %v1763
    %1831 = vmatprep.subr.bf16.mxu0 %v1760
    %1832 = vmatpush1.bf16.msra.mxu0 %v1759
    %1833 = vmatprep.subr.bf16.mxu0 %v1756
    %1834 = vmatpush1.bf16.msra.mxu0 %v1755
    %1835 = vmatprep.subr.bf16.mxu0 0
    %1836 = vmatpush2.bf16.msra.mxu0 0
    %1837 = vmatprep.subr.bf16.mxu0 0
    %1838 = vmatpush2.bf16.msra.mxu0 0
    %1839 = vmatprep.subr.bf16.mxu0 0
    %1840 = vmatpush2.bf16.msra.mxu0 0
    %1841 = vmatprep.subr.bf16.mxu0 0
    %1842 = vmatpush2.bf16.msra.mxu0 0
    %1843 = vmatprep.subr.bf16.mxu0 0
    %1844 = vmatpush2.bf16.msra.mxu0 0
    %1845 = vmatprep.subr.bf16.mxu0 0
    %1846 = vmatpush2.bf16.msra.mxu0 0
    %1847 = vmatprep.subr.bf16.mxu0 0
    %1848 = vmatpush2.bf16.msra.mxu0 0
    %1849 = vmatprep.subr.bf16.mxu0 0
    %1850 = vmatpush2.bf16.msra.mxu0 0
    %1851 = vmatprep.mubr.bf16.mxu0 0
    %1852 = vmatmul.mubr.bf16.gmra.mxu0 %v1599
    %v1853 = vpop.f32.mrf.mxu0
    %v1854 = vadd.f32 %v1642, %v1853
    %v1855 = vpop.f32.mrf.mxu0
    %v1856 = vadd.f32 %v1646, %v1855
    %v1857 = vpop.f32.mrf.mxu0
    %v1858 = vadd.f32 %v1642, %v1857
    %v1859 = vpop.f32.mrf.mxu0
    %v1860 = vadd.f32 %v1646, %v1859
    %1861 = vmatprep.mubr.bf16.mxu0 0
    %1862 = vmatmul.mubr.bf16.gmra.mxu0 %v1600
    %v1863 = vpop.f32.mrf.mxu0
    %v1864 = vadd.f32 %v1642, %v1863
    %v1865 = vpop.f32.mrf.mxu0
    %v1866 = vadd.f32 %v1646, %v1865
    %v1867 = vpop.f32.mrf.mxu0
    %v1868 = vadd.f32 %v1642, %v1867
    %v1869 = vpop.f32.mrf.mxu0
    %v1870 = vadd.f32 %v1646, %v1869
    %1871 = vmatprep.mubr.bf16.mxu0 0
    %1872 = vmatmul.mubr.bf16.gmra.mxu0 %v1601
    %v1873 = vpop.f32.mrf.mxu0
    %v1874 = vadd.f32 %v1642, %v1873
    %v1875 = vpop.f32.mrf.mxu0
    %v1876 = vadd.f32 %v1646, %v1875
    %v1877 = vpop.f32.mrf.mxu0
    %v1878 = vadd.f32 %v1642, %v1877
    %v1879 = vpop.f32.mrf.mxu0
    %v1880 = vadd.f32 %v1646, %v1879
    %1881 = vmatprep.mubr.bf16.mxu0 0
    %1882 = vmatmul.mubr.bf16.gmra.mxu0 %v1602
    %v1883 = vpop.f32.mrf.mxu0
    %v1884 = vadd.f32 %v1642, %v1883
    %v1885 = vpop.f32.mrf.mxu0
    %v1886 = vadd.f32 %v1646, %v1885
    %v1887 = vpop.f32.mrf.mxu0
    %v1888 = vadd.f32 %v1642, %v1887
    %v1889 = vpop.f32.mrf.mxu0
    %v1890 = vadd.f32 %v1646, %v1889
    %1891 = vdwg.mxu0
    %1892 = vmatprep.subr.bf16.mxu0 %v1786
    %1893 = vmatpush1.bf16.msra.mxu0 %v1785
    %1894 = vmatprep.subr.bf16.mxu0 %v1782
    %1895 = vmatpush1.bf16.msra.mxu0 %v1781
    %1896 = vmatprep.subr.bf16.mxu0 %v1778
    %1897 = vmatpush1.bf16.msra.mxu0 %v1777
    %1898 = vmatprep.subr.bf16.mxu0 %v1774
    %1899 = vmatpush1.bf16.msra.mxu0 %v1773
    %1900 = vmatprep.subr.bf16.mxu0 %v1770
    %1901 = vmatpush1.bf16.msra.mxu0 %v1769
    %1902 = vmatprep.subr.bf16.mxu0 %v1766
    %1903 = vmatpush1.bf16.msra.mxu0 %v1765
    %1904 = vmatprep.subr.bf16.mxu0 %v1762
    %1905 = vmatpush1.bf16.msra.mxu0 %v1761
    %1906 = vmatprep.subr.bf16.mxu0 %v1758
    %1907 = vmatpush1.bf16.msra.mxu0 %v1757
    %1908 = vmatprep.subr.bf16.mxu0 0
    %1909 = vmatpush2.bf16.msra.mxu0 0
    %1910 = vmatprep.subr.bf16.mxu0 0
    %1911 = vmatpush2.bf16.msra.mxu0 0
    %1912 = vmatprep.subr.bf16.mxu0 0
    %1913 = vmatpush2.bf16.msra.mxu0 0
    %1914 = vmatprep.subr.bf16.mxu0 0
    %1915 = vmatpush2.bf16.msra.mxu0 0
    %1916 = vmatprep.subr.bf16.mxu0 0
    %1917 = vmatpush2.bf16.msra.mxu0 0
    %1918 = vmatprep.subr.bf16.mxu0 0
    %1919 = vmatpush2.bf16.msra.mxu0 0
    %1920 = vmatprep.subr.bf16.mxu0 0
    %1921 = vmatpush2.bf16.msra.mxu0 0
    %1922 = vmatprep.subr.bf16.mxu0 0
    %1923 = vmatpush2.bf16.msra.mxu0 0
    %1924 = vmatprep.mubr.bf16.mxu0 0
    %1925 = vmatmul.mubr.bf16.gmra.mxu0 %v1599
    %v1926 = vpop.f32.mrf.mxu0
    %v1927 = vadd.f32 %v1650, %v1926
    %v1928 = vpop.f32.mrf.mxu0
    %v1929 = vadd.f32 %v1654, %v1928
    %v1930 = vpop.f32.mrf.mxu0
    %v1931 = vadd.f32 %v1650, %v1930
    %v1932 = vpop.f32.mrf.mxu0
    %v1933 = vadd.f32 %v1654, %v1932
    %1934 = vmatprep.mubr.bf16.mxu0 0
    %1935 = vmatmul.mubr.bf16.gmra.mxu0 %v1600
    %v1936 = vpop.f32.mrf.mxu0
    %v1937 = vadd.f32 %v1650, %v1936
    %v1938 = vpop.f32.mrf.mxu0
    %v1939 = vadd.f32 %v1654, %v1938
    %v1940 = vpop.f32.mrf.mxu0
    %v1941 = vadd.f32 %v1650, %v1940
    %v1942 = vpop.f32.mrf.mxu0
    %v1943 = vadd.f32 %v1654, %v1942
    %1944 = vmatprep.mubr.bf16.mxu0 0
    %1945 = vmatmul.mubr.bf16.gmra.mxu0 %v1601
    %v1946 = vpop.f32.mrf.mxu0
    %v1947 = vadd.f32 %v1650, %v1946
    %v1948 = vpop.f32.mrf.mxu0
    %v1949 = vadd.f32 %v1654, %v1948
    %v1950 = vpop.f32.mrf.mxu0
    %v1951 = vadd.f32 %v1650, %v1950
    %v1952 = vpop.f32.mrf.mxu0
    %v1953 = vadd.f32 %v1654, %v1952
    %1954 = vmatprep.mubr.bf16.mxu0 0
    %1955 = vmatmul.mubr.bf16.gmra.mxu0 %v1602
    %v1956 = vpop.f32.mrf.mxu0
    %v1957 = vadd.f32 %v1650, %v1956
    %v1958 = vpop.f32.mrf.mxu0
    %v1959 = vadd.f32 %v1654, %v1958
    %v1960 = vpop.f32.mrf.mxu0
    %v1961 = vadd.f32 %v1650, %v1960
    %v1962 = vpop.f32.mrf.mxu0
    %v1963 = vadd.f32 %v1654, %v1962
    %1964 = vdwg.mxu0
    %1965 = vst [vmem:[#allocation3] sm:$0xff] %v1854
    %1966 = vst [vmem:[#allocation3 + $0x8] sm:$0xff] %v1856
    %1967 = vst [vmem:[#allocation3 + $0x10] sm:$0xff] %v1927
    %1968 = vst [vmem:[#allocation3 + $0x18] sm:$0xff] %v1929
    %1969 = vst [vmem:[#allocation3 + $0x20] sm:$0xff] %v1858
    %1970 = vst [vmem:[#allocation3 + $0x28] sm:$0xff] %v1860
    %1971 = vst [vmem:[#allocation3 + $0x30] sm:$0xff] %v1931
    %1972 = vst [vmem:[#allocation3 + $0x38] sm:$0xff] %v1933
    %1973 = vst [vmem:[#allocation3 + $0x40] sm:$0xff] %v1864
    %1974 = vst [vmem:[#allocation3 + $0x48] sm:$0xff] %v1866
    %1975 = vst [vmem:[#allocation3 + $0x50] sm:$0xff] %v1937
    %1976 = vst [vmem:[#allocation3 + $0x58] sm:$0xff] %v1939
    %1977 = vst [vmem:[#allocation3 + $0x60] sm:$0xff] %v1868
    %1978 = vst [vmem:[#allocation3 + $0x68] sm:$0xff] %v1870
    %1979 = vst [vmem:[#allocation3 + $0x70] sm:$0xff] %v1941
    %1980 = vst [vmem:[#allocation3 + $0x78] sm:$0xff] %v1943
    %1981 = vst [vmem:[#allocation3 + $0x80] sm:$0xff] %v1874
    %1982 = vst [vmem:[#allocation3 + $0x88] sm:$0xff] %v1876
    %1983 = vst [vmem:[#allocation3 + $0x90] sm:$0xff] %v1947
    %1984 = vst [vmem:[#allocation3 + $0x98] sm:$0xff] %v1949
    %1985 = vst [vmem:[#allocation3 + $0xa0] sm:$0xff] %v1878
    %1986 = vst [vmem:[#allocation3 + $0xa8] sm:$0xff] %v1880
    %1987 = vst [vmem:[#allocation3 + $0xb0] sm:$0xff] %v1951
    %1988 = vst [vmem:[#allocation3 + $0xb8] sm:$0xff] %v1953
    %1989 = vst [vmem:[#allocation3 + $0xc0] sm:$0xff] %v1884
    %1990 = vst [vmem:[#allocation3 + $0xc8] sm:$0xff] %v1886
    %1991 = vst [vmem:[#allocation3 + $0xd0] sm:$0xff] %v1957
    %1992 = vst [vmem:[#allocation3 + $0xd8] sm:$0xff] %v1959
    %1993 = vst [vmem:[#allocation3 + $0xe0] sm:$0xff] %v1888
    %1994 = vst [vmem:[#allocation3 + $0xe8] sm:$0xff] %v1890
    %1995 = vst [vmem:[#allocation3 + $0xf0] sm:$0xff] %v1961
    %1996 = vst [vmem:[#allocation3 + $0xf8] sm:$0xff] %v1963
    %s1997 = scalar_lea.vmem [#allocation7], 256
    %v1998 = vld [vmem:[%s1997] sm:$0xff]
    %v1999 = vld [vmem:[%s1997 + $0x8] sm:$0xff]
    %v2000 = vld [vmem:[%s1997 + $0x10] sm:$0xff]
    %v2001 = vld [vmem:[%s1997 + $0x18] sm:$0xff]
    %v2002 = vld [vmem:[%s1997 + $0x20] sm:$0xff]
    %v2003 = vld [vmem:[%s1997 + $0x28] sm:$0xff]
    %v2004 = vld [vmem:[%s1997 + $0x30] sm:$0xff]
    %v2005 = vld [vmem:[%s1997 + $0x38] sm:$0xff]
    %v2006 = vld [vmem:[%s1997 + $0x40] sm:$0xff]
    %v2007 = vld [vmem:[%s1997 + $0x48] sm:$0xff]
    %v2008 = vld [vmem:[%s1997 + $0x50] sm:$0xff]
    %v2009 = vld [vmem:[%s1997 + $0x58] sm:$0xff]
    %v2010 = vld [vmem:[%s1997 + $0x60] sm:$0xff]
    %v2011 = vld [vmem:[%s1997 + $0x68] sm:$0xff]
    %v2012 = vld [vmem:[%s1997 + $0x70] sm:$0xff]
    %v2013 = vld [vmem:[%s1997 + $0x78] sm:$0xff]
    %v2014 = vld [vmem:[%s1997 + $0x80] sm:$0xff]
    %v2015 = vld [vmem:[%s1997 + $0x88] sm:$0xff]
    %v2016 = vld [vmem:[%s1997 + $0x90] sm:$0xff]
    %v2017 = vld [vmem:[%s1997 + $0x98] sm:$0xff]
    %v2018 = vld [vmem:[%s1997 + $0xa0] sm:$0xff]
    %v2019 = vld [vmem:[%s1997 + $0xa8] sm:$0xff]
    %v2020 = vld [vmem:[%s1997 + $0xb0] sm:$0xff]
    %v2021 = vld [vmem:[%s1997 + $0xb8] sm:$0xff]
    %v2022 = vld [vmem:[%s1997 + $0xc0] sm:$0xff]
    %v2023 = vld [vmem:[%s1997 + $0xc8] sm:$0xff]
    %v2024 = vld [vmem:[%s1997 + $0xd0] sm:$0xff]
    %v2025 = vld [vmem:[%s1997 + $0xd8] sm:$0xff]
    %v2026 = vld [vmem:[%s1997 + $0xe0] sm:$0xff]
    %v2027 = vld [vmem:[%s1997 + $0xe8] sm:$0xff]
    %v2028 = vld [vmem:[%s1997 + $0xf0] sm:$0xff]
    %v2029 = vld [vmem:[%s1997 + $0xf8] sm:$0xff]
    %v2030 = vld [vmem:[#allocation3] sm:$0xff]
    %v2031 = vld [vmem:[#allocation3 + $0x8] sm:$0xff]
    %v2032 = vld [vmem:[#allocation3 + $0x10] sm:$0xff]
    %v2033 = vld [vmem:[#allocation3 + $0x18] sm:$0xff]
    %v2066 = vunpack.c.l.b16 %v1998
    %v2067 = vunpack.c.h.b16 %v1998
    %v2068 = vunpack.c.l.b16 %v1999
    %v2069 = vunpack.c.h.b16 %v1999
    %v2070 = vunpack.c.l.b16 %v2000
    %v2071 = vunpack.c.h.b16 %v2000
    %v2072 = vunpack.c.l.b16 %v2001
    %v2073 = vunpack.c.h.b16 %v2001
    %v2074 = vunpack.c.l.b16 %v2002
    %v2075 = vunpack.c.h.b16 %v2002
    %v2076 = vunpack.c.l.b16 %v2003
    %v2077 = vunpack.c.h.b16 %v2003
    %v2078 = vunpack.c.l.b16 %v2004
    %v2079 = vunpack.c.h.b16 %v2004
    %v2080 = vunpack.c.l.b16 %v2005
    %v2081 = vunpack.c.h.b16 %v2005
    %v2082 = vunpack.c.l.b16 %v2006
    %v2083 = vunpack.c.h.b16 %v2006
    %v2084 = vunpack.c.l.b16 %v2007
    %v2085 = vunpack.c.h.b16 %v2007
    %v2086 = vunpack.c.l.b16 %v2008
    %v2087 = vunpack.c.h.b16 %v2008
    %v2088 = vunpack.c.l.b16 %v2009
    %v2089 = vunpack.c.h.b16 %v2009
    %v2090 = vunpack.c.l.b16 %v2010
    %v2091 = vunpack.c.h.b16 %v2010
    %v2092 = vunpack.c.l.b16 %v2011
    %v2093 = vunpack.c.h.b16 %v2011
    %v2094 = vunpack.c.l.b16 %v2012
    %v2095 = vunpack.c.h.b16 %v2012
    %v2096 = vunpack.c.l.b16 %v2013
    %v2097 = vunpack.c.h.b16 %v2013
    %v2098 = vunpack.c.l.b16 %v2014
    %v2099 = vunpack.c.h.b16 %v2014
    %v2100 = vunpack.c.l.b16 %v2015
    %v2101 = vunpack.c.h.b16 %v2015
    %v2102 = vunpack.c.l.b16 %v2016
    %v2103 = vunpack.c.h.b16 %v2016
    %v2104 = vunpack.c.l.b16 %v2017
    %v2105 = vunpack.c.h.b16 %v2017
    %v2106 = vunpack.c.l.b16 %v2018
    %v2107 = vunpack.c.h.b16 %v2018
    %v2108 = vunpack.c.l.b16 %v2019
    %v2109 = vunpack.c.h.b16 %v2019
    %v2110 = vunpack.c.l.b16 %v2020
    %v2111 = vunpack.c.h.b16 %v2020
    %v2112 = vunpack.c.l.b16 %v2021
    %v2113 = vunpack.c.h.b16 %v2021
    %v2114 = vunpack.c.l.b16 %v2022
    %v2115 = vunpack.c.h.b16 %v2022
    %v2116 = vunpack.c.l.b16 %v2023
    %v2117 = vunpack.c.h.b16 %v2023
    %v2118 = vunpack.c.l.b16 %v2024
    %v2119 = vunpack.c.h.b16 %v2024
    %v2120 = vunpack.c.l.b16 %v2025
    %v2121 = vunpack.c.h.b16 %v2025
    %v2122 = vunpack.c.l.b16 %v2026
    %v2123 = vunpack.c.h.b16 %v2026
    %v2124 = vunpack.c.l.b16 %v2027
    %v2125 = vunpack.c.h.b16 %v2027
    %v2126 = vunpack.c.l.b16 %v2028
    %v2127 = vunpack.c.h.b16 %v2028
    %v2128 = vunpack.c.l.b16 %v2029
    %v2129 = vunpack.c.h.b16 %v2029
    %v2130 = vpack.c.b16 %v2070, %v2066
    %v2131 = vpack.c.b16 %v2071, %v2067
    %v2132 = vpack.c.b16 %v2072, %v2068
    %v2133 = vpack.c.b16 %v2073, %v2069
    %v2134 = vpack.c.b16 %v2078, %v2074
    %v2135 = vpack.c.b16 %v2079, %v2075
    %v2136 = vpack.c.b16 %v2080, %v2076
    %v2137 = vpack.c.b16 %v2081, %v2077
    %v2138 = vpack.c.b16 %v2086, %v2082
    %v2139 = vpack.c.b16 %v2087, %v2083
    %v2140 = vpack.c.b16 %v2088, %v2084
    %v2141 = vpack.c.b16 %v2089, %v2085
    %v2142 = vpack.c.b16 %v2094, %v2090
    %v2143 = vpack.c.b16 %v2095, %v2091
    %v2144 = vpack.c.b16 %v2096, %v2092
    %v2145 = vpack.c.b16 %v2097, %v2093
    %v2146 = vpack.c.b16 %v2102, %v2098
    %v2147 = vpack.c.b16 %v2103, %v2099
    %v2148 = vpack.c.b16 %v2104, %v2100
    %v2149 = vpack.c.b16 %v2105, %v2101
    %v2150 = vpack.c.b16 %v2110, %v2106
    %v2151 = vpack.c.b16 %v2111, %v2107
    %v2152 = vpack.c.b16 %v2112, %v2108
    %v2153 = vpack.c.b16 %v2113, %v2109
    %v2154 = vpack.c.b16 %v2118, %v2114
    %v2155 = vpack.c.b16 %v2119, %v2115
    %v2156 = vpack.c.b16 %v2120, %v2116
    %v2157 = vpack.c.b16 %v2121, %v2117
    %v2158 = vpack.c.b16 %v2126, %v2122
    %v2159 = vpack.c.b16 %v2127, %v2123
    %v2160 = vpack.c.b16 %v2128, %v2124
    %v2161 = vpack.c.b16 %v2129, %v2125
    %2194 = vmatprep.subr.bf16.mxu0 %v2159
    %2195 = vmatpush1.bf16.msra.mxu0 %v2158
    %2196 = vmatprep.subr.bf16.mxu0 %v2155
    %2197 = vmatpush1.bf16.msra.mxu0 %v2154
    %2198 = vmatprep.subr.bf16.mxu0 %v2151
    %2199 = vmatpush1.bf16.msra.mxu0 %v2150
    %2200 = vmatprep.subr.bf16.mxu0 %v2147
    %2201 = vmatpush1.bf16.msra.mxu0 %v2146
    %2202 = vmatprep.subr.bf16.mxu0 %v2143
    %2203 = vmatpush1.bf16.msra.mxu0 %v2142
    %2204 = vmatprep.subr.bf16.mxu0 %v2139
    %2205 = vmatpush1.bf16.msra.mxu0 %v2138
    %2206 = vmatprep.subr.bf16.mxu0 %v2135
    %2207 = vmatpush1.bf16.msra.mxu0 %v2134
    %2208 = vmatprep.subr.bf16.mxu0 %v2131
    %2209 = vmatpush1.bf16.msra.mxu0 %v2130
    %2210 = vmatprep.subr.bf16.mxu0 0
    %2211 = vmatpush2.bf16.msra.mxu0 0
    %2212 = vmatprep.subr.bf16.mxu0 0
    %2213 = vmatpush2.bf16.msra.mxu0 0
    %2214 = vmatprep.subr.bf16.mxu0 0
    %2215 = vmatpush2.bf16.msra.mxu0 0
    %2216 = vmatprep.subr.bf16.mxu0 0
    %2217 = vmatpush2.bf16.msra.mxu0 0
    %2218 = vmatprep.subr.bf16.mxu0 0
    %2219 = vmatpush2.bf16.msra.mxu0 0
    %2220 = vmatprep.subr.bf16.mxu0 0
    %2221 = vmatpush2.bf16.msra.mxu0 0
    %2222 = vmatprep.subr.bf16.mxu0 0
    %2223 = vmatpush2.bf16.msra.mxu0 0
    %2224 = vmatprep.subr.bf16.mxu0 0
    %2225 = vmatpush2.bf16.msra.mxu0 0
    %2226 = vmatprep.mubr.bf16.mxu0 0
    %2227 = vmatmul.mubr.bf16.gmra.mxu0 0
    %v2228 = vpop.f32.mrf.mxu0
    %v2229 = vadd.f32 0.0, %v2228
    %v2230 = vpop.f32.mrf.mxu0
    %v2231 = vadd.f32 0.0, %v2230
    %v2232 = vpop.f32.mrf.mxu0
    %v2233 = vpop.f32.mrf.mxu0
    %2234 = vdwg.mxu0
    %2235 = vmatprep.subr.bf16.mxu0 %v2161
    %2236 = vmatpush1.bf16.msra.mxu0 %v2160
    %2237 = vmatprep.subr.bf16.mxu0 %v2157
    %2238 = vmatpush1.bf16.msra.mxu0 %v2156
    %2239 = vmatprep.subr.bf16.mxu0 %v2153
    %2240 = vmatpush1.bf16.msra.mxu0 %v2152
    %2241 = vmatprep.subr.bf16.mxu0 %v2149
    %2242 = vmatpush1.bf16.msra.mxu0 %v2148
    %2243 = vmatprep.subr.bf16.mxu0 %v2145
    %2244 = vmatpush1.bf16.msra.mxu0 %v2144
    %2245 = vmatprep.subr.bf16.mxu0 %v2141
    %2246 = vmatpush1.bf16.msra.mxu0 %v2140
    %2247 = vmatprep.subr.bf16.mxu0 %v2137
    %2248 = vmatpush1.bf16.msra.mxu0 %v2136
    %2249 = vmatprep.subr.bf16.mxu0 %v2133
    %2250 = vmatpush1.bf16.msra.mxu0 %v2132
    %2251 = vmatprep.subr.bf16.mxu0 0
    %2252 = vmatpush2.bf16.msra.mxu0 0
    %2253 = vmatprep.subr.bf16.mxu0 0
    %2254 = vmatpush2.bf16.msra.mxu0 0
    %2255 = vmatprep.subr.bf16.mxu0 0
    %2256 = vmatpush2.bf16.msra.mxu0 0
    %2257 = vmatprep.subr.bf16.mxu0 0
    %2258 = vmatpush2.bf16.msra.mxu0 0
    %2259 = vmatprep.subr.bf16.mxu0 0
    %2260 = vmatpush2.bf16.msra.mxu0 0
    %2261 = vmatprep.subr.bf16.mxu0 0
    %2262 = vmatpush2.bf16.msra.mxu0 0
    %2263 = vmatprep.subr.bf16.mxu0 0
    %2264 = vmatpush2.bf16.msra.mxu0 0
    %2265 = vmatprep.subr.bf16.mxu0 0
    %2266 = vmatpush2.bf16.msra.mxu0 0
    %2267 = vmatprep.mubr.bf16.mxu0 0
    %2268 = vmatmul.mubr.bf16.gmra.mxu0 0
    %v2269 = vpop.f32.mrf.mxu0
    %v2270 = vadd.f32 0.0, %v2269
    %v2271 = vpop.f32.mrf.mxu0
    %v2272 = vadd.f32 0.0, %v2271
    %v2273 = vpop.f32.mrf.mxu0
    %v2274 = vpop.f32.mrf.mxu0
    %2275 = vdwg.mxu0
    %v2276 = vadd.f32 %v2030, %v2229
    %v2277 = vadd.f32 %v2031, %v2231
    %v2278 = vadd.f32 %v2032, %v2270
    %v2279 = vadd.f32 %v2033, %v2272
    %v2280 = vxor.u32 %v2276, 2147483648
    %v2281 = vxor.u32 %v2277, 2147483648
    %v2282 = vxor.u32 %v2278, 2147483648
    %v2283 = vmul.f32 %v2280, 1.442695
    %v2284 = vpow.pop %v2283
    %v2285 = vmul.f32 %v2281, 1.442695
    %v2286 = vpow.pop %v2285
    %v2287 = vmul.f32 %v2282, 1.442695
    %v2288 = vpow.pop %v2287
    %v2289 = vadd.f32 %v2284, 1.0
    %v2290 = vadd.f32 %v2286, 1.0
    %v2291 = vadd.f32 %v2288, 1.0
    %v2292 = vrcp.pop %v2289
    %v2293 = vmul.f32 1.0, %v2292
    %v2294 = vrcp.pop %v2290
    %v2295 = vmul.f32 1.0, %v2294
    %v2296 = vrcp.pop %v2291
    %v2297 = vmul.f32 1.0, %v2296
    %v2298 = vtanh.pop %v2279
    %v2299 = vmul.f32 %v2295, 0.0
    %v2300 = vmul.f32 %v2293, %v2298
    %v2301 = vadd.f32 %v2299, %v2300
    %v2302 = vtanh.pop %v2301
    %v2303 = vmul.f32 %v2297, %v2302
    %2304 = vst [vmem:[#allocation2] sm:$0xff] %v2303
    %v2305 = vld [vmem:[%s765] sm:$0xff]
    %v2306 = vld [vmem:[%s765 + $0x8] sm:$0xff]
    %v2307 = vld [vmem:[%s765 + $0x10] sm:$0xff]
    %v2308 = vld [vmem:[%s765 + $0x18] sm:$0xff]
    %v2309 = vpack.c.bf16 %v2303, %v2303
    %2310 = vmatprep.subr.bf16.mxu0 %v2159
    %2311 = vmatpush1.bf16.msra.mxu0 %v2158
    %2312 = vmatprep.subr.bf16.mxu0 %v2155
    %2313 = vmatpush1.bf16.msra.mxu0 %v2154
    %2314 = vmatprep.subr.bf16.mxu0 %v2151
    %2315 = vmatpush1.bf16.msra.mxu0 %v2150
    %2316 = vmatprep.subr.bf16.mxu0 %v2147
    %2317 = vmatpush1.bf16.msra.mxu0 %v2146
    %2318 = vmatprep.subr.bf16.mxu0 %v2143
    %2319 = vmatpush1.bf16.msra.mxu0 %v2142
    %2320 = vmatprep.subr.bf16.mxu0 %v2139
    %2321 = vmatpush1.bf16.msra.mxu0 %v2138
    %2322 = vmatprep.subr.bf16.mxu0 %v2135
    %2323 = vmatpush1.bf16.msra.mxu0 %v2134
    %2324 = vmatprep.subr.bf16.mxu0 %v2131
    %2325 = vmatpush1.bf16.msra.mxu0 %v2130
    %2326 = vmatprep.subr.bf16.mxu0 0
    %2327 = vmatpush2.bf16.msra.mxu0 0
    %2328 = vmatprep.subr.bf16.mxu0 0
    %2329 = vmatpush2.bf16.msra.mxu0 0
    %2330 = vmatprep.subr.bf16.mxu0 0
    %2331 = vmatpush2.bf16.msra.mxu0 0
    %2332 = vmatprep.subr.bf16.mxu0 0
    %2333 = vmatpush2.bf16.msra.mxu0 0
    %2334 = vmatprep.subr.bf16.mxu0 0
    %2335 = vmatpush2.bf16.msra.mxu0 0
    %2336 = vmatprep.subr.bf16.mxu0 0
    %2337 = vmatpush2.bf16.msra.mxu0 0
    %2338 = vmatprep.subr.bf16.mxu0 0
    %2339 = vmatpush2.bf16.msra.mxu0 0
    %2340 = vmatprep.subr.bf16.mxu0 0
    %2341 = vmatpush2.bf16.msra.mxu0 0
    %2342 = vmatprep.mubr.bf16.mxu0 0
    %2343 = vmatmul.mubr.bf16.gmra.mxu0 %v2309
    %v2344 = vpop.f32.mrf.mxu0
    %v2345 = vadd.f32 0.0, %v2344
    %v2346 = vpop.f32.mrf.mxu0
    %v2347 = vadd.f32 0.0, %v2346
    %v2348 = vpop.f32.mrf.mxu0
    %v2349 = vpop.f32.mrf.mxu0
    %2350 = vdwg.mxu0
    %2351 = vmatprep.subr.bf16.mxu0 %v2161
    %2352 = vmatpush1.bf16.msra.mxu0 %v2160
    %2353 = vmatprep.subr.bf16.mxu0 %v2157
    %2354 = vmatpush1.bf16.msra.mxu0 %v2156
    %2355 = vmatprep.subr.bf16.mxu0 %v2153
    %2356 = vmatpush1.bf16.msra.mxu0 %v2152
    %2357 = vmatprep.subr.bf16.mxu0 %v2149
    %2358 = vmatpush1.bf16.msra.mxu0 %v2148
    %2359 = vmatprep.subr.bf16.mxu0 %v2145
    %2360 = vmatpush1.bf16.msra.mxu0 %v2144
    %2361 = vmatprep.subr.bf16.mxu0 %v2141
    %2362 = vmatpush1.bf16.msra.mxu0 %v2140
    %2363 = vmatprep.subr.bf16.mxu0 %v2137
    %2364 = vmatpush1.bf16.msra.mxu0 %v2136
    %2365 = vmatprep.subr.bf16.mxu0 %v2133
    %2366 = vmatpush1.bf16.msra.mxu0 %v2132
    %2367 = vmatprep.subr.bf16.mxu0 0
    %2368 = vmatpush2.bf16.msra.mxu0 0
    %2369 = vmatprep.subr.bf16.mxu0 0
    %2370 = vmatpush2.bf16.msra.mxu0 0
    %2371 = vmatprep.subr.bf16.mxu0 0
    %2372 = vmatpush2.bf16.msra.mxu0 0
    %2373 = vmatprep.subr.bf16.mxu0 0
    %2374 = vmatpush2.bf16.msra.mxu0 0
    %2375 = vmatprep.subr.bf16.mxu0 0
    %2376 = vmatpush2.bf16.msra.mxu0 0
    %2377 = vmatprep.subr.bf16.mxu0 0
    %2378 = vmatpush2.bf16.msra.mxu0 0
    %2379 = vmatprep.subr.bf16.mxu0 0
    %2380 = vmatpush2.bf16.msra.mxu0 0
    %2381 = vmatprep.subr.bf16.mxu0 0
    %2382 = vmatpush2.bf16.msra.mxu0 0
    %2383 = vmatprep.mubr.bf16.mxu0 0
    %2384 = vmatmul.mubr.bf16.gmra.mxu0 %v2309
    %v2385 = vpop.f32.mrf.mxu0
    %v2386 = vadd.f32 0.0, %v2385
    %v2387 = vpop.f32.mrf.mxu0
    %v2388 = vadd.f32 0.0, %v2387
    %v2389 = vpop.f32.mrf.mxu0
    %v2390 = vpop.f32.mrf.mxu0
    %2391 = vdwg.mxu0
    %v2392 = vadd.f32 %v2305, %v2345
    %v2393 = vadd.f32 %v2306, %v2347
    %v2394 = vadd.f32 %v2307, %v2386
    %v2395 = vadd.f32 %v2308, %v2388
    %v2396 = vxor.u32 %v2392, 2147483648
    %v2397 = vxor.u32 %v2393, 2147483648
    %v2398 = vxor.u32 %v2394, 2147483648
    %v2399 = vmul.f32 %v2396, 1.442695
    %v2400 = vpow.pop %v2399
    %v2401 = vmul.f32 %v2397, 1.442695
    %v2402 = vpow.pop %v2401
    %v2403 = vmul.f32 %v2398, 1.442695
    %v2404 = vpow.pop %v2403
    %v2405 = vadd.f32 %v2400, 1.0
    %v2406 = vadd.f32 %v2402, 1.0
    %v2407 = vadd.f32 %v2404, 1.0
    %v2408 = vrcp.pop %v2405
    %v2409 = vmul.f32 1.0, %v2408
    %v2410 = vrcp.pop %v2406
    %v2411 = vmul.f32 1.0, %v2410
    %v2412 = vrcp.pop %v2407
    %v2413 = vmul.f32 1.0, %v2412
    %v2414 = vtanh.pop %v2395
    %v2415 = vmul.f32 %v2411, %v2301
    %v2416 = vmul.f32 %v2409, %v2414
    %v2417 = vadd.f32 %v2415, %v2416
    %v2418 = vtanh.pop %v2417
    %v2419 = vmul.f32 %v2413, %v2418
    %2420 = vst [vmem:[%s881] sm:$0xff] %v2419
    %v2421 = vld [vmem:[%s883] sm:$0xff]
    %v2422 = vld [vmem:[%s883 + $0x8] sm:$0xff]
    %v2423 = vld [vmem:[%s883 + $0x10] sm:$0xff]
    %v2424 = vld [vmem:[%s883 + $0x18] sm:$0xff]
    %v2425 = vpack.c.bf16 %v2419, %v2419
    %2426 = vmatprep.subr.bf16.mxu0 %v2159
    %2427 = vmatpush1.bf16.msra.mxu0 %v2158
    %2428 = vmatprep.subr.bf16.mxu0 %v2155
    %2429 = vmatpush1.bf16.msra.mxu0 %v2154
    %2430 = vmatprep.subr.bf16.mxu0 %v2151
    %2431 = vmatpush1.bf16.msra.mxu0 %v2150
    %2432 = vmatprep.subr.bf16.mxu0 %v2147
    %2433 = vmatpush1.bf16.msra.mxu0 %v2146
    %2434 = vmatprep.subr.bf16.mxu0 %v2143
    %2435 = vmatpush1.bf16.msra.mxu0 %v2142
    %2436 = vmatprep.subr.bf16.mxu0 %v2139
    %2437 = vmatpush1.bf16.msra.mxu0 %v2138
    %2438 = vmatprep.subr.bf16.mxu0 %v2135
    %2439 = vmatpush1.bf16.msra.mxu0 %v2134
    %2440 = vmatprep.subr.bf16.mxu0 %v2131
    %2441 = vmatpush1.bf16.msra.mxu0 %v2130
    %2442 = vmatprep.subr.bf16.mxu0 0
    %2443 = vmatpush2.bf16.msra.mxu0 0
    %2444 = vmatprep.subr.bf16.mxu0 0
    %2445 = vmatpush2.bf16.msra.mxu0 0
    %2446 = vmatprep.subr.bf16.mxu0 0
    %2447 = vmatpush2.bf16.msra.mxu0 0
    %2448 = vmatprep.subr.bf16.mxu0 0
    %2449 = vmatpush2.bf16.msra.mxu0 0
    %2450 = vmatprep.subr.bf16.mxu0 0
    %2451 = vmatpush2.bf16.msra.mxu0 0
    %2452 = vmatprep.subr.bf16.mxu0 0
    %2453 = vmatpush2.bf16.msra.mxu0 0
    %2454 = vmatprep.subr.bf16.mxu0 0
    %2455 = vmatpush2.bf16.msra.mxu0 0
    %2456 = vmatprep.subr.bf16.mxu0 0
    %2457 = vmatpush2.bf16.msra.mxu0 0
    %2458 = vmatprep.mubr.bf16.mxu0 0
    %2459 = vmatmul.mubr.bf16.gmra.mxu0 %v2425
    %v2460 = vpop.f32.mrf.mxu0
    %v2461 = vadd.f32 0.0, %v2460
    %v2462 = vpop.f32.mrf.mxu0
    %v2463 = vadd.f32 0.0, %v2462
    %v2464 = vpop.f32.mrf.mxu0
    %v2465 = vpop.f32.mrf.mxu0
    %2466 = vdwg.mxu0
    %2467 = vmatprep.subr.bf16.mxu0 %v2161
    %2468 = vmatpush1.bf16.msra.mxu0 %v2160
    %2469 = vmatprep.subr.bf16.mxu0 %v2157
    %2470 = vmatpush1.bf16.msra.mxu0 %v2156
    %2471 = vmatprep.subr.bf16.mxu0 %v2153
    %2472 = vmatpush1.bf16.msra.mxu0 %v2152
    %2473 = vmatprep.subr.bf16.mxu0 %v2149
    %2474 = vmatpush1.bf16.msra.mxu0 %v2148
    %2475 = vmatprep.subr.bf16.mxu0 %v2145
    %2476 = vmatpush1.bf16.msra.mxu0 %v2144
    %2477 = vmatprep.subr.bf16.mxu0 %v2141
    %2478 = vmatpush1.bf16.msra.mxu0 %v2140
    %2479 = vmatprep.subr.bf16.mxu0 %v2137
    %2480 = vmatpush1.bf16.msra.mxu0 %v2136
    %2481 = vmatprep.subr.bf16.mxu0 %v2133
    %2482 = vmatpush1.bf16.msra.mxu0 %v2132
    %2483 = vmatprep.subr.bf16.mxu0 0
    %2484 = vmatpush2.bf16.msra.mxu0 0
    %2485 = vmatprep.subr.bf16.mxu0 0
    %2486 = vmatpush2.bf16.msra.mxu0 0
    %2487 = vmatprep.subr.bf16.mxu0 0
    %2488 = vmatpush2.bf16.msra.mxu0 0
    %2489 = vmatprep.subr.bf16.mxu0 0
    %2490 = vmatpush2.bf16.msra.mxu0 0
    %2491 = vmatprep.subr.bf16.mxu0 0
    %2492 = vmatpush2.bf16.msra.mxu0 0
    %2493 = vmatprep.subr.bf16.mxu0 0
    %2494 = vmatpush2.bf16.msra.mxu0 0
    %2495 = vmatprep.subr.bf16.mxu0 0
    %2496 = vmatpush2.bf16.msra.mxu0 0
    %2497 = vmatprep.subr.bf16.mxu0 0
    %2498 = vmatpush2.bf16.msra.mxu0 0
    %2499 = vmatprep.mubr.bf16.mxu0 0
    %2500 = vmatmul.mubr.bf16.gmra.mxu0 %v2425
    %v2501 = vpop.f32.mrf.mxu0
    %v2502 = vadd.f32 0.0, %v2501
    %v2503 = vpop.f32.mrf.mxu0
    %v2504 = vadd.f32 0.0, %v2503
    %v2505 = vpop.f32.mrf.mxu0
    %v2506 = vpop.f32.mrf.mxu0
    %2507 = vdwg.mxu0
    %v2508 = vadd.f32 %v2421, %v2461
    %v2509 = vadd.f32 %v2422, %v2463
    %v2510 = vadd.f32 %v2423, %v2502
    %v2511 = vadd.f32 %v2424, %v2504
    %v2512 = vxor.u32 %v2508, 2147483648
    %v2513 = vxor.u32 %v2509, 2147483648
    %v2514 = vxor.u32 %v2510, 2147483648
    %v2515 = vmul.f32 %v2512, 1.442695
    %v2516 = vpow.pop %v2515
    %v2517 = vmul.f32 %v2513, 1.442695
    %v2518 = vpow.pop %v2517
    %v2519 = vmul.f32 %v2514, 1.442695
    %v2520 = vpow.pop %v2519
    %v2521 = vadd.f32 %v2516, 1.0
    %v2522 = vadd.f32 %v2518, 1.0
    %v2523 = vadd.f32 %v2520, 1.0
    %v2524 = vrcp.pop %v2521
    %v2525 = vmul.f32 1.0, %v2524
    %v2526 = vrcp.pop %v2522
    %v2527 = vmul.f32 1.0, %v2526
    %v2528 = vrcp.pop %v2523
    %v2529 = vmul.f32 1.0, %v2528
    %v2530 = vtanh.pop %v2511
    %v2531 = vmul.f32 %v2527, %v2417
    %v2532 = vmul.f32 %v2525, %v2530
    %v2533 = vadd.f32 %v2531, %v2532
    %v2534 = vtanh.pop %v2533
    %v2535 = vmul.f32 %v2529, %v2534
    %2536 = vst [vmem:[%s999] sm:$0xff] %v2535
    %v2537 = vld [vmem:[%s1001] sm:$0xff]
    %v2538 = vld [vmem:[%s1001 + $0x8] sm:$0xff]
    %v2539 = vld [vmem:[%s1001 + $0x10] sm:$0xff]
    %v2540 = vld [vmem:[%s1001 + $0x18] sm:$0xff]
    %v2541 = vpack.c.bf16 %v2535, %v2535
    %2542 = vmatprep.subr.bf16.mxu0 %v2159
    %2543 = vmatpush1.bf16.msra.mxu0 %v2158
    %2544 = vmatprep.subr.bf16.mxu0 %v2155
    %2545 = vmatpush1.bf16.msra.mxu0 %v2154
    %2546 = vmatprep.subr.bf16.mxu0 %v2151
    %2547 = vmatpush1.bf16.msra.mxu0 %v2150
    %2548 = vmatprep.subr.bf16.mxu0 %v2147
    %2549 = vmatpush1.bf16.msra.mxu0 %v2146
    %2550 = vmatprep.subr.bf16.mxu0 %v2143
    %2551 = vmatpush1.bf16.msra.mxu0 %v2142
    %2552 = vmatprep.subr.bf16.mxu0 %v2139
    %2553 = vmatpush1.bf16.msra.mxu0 %v2138
    %2554 = vmatprep.subr.bf16.mxu0 %v2135
    %2555 = vmatpush1.bf16.msra.mxu0 %v2134
    %2556 = vmatprep.subr.bf16.mxu0 %v2131
    %2557 = vmatpush1.bf16.msra.mxu0 %v2130
    %2558 = vmatprep.subr.bf16.mxu0 0
    %2559 = vmatpush2.bf16.msra.mxu0 0
    %2560 = vmatprep.subr.bf16.mxu0 0
    %2561 = vmatpush2.bf16.msra.mxu0 0
    %2562 = vmatprep.subr.bf16.mxu0 0
    %2563 = vmatpush2.bf16.msra.mxu0 0
    %2564 = vmatprep.subr.bf16.mxu0 0
    %2565 = vmatpush2.bf16.msra.mxu0 0
    %2566 = vmatprep.subr.bf16.mxu0 0
    %2567 = vmatpush2.bf16.msra.mxu0 0
    %2568 = vmatprep.subr.bf16.mxu0 0
    %2569 = vmatpush2.bf16.msra.mxu0 0
    %2570 = vmatprep.subr.bf16.mxu0 0
    %2571 = vmatpush2.bf16.msra.mxu0 0
    %2572 = vmatprep.subr.bf16.mxu0 0
    %2573 = vmatpush2.bf16.msra.mxu0 0
    %2574 = vmatprep.mubr.bf16.mxu0 0
    %2575 = vmatmul.mubr.bf16.gmra.mxu0 %v2541
    %v2576 = vpop.f32.mrf.mxu0
    %v2577 = vadd.f32 0.0, %v2576
    %v2578 = vpop.f32.mrf.mxu0
    %v2579 = vadd.f32 0.0, %v2578
    %v2580 = vpop.f32.mrf.mxu0
    %v2581 = vpop.f32.mrf.mxu0
    %2582 = vdwg.mxu0
    %2583 = vmatprep.subr.bf16.mxu0 %v2161
    %2584 = vmatpush1.bf16.msra.mxu0 %v2160
    %2585 = vmatprep.subr.bf16.mxu0 %v2157
    %2586 = vmatpush1.bf16.msra.mxu0 %v2156
    %2587 = vmatprep.subr.bf16.mxu0 %v2153
    %2588 = vmatpush1.bf16.msra.mxu0 %v2152
    %2589 = vmatprep.subr.bf16.mxu0 %v2149
    %2590 = vmatpush1.bf16.msra.mxu0 %v2148
    %2591 = vmatprep.subr.bf16.mxu0 %v2145
    %2592 = vmatpush1.bf16.msra.mxu0 %v2144
    %2593 = vmatprep.subr.bf16.mxu0 %v2141
    %2594 = vmatpush1.bf16.msra.mxu0 %v2140
    %2595 = vmatprep.subr.bf16.mxu0 %v2137
    %2596 = vmatpush1.bf16.msra.mxu0 %v2136
    %2597 = vmatprep.subr.bf16.mxu0 %v2133
    %2598 = vmatpush1.bf16.msra.mxu0 %v2132
    %2599 = vmatprep.subr.bf16.mxu0 0
    %2600 = vmatpush2.bf16.msra.mxu0 0
    %2601 = vmatprep.subr.bf16.mxu0 0
    %2602 = vmatpush2.bf16.msra.mxu0 0
    %2603 = vmatprep.subr.bf16.mxu0 0
    %2604 = vmatpush2.bf16.msra.mxu0 0
    %2605 = vmatprep.subr.bf16.mxu0 0
    %2606 = vmatpush2.bf16.msra.mxu0 0
    %2607 = vmatprep.subr.bf16.mxu0 0
    %2608 = vmatpush2.bf16.msra.mxu0 0
    %2609 = vmatprep.subr.bf16.mxu0 0
    %2610 = vmatpush2.bf16.msra.mxu0 0
    %2611 = vmatprep.subr.bf16.mxu0 0
    %2612 = vmatpush2.bf16.msra.mxu0 0
    %2613 = vmatprep.subr.bf16.mxu0 0
    %2614 = vmatpush2.bf16.msra.mxu0 0
    %2615 = vmatprep.mubr.bf16.mxu0 0
    %2616 = vmatmul.mubr.bf16.gmra.mxu0 %v2541
    %v2617 = vpop.f32.mrf.mxu0
    %v2618 = vadd.f32 0.0, %v2617
    %v2619 = vpop.f32.mrf.mxu0
    %v2620 = vadd.f32 0.0, %v2619
    %v2621 = vpop.f32.mrf.mxu0
    %v2622 = vpop.f32.mrf.mxu0
    %2623 = vdwg.mxu0
    %v2624 = vadd.f32 %v2537, %v2577
    %v2625 = vadd.f32 %v2538, %v2579
    %v2626 = vadd.f32 %v2539, %v2618
    %v2627 = vadd.f32 %v2540, %v2620
    %v2628 = vxor.u32 %v2624, 2147483648
    %v2629 = vxor.u32 %v2625, 2147483648
    %v2630 = vxor.u32 %v2626, 2147483648
    %v2631 = vmul.f32 %v2628, 1.442695
    %v2632 = vpow.pop %v2631
    %v2633 = vmul.f32 %v2629, 1.442695
    %v2634 = vpow.pop %v2633
    %v2635 = vmul.f32 %v2630, 1.442695
    %v2636 = vpow.pop %v2635
    %v2637 = vadd.f32 %v2632, 1.0
    %v2638 = vadd.f32 %v2634, 1.0
    %v2639 = vadd.f32 %v2636, 1.0
    %v2640 = vrcp.pop %v2637
    %v2641 = vmul.f32 1.0, %v2640
    %v2642 = vrcp.pop %v2638
    %v2643 = vmul.f32 1.0, %v2642
    %v2644 = vrcp.pop %v2639
    %v2645 = vmul.f32 1.0, %v2644
    %v2646 = vtanh.pop %v2627
    %v2647 = vmul.f32 %v2643, %v2533
    %v2648 = vmul.f32 %v2641, %v2646
    %v2649 = vadd.f32 %v2647, %v2648
    %v2650 = vtanh.pop %v2649
    %v2651 = vmul.f32 %v2645, %v2650
    %2652 = vst [vmem:[%s1117] sm:$0xff] %v2651
    %v2653 = vld [vmem:[%s1119] sm:$0xff]
    %v2654 = vld [vmem:[%s1119 + $0x8] sm:$0xff]
    %v2655 = vld [vmem:[%s1119 + $0x10] sm:$0xff]
    %v2656 = vld [vmem:[%s1119 + $0x18] sm:$0xff]
    %v2657 = vpack.c.bf16 %v2651, %v2651
    %2658 = vmatprep.subr.bf16.mxu0 %v2159
    %2659 = vmatpush1.bf16.msra.mxu0 %v2158
    %2660 = vmatprep.subr.bf16.mxu0 %v2155
    %2661 = vmatpush1.bf16.msra.mxu0 %v2154
    %2662 = vmatprep.subr.bf16.mxu0 %v2151
    %2663 = vmatpush1.bf16.msra.mxu0 %v2150
    %2664 = vmatprep.subr.bf16.mxu0 %v2147
    %2665 = vmatpush1.bf16.msra.mxu0 %v2146
    %2666 = vmatprep.subr.bf16.mxu0 %v2143
    %2667 = vmatpush1.bf16.msra.mxu0 %v2142
    %2668 = vmatprep.subr.bf16.mxu0 %v2139
    %2669 = vmatpush1.bf16.msra.mxu0 %v2138
    %2670 = vmatprep.subr.bf16.mxu0 %v2135
    %2671 = vmatpush1.bf16.msra.mxu0 %v2134
    %2672 = vmatprep.subr.bf16.mxu0 %v2131
    %2673 = vmatpush1.bf16.msra.mxu0 %v2130
    %2674 = vmatprep.subr.bf16.mxu0 0
    %2675 = vmatpush2.bf16.msra.mxu0 0
    %2676 = vmatprep.subr.bf16.mxu0 0
    %2677 = vmatpush2.bf16.msra.mxu0 0
    %2678 = vmatprep.subr.bf16.mxu0 0
    %2679 = vmatpush2.bf16.msra.mxu0 0
    %2680 = vmatprep.subr.bf16.mxu0 0
    %2681 = vmatpush2.bf16.msra.mxu0 0
    %2682 = vmatprep.subr.bf16.mxu0 0
    %2683 = vmatpush2.bf16.msra.mxu0 0
    %2684 = vmatprep.subr.bf16.mxu0 0
    %2685 = vmatpush2.bf16.msra.mxu0 0
    %2686 = vmatprep.subr.bf16.mxu0 0
    %2687 = vmatpush2.bf16.msra.mxu0 0
    %2688 = vmatprep.subr.bf16.mxu0 0
    %2689 = vmatpush2.bf16.msra.mxu0 0
    %2690 = vmatprep.mubr.bf16.mxu0 0
    %2691 = vmatmul.mubr.bf16.gmra.mxu0 %v2657
    %v2692 = vpop.f32.mrf.mxu0
    %v2693 = vadd.f32 0.0, %v2692
    %v2694 = vpop.f32.mrf.mxu0
    %v2695 = vadd.f32 0.0, %v2694
    %v2696 = vpop.f32.mrf.mxu0
    %v2697 = vpop.f32.mrf.mxu0
    %2698 = vdwg.mxu0
    %2699 = vmatprep.subr.bf16.mxu0 %v2161
    %2700 = vmatpush1.bf16.msra.mxu0 %v2160
    %2701 = vmatprep.subr.bf16.mxu0 %v2157
    %2702 = vmatpush1.bf16.msra.mxu0 %v2156
    %2703 = vmatprep.subr.bf16.mxu0 %v2153
    %2704 = vmatpush1.bf16.msra.mxu0 %v2152
    %2705 = vmatprep.subr.bf16.mxu0 %v2149
    %2706 = vmatpush1.bf16.msra.mxu0 %v2148
    %2707 = vmatprep.subr.bf16.mxu0 %v2145
    %2708 = vmatpush1.bf16.msra.mxu0 %v2144
    %2709 = vmatprep.subr.bf16.mxu0 %v2141
    %2710 = vmatpush1.bf16.msra.mxu0 %v2140
    %2711 = vmatprep.subr.bf16.mxu0 %v2137
    %2712 = vmatpush1.bf16.msra.mxu0 %v2136
    %2713 = vmatprep.subr.bf16.mxu0 %v2133
    %2714 = vmatpush1.bf16.msra.mxu0 %v2132
    %2715 = vmatprep.subr.bf16.mxu0 0
    %2716 = vmatpush2.bf16.msra.mxu0 0
    %2717 = vmatprep.subr.bf16.mxu0 0
    %2718 = vmatpush2.bf16.msra.mxu0 0
    %2719 = vmatprep.subr.bf16.mxu0 0
    %2720 = vmatpush2.bf16.msra.mxu0 0
    %2721 = vmatprep.subr.bf16.mxu0 0
    %2722 = vmatpush2.bf16.msra.mxu0 0
    %2723 = vmatprep.subr.bf16.mxu0 0
    %2724 = vmatpush2.bf16.msra.mxu0 0
    %2725 = vmatprep.subr.bf16.mxu0 0
    %2726 = vmatpush2.bf16.msra.mxu0 0
    %2727 = vmatprep.subr.bf16.mxu0 0
    %2728 = vmatpush2.bf16.msra.mxu0 0
    %2729 = vmatprep.subr.bf16.mxu0 0
    %2730 = vmatpush2.bf16.msra.mxu0 0
    %2731 = vmatprep.mubr.bf16.mxu0 0
    %2732 = vmatmul.mubr.bf16.gmra.mxu0 %v2657
    %v2733 = vpop.f32.mrf.mxu0
    %v2734 = vadd.f32 0.0, %v2733
    %v2735 = vpop.f32.mrf.mxu0
    %v2736 = vadd.f32 0.0, %v2735
    %v2737 = vpop.f32.mrf.mxu0
    %v2738 = vpop.f32.mrf.mxu0
    %2739 = vdwg.mxu0
    %v2740 = vadd.f32 %v2653, %v2693
    %v2741 = vadd.f32 %v2654, %v2695
    %v2742 = vadd.f32 %v2655, %v2734
    %v2743 = vadd.f32 %v2656, %v2736
    %v2744 = vxor.u32 %v2740, 2147483648
    %v2745 = vxor.u32 %v2741, 2147483648
    %v2746 = vxor.u32 %v2742, 2147483648
    %v2747 = vmul.f32 %v2744, 1.442695
    %v2748 = vpow.pop %v2747
    %v2749 = vmul.f32 %v2745, 1.442695
    %v2750 = vpow.pop %v2749
    %v2751 = vmul.f32 %v2746, 1.442695
    %v2752 = vpow.pop %v2751
    %v2753 = vadd.f32 %v2748, 1.0
    %v2754 = vadd.f32 %v2750, 1.0
    %v2755 = vadd.f32 %v2752, 1.0
    %v2756 = vrcp.pop %v2753
    %v2757 = vmul.f32 1.0, %v2756
    %v2758 = vrcp.pop %v2754
    %v2759 = vmul.f32 1.0, %v2758
    %v2760 = vrcp.pop %v2755
    %v2761 = vmul.f32 1.0, %v2760
    %v2762 = vtanh.pop %v2743
    %v2763 = vmul.f32 %v2759, %v2649
    %v2764 = vmul.f32 %v2757, %v2762
    %v2765 = vadd.f32 %v2763, %v2764
    %v2766 = vtanh.pop %v2765
    %v2767 = vmul.f32 %v2761, %v2766
    %2768 = vst [vmem:[%s1235] sm:$0xff] %v2767
    %v2769 = vld [vmem:[%s1237] sm:$0xff]
    %v2770 = vld [vmem:[%s1237 + $0x8] sm:$0xff]
    %v2771 = vld [vmem:[%s1237 + $0x10] sm:$0xff]
    %v2772 = vld [vmem:[%s1237 + $0x18] sm:$0xff]
    %v2773 = vpack.c.bf16 %v2767, %v2767
    %2774 = vmatprep.subr.bf16.mxu0 %v2159
    %2775 = vmatpush1.bf16.msra.mxu0 %v2158
    %2776 = vmatprep.subr.bf16.mxu0 %v2155
    %2777 = vmatpush1.bf16.msra.mxu0 %v2154
    %2778 = vmatprep.subr.bf16.mxu0 %v2151
    %2779 = vmatpush1.bf16.msra.mxu0 %v2150
    %2780 = vmatprep.subr.bf16.mxu0 %v2147
    %2781 = vmatpush1.bf16.msra.mxu0 %v2146
    %2782 = vmatprep.subr.bf16.mxu0 %v2143
    %2783 = vmatpush1.bf16.msra.mxu0 %v2142
    %2784 = vmatprep.subr.bf16.mxu0 %v2139
    %2785 = vmatpush1.bf16.msra.mxu0 %v2138
    %2786 = vmatprep.subr.bf16.mxu0 %v2135
    %2787 = vmatpush1.bf16.msra.mxu0 %v2134
    %2788 = vmatprep.subr.bf16.mxu0 %v2131
    %2789 = vmatpush1.bf16.msra.mxu0 %v2130
    %2790 = vmatprep.subr.bf16.mxu0 0
    %2791 = vmatpush2.bf16.msra.mxu0 0
    %2792 = vmatprep.subr.bf16.mxu0 0
    %2793 = vmatpush2.bf16.msra.mxu0 0
    %2794 = vmatprep.subr.bf16.mxu0 0
    %2795 = vmatpush2.bf16.msra.mxu0 0
    %2796 = vmatprep.subr.bf16.mxu0 0
    %2797 = vmatpush2.bf16.msra.mxu0 0
    %2798 = vmatprep.subr.bf16.mxu0 0
    %2799 = vmatpush2.bf16.msra.mxu0 0
    %2800 = vmatprep.subr.bf16.mxu0 0
    %2801 = vmatpush2.bf16.msra.mxu0 0
    %2802 = vmatprep.subr.bf16.mxu0 0
    %2803 = vmatpush2.bf16.msra.mxu0 0
    %2804 = vmatprep.subr.bf16.mxu0 0
    %2805 = vmatpush2.bf16.msra.mxu0 0
    %2806 = vmatprep.mubr.bf16.mxu0 0
    %2807 = vmatmul.mubr.bf16.gmra.mxu0 %v2773
    %v2808 = vpop.f32.mrf.mxu0
    %v2809 = vadd.f32 0.0, %v2808
    %v2810 = vpop.f32.mrf.mxu0
    %v2811 = vadd.f32 0.0, %v2810
    %v2812 = vpop.f32.mrf.mxu0
    %v2813 = vpop.f32.mrf.mxu0
    %2814 = vdwg.mxu0
    %2815 = vmatprep.subr.bf16.mxu0 %v2161
    %2816 = vmatpush1.bf16.msra.mxu0 %v2160
    %2817 = vmatprep.subr.bf16.mxu0 %v2157
    %2818 = vmatpush1.bf16.msra.mxu0 %v2156
    %2819 = vmatprep.subr.bf16.mxu0 %v2153
    %2820 = vmatpush1.bf16.msra.mxu0 %v2152
    %2821 = vmatprep.subr.bf16.mxu0 %v2149
    %2822 = vmatpush1.bf16.msra.mxu0 %v2148
    %2823 = vmatprep.subr.bf16.mxu0 %v2145
    %2824 = vmatpush1.bf16.msra.mxu0 %v2144
    %2825 = vmatprep.subr.bf16.mxu0 %v2141
    %2826 = vmatpush1.bf16.msra.mxu0 %v2140
    %2827 = vmatprep.subr.bf16.mxu0 %v2137
    %2828 = vmatpush1.bf16.msra.mxu0 %v2136
    %2829 = vmatprep.subr.bf16.mxu0 %v2133
    %2830 = vmatpush1.bf16.msra.mxu0 %v2132
    %2831 = vmatprep.subr.bf16.mxu0 0
    %2832 = vmatpush2.bf16.msra.mxu0 0
    %2833 = vmatprep.subr.bf16.mxu0 0
    %2834 = vmatpush2.bf16.msra.mxu0 0
    %2835 = vmatprep.subr.bf16.mxu0 0
    %2836 = vmatpush2.bf16.msra.mxu0 0
    %2837 = vmatprep.subr.bf16.mxu0 0
    %2838 = vmatpush2.bf16.msra.mxu0 0
    %2839 = vmatprep.subr.bf16.mxu0 0
    %2840 = vmatpush2.bf16.msra.mxu0 0
    %2841 = vmatprep.subr.bf16.mxu0 0
    %2842 = vmatpush2.bf16.msra.mxu0 0
    %2843 = vmatprep.subr.bf16.mxu0 0
    %2844 = vmatpush2.bf16.msra.mxu0 0
    %2845 = vmatprep.subr.bf16.mxu0 0
    %2846 = vmatpush2.bf16.msra.mxu0 0
    %2847 = vmatprep.mubr.bf16.mxu0 0
    %2848 = vmatmul.mubr.bf16.gmra.mxu0 %v2773
    %v2849 = vpop.f32.mrf.mxu0
    %v2850 = vadd.f32 0.0, %v2849
    %v2851 = vpop.f32.mrf.mxu0
    %v2852 = vadd.f32 0.0, %v2851
    %v2853 = vpop.f32.mrf.mxu0
    %v2854 = vpop.f32.mrf.mxu0
    %2855 = vdwg.mxu0
    %v2856 = vadd.f32 %v2769, %v2809
    %v2857 = vadd.f32 %v2770, %v2811
    %v2858 = vadd.f32 %v2771, %v2850
    %v2859 = vadd.f32 %v2772, %v2852
    %v2860 = vxor.u32 %v2856, 2147483648
    %v2861 = vxor.u32 %v2857, 2147483648
    %v2862 = vxor.u32 %v2858, 2147483648
    %v2863 = vmul.f32 %v2860, 1.442695
    %v2864 = vpow.pop %v2863
    %v2865 = vmul.f32 %v2861, 1.442695
    %v2866 = vpow.pop %v2865
    %v2867 = vmul.f32 %v2862, 1.442695
    %v2868 = vpow.pop %v2867
    %v2869 = vadd.f32 %v2864, 1.0
    %v2870 = vadd.f32 %v2866, 1.0
    %v2871 = vadd.f32 %v2868, 1.0
    %v2872 = vrcp.pop %v2869
    %v2873 = vmul.f32 1.0, %v2872
    %v2874 = vrcp.pop %v2870
    %v2875 = vmul.f32 1.0, %v2874
    %v2876 = vrcp.pop %v2871
    %v2877 = vmul.f32 1.0, %v2876
    %v2878 = vtanh.pop %v2859
    %v2879 = vmul.f32 %v2875, %v2765
    %v2880 = vmul.f32 %v2873, %v2878
    %v2881 = vadd.f32 %v2879, %v2880
    %v2882 = vtanh.pop %v2881
    %v2883 = vmul.f32 %v2877, %v2882
    %2884 = vst [vmem:[%s1353] sm:$0xff] %v2883
    %v2885 = vld [vmem:[%s1355] sm:$0xff]
    %v2886 = vld [vmem:[%s1355 + $0x8] sm:$0xff]
    %v2887 = vld [vmem:[%s1355 + $0x10] sm:$0xff]
    %v2888 = vld [vmem:[%s1355 + $0x18] sm:$0xff]
    %v2889 = vpack.c.bf16 %v2883, %v2883
    %2890 = vmatprep.subr.bf16.mxu0 %v2159
    %2891 = vmatpush1.bf16.msra.mxu0 %v2158
    %2892 = vmatprep.subr.bf16.mxu0 %v2155
    %2893 = vmatpush1.bf16.msra.mxu0 %v2154
    %2894 = vmatprep.subr.bf16.mxu0 %v2151
    %2895 = vmatpush1.bf16.msra.mxu0 %v2150
    %2896 = vmatprep.subr.bf16.mxu0 %v2147
    %2897 = vmatpush1.bf16.msra.mxu0 %v2146
    %2898 = vmatprep.subr.bf16.mxu0 %v2143
    %2899 = vmatpush1.bf16.msra.mxu0 %v2142
    %2900 = vmatprep.subr.bf16.mxu0 %v2139
    %2901 = vmatpush1.bf16.msra.mxu0 %v2138
    %2902 = vmatprep.subr.bf16.mxu0 %v2135
    %2903 = vmatpush1.bf16.msra.mxu0 %v2134
    %2904 = vmatprep.subr.bf16.mxu0 %v2131
    %2905 = vmatpush1.bf16.msra.mxu0 %v2130
    %2906 = vmatprep.subr.bf16.mxu0 0
    %2907 = vmatpush2.bf16.msra.mxu0 0
    %2908 = vmatprep.subr.bf16.mxu0 0
    %2909 = vmatpush2.bf16.msra.mxu0 0
    %2910 = vmatprep.subr.bf16.mxu0 0
    %2911 = vmatpush2.bf16.msra.mxu0 0
    %2912 = vmatprep.subr.bf16.mxu0 0
    %2913 = vmatpush2.bf16.msra.mxu0 0
    %2914 = vmatprep.subr.bf16.mxu0 0
    %2915 = vmatpush2.bf16.msra.mxu0 0
    %2916 = vmatprep.subr.bf16.mxu0 0
    %2917 = vmatpush2.bf16.msra.mxu0 0
    %2918 = vmatprep.subr.bf16.mxu0 0
    %2919 = vmatpush2.bf16.msra.mxu0 0
    %2920 = vmatprep.subr.bf16.mxu0 0
    %2921 = vmatpush2.bf16.msra.mxu0 0
    %2922 = vmatprep.mubr.bf16.mxu0 0
    %2923 = vmatmul.mubr.bf16.gmra.mxu0 %v2889
    %v2924 = vpop.f32.mrf.mxu0
    %v2925 = vadd.f32 0.0, %v2924
    %v2926 = vpop.f32.mrf.mxu0
    %v2927 = vadd.f32 0.0, %v2926
    %v2928 = vpop.f32.mrf.mxu0
    %v2929 = vpop.f32.mrf.mxu0
    %2930 = vdwg.mxu0
    %2931 = vmatprep.subr.bf16.mxu0 %v2161
    %2932 = vmatpush1.bf16.msra.mxu0 %v2160
    %2933 = vmatprep.subr.bf16.mxu0 %v2157
    %2934 = vmatpush1.bf16.msra.mxu0 %v2156
    %2935 = vmatprep.subr.bf16.mxu0 %v2153
    %2936 = vmatpush1.bf16.msra.mxu0 %v2152
    %2937 = vmatprep.subr.bf16.mxu0 %v2149
    %2938 = vmatpush1.bf16.msra.mxu0 %v2148
    %2939 = vmatprep.subr.bf16.mxu0 %v2145
    %2940 = vmatpush1.bf16.msra.mxu0 %v2144
    %2941 = vmatprep.subr.bf16.mxu0 %v2141
    %2942 = vmatpush1.bf16.msra.mxu0 %v2140
    %2943 = vmatprep.subr.bf16.mxu0 %v2137
    %2944 = vmatpush1.bf16.msra.mxu0 %v2136
    %2945 = vmatprep.subr.bf16.mxu0 %v2133
    %2946 = vmatpush1.bf16.msra.mxu0 %v2132
    %2947 = vmatprep.subr.bf16.mxu0 0
    %2948 = vmatpush2.bf16.msra.mxu0 0
    %2949 = vmatprep.subr.bf16.mxu0 0
    %2950 = vmatpush2.bf16.msra.mxu0 0
    %2951 = vmatprep.subr.bf16.mxu0 0
    %2952 = vmatpush2.bf16.msra.mxu0 0
    %2953 = vmatprep.subr.bf16.mxu0 0
    %2954 = vmatpush2.bf16.msra.mxu0 0
    %2955 = vmatprep.subr.bf16.mxu0 0
    %2956 = vmatpush2.bf16.msra.mxu0 0
    %2957 = vmatprep.subr.bf16.mxu0 0
    %2958 = vmatpush2.bf16.msra.mxu0 0
    %2959 = vmatprep.subr.bf16.mxu0 0
    %2960 = vmatpush2.bf16.msra.mxu0 0
    %2961 = vmatprep.subr.bf16.mxu0 0
    %2962 = vmatpush2.bf16.msra.mxu0 0
    %2963 = vmatprep.mubr.bf16.mxu0 0
    %2964 = vmatmul.mubr.bf16.gmra.mxu0 %v2889
    %v2965 = vpop.f32.mrf.mxu0
    %v2966 = vadd.f32 0.0, %v2965
    %v2967 = vpop.f32.mrf.mxu0
    %v2968 = vadd.f32 0.0, %v2967
    %v2969 = vpop.f32.mrf.mxu0
    %v2970 = vpop.f32.mrf.mxu0
    %2971 = vdwg.mxu0
    %v2972 = vadd.f32 %v2885, %v2925
    %v2973 = vadd.f32 %v2886, %v2927
    %v2974 = vadd.f32 %v2887, %v2966
    %v2975 = vadd.f32 %v2888, %v2968
    %v2976 = vxor.u32 %v2972, 2147483648
    %v2977 = vxor.u32 %v2973, 2147483648
    %v2978 = vxor.u32 %v2974, 2147483648
    %v2979 = vmul.f32 %v2976, 1.442695
    %v2980 = vpow.pop %v2979
    %v2981 = vmul.f32 %v2977, 1.442695
    %v2982 = vpow.pop %v2981
    %v2983 = vmul.f32 %v2978, 1.442695
    %v2984 = vpow.pop %v2983
    %v2985 = vadd.f32 %v2980, 1.0
    %v2986 = vadd.f32 %v2982, 1.0
    %v2987 = vadd.f32 %v2984, 1.0
    %v2988 = vrcp.pop %v2985
    %v2989 = vmul.f32 1.0, %v2988
    %v2990 = vrcp.pop %v2986
    %v2991 = vmul.f32 1.0, %v2990
    %v2992 = vrcp.pop %v2987
    %v2993 = vmul.f32 1.0, %v2992
    %v2994 = vtanh.pop %v2975
    %v2995 = vmul.f32 %v2991, %v2881
    %v2996 = vmul.f32 %v2989, %v2994
    %v2997 = vadd.f32 %v2995, %v2996
    %v2998 = vtanh.pop %v2997
    %v2999 = vmul.f32 %v2993, %v2998
    %3000 = vst [vmem:[%s1471] sm:$0xff] %v2999
    %v3001 = vld [vmem:[%s1473] sm:$0xff]
    %v3002 = vld [vmem:[%s1473 + $0x8] sm:$0xff]
    %v3003 = vld [vmem:[%s1473 + $0x10] sm:$0xff]
    %v3004 = vld [vmem:[%s1473 + $0x18] sm:$0xff]
    %v3005 = vpack.c.bf16 %v2999, %v2999
    %3006 = vmatprep.subr.bf16.mxu0 %v2159
    %3007 = vmatpush1.bf16.msra.mxu0 %v2158
    %3008 = vmatprep.subr.bf16.mxu0 %v2155
    %3009 = vmatpush1.bf16.msra.mxu0 %v2154
    %3010 = vmatprep.subr.bf16.mxu0 %v2151
    %3011 = vmatpush1.bf16.msra.mxu0 %v2150
    %3012 = vmatprep.subr.bf16.mxu0 %v2147
    %3013 = vmatpush1.bf16.msra.mxu0 %v2146
    %3014 = vmatprep.subr.bf16.mxu0 %v2143
    %3015 = vmatpush1.bf16.msra.mxu0 %v2142
    %3016 = vmatprep.subr.bf16.mxu0 %v2139
    %3017 = vmatpush1.bf16.msra.mxu0 %v2138
    %3018 = vmatprep.subr.bf16.mxu0 %v2135
    %3019 = vmatpush1.bf16.msra.mxu0 %v2134
    %3020 = vmatprep.subr.bf16.mxu0 %v2131
    %3021 = vmatpush1.bf16.msra.mxu0 %v2130
    %3022 = vmatprep.subr.bf16.mxu0 0
    %3023 = vmatpush2.bf16.msra.mxu0 0
    %3024 = vmatprep.subr.bf16.mxu0 0
    %3025 = vmatpush2.bf16.msra.mxu0 0
    %3026 = vmatprep.subr.bf16.mxu0 0
    %3027 = vmatpush2.bf16.msra.mxu0 0
    %3028 = vmatprep.subr.bf16.mxu0 0
    %3029 = vmatpush2.bf16.msra.mxu0 0
    %3030 = vmatprep.subr.bf16.mxu0 0
    %3031 = vmatpush2.bf16.msra.mxu0 0
    %3032 = vmatprep.subr.bf16.mxu0 0
    %3033 = vmatpush2.bf16.msra.mxu0 0
    %3034 = vmatprep.subr.bf16.mxu0 0
    %3035 = vmatpush2.bf16.msra.mxu0 0
    %3036 = vmatprep.subr.bf16.mxu0 0
    %3037 = vmatpush2.bf16.msra.mxu0 0
    %3038 = vmatprep.mubr.bf16.mxu0 0
    %3039 = vmatmul.mubr.bf16.gmra.mxu0 %v3005
    %v3040 = vpop.f32.mrf.mxu0
    %v3041 = vadd.f32 0.0, %v3040
    %v3042 = vpop.f32.mrf.mxu0
    %v3043 = vadd.f32 0.0, %v3042
    %v3044 = vpop.f32.mrf.mxu0
    %v3045 = vpop.f32.mrf.mxu0
    %3046 = vdwg.mxu0
    %3047 = vmatprep.subr.bf16.mxu0 %v2161
    %3048 = vmatpush1.bf16.msra.mxu0 %v2160
    %3049 = vmatprep.subr.bf16.mxu0 %v2157
    %3050 = vmatpush1.bf16.msra.mxu0 %v2156
    %3051 = vmatprep.subr.bf16.mxu0 %v2153
    %3052 = vmatpush1.bf16.msra.mxu0 %v2152
    %3053 = vmatprep.subr.bf16.mxu0 %v2149
    %3054 = vmatpush1.bf16.msra.mxu0 %v2148
    %3055 = vmatprep.subr.bf16.mxu0 %v2145
    %3056 = vmatpush1.bf16.msra.mxu0 %v2144
    %3057 = vmatprep.subr.bf16.mxu0 %v2141
    %3058 = vmatpush1.bf16.msra.mxu0 %v2140
    %3059 = vmatprep.subr.bf16.mxu0 %v2137
    %3060 = vmatpush1.bf16.msra.mxu0 %v2136
    %3061 = vmatprep.subr.bf16.mxu0 %v2133
    %3062 = vmatpush1.bf16.msra.mxu0 %v2132
    %3063 = vmatprep.subr.bf16.mxu0 0
    %3064 = vmatpush2.bf16.msra.mxu0 0
    %3065 = vmatprep.subr.bf16.mxu0 0
    %3066 = vmatpush2.bf16.msra.mxu0 0
    %3067 = vmatprep.subr.bf16.mxu0 0
    %3068 = vmatpush2.bf16.msra.mxu0 0
    %3069 = vmatprep.subr.bf16.mxu0 0
    %3070 = vmatpush2.bf16.msra.mxu0 0
    %3071 = vmatprep.subr.bf16.mxu0 0
    %3072 = vmatpush2.bf16.msra.mxu0 0
    %3073 = vmatprep.subr.bf16.mxu0 0
    %3074 = vmatpush2.bf16.msra.mxu0 0
    %3075 = vmatprep.subr.bf16.mxu0 0
    %3076 = vmatpush2.bf16.msra.mxu0 0
    %3077 = vmatprep.subr.bf16.mxu0 0
    %3078 = vmatpush2.bf16.msra.mxu0 0
    %3079 = vmatprep.mubr.bf16.mxu0 0
    %3080 = vmatmul.mubr.bf16.gmra.mxu0 %v3005
    %v3081 = vpop.f32.mrf.mxu0
    %v3082 = vadd.f32 0.0, %v3081
    %v3083 = vpop.f32.mrf.mxu0
    %v3084 = vadd.f32 0.0, %v3083
    %v3085 = vpop.f32.mrf.mxu0
    %v3086 = vpop.f32.mrf.mxu0
    %3087 = vdwg.mxu0
    %v3088 = vadd.f32 %v3001, %v3041
    %v3089 = vadd.f32 %v3002, %v3043
    %v3090 = vadd.f32 %v3003, %v3082
    %v3091 = vadd.f32 %v3004, %v3084
    %v3092 = vxor.u32 %v3088, 2147483648
    %v3093 = vxor.u32 %v3089, 2147483648
    %v3094 = vxor.u32 %v3090, 2147483648
    %v3095 = vmul.f32 %v3092, 1.442695
    %v3096 = vpow.pop %v3095
    %v3097 = vmul.f32 %v3093, 1.442695
    %v3098 = vpow.pop %v3097
    %v3099 = vmul.f32 %v3094, 1.442695
    %v3100 = vpow.pop %v3099
    %v3101 = vadd.f32 %v3096, 1.0
    %v3102 = vadd.f32 %v3098, 1.0
    %v3103 = vadd.f32 %v3100, 1.0
    %v3104 = vrcp.pop %v3101
    %v3105 = vmul.f32 1.0, %v3104
    %v3106 = vrcp.pop %v3102
    %v3107 = vmul.f32 1.0, %v3106
    %v3108 = vrcp.pop %v3103
    %v3109 = vmul.f32 1.0, %v3108
    %v3110 = vtanh.pop %v3091
    %v3111 = vmul.f32 %v3107, %v2997
    %v3112 = vmul.f32 %v3105, %v3110
    %v3113 = vadd.f32 %v3111, %v3112
    %v3114 = vtanh.pop %v3113
    %v3115 = vmul.f32 %v3109, %v3114
    %3116 = vst [vmem:[%s1589] sm:$0xff] %v3115
    %v3117 = vld [vmem:[#allocation2] sm:$0xff]
    %v3118 = vld [vmem:[#allocation2 + $0x8] sm:$0xff]
    %v3119 = vld [vmem:[#allocation2 + $0x10] sm:$0xff]
    %v3120 = vld [vmem:[#allocation2 + $0x18] sm:$0xff]
    %v3121 = vld [vmem:[#allocation2 + $0x20] sm:$0xff]
    %v3122 = vld [vmem:[#allocation2 + $0x28] sm:$0xff]
    %v3123 = vld [vmem:[#allocation2 + $0x30] sm:$0xff]
    %v3124 = vld [vmem:[#allocation2 + $0x38] sm:$0xff]
    %v3125 = vpack.c.bf16 %v3118, %v3117
    %v3126 = vpack.c.bf16 %v3120, %v3119
    %v3127 = vpack.c.bf16 %v3122, %v3121
    %v3128 = vpack.c.bf16 %v3124, %v3123
    %s3129 = scalar_lea.vmem [#allocation5], 512
    %v3130 = vld [vmem:[%s3129] sm:$0xff]
    %v3131 = vld [vmem:[%s3129 + $0x8] sm:$0xff]
    %v3132 = vld [vmem:[%s3129 + $0x10] sm:$0xff]
    %v3133 = vld [vmem:[%s3129 + $0x18] sm:$0xff]
    %v3134 = vld [vmem:[%s3129 + $0x20] sm:$0xff]
    %v3135 = vld [vmem:[%s3129 + $0x28] sm:$0xff]
    %v3136 = vld [vmem:[%s3129 + $0x30] sm:$0xff]
    %v3137 = vld [vmem:[%s3129 + $0x38] sm:$0xff]
    %v3138 = vld [vmem:[%s3129 + $0x40] sm:$0xff]
    %v3139 = vld [vmem:[%s3129 + $0x48] sm:$0xff]
    %v3140 = vld [vmem:[%s3129 + $0x50] sm:$0xff]
    %v3141 = vld [vmem:[%s3129 + $0x58] sm:$0xff]
    %v3142 = vld [vmem:[%s3129 + $0x60] sm:$0xff]
    %v3143 = vld [vmem:[%s3129 + $0x68] sm:$0xff]
    %v3144 = vld [vmem:[%s3129 + $0x70] sm:$0xff]
    %v3145 = vld [vmem:[%s3129 + $0x78] sm:$0xff]
    %v3146 = vld [vmem:[%s3129 + $0x80] sm:$0xff]
    %v3147 = vld [vmem:[%s3129 + $0x88] sm:$0xff]
    %v3148 = vld [vmem:[%s3129 + $0x90] sm:$0xff]
    %v3149 = vld [vmem:[%s3129 + $0x98] sm:$0xff]
    %v3150 = vld [vmem:[%s3129 + $0xa0] sm:$0xff]
    %v3151 = vld [vmem:[%s3129 + $0xa8] sm:$0xff]
    %v3152 = vld [vmem:[%s3129 + $0xb0] sm:$0xff]
    %v3153 = vld [vmem:[%s3129 + $0xb8] sm:$0xff]
    %v3154 = vld [vmem:[%s3129 + $0xc0] sm:$0xff]
    %v3155 = vld [vmem:[%s3129 + $0xc8] sm:$0xff]
    %v3156 = vld [vmem:[%s3129 + $0xd0] sm:$0xff]
    %v3157 = vld [vmem:[%s3129 + $0xd8] sm:$0xff]
    %v3158 = vld [vmem:[%s3129 + $0xe0] sm:$0xff]
    %v3159 = vld [vmem:[%s3129 + $0xe8] sm:$0xff]
    %v3160 = vld [vmem:[%s3129 + $0xf0] sm:$0xff]
    %v3161 = vld [vmem:[%s3129 + $0xf8] sm:$0xff]
    %s3162 = scalar_lea.vmem %s3, 8
    %v3163 = vld [vmem:[%s3162] sm:$0xf]
    %v3165 = vlaneseq
    %v3166 = vshrl.u32 %v3165, 7
    %v3167 = vsub.s32 0, %v3166
    %v3168 = vrot.slane %v3163, %v3167
    %v3169 = vlaneseq
    %v3170 = vshrl.u32 %v3169, 7
    %v3171 = vsub.s32 1, %v3170
    %v3172 = vrot.slane %v3163, %v3171
    %v3173 = vlaneseq
    %v3174 = vshrl.u32 %v3173, 7
    %v3175 = vsub.s32 2, %v3174
    %v3176 = vrot.slane %v3163, %v3175
    %v3177 = vlaneseq
    %v3178 = vshrl.u32 %v3177, 7
    %v3179 = vsub.s32 3, %v3178
    %v3180 = vrot.slane %v3163, %v3179
    %v3217 = vunpack.c.l.b16 %v3130
    %v3218 = vunpack.c.h.b16 %v3130
    %v3219 = vunpack.c.l.b16 %v3131
    %v3220 = vunpack.c.h.b16 %v3131
    %v3221 = vunpack.c.l.b16 %v3132
    %v3222 = vunpack.c.h.b16 %v3132
    %v3223 = vunpack.c.l.b16 %v3133
    %v3224 = vunpack.c.h.b16 %v3133
    %v3225 = vunpack.c.l.b16 %v3134
    %v3226 = vunpack.c.h.b16 %v3134
    %v3227 = vunpack.c.l.b16 %v3135
    %v3228 = vunpack.c.h.b16 %v3135
    %v3229 = vunpack.c.l.b16 %v3136
    %v3230 = vunpack.c.h.b16 %v3136
    %v3231 = vunpack.c.l.b16 %v3137
    %v3232 = vunpack.c.h.b16 %v3137
    %v3233 = vunpack.c.l.b16 %v3138
    %v3234 = vunpack.c.h.b16 %v3138
    %v3235 = vunpack.c.l.b16 %v3139
    %v3236 = vunpack.c.h.b16 %v3139
    %v3237 = vunpack.c.l.b16 %v3140
    %v3238 = vunpack.c.h.b16 %v3140
    %v3239 = vunpack.c.l.b16 %v3141
    %v3240 = vunpack.c.h.b16 %v3141
    %v3241 = vunpack.c.l.b16 %v3142
    %v3242 = vunpack.c.h.b16 %v3142
    %v3243 = vunpack.c.l.b16 %v3143
    %v3244 = vunpack.c.h.b16 %v3143
    %v3245 = vunpack.c.l.b16 %v3144
    %v3246 = vunpack.c.h.b16 %v3144
    %v3247 = vunpack.c.l.b16 %v3145
    %v3248 = vunpack.c.h.b16 %v3145
    %v3249 = vunpack.c.l.b16 %v3146
    %v3250 = vunpack.c.h.b16 %v3146
    %v3251 = vunpack.c.l.b16 %v3147
    %v3252 = vunpack.c.h.b16 %v3147
    %v3253 = vunpack.c.l.b16 %v3148
    %v3254 = vunpack.c.h.b16 %v3148
    %v3255 = vunpack.c.l.b16 %v3149
    %v3256 = vunpack.c.h.b16 %v3149
    %v3257 = vunpack.c.l.b16 %v3150
    %v3258 = vunpack.c.h.b16 %v3150
    %v3259 = vunpack.c.l.b16 %v3151
    %v3260 = vunpack.c.h.b16 %v3151
    %v3261 = vunpack.c.l.b16 %v3152
    %v3262 = vunpack.c.h.b16 %v3152
    %v3263 = vunpack.c.l.b16 %v3153
    %v3264 = vunpack.c.h.b16 %v3153
    %v3265 = vunpack.c.l.b16 %v3154
    %v3266 = vunpack.c.h.b16 %v3154
    %v3267 = vunpack.c.l.b16 %v3155
    %v3268 = vunpack.c.h.b16 %v3155
    %v3269 = vunpack.c.l.b16 %v3156
    %v3270 = vunpack.c.h.b16 %v3156
    %v3271 = vunpack.c.l.b16 %v3157
    %v3272 = vunpack.c.h.b16 %v3157
    %v3273 = vunpack.c.l.b16 %v3158
    %v3274 = vunpack.c.h.b16 %v3158
    %v3275 = vunpack.c.l.b16 %v3159
    %v3276 = vunpack.c.h.b16 %v3159
    %v3277 = vunpack.c.l.b16 %v3160
    %v3278 = vunpack.c.h.b16 %v3160
    %v3279 = vunpack.c.l.b16 %v3161
    %v3280 = vunpack.c.h.b16 %v3161
    %v3281 = vpack.c.b16 %v3221, %v3217
    %v3282 = vpack.c.b16 %v3222, %v3218
    %v3283 = vpack.c.b16 %v3223, %v3219
    %v3284 = vpack.c.b16 %v3224, %v3220
    %v3285 = vpack.c.b16 %v3229, %v3225
    %v3286 = vpack.c.b16 %v3230, %v3226
    %v3287 = vpack.c.b16 %v3231, %v3227
    %v3288 = vpack.c.b16 %v3232, %v3228
    %v3289 = vpack.c.b16 %v3237, %v3233
    %v3290 = vpack.c.b16 %v3238, %v3234
    %v3291 = vpack.c.b16 %v3239, %v3235
    %v3292 = vpack.c.b16 %v3240, %v3236
    %v3293 = vpack.c.b16 %v3245, %v3241
    %v3294 = vpack.c.b16 %v3246, %v3242
    %v3295 = vpack.c.b16 %v3247, %v3243
    %v3296 = vpack.c.b16 %v3248, %v3244
    %v3297 = vpack.c.b16 %v3253, %v3249
    %v3298 = vpack.c.b16 %v3254, %v3250
    %v3299 = vpack.c.b16 %v3255, %v3251
    %v3300 = vpack.c.b16 %v3256, %v3252
    %v3301 = vpack.c.b16 %v3261, %v3257
    %v3302 = vpack.c.b16 %v3262, %v3258
    %v3303 = vpack.c.b16 %v3263, %v3259
    %v3304 = vpack.c.b16 %v3264, %v3260
    %v3305 = vpack.c.b16 %v3269, %v3265
    %v3306 = vpack.c.b16 %v3270, %v3266
    %v3307 = vpack.c.b16 %v3271, %v3267
    %v3308 = vpack.c.b16 %v3272, %v3268
    %v3309 = vpack.c.b16 %v3277, %v3273
    %v3310 = vpack.c.b16 %v3278, %v3274
    %v3311 = vpack.c.b16 %v3279, %v3275
    %v3312 = vpack.c.b16 %v3280, %v3276
    %3345 = vmatprep.subr.bf16.mxu0 %v3310
    %3346 = vmatpush1.bf16.msra.mxu0 %v3309
    %3347 = vmatprep.subr.bf16.mxu0 %v3306
    %3348 = vmatpush1.bf16.msra.mxu0 %v3305
    %3349 = vmatprep.subr.bf16.mxu0 %v3302
    %3350 = vmatpush1.bf16.msra.mxu0 %v3301
    %3351 = vmatprep.subr.bf16.mxu0 %v3298
    %3352 = vmatpush1.bf16.msra.mxu0 %v3297
    %3353 = vmatprep.subr.bf16.mxu0 %v3294
    %3354 = vmatpush1.bf16.msra.mxu0 %v3293
    %3355 = vmatprep.subr.bf16.mxu0 %v3290
    %3356 = vmatpush1.bf16.msra.mxu0 %v3289
    %3357 = vmatprep.subr.bf16.mxu0 %v3286
    %3358 = vmatpush1.bf16.msra.mxu0 %v3285
    %3359 = vmatprep.subr.bf16.mxu0 %v3282
    %3360 = vmatpush1.bf16.msra.mxu0 %v3281
    %3361 = vmatprep.subr.bf16.mxu0 0
    %3362 = vmatpush2.bf16.msra.mxu0 0
    %3363 = vmatprep.subr.bf16.mxu0 0
    %3364 = vmatpush2.bf16.msra.mxu0 0
    %3365 = vmatprep.subr.bf16.mxu0 0
    %3366 = vmatpush2.bf16.msra.mxu0 0
    %3367 = vmatprep.subr.bf16.mxu0 0
    %3368 = vmatpush2.bf16.msra.mxu0 0
    %3369 = vmatprep.subr.bf16.mxu0 0
    %3370 = vmatpush2.bf16.msra.mxu0 0
    %3371 = vmatprep.subr.bf16.mxu0 0
    %3372 = vmatpush2.bf16.msra.mxu0 0
    %3373 = vmatprep.subr.bf16.mxu0 0
    %3374 = vmatpush2.bf16.msra.mxu0 0
    %3375 = vmatprep.subr.bf16.mxu0 0
    %3376 = vmatpush2.bf16.msra.mxu0 0
    %3377 = vmatprep.mubr.bf16.mxu0 0
    %3378 = vmatmul.mubr.bf16.gmra.mxu0 %v3125
    %v3379 = vpop.f32.mrf.mxu0
    %v3380 = vadd.f32 %v3168, %v3379
    %v3381 = vpop.f32.mrf.mxu0
    %v3382 = vadd.f32 %v3172, %v3381
    %v3383 = vpop.f32.mrf.mxu0
    %v3384 = vadd.f32 %v3168, %v3383
    %v3385 = vpop.f32.mrf.mxu0
    %v3386 = vadd.f32 %v3172, %v3385
    %3387 = vmatprep.mubr.bf16.mxu0 0
    %3388 = vmatmul.mubr.bf16.gmra.mxu0 %v3126
    %v3389 = vpop.f32.mrf.mxu0
    %v3390 = vadd.f32 %v3168, %v3389
    %v3391 = vpop.f32.mrf.mxu0
    %v3392 = vadd.f32 %v3172, %v3391
    %v3393 = vpop.f32.mrf.mxu0
    %v3394 = vadd.f32 %v3168, %v3393
    %v3395 = vpop.f32.mrf.mxu0
    %v3396 = vadd.f32 %v3172, %v3395
    %3397 = vmatprep.mubr.bf16.mxu0 0
    %3398 = vmatmul.mubr.bf16.gmra.mxu0 %v3127
    %v3399 = vpop.f32.mrf.mxu0
    %v3400 = vadd.f32 %v3168, %v3399
    %v3401 = vpop.f32.mrf.mxu0
    %v3402 = vadd.f32 %v3172, %v3401
    %v3403 = vpop.f32.mrf.mxu0
    %v3404 = vadd.f32 %v3168, %v3403
    %v3405 = vpop.f32.mrf.mxu0
    %v3406 = vadd.f32 %v3172, %v3405
    %3407 = vmatprep.mubr.bf16.mxu0 0
    %3408 = vmatmul.mubr.bf16.gmra.mxu0 %v3128
    %v3409 = vpop.f32.mrf.mxu0
    %v3410 = vadd.f32 %v3168, %v3409
    %v3411 = vpop.f32.mrf.mxu0
    %v3412 = vadd.f32 %v3172, %v3411
    %v3413 = vpop.f32.mrf.mxu0
    %v3414 = vadd.f32 %v3168, %v3413
    %v3415 = vpop.f32.mrf.mxu0
    %v3416 = vadd.f32 %v3172, %v3415
    %3417 = vdwg.mxu0
    %3418 = vmatprep.subr.bf16.mxu0 %v3312
    %3419 = vmatpush1.bf16.msra.mxu0 %v3311
    %3420 = vmatprep.subr.bf16.mxu0 %v3308
    %3421 = vmatpush1.bf16.msra.mxu0 %v3307
    %3422 = vmatprep.subr.bf16.mxu0 %v3304
    %3423 = vmatpush1.bf16.msra.mxu0 %v3303
    %3424 = vmatprep.subr.bf16.mxu0 %v3300
    %3425 = vmatpush1.bf16.msra.mxu0 %v3299
    %3426 = vmatprep.subr.bf16.mxu0 %v3296
    %3427 = vmatpush1.bf16.msra.mxu0 %v3295
    %3428 = vmatprep.subr.bf16.mxu0 %v3292
    %3429 = vmatpush1.bf16.msra.mxu0 %v3291
    %3430 = vmatprep.subr.bf16.mxu0 %v3288
    %3431 = vmatpush1.bf16.msra.mxu0 %v3287
    %3432 = vmatprep.subr.bf16.mxu0 %v3284
    %3433 = vmatpush1.bf16.msra.mxu0 %v3283
    %3434 = vmatprep.subr.bf16.mxu0 0
    %3435 = vmatpush2.bf16.msra.mxu0 0
    %3436 = vmatprep.subr.bf16.mxu0 0
    %3437 = vmatpush2.bf16.msra.mxu0 0
    %3438 = vmatprep.subr.bf16.mxu0 0
    %3439 = vmatpush2.bf16.msra.mxu0 0
    %3440 = vmatprep.subr.bf16.mxu0 0
    %3441 = vmatpush2.bf16.msra.mxu0 0
    %3442 = vmatprep.subr.bf16.mxu0 0
    %3443 = vmatpush2.bf16.msra.mxu0 0
    %3444 = vmatprep.subr.bf16.mxu0 0
    %3445 = vmatpush2.bf16.msra.mxu0 0
    %3446 = vmatprep.subr.bf16.mxu0 0
    %3447 = vmatpush2.bf16.msra.mxu0 0
    %3448 = vmatprep.subr.bf16.mxu0 0
    %3449 = vmatpush2.bf16.msra.mxu0 0
    %3450 = vmatprep.mubr.bf16.mxu0 0
    %3451 = vmatmul.mubr.bf16.gmra.mxu0 %v3125
    %v3452 = vpop.f32.mrf.mxu0
    %v3453 = vadd.f32 %v3176, %v3452
    %v3454 = vpop.f32.mrf.mxu0
    %v3455 = vadd.f32 %v3180, %v3454
    %v3456 = vpop.f32.mrf.mxu0
    %v3457 = vadd.f32 %v3176, %v3456
    %v3458 = vpop.f32.mrf.mxu0
    %v3459 = vadd.f32 %v3180, %v3458
    %3460 = vmatprep.mubr.bf16.mxu0 0
    %3461 = vmatmul.mubr.bf16.gmra.mxu0 %v3126
    %v3462 = vpop.f32.mrf.mxu0
    %v3463 = vadd.f32 %v3176, %v3462
    %v3464 = vpop.f32.mrf.mxu0
    %v3465 = vadd.f32 %v3180, %v3464
    %v3466 = vpop.f32.mrf.mxu0
    %v3467 = vadd.f32 %v3176, %v3466
    %v3468 = vpop.f32.mrf.mxu0
    %v3469 = vadd.f32 %v3180, %v3468
    %3470 = vmatprep.mubr.bf16.mxu0 0
    %3471 = vmatmul.mubr.bf16.gmra.mxu0 %v3127
    %v3472 = vpop.f32.mrf.mxu0
    %v3473 = vadd.f32 %v3176, %v3472
    %v3474 = vpop.f32.mrf.mxu0
    %v3475 = vadd.f32 %v3180, %v3474
    %v3476 = vpop.f32.mrf.mxu0
    %v3477 = vadd.f32 %v3176, %v3476
    %v3478 = vpop.f32.mrf.mxu0
    %v3479 = vadd.f32 %v3180, %v3478
    %3480 = vmatprep.mubr.bf16.mxu0 0
    %3481 = vmatmul.mubr.bf16.gmra.mxu0 %v3128
    %v3482 = vpop.f32.mrf.mxu0
    %v3483 = vadd.f32 %v3176, %v3482
    %v3484 = vpop.f32.mrf.mxu0
    %v3485 = vadd.f32 %v3180, %v3484
    %v3486 = vpop.f32.mrf.mxu0
    %v3487 = vadd.f32 %v3176, %v3486
    %v3488 = vpop.f32.mrf.mxu0
    %v3489 = vadd.f32 %v3180, %v3488
    %3490 = vdwg.mxu0
    %3491 = vst [vmem:[#allocation3] sm:$0xff] %v3380
    %3492 = vst [vmem:[#allocation3 + $0x8] sm:$0xff] %v3382
    %3493 = vst [vmem:[#allocation3 + $0x10] sm:$0xff] %v3453
    %3494 = vst [vmem:[#allocation3 + $0x18] sm:$0xff] %v3455
    %3495 = vst [vmem:[#allocation3 + $0x20] sm:$0xff] %v3384
    %3496 = vst [vmem:[#allocation3 + $0x28] sm:$0xff] %v3386
    %3497 = vst [vmem:[#allocation3 + $0x30] sm:$0xff] %v3457
    %3498 = vst [vmem:[#allocation3 + $0x38] sm:$0xff] %v3459
    %3499 = vst [vmem:[#allocation3 + $0x40] sm:$0xff] %v3390
    %3500 = vst [vmem:[#allocation3 + $0x48] sm:$0xff] %v3392
    %3501 = vst [vmem:[#allocation3 + $0x50] sm:$0xff] %v3463
    %3502 = vst [vmem:[#allocation3 + $0x58] sm:$0xff] %v3465
    %3503 = vst [vmem:[#allocation3 + $0x60] sm:$0xff] %v3394
    %3504 = vst [vmem:[#allocation3 + $0x68] sm:$0xff] %v3396
    %3505 = vst [vmem:[#allocation3 + $0x70] sm:$0xff] %v3467
    %3506 = vst [vmem:[#allocation3 + $0x78] sm:$0xff] %v3469
    %3507 = vst [vmem:[#allocation3 + $0x80] sm:$0xff] %v3400
    %3508 = vst [vmem:[#allocation3 + $0x88] sm:$0xff] %v3402
    %3509 = vst [vmem:[#allocation3 + $0x90] sm:$0xff] %v3473
    %3510 = vst [vmem:[#allocation3 + $0x98] sm:$0xff] %v3475
    %3511 = vst [vmem:[#allocation3 + $0xa0] sm:$0xff] %v3404
    %3512 = vst [vmem:[#allocation3 + $0xa8] sm:$0xff] %v3406
    %3513 = vst [vmem:[#allocation3 + $0xb0] sm:$0xff] %v3477
    %3514 = vst [vmem:[#allocation3 + $0xb8] sm:$0xff] %v3479
    %3515 = vst [vmem:[#allocation3 + $0xc0] sm:$0xff] %v3410
    %3516 = vst [vmem:[#allocation3 + $0xc8] sm:$0xff] %v3412
    %3517 = vst [vmem:[#allocation3 + $0xd0] sm:$0xff] %v3483
    %3518 = vst [vmem:[#allocation3 + $0xd8] sm:$0xff] %v3485
    %3519 = vst [vmem:[#allocation3 + $0xe0] sm:$0xff] %v3414
    %3520 = vst [vmem:[#allocation3 + $0xe8] sm:$0xff] %v3416
    %3521 = vst [vmem:[#allocation3 + $0xf0] sm:$0xff] %v3487
    %3522 = vst [vmem:[#allocation3 + $0xf8] sm:$0xff] %v3489
    %s3523 = scalar_lea.vmem [#allocation7], 512
    %v3524 = vld [vmem:[%s3523] sm:$0xff]
    %v3525 = vld [vmem:[%s3523 + $0x8] sm:$0xff]
    %v3526 = vld [vmem:[%s3523 + $0x10] sm:$0xff]
    %v3527 = vld [vmem:[%s3523 + $0x18] sm:$0xff]
    %v3528 = vld [vmem:[%s3523 + $0x20] sm:$0xff]
    %v3529 = vld [vmem:[%s3523 + $0x28] sm:$0xff]
    %v3530 = vld [vmem:[%s3523 + $0x30] sm:$0xff]
    %v3531 = vld [vmem:[%s3523 + $0x38] sm:$0xff]
    %v3532 = vld [vmem:[%s3523 + $0x40] sm:$0xff]
    %v3533 = vld [vmem:[%s3523 + $0x48] sm:$0xff]
    %v3534 = vld [vmem:[%s3523 + $0x50] sm:$0xff]
    %v3535 = vld [vmem:[%s3523 + $0x58] sm:$0xff]
    %v3536 = vld [vmem:[%s3523 + $0x60] sm:$0xff]
    %v3537 = vld [vmem:[%s3523 + $0x68] sm:$0xff]
    %v3538 = vld [vmem:[%s3523 + $0x70] sm:$0xff]
    %v3539 = vld [vmem:[%s3523 + $0x78] sm:$0xff]
    %v3540 = vld [vmem:[%s3523 + $0x80] sm:$0xff]
    %v3541 = vld [vmem:[%s3523 + $0x88] sm:$0xff]
    %v3542 = vld [vmem:[%s3523 + $0x90] sm:$0xff]
    %v3543 = vld [vmem:[%s3523 + $0x98] sm:$0xff]
    %v3544 = vld [vmem:[%s3523 + $0xa0] sm:$0xff]
    %v3545 = vld [vmem:[%s3523 + $0xa8] sm:$0xff]
    %v3546 = vld [vmem:[%s3523 + $0xb0] sm:$0xff]
    %v3547 = vld [vmem:[%s3523 + $0xb8] sm:$0xff]
    %v3548 = vld [vmem:[%s3523 + $0xc0] sm:$0xff]
    %v3549 = vld [vmem:[%s3523 + $0xc8] sm:$0xff]
    %v3550 = vld [vmem:[%s3523 + $0xd0] sm:$0xff]
    %v3551 = vld [vmem:[%s3523 + $0xd8] sm:$0xff]
    %v3552 = vld [vmem:[%s3523 + $0xe0] sm:$0xff]
    %v3553 = vld [vmem:[%s3523 + $0xe8] sm:$0xff]
    %v3554 = vld [vmem:[%s3523 + $0xf0] sm:$0xff]
    %v3555 = vld [vmem:[%s3523 + $0xf8] sm:$0xff]
    %v3556 = vld [vmem:[#allocation3] sm:$0xff]
    %v3557 = vld [vmem:[#allocation3 + $0x8] sm:$0xff]
    %v3558 = vld [vmem:[#allocation3 + $0x10] sm:$0xff]
    %v3559 = vld [vmem:[#allocation3 + $0x18] sm:$0xff]
    %v3592 = vunpack.c.l.b16 %v3524
    %v3593 = vunpack.c.h.b16 %v3524
    %v3594 = vunpack.c.l.b16 %v3525
    %v3595 = vunpack.c.h.b16 %v3525
    %v3596 = vunpack.c.l.b16 %v3526
    %v3597 = vunpack.c.h.b16 %v3526
    %v3598 = vunpack.c.l.b16 %v3527
    %v3599 = vunpack.c.h.b16 %v3527
    %v3600 = vunpack.c.l.b16 %v3528
    %v3601 = vunpack.c.h.b16 %v3528
    %v3602 = vunpack.c.l.b16 %v3529
    %v3603 = vunpack.c.h.b16 %v3529
    %v3604 = vunpack.c.l.b16 %v3530
    %v3605 = vunpack.c.h.b16 %v3530
    %v3606 = vunpack.c.l.b16 %v3531
    %v3607 = vunpack.c.h.b16 %v3531
    %v3608 = vunpack.c.l.b16 %v3532
    %v3609 = vunpack.c.h.b16 %v3532
    %v3610 = vunpack.c.l.b16 %v3533
    %v3611 = vunpack.c.h.b16 %v3533
    %v3612 = vunpack.c.l.b16 %v3534
    %v3613 = vunpack.c.h.b16 %v3534
    %v3614 = vunpack.c.l.b16 %v3535
    %v3615 = vunpack.c.h.b16 %v3535
    %v3616 = vunpack.c.l.b16 %v3536
    %v3617 = vunpack.c.h.b16 %v3536
    %v3618 = vunpack.c.l.b16 %v3537
    %v3619 = vunpack.c.h.b16 %v3537
    %v3620 = vunpack.c.l.b16 %v3538
    %v3621 = vunpack.c.h.b16 %v3538
    %v3622 = vunpack.c.l.b16 %v3539
    %v3623 = vunpack.c.h.b16 %v3539
    %v3624 = vunpack.c.l.b16 %v3540
    %v3625 = vunpack.c.h.b16 %v3540
    %v3626 = vunpack.c.l.b16 %v3541
    %v3627 = vunpack.c.h.b16 %v3541
    %v3628 = vunpack.c.l.b16 %v3542
    %v3629 = vunpack.c.h.b16 %v3542
    %v3630 = vunpack.c.l.b16 %v3543
    %v3631 = vunpack.c.h.b16 %v3543
    %v3632 = vunpack.c.l.b16 %v3544
    %v3633 = vunpack.c.h.b16 %v3544
    %v3634 = vunpack.c.l.b16 %v3545
    %v3635 = vunpack.c.h.b16 %v3545
    %v3636 = vunpack.c.l.b16 %v3546
    %v3637 = vunpack.c.h.b16 %v3546
    %v3638 = vunpack.c.l.b16 %v3547
    %v3639 = vunpack.c.h.b16 %v3547
    %v3640 = vunpack.c.l.b16 %v3548
    %v3641 = vunpack.c.h.b16 %v3548
    %v3642 = vunpack.c.l.b16 %v3549
    %v3643 = vunpack.c.h.b16 %v3549
    %v3644 = vunpack.c.l.b16 %v3550
    %v3645 = vunpack.c.h.b16 %v3550
    %v3646 = vunpack.c.l.b16 %v3551
    %v3647 = vunpack.c.h.b16 %v3551
    %v3648 = vunpack.c.l.b16 %v3552
    %v3649 = vunpack.c.h.b16 %v3552
    %v3650 = vunpack.c.l.b16 %v3553
    %v3651 = vunpack.c.h.b16 %v3553
    %v3652 = vunpack.c.l.b16 %v3554
    %v3653 = vunpack.c.h.b16 %v3554
    %v3654 = vunpack.c.l.b16 %v3555
    %v3655 = vunpack.c.h.b16 %v3555
    %v3656 = vpack.c.b16 %v3596, %v3592
    %v3657 = vpack.c.b16 %v3597, %v3593
    %v3658 = vpack.c.b16 %v3598, %v3594
    %v3659 = vpack.c.b16 %v3599, %v3595
    %v3660 = vpack.c.b16 %v3604, %v3600
    %v3661 = vpack.c.b16 %v3605, %v3601
    %v3662 = vpack.c.b16 %v3606, %v3602
    %v3663 = vpack.c.b16 %v3607, %v3603
    %v3664 = vpack.c.b16 %v3612, %v3608
    %v3665 = vpack.c.b16 %v3613, %v3609
    %v3666 = vpack.c.b16 %v3614, %v3610
    %v3667 = vpack.c.b16 %v3615, %v3611
    %v3668 = vpack.c.b16 %v3620, %v3616
    %v3669 = vpack.c.b16 %v3621, %v3617
    %v3670 = vpack.c.b16 %v3622, %v3618
    %v3671 = vpack.c.b16 %v3623, %v3619
    %v3672 = vpack.c.b16 %v3628, %v3624
    %v3673 = vpack.c.b16 %v3629, %v3625
    %v3674 = vpack.c.b16 %v3630, %v3626
    %v3675 = vpack.c.b16 %v3631, %v3627
    %v3676 = vpack.c.b16 %v3636, %v3632
    %v3677 = vpack.c.b16 %v3637, %v3633
    %v3678 = vpack.c.b16 %v3638, %v3634
    %v3679 = vpack.c.b16 %v3639, %v3635
    %v3680 = vpack.c.b16 %v3644, %v3640
    %v3681 = vpack.c.b16 %v3645, %v3641
    %v3682 = vpack.c.b16 %v3646, %v3642
    %v3683 = vpack.c.b16 %v3647, %v3643
    %v3684 = vpack.c.b16 %v3652, %v3648
    %v3685 = vpack.c.b16 %v3653, %v3649
    %v3686 = vpack.c.b16 %v3654, %v3650
    %v3687 = vpack.c.b16 %v3655, %v3651
    %3720 = vmatprep.subr.bf16.mxu0 %v3685
    %3721 = vmatpush1.bf16.msra.mxu0 %v3684
    %3722 = vmatprep.subr.bf16.mxu0 %v3681
    %3723 = vmatpush1.bf16.msra.mxu0 %v3680
    %3724 = vmatprep.subr.bf16.mxu0 %v3677
    %3725 = vmatpush1.bf16.msra.mxu0 %v3676
    %3726 = vmatprep.subr.bf16.mxu0 %v3673
    %3727 = vmatpush1.bf16.msra.mxu0 %v3672
    %3728 = vmatprep.subr.bf16.mxu0 %v3669
    %3729 = vmatpush1.bf16.msra.mxu0 %v3668
    %3730 = vmatprep.subr.bf16.mxu0 %v3665
    %3731 = vmatpush1.bf16.msra.mxu0 %v3664
    %3732 = vmatprep.subr.bf16.mxu0 %v3661
    %3733 = vmatpush1.bf16.msra.mxu0 %v3660
    %3734 = vmatprep.subr.bf16.mxu0 %v3657
    %3735 = vmatpush1.bf16.msra.mxu0 %v3656
    %3736 = vmatprep.subr.bf16.mxu0 0
    %3737 = vmatpush2.bf16.msra.mxu0 0
    %3738 = vmatprep.subr.bf16.mxu0 0
    %3739 = vmatpush2.bf16.msra.mxu0 0
    %3740 = vmatprep.subr.bf16.mxu0 0
    %3741 = vmatpush2.bf16.msra.mxu0 0
    %3742 = vmatprep.subr.bf16.mxu0 0
    %3743 = vmatpush2.bf16.msra.mxu0 0
    %3744 = vmatprep.subr.bf16.mxu0 0
    %3745 = vmatpush2.bf16.msra.mxu0 0
    %3746 = vmatprep.subr.bf16.mxu0 0
    %3747 = vmatpush2.bf16.msra.mxu0 0
    %3748 = vmatprep.subr.bf16.mxu0 0
    %3749 = vmatpush2.bf16.msra.mxu0 0
    %3750 = vmatprep.subr.bf16.mxu0 0
    %3751 = vmatpush2.bf16.msra.mxu0 0
    %3752 = vmatprep.mubr.bf16.mxu0 0
    %3753 = vmatmul.mubr.bf16.gmra.mxu0 0
    %v3754 = vpop.f32.mrf.mxu0
    %v3755 = vadd.f32 0.0, %v3754
    %v3756 = vpop.f32.mrf.mxu0
    %v3757 = vadd.f32 0.0, %v3756
    %v3758 = vpop.f32.mrf.mxu0
    %v3759 = vpop.f32.mrf.mxu0
    %3760 = vdwg.mxu0
    %3761 = vmatprep.subr.bf16.mxu0 %v3687
    %3762 = vmatpush1.bf16.msra.mxu0 %v3686
    %3763 = vmatprep.subr.bf16.mxu0 %v3683
    %3764 = vmatpush1.bf16.msra.mxu0 %v3682
    %3765 = vmatprep.subr.bf16.mxu0 %v3679
    %3766 = vmatpush1.bf16.msra.mxu0 %v3678
    %3767 = vmatprep.subr.bf16.mxu0 %v3675
    %3768 = vmatpush1.bf16.msra.mxu0 %v3674
    %3769 = vmatprep.subr.bf16.mxu0 %v3671
    %3770 = vmatpush1.bf16.msra.mxu0 %v3670
    %3771 = vmatprep.subr.bf16.mxu0 %v3667
    %3772 = vmatpush1.bf16.msra.mxu0 %v3666
    %3773 = vmatprep.subr.bf16.mxu0 %v3663
    %3774 = vmatpush1.bf16.msra.mxu0 %v3662
    %3775 = vmatprep.subr.bf16.mxu0 %v3659
    %3776 = vmatpush1.bf16.msra.mxu0 %v3658
    %3777 = vmatprep.subr.bf16.mxu0 0
    %3778 = vmatpush2.bf16.msra.mxu0 0
    %3779 = vmatprep.subr.bf16.mxu0 0
    %3780 = vmatpush2.bf16.msra.mxu0 0
    %3781 = vmatprep.subr.bf16.mxu0 0
    %3782 = vmatpush2.bf16.msra.mxu0 0
    %3783 = vmatprep.subr.bf16.mxu0 0
    %3784 = vmatpush2.bf16.msra.mxu0 0
    %3785 = vmatprep.subr.bf16.mxu0 0
    %3786 = vmatpush2.bf16.msra.mxu0 0
    %3787 = vmatprep.subr.bf16.mxu0 0
    %3788 = vmatpush2.bf16.msra.mxu0 0
    %3789 = vmatprep.subr.bf16.mxu0 0
    %3790 = vmatpush2.bf16.msra.mxu0 0
    %3791 = vmatprep.subr.bf16.mxu0 0
    %3792 = vmatpush2.bf16.msra.mxu0 0
    %3793 = vmatprep.mubr.bf16.mxu0 0
    %3794 = vmatmul.mubr.bf16.gmra.mxu0 0
    %v3795 = vpop.f32.mrf.mxu0
    %v3796 = vadd.f32 0.0, %v3795
    %v3797 = vpop.f32.mrf.mxu0
    %v3798 = vadd.f32 0.0, %v3797
    %v3799 = vpop.f32.mrf.mxu0
    %v3800 = vpop.f32.mrf.mxu0
    %3801 = vdwg.mxu0
    %v3802 = vadd.f32 %v3556, %v3755
    %v3803 = vadd.f32 %v3557, %v3757
    %v3804 = vadd.f32 %v3558, %v3796
    %v3805 = vadd.f32 %v3559, %v3798
    %v3806 = vxor.u32 %v3802, 2147483648
    %v3807 = vxor.u32 %v3803, 2147483648
    %v3808 = vxor.u32 %v3804, 2147483648
    %v3809 = vmul.f32 %v3806, 1.442695
    %v3810 = vpow.pop %v3809
    %v3811 = vmul.f32 %v3807, 1.442695
    %v3812 = vpow.pop %v3811
    %v3813 = vmul.f32 %v3808, 1.442695
    %v3814 = vpow.pop %v3813
    %v3815 = vadd.f32 %v3810, 1.0
    %v3816 = vadd.f32 %v3812, 1.0
    %v3817 = vadd.f32 %v3814, 1.0
    %v3818 = vrcp.pop %v3815
    %v3819 = vmul.f32 1.0, %v3818
    %v3820 = vrcp.pop %v3816
    %v3821 = vmul.f32 1.0, %v3820
    %v3822 = vrcp.pop %v3817
    %v3823 = vmul.f32 1.0, %v3822
    %v3824 = vtanh.pop %v3805
    %v3825 = vmul.f32 %v3821, 0.0
    %v3826 = vmul.f32 %v3819, %v3824
    %v3827 = vadd.f32 %v3825, %v3826
    %v3828 = vtanh.pop %v3827
    %v3829 = vmul.f32 %v3823, %v3828
    %3830 = vst [vmem:[#allocation2] sm:$0xff] %v3829
    %v3831 = vld [vmem:[%s765] sm:$0xff]
    %v3832 = vld [vmem:[%s765 + $0x8] sm:$0xff]
    %v3833 = vld [vmem:[%s765 + $0x10] sm:$0xff]
    %v3834 = vld [vmem:[%s765 + $0x18] sm:$0xff]
    %v3835 = vpack.c.bf16 %v3829, %v3829
    %3836 = vmatprep.subr.bf16.mxu0 %v3685
    %3837 = vmatpush1.bf16.msra.mxu0 %v3684
    %3838 = vmatprep.subr.bf16.mxu0 %v3681
    %3839 = vmatpush1.bf16.msra.mxu0 %v3680
    %3840 = vmatprep.subr.bf16.mxu0 %v3677
    %3841 = vmatpush1.bf16.msra.mxu0 %v3676
    %3842 = vmatprep.subr.bf16.mxu0 %v3673
    %3843 = vmatpush1.bf16.msra.mxu0 %v3672
    %3844 = vmatprep.subr.bf16.mxu0 %v3669
    %3845 = vmatpush1.bf16.msra.mxu0 %v3668
    %3846 = vmatprep.subr.bf16.mxu0 %v3665
    %3847 = vmatpush1.bf16.msra.mxu0 %v3664
    %3848 = vmatprep.subr.bf16.mxu0 %v3661
    %3849 = vmatpush1.bf16.msra.mxu0 %v3660
    %3850 = vmatprep.subr.bf16.mxu0 %v3657
    %3851 = vmatpush1.bf16.msra.mxu0 %v3656
    %3852 = vmatprep.subr.bf16.mxu0 0
    %3853 = vmatpush2.bf16.msra.mxu0 0
    %3854 = vmatprep.subr.bf16.mxu0 0
    %3855 = vmatpush2.bf16.msra.mxu0 0
    %3856 = vmatprep.subr.bf16.mxu0 0
    %3857 = vmatpush2.bf16.msra.mxu0 0
    %3858 = vmatprep.subr.bf16.mxu0 0
    %3859 = vmatpush2.bf16.msra.mxu0 0
    %3860 = vmatprep.subr.bf16.mxu0 0
    %3861 = vmatpush2.bf16.msra.mxu0 0
    %3862 = vmatprep.subr.bf16.mxu0 0
    %3863 = vmatpush2.bf16.msra.mxu0 0
    %3864 = vmatprep.subr.bf16.mxu0 0
    %3865 = vmatpush2.bf16.msra.mxu0 0
    %3866 = vmatprep.subr.bf16.mxu0 0
    %3867 = vmatpush2.bf16.msra.mxu0 0
    %3868 = vmatprep.mubr.bf16.mxu0 0
    %3869 = vmatmul.mubr.bf16.gmra.mxu0 %v3835
    %v3870 = vpop.f32.mrf.mxu0
    %v3871 = vadd.f32 0.0, %v3870
    %v3872 = vpop.f32.mrf.mxu0
    %v3873 = vadd.f32 0.0, %v3872
    %v3874 = vpop.f32.mrf.mxu0
    %v3875 = vpop.f32.mrf.mxu0
    %3876 = vdwg.mxu0
    %3877 = vmatprep.subr.bf16.mxu0 %v3687
    %3878 = vmatpush1.bf16.msra.mxu0 %v3686
    %3879 = vmatprep.subr.bf16.mxu0 %v3683
    %3880 = vmatpush1.bf16.msra.mxu0 %v3682
    %3881 = vmatprep.subr.bf16.mxu0 %v3679
    %3882 = vmatpush1.bf16.msra.mxu0 %v3678
    %3883 = vmatprep.subr.bf16.mxu0 %v3675
    %3884 = vmatpush1.bf16.msra.mxu0 %v3674
    %3885 = vmatprep.subr.bf16.mxu0 %v3671
    %3886 = vmatpush1.bf16.msra.mxu0 %v3670
    %3887 = vmatprep.subr.bf16.mxu0 %v3667
    %3888 = vmatpush1.bf16.msra.mxu0 %v3666
    %3889 = vmatprep.subr.bf16.mxu0 %v3663
    %3890 = vmatpush1.bf16.msra.mxu0 %v3662
    %3891 = vmatprep.subr.bf16.mxu0 %v3659
    %3892 = vmatpush1.bf16.msra.mxu0 %v3658
    %3893 = vmatprep.subr.bf16.mxu0 0
    %3894 = vmatpush2.bf16.msra.mxu0 0
    %3895 = vmatprep.subr.bf16.mxu0 0
    %3896 = vmatpush2.bf16.msra.mxu0 0
    %3897 = vmatprep.subr.bf16.mxu0 0
    %3898 = vmatpush2.bf16.msra.mxu0 0
    %3899 = vmatprep.subr.bf16.mxu0 0
    %3900 = vmatpush2.bf16.msra.mxu0 0
    %3901 = vmatprep.subr.bf16.mxu0 0
    %3902 = vmatpush2.bf16.msra.mxu0 0
    %3903 = vmatprep.subr.bf16.mxu0 0
    %3904 = vmatpush2.bf16.msra.mxu0 0
    %3905 = vmatprep.subr.bf16.mxu0 0
    %3906 = vmatpush2.bf16.msra.mxu0 0
    %3907 = vmatprep.subr.bf16.mxu0 0
    %3908 = vmatpush2.bf16.msra.mxu0 0
    %3909 = vmatprep.mubr.bf16.mxu0 0
    %3910 = vmatmul.mubr.bf16.gmra.mxu0 %v3835
    %v3911 = vpop.f32.mrf.mxu0
    %v3912 = vadd.f32 0.0, %v3911
    %v3913 = vpop.f32.mrf.mxu0
    %v3914 = vadd.f32 0.0, %v3913
    %v3915 = vpop.f32.mrf.mxu0
    %v3916 = vpop.f32.mrf.mxu0
    %3917 = vdwg.mxu0
    %v3918 = vadd.f32 %v3831, %v3871
    %v3919 = vadd.f32 %v3832, %v3873
    %v3920 = vadd.f32 %v3833, %v3912
    %v3921 = vadd.f32 %v3834, %v3914
    %v3922 = vxor.u32 %v3918, 2147483648
    %v3923 = vxor.u32 %v3919, 2147483648
    %v3924 = vxor.u32 %v3920, 2147483648
    %v3925 = vmul.f32 %v3922, 1.442695
    %v3926 = vpow.pop %v3925
    %v3927 = vmul.f32 %v3923, 1.442695
    %v3928 = vpow.pop %v3927
    %v3929 = vmul.f32 %v3924, 1.442695
    %v3930 = vpow.pop %v3929
    %v3931 = vadd.f32 %v3926, 1.0
    %v3932 = vadd.f32 %v3928, 1.0
    %v3933 = vadd.f32 %v3930, 1.0
    %v3934 = vrcp.pop %v3931
    %v3935 = vmul.f32 1.0, %v3934
    %v3936 = vrcp.pop %v3932
    %v3937 = vmul.f32 1.0, %v3936
    %v3938 = vrcp.pop %v3933
    %v3939 = vmul.f32 1.0, %v3938
    %v3940 = vtanh.pop %v3921
    %v3941 = vmul.f32 %v3937, %v3827
    %v3942 = vmul.f32 %v3935, %v3940
    %v3943 = vadd.f32 %v3941, %v3942
    %v3944 = vtanh.pop %v3943
    %v3945 = vmul.f32 %v3939, %v3944
    %3946 = vst [vmem:[%s881] sm:$0xff] %v3945
    %v3947 = vld [vmem:[%s883] sm:$0xff]
    %v3948 = vld [vmem:[%s883 + $0x8] sm:$0xff]
    %v3949 = vld [vmem:[%s883 + $0x10] sm:$0xff]
    %v3950 = vld [vmem:[%s883 + $0x18] sm:$0xff]
    %v3951 = vpack.c.bf16 %v3945, %v3945
    %3952 = vmatprep.subr.bf16.mxu0 %v3685
    %3953 = vmatpush1.bf16.msra.mxu0 %v3684
    %3954 = vmatprep.subr.bf16.mxu0 %v3681
    %3955 = vmatpush1.bf16.msra.mxu0 %v3680
    %3956 = vmatprep.subr.bf16.mxu0 %v3677
    %3957 = vmatpush1.bf16.msra.mxu0 %v3676
    %3958 = vmatprep.subr.bf16.mxu0 %v3673
    %3959 = vmatpush1.bf16.msra.mxu0 %v3672
    %3960 = vmatprep.subr.bf16.mxu0 %v3669
    %3961 = vmatpush1.bf16.msra.mxu0 %v3668
    %3962 = vmatprep.subr.bf16.mxu0 %v3665
    %3963 = vmatpush1.bf16.msra.mxu0 %v3664
    %3964 = vmatprep.subr.bf16.mxu0 %v3661
    %3965 = vmatpush1.bf16.msra.mxu0 %v3660
    %3966 = vmatprep.subr.bf16.mxu0 %v3657
    %3967 = vmatpush1.bf16.msra.mxu0 %v3656
    %3968 = vmatprep.subr.bf16.mxu0 0
    %3969 = vmatpush2.bf16.msra.mxu0 0
    %3970 = vmatprep.subr.bf16.mxu0 0
    %3971 = vmatpush2.bf16.msra.mxu0 0
    %3972 = vmatprep.subr.bf16.mxu0 0
    %3973 = vmatpush2.bf16.msra.mxu0 0
    %3974 = vmatprep.subr.bf16.mxu0 0
    %3975 = vmatpush2.bf16.msra.mxu0 0
    %3976 = vmatprep.subr.bf16.mxu0 0
    %3977 = vmatpush2.bf16.msra.mxu0 0
    %3978 = vmatprep.subr.bf16.mxu0 0
    %3979 = vmatpush2.bf16.msra.mxu0 0
    %3980 = vmatprep.subr.bf16.mxu0 0
    %3981 = vmatpush2.bf16.msra.mxu0 0
    %3982 = vmatprep.subr.bf16.mxu0 0
    %3983 = vmatpush2.bf16.msra.mxu0 0
    %3984 = vmatprep.mubr.bf16.mxu0 0
    %3985 = vmatmul.mubr.bf16.gmra.mxu0 %v3951
    %v3986 = vpop.f32.mrf.mxu0
    %v3987 = vadd.f32 0.0, %v3986
    %v3988 = vpop.f32.mrf.mxu0
    %v3989 = vadd.f32 0.0, %v3988
    %v3990 = vpop.f32.mrf.mxu0
    %v3991 = vpop.f32.mrf.mxu0
    %3992 = vdwg.mxu0
    %3993 = vmatprep.subr.bf16.mxu0 %v3687
    %3994 = vmatpush1.bf16.msra.mxu0 %v3686
    %3995 = vmatprep.subr.bf16.mxu0 %v3683
    %3996 = vmatpush1.bf16.msra.mxu0 %v3682
    %3997 = vmatprep.subr.bf16.mxu0 %v3679
    %3998 = vmatpush1.bf16.msra.mxu0 %v3678
    %3999 = vmatprep.subr.bf16.mxu0 %v3675
    %4000 = vmatpush1.bf16.msra.mxu0 %v3674
    %4001 = vmatprep.subr.bf16.mxu0 %v3671
    %4002 = vmatpush1.bf16.msra.mxu0 %v3670
    %4003 = vmatprep.subr.bf16.mxu0 %v3667
    %4004 = vmatpush1.bf16.msra.mxu0 %v3666
    %4005 = vmatprep.subr.bf16.mxu0 %v3663
    %4006 = vmatpush1.bf16.msra.mxu0 %v3662
    %4007 = vmatprep.subr.bf16.mxu0 %v3659
    %4008 = vmatpush1.bf16.msra.mxu0 %v3658
    %4009 = vmatprep.subr.bf16.mxu0 0
    %4010 = vmatpush2.bf16.msra.mxu0 0
    %4011 = vmatprep.subr.bf16.mxu0 0
    %4012 = vmatpush2.bf16.msra.mxu0 0
    %4013 = vmatprep.subr.bf16.mxu0 0
    %4014 = vmatpush2.bf16.msra.mxu0 0
    %4015 = vmatprep.subr.bf16.mxu0 0
    %4016 = vmatpush2.bf16.msra.mxu0 0
    %4017 = vmatprep.subr.bf16.mxu0 0
    %4018 = vmatpush2.bf16.msra.mxu0 0
    %4019 = vmatprep.subr.bf16.mxu0 0
    %4020 = vmatpush2.bf16.msra.mxu0 0
    %4021 = vmatprep.subr.bf16.mxu0 0
    %4022 = vmatpush2.bf16.msra.mxu0 0
    %4023 = vmatprep.subr.bf16.mxu0 0
    %4024 = vmatpush2.bf16.msra.mxu0 0
    %4025 = vmatprep.mubr.bf16.mxu0 0
    %4026 = vmatmul.mubr.bf16.gmra.mxu0 %v3951
    %v4027 = vpop.f32.mrf.mxu0
    %v4028 = vadd.f32 0.0, %v4027
    %v4029 = vpop.f32.mrf.mxu0
    %v4030 = vadd.f32 0.0, %v4029
    %v4031 = vpop.f32.mrf.mxu0
    %v4032 = vpop.f32.mrf.mxu0
    %4033 = vdwg.mxu0
    %v4034 = vadd.f32 %v3947, %v3987
    %v4035 = vadd.f32 %v3948, %v3989
    %v4036 = vadd.f32 %v3949, %v4028
    %v4037 = vadd.f32 %v3950, %v4030
    %v4038 = vxor.u32 %v4034, 2147483648
    %v4039 = vxor.u32 %v4035, 2147483648
    %v4040 = vxor.u32 %v4036, 2147483648
    %v4041 = vmul.f32 %v4038, 1.442695
    %v4042 = vpow.pop %v4041
    %v4043 = vmul.f32 %v4039, 1.442695
    %v4044 = vpow.pop %v4043
    %v4045 = vmul.f32 %v4040, 1.442695
    %v4046 = vpow.pop %v4045
    %v4047 = vadd.f32 %v4042, 1.0
    %v4048 = vadd.f32 %v4044, 1.0
    %v4049 = vadd.f32 %v4046, 1.0
    %v4050 = vrcp.pop %v4047
    %v4051 = vmul.f32 1.0, %v4050
    %v4052 = vrcp.pop %v4048
    %v4053 = vmul.f32 1.0, %v4052
    %v4054 = vrcp.pop %v4049
    %v4055 = vmul.f32 1.0, %v4054
    %v4056 = vtanh.pop %v4037
    %v4057 = vmul.f32 %v4053, %v3943
    %v4058 = vmul.f32 %v4051, %v4056
    %v4059 = vadd.f32 %v4057, %v4058
    %v4060 = vtanh.pop %v4059
    %v4061 = vmul.f32 %v4055, %v4060
    %4062 = vst [vmem:[%s999] sm:$0xff] %v4061
    %v4063 = vld [vmem:[%s1001] sm:$0xff]
    %v4064 = vld [vmem:[%s1001 + $0x8] sm:$0xff]
    %v4065 = vld [vmem:[%s1001 + $0x10] sm:$0xff]
    %v4066 = vld [vmem:[%s1001 + $0x18] sm:$0xff]
    %v4067 = vpack.c.bf16 %v4061, %v4061
    %4068 = vmatprep.subr.bf16.mxu0 %v3685
    %4069 = vmatpush1.bf16.msra.mxu0 %v3684
    %4070 = vmatprep.subr.bf16.mxu0 %v3681
    %4071 = vmatpush1.bf16.msra.mxu0 %v3680
    %4072 = vmatprep.subr.bf16.mxu0 %v3677
    %4073 = vmatpush1.bf16.msra.mxu0 %v3676
    %4074 = vmatprep.subr.bf16.mxu0 %v3673
    %4075 = vmatpush1.bf16.msra.mxu0 %v3672
    %4076 = vmatprep.subr.bf16.mxu0 %v3669
    %4077 = vmatpush1.bf16.msra.mxu0 %v3668
    %4078 = vmatprep.subr.bf16.mxu0 %v3665
    %4079 = vmatpush1.bf16.msra.mxu0 %v3664
    %4080 = vmatprep.subr.bf16.mxu0 %v3661
    %4081 = vmatpush1.bf16.msra.mxu0 %v3660
    %4082 = vmatprep.subr.bf16.mxu0 %v3657
    %4083 = vmatpush1.bf16.msra.mxu0 %v3656
    %4084 = vmatprep.subr.bf16.mxu0 0
    %4085 = vmatpush2.bf16.msra.mxu0 0
    %4086 = vmatprep.subr.bf16.mxu0 0
    %4087 = vmatpush2.bf16.msra.mxu0 0
    %4088 = vmatprep.subr.bf16.mxu0 0
    %4089 = vmatpush2.bf16.msra.mxu0 0
    %4090 = vmatprep.subr.bf16.mxu0 0
    %4091 = vmatpush2.bf16.msra.mxu0 0
    %4092 = vmatprep.subr.bf16.mxu0 0
    %4093 = vmatpush2.bf16.msra.mxu0 0
    %4094 = vmatprep.subr.bf16.mxu0 0
    %4095 = vmatpush2.bf16.msra.mxu0 0
    %4096 = vmatprep.subr.bf16.mxu0 0
    %4097 = vmatpush2.bf16.msra.mxu0 0
    %4098 = vmatprep.subr.bf16.mxu0 0
    %4099 = vmatpush2.bf16.msra.mxu0 0
    %4100 = vmatprep.mubr.bf16.mxu0 0
    %4101 = vmatmul.mubr.bf16.gmra.mxu0 %v4067
    %v4102 = vpop.f32.mrf.mxu0
    %v4103 = vadd.f32 0.0, %v4102
    %v4104 = vpop.f32.mrf.mxu0
    %v4105 = vadd.f32 0.0, %v4104
    %v4106 = vpop.f32.mrf.mxu0
    %v4107 = vpop.f32.mrf.mxu0
    %4108 = vdwg.mxu0
    %4109 = vmatprep.subr.bf16.mxu0 %v3687
    %4110 = vmatpush1.bf16.msra.mxu0 %v3686
    %4111 = vmatprep.subr.bf16.mxu0 %v3683
    %4112 = vmatpush1.bf16.msra.mxu0 %v3682
    %4113 = vmatprep.subr.bf16.mxu0 %v3679
    %4114 = vmatpush1.bf16.msra.mxu0 %v3678
    %4115 = vmatprep.subr.bf16.mxu0 %v3675
    %4116 = vmatpush1.bf16.msra.mxu0 %v3674
    %4117 = vmatprep.subr.bf16.mxu0 %v3671
    %4118 = vmatpush1.bf16.msra.mxu0 %v3670
    %4119 = vmatprep.subr.bf16.mxu0 %v3667
    %4120 = vmatpush1.bf16.msra.mxu0 %v3666
    %4121 = vmatprep.subr.bf16.mxu0 %v3663
    %4122 = vmatpush1.bf16.msra.mxu0 %v3662
    %4123 = vmatprep.subr.bf16.mxu0 %v3659
    %4124 = vmatpush1.bf16.msra.mxu0 %v3658
    %4125 = vmatprep.subr.bf16.mxu0 0
    %4126 = vmatpush2.bf16.msra.mxu0 0
    %4127 = vmatprep.subr.bf16.mxu0 0
    %4128 = vmatpush2.bf16.msra.mxu0 0
    %4129 = vmatprep.subr.bf16.mxu0 0
    %4130 = vmatpush2.bf16.msra.mxu0 0
    %4131 = vmatprep.subr.bf16.mxu0 0
    %4132 = vmatpush2.bf16.msra.mxu0 0
    %4133 = vmatprep.subr.bf16.mxu0 0
    %4134 = vmatpush2.bf16.msra.mxu0 0
    %4135 = vmatprep.subr.bf16.mxu0 0
    %4136 = vmatpush2.bf16.msra.mxu0 0
    %4137 = vmatprep.subr.bf16.mxu0 0
    %4138 = vmatpush2.bf16.msra.mxu0 0
    %4139 = vmatprep.subr.bf16.mxu0 0
    %4140 = vmatpush2.bf16.msra.mxu0 0
    %4141 = vmatprep.mubr.bf16.mxu0 0
    %4142 = vmatmul.mubr.bf16.gmra.mxu0 %v4067
    %v4143 = vpop.f32.mrf.mxu0
    %v4144 = vadd.f32 0.0, %v4143
    %v4145 = vpop.f32.mrf.mxu0
    %v4146 = vadd.f32 0.0, %v4145
    %v4147 = vpop.f32.mrf.mxu0
    %v4148 = vpop.f32.mrf.mxu0
    %4149 = vdwg.mxu0
    %v4150 = vadd.f32 %v4063, %v4103
    %v4151 = vadd.f32 %v4064, %v4105
    %v4152 = vadd.f32 %v4065, %v4144
    %v4153 = vadd.f32 %v4066, %v4146
    %v4154 = vxor.u32 %v4150, 2147483648
    %v4155 = vxor.u32 %v4151, 2147483648
    %v4156 = vxor.u32 %v4152, 2147483648
    %v4157 = vmul.f32 %v4154, 1.442695
    %v4158 = vpow.pop %v4157
    %v4159 = vmul.f32 %v4155, 1.442695
    %v4160 = vpow.pop %v4159
    %v4161 = vmul.f32 %v4156, 1.442695
    %v4162 = vpow.pop %v4161
    %v4163 = vadd.f32 %v4158, 1.0
    %v4164 = vadd.f32 %v4160, 1.0
    %v4165 = vadd.f32 %v4162, 1.0
    %v4166 = vrcp.pop %v4163
    %v4167 = vmul.f32 1.0, %v4166
    %v4168 = vrcp.pop %v4164
    %v4169 = vmul.f32 1.0, %v4168
    %v4170 = vrcp.pop %v4165
    %v4171 = vmul.f32 1.0, %v4170
    %v4172 = vtanh.pop %v4153
    %v4173 = vmul.f32 %v4169, %v4059
    %v4174 = vmul.f32 %v4167, %v4172
    %v4175 = vadd.f32 %v4173, %v4174
    %v4176 = vtanh.pop %v4175
    %v4177 = vmul.f32 %v4171, %v4176
    %4178 = vst [vmem:[%s1117] sm:$0xff] %v4177
    %v4179 = vld [vmem:[%s1119] sm:$0xff]
    %v4180 = vld [vmem:[%s1119 + $0x8] sm:$0xff]
    %v4181 = vld [vmem:[%s1119 + $0x10] sm:$0xff]
    %v4182 = vld [vmem:[%s1119 + $0x18] sm:$0xff]
    %v4183 = vpack.c.bf16 %v4177, %v4177
    %4184 = vmatprep.subr.bf16.mxu0 %v3685
    %4185 = vmatpush1.bf16.msra.mxu0 %v3684
    %4186 = vmatprep.subr.bf16.mxu0 %v3681
    %4187 = vmatpush1.bf16.msra.mxu0 %v3680
    %4188 = vmatprep.subr.bf16.mxu0 %v3677
    %4189 = vmatpush1.bf16.msra.mxu0 %v3676
    %4190 = vmatprep.subr.bf16.mxu0 %v3673
    %4191 = vmatpush1.bf16.msra.mxu0 %v3672
    %4192 = vmatprep.subr.bf16.mxu0 %v3669
    %4193 = vmatpush1.bf16.msra.mxu0 %v3668
    %4194 = vmatprep.subr.bf16.mxu0 %v3665
    %4195 = vmatpush1.bf16.msra.mxu0 %v3664
    %4196 = vmatprep.subr.bf16.mxu0 %v3661
    %4197 = vmatpush1.bf16.msra.mxu0 %v3660
    %4198 = vmatprep.subr.bf16.mxu0 %v3657
    %4199 = vmatpush1.bf16.msra.mxu0 %v3656
    %4200 = vmatprep.subr.bf16.mxu0 0
    %4201 = vmatpush2.bf16.msra.mxu0 0
    %4202 = vmatprep.subr.bf16.mxu0 0
    %4203 = vmatpush2.bf16.msra.mxu0 0
    %4204 = vmatprep.subr.bf16.mxu0 0
    %4205 = vmatpush2.bf16.msra.mxu0 0
    %4206 = vmatprep.subr.bf16.mxu0 0
    %4207 = vmatpush2.bf16.msra.mxu0 0
    %4208 = vmatprep.subr.bf16.mxu0 0
    %4209 = vmatpush2.bf16.msra.mxu0 0
    %4210 = vmatprep.subr.bf16.mxu0 0
    %4211 = vmatpush2.bf16.msra.mxu0 0
    %4212 = vmatprep.subr.bf16.mxu0 0
    %4213 = vmatpush2.bf16.msra.mxu0 0
    %4214 = vmatprep.subr.bf16.mxu0 0
    %4215 = vmatpush2.bf16.msra.mxu0 0
    %4216 = vmatprep.mubr.bf16.mxu0 0
    %4217 = vmatmul.mubr.bf16.gmra.mxu0 %v4183
    %v4218 = vpop.f32.mrf.mxu0
    %v4219 = vadd.f32 0.0, %v4218
    %v4220 = vpop.f32.mrf.mxu0
    %v4221 = vadd.f32 0.0, %v4220
    %v4222 = vpop.f32.mrf.mxu0
    %v4223 = vpop.f32.mrf.mxu0
    %4224 = vdwg.mxu0
    %4225 = vmatprep.subr.bf16.mxu0 %v3687
    %4226 = vmatpush1.bf16.msra.mxu0 %v3686
    %4227 = vmatprep.subr.bf16.mxu0 %v3683
    %4228 = vmatpush1.bf16.msra.mxu0 %v3682
    %4229 = vmatprep.subr.bf16.mxu0 %v3679
    %4230 = vmatpush1.bf16.msra.mxu0 %v3678
    %4231 = vmatprep.subr.bf16.mxu0 %v3675
    %4232 = vmatpush1.bf16.msra.mxu0 %v3674
    %4233 = vmatprep.subr.bf16.mxu0 %v3671
    %4234 = vmatpush1.bf16.msra.mxu0 %v3670
    %4235 = vmatprep.subr.bf16.mxu0 %v3667
    %4236 = vmatpush1.bf16.msra.mxu0 %v3666
    %4237 = vmatprep.subr.bf16.mxu0 %v3663
    %4238 = vmatpush1.bf16.msra.mxu0 %v3662
    %4239 = vmatprep.subr.bf16.mxu0 %v3659
    %4240 = vmatpush1.bf16.msra.mxu0 %v3658
    %4241 = vmatprep.subr.bf16.mxu0 0
    %4242 = vmatpush2.bf16.msra.mxu0 0
    %4243 = vmatprep.subr.bf16.mxu0 0
    %4244 = vmatpush2.bf16.msra.mxu0 0
    %4245 = vmatprep.subr.bf16.mxu0 0
    %4246 = vmatpush2.bf16.msra.mxu0 0
    %4247 = vmatprep.subr.bf16.mxu0 0
    %4248 = vmatpush2.bf16.msra.mxu0 0
    %4249 = vmatprep.subr.bf16.mxu0 0
    %4250 = vmatpush2.bf16.msra.mxu0 0
    %4251 = vmatprep.subr.bf16.mxu0 0
    %4252 = vmatpush2.bf16.msra.mxu0 0
    %4253 = vmatprep.subr.bf16.mxu0 0
    %4254 = vmatpush2.bf16.msra.mxu0 0
    %4255 = vmatprep.subr.bf16.mxu0 0
    %4256 = vmatpush2.bf16.msra.mxu0 0
    %4257 = vmatprep.mubr.bf16.mxu0 0
    %4258 = vmatmul.mubr.bf16.gmra.mxu0 %v4183
    %v4259 = vpop.f32.mrf.mxu0
    %v4260 = vadd.f32 0.0, %v4259
    %v4261 = vpop.f32.mrf.mxu0
    %v4262 = vadd.f32 0.0, %v4261
    %v4263 = vpop.f32.mrf.mxu0
    %v4264 = vpop.f32.mrf.mxu0
    %4265 = vdwg.mxu0
    %v4266 = vadd.f32 %v4179, %v4219
    %v4267 = vadd.f32 %v4180, %v4221
    %v4268 = vadd.f32 %v4181, %v4260
    %v4269 = vadd.f32 %v4182, %v4262
    %v4270 = vxor.u32 %v4266, 2147483648
    %v4271 = vxor.u32 %v4267, 2147483648
    %v4272 = vxor.u32 %v4268, 2147483648
    %v4273 = vmul.f32 %v4270, 1.442695
    %v4274 = vpow.pop %v4273
    %v4275 = vmul.f32 %v4271, 1.442695
    %v4276 = vpow.pop %v4275
    %v4277 = vmul.f32 %v4272, 1.442695
    %v4278 = vpow.pop %v4277
    %v4279 = vadd.f32 %v4274, 1.0
    %v4280 = vadd.f32 %v4276, 1.0
    %v4281 = vadd.f32 %v4278, 1.0
    %v4282 = vrcp.pop %v4279
    %v4283 = vmul.f32 1.0, %v4282
    %v4284 = vrcp.pop %v4280
    %v4285 = vmul.f32 1.0, %v4284
    %v4286 = vrcp.pop %v4281
    %v4287 = vmul.f32 1.0, %v4286
    %v4288 = vtanh.pop %v4269
    %v4289 = vmul.f32 %v4285, %v4175
    %v4290 = vmul.f32 %v4283, %v4288
    %v4291 = vadd.f32 %v4289, %v4290
    %v4292 = vtanh.pop %v4291
    %v4293 = vmul.f32 %v4287, %v4292
    %4294 = vst [vmem:[%s1235] sm:$0xff] %v4293
    %v4295 = vld [vmem:[%s1237] sm:$0xff]
    %v4296 = vld [vmem:[%s1237 + $0x8] sm:$0xff]
    %v4297 = vld [vmem:[%s1237 + $0x10] sm:$0xff]
    %v4298 = vld [vmem:[%s1237 + $0x18] sm:$0xff]
    %v4299 = vpack.c.bf16 %v4293, %v4293
    %4300 = vmatprep.subr.bf16.mxu0 %v3685
    %4301 = vmatpush1.bf16.msra.mxu0 %v3684
    %4302 = vmatprep.subr.bf16.mxu0 %v3681
    %4303 = vmatpush1.bf16.msra.mxu0 %v3680
    %4304 = vmatprep.subr.bf16.mxu0 %v3677
    %4305 = vmatpush1.bf16.msra.mxu0 %v3676
    %4306 = vmatprep.subr.bf16.mxu0 %v3673
    %4307 = vmatpush1.bf16.msra.mxu0 %v3672
    %4308 = vmatprep.subr.bf16.mxu0 %v3669
    %4309 = vmatpush1.bf16.msra.mxu0 %v3668
    %4310 = vmatprep.subr.bf16.mxu0 %v3665
    %4311 = vmatpush1.bf16.msra.mxu0 %v3664
    %4312 = vmatprep.subr.bf16.mxu0 %v3661
    %4313 = vmatpush1.bf16.msra.mxu0 %v3660
    %4314 = vmatprep.subr.bf16.mxu0 %v3657
    %4315 = vmatpush1.bf16.msra.mxu0 %v3656
    %4316 = vmatprep.subr.bf16.mxu0 0
    %4317 = vmatpush2.bf16.msra.mxu0 0
    %4318 = vmatprep.subr.bf16.mxu0 0
    %4319 = vmatpush2.bf16.msra.mxu0 0
    %4320 = vmatprep.subr.bf16.mxu0 0
    %4321 = vmatpush2.bf16.msra.mxu0 0
    %4322 = vmatprep.subr.bf16.mxu0 0
    %4323 = vmatpush2.bf16.msra.mxu0 0
    %4324 = vmatprep.subr.bf16.mxu0 0
    %4325 = vmatpush2.bf16.msra.mxu0 0
    %4326 = vmatprep.subr.bf16.mxu0 0
    %4327 = vmatpush2.bf16.msra.mxu0 0
    %4328 = vmatprep.subr.bf16.mxu0 0
    %4329 = vmatpush2.bf16.msra.mxu0 0
    %4330 = vmatprep.subr.bf16.mxu0 0
    %4331 = vmatpush2.bf16.msra.mxu0 0
    %4332 = vmatprep.mubr.bf16.mxu0 0
    %4333 = vmatmul.mubr.bf16.gmra.mxu0 %v4299
    %v4334 = vpop.f32.mrf.mxu0
    %v4335 = vadd.f32 0.0, %v4334
    %v4336 = vpop.f32.mrf.mxu0
    %v4337 = vadd.f32 0.0, %v4336
    %v4338 = vpop.f32.mrf.mxu0
    %v4339 = vpop.f32.mrf.mxu0
    %4340 = vdwg.mxu0
    %4341 = vmatprep.subr.bf16.mxu0 %v3687
    %4342 = vmatpush1.bf16.msra.mxu0 %v3686
    %4343 = vmatprep.subr.bf16.mxu0 %v3683
    %4344 = vmatpush1.bf16.msra.mxu0 %v3682
    %4345 = vmatprep.subr.bf16.mxu0 %v3679
    %4346 = vmatpush1.bf16.msra.mxu0 %v3678
    %4347 = vmatprep.subr.bf16.mxu0 %v3675
    %4348 = vmatpush1.bf16.msra.mxu0 %v3674
    %4349 = vmatprep.subr.bf16.mxu0 %v3671
    %4350 = vmatpush1.bf16.msra.mxu0 %v3670
    %4351 = vmatprep.subr.bf16.mxu0 %v3667
    %4352 = vmatpush1.bf16.msra.mxu0 %v3666
    %4353 = vmatprep.subr.bf16.mxu0 %v3663
    %4354 = vmatpush1.bf16.msra.mxu0 %v3662
    %4355 = vmatprep.subr.bf16.mxu0 %v3659
    %4356 = vmatpush1.bf16.msra.mxu0 %v3658
    %4357 = vmatprep.subr.bf16.mxu0 0
    %4358 = vmatpush2.bf16.msra.mxu0 0
    %4359 = vmatprep.subr.bf16.mxu0 0
    %4360 = vmatpush2.bf16.msra.mxu0 0
    %4361 = vmatprep.subr.bf16.mxu0 0
    %4362 = vmatpush2.bf16.msra.mxu0 0
    %4363 = vmatprep.subr.bf16.mxu0 0
    %4364 = vmatpush2.bf16.msra.mxu0 0
    %4365 = vmatprep.subr.bf16.mxu0 0
    %4366 = vmatpush2.bf16.msra.mxu0 0
    %4367 = vmatprep.subr.bf16.mxu0 0
    %4368 = vmatpush2.bf16.msra.mxu0 0
    %4369 = vmatprep.subr.bf16.mxu0 0
    %4370 = vmatpush2.bf16.msra.mxu0 0
    %4371 = vmatprep.subr.bf16.mxu0 0
    %4372 = vmatpush2.bf16.msra.mxu0 0
    %4373 = vmatprep.mubr.bf16.mxu0 0
    %4374 = vmatmul.mubr.bf16.gmra.mxu0 %v4299
    %v4375 = vpop.f32.mrf.mxu0
    %v4376 = vadd.f32 0.0, %v4375
    %v4377 = vpop.f32.mrf.mxu0
    %v4378 = vadd.f32 0.0, %v4377
    %v4379 = vpop.f32.mrf.mxu0
    %v4380 = vpop.f32.mrf.mxu0
    %4381 = vdwg.mxu0
    %v4382 = vadd.f32 %v4295, %v4335
    %v4383 = vadd.f32 %v4296, %v4337
    %v4384 = vadd.f32 %v4297, %v4376
    %v4385 = vadd.f32 %v4298, %v4378
    %v4386 = vxor.u32 %v4382, 2147483648
    %v4387 = vxor.u32 %v4383, 2147483648
    %v4388 = vxor.u32 %v4384, 2147483648
    %v4389 = vmul.f32 %v4386, 1.442695
    %v4390 = vpow.pop %v4389
    %v4391 = vmul.f32 %v4387, 1.442695
    %v4392 = vpow.pop %v4391
    %v4393 = vmul.f32 %v4388, 1.442695
    %v4394 = vpow.pop %v4393
    %v4395 = vadd.f32 %v4390, 1.0
    %v4396 = vadd.f32 %v4392, 1.0
    %v4397 = vadd.f32 %v4394, 1.0
    %v4398 = vrcp.pop %v4395
    %v4399 = vmul.f32 1.0, %v4398
    %v4400 = vrcp.pop %v4396
    %v4401 = vmul.f32 1.0, %v4400
    %v4402 = vrcp.pop %v4397
    %v4403 = vmul.f32 1.0, %v4402
    %v4404 = vtanh.pop %v4385
    %v4405 = vmul.f32 %v4401, %v4291
    %v4406 = vmul.f32 %v4399, %v4404
    %v4407 = vadd.f32 %v4405, %v4406
    %v4408 = vtanh.pop %v4407
    %v4409 = vmul.f32 %v4403, %v4408
    %4410 = vst [vmem:[%s1353] sm:$0xff] %v4409
    %v4411 = vld [vmem:[%s1355] sm:$0xff]
    %v4412 = vld [vmem:[%s1355 + $0x8] sm:$0xff]
    %v4413 = vld [vmem:[%s1355 + $0x10] sm:$0xff]
    %v4414 = vld [vmem:[%s1355 + $0x18] sm:$0xff]
    %v4415 = vpack.c.bf16 %v4409, %v4409
    %4416 = vmatprep.subr.bf16.mxu0 %v3685
    %4417 = vmatpush1.bf16.msra.mxu0 %v3684
    %4418 = vmatprep.subr.bf16.mxu0 %v3681
    %4419 = vmatpush1.bf16.msra.mxu0 %v3680
    %4420 = vmatprep.subr.bf16.mxu0 %v3677
    %4421 = vmatpush1.bf16.msra.mxu0 %v3676
    %4422 = vmatprep.subr.bf16.mxu0 %v3673
    %4423 = vmatpush1.bf16.msra.mxu0 %v3672
    %4424 = vmatprep.subr.bf16.mxu0 %v3669
    %4425 = vmatpush1.bf16.msra.mxu0 %v3668
    %4426 = vmatprep.subr.bf16.mxu0 %v3665
    %4427 = vmatpush1.bf16.msra.mxu0 %v3664
    %4428 = vmatprep.subr.bf16.mxu0 %v3661
    %4429 = vmatpush1.bf16.msra.mxu0 %v3660
    %4430 = vmatprep.subr.bf16.mxu0 %v3657
    %4431 = vmatpush1.bf16.msra.mxu0 %v3656
    %4432 = vmatprep.subr.bf16.mxu0 0
    %4433 = vmatpush2.bf16.msra.mxu0 0
    %4434 = vmatprep.subr.bf16.mxu0 0
    %4435 = vmatpush2.bf16.msra.mxu0 0
    %4436 = vmatprep.subr.bf16.mxu0 0
    %4437 = vmatpush2.bf16.msra.mxu0 0
    %4438 = vmatprep.subr.bf16.mxu0 0
    %4439 = vmatpush2.bf16.msra.mxu0 0
    %4440 = vmatprep.subr.bf16.mxu0 0
    %4441 = vmatpush2.bf16.msra.mxu0 0
    %4442 = vmatprep.subr.bf16.mxu0 0
    %4443 = vmatpush2.bf16.msra.mxu0 0
    %4444 = vmatprep.subr.bf16.mxu0 0
    %4445 = vmatpush2.bf16.msra.mxu0 0
    %4446 = vmatprep.subr.bf16.mxu0 0
    %4447 = vmatpush2.bf16.msra.mxu0 0
    %4448 = vmatprep.mubr.bf16.mxu0 0
    %4449 = vmatmul.mubr.bf16.gmra.mxu0 %v4415
    %v4450 = vpop.f32.mrf.mxu0
    %v4451 = vadd.f32 0.0, %v4450
    %v4452 = vpop.f32.mrf.mxu0
    %v4453 = vadd.f32 0.0, %v4452
    %v4454 = vpop.f32.mrf.mxu0
    %v4455 = vpop.f32.mrf.mxu0
    %4456 = vdwg.mxu0
    %4457 = vmatprep.subr.bf16.mxu0 %v3687
    %4458 = vmatpush1.bf16.msra.mxu0 %v3686
    %4459 = vmatprep.subr.bf16.mxu0 %v3683
    %4460 = vmatpush1.bf16.msra.mxu0 %v3682
    %4461 = vmatprep.subr.bf16.mxu0 %v3679
    %4462 = vmatpush1.bf16.msra.mxu0 %v3678
    %4463 = vmatprep.subr.bf16.mxu0 %v3675
    %4464 = vmatpush1.bf16.msra.mxu0 %v3674
    %4465 = vmatprep.subr.bf16.mxu0 %v3671
    %4466 = vmatpush1.bf16.msra.mxu0 %v3670
    %4467 = vmatprep.subr.bf16.mxu0 %v3667
    %4468 = vmatpush1.bf16.msra.mxu0 %v3666
    %4469 = vmatprep.subr.bf16.mxu0 %v3663
    %4470 = vmatpush1.bf16.msra.mxu0 %v3662
    %4471 = vmatprep.subr.bf16.mxu0 %v3659
    %4472 = vmatpush1.bf16.msra.mxu0 %v3658
    %4473 = vmatprep.subr.bf16.mxu0 0
    %4474 = vmatpush2.bf16.msra.mxu0 0
    %4475 = vmatprep.subr.bf16.mxu0 0
    %4476 = vmatpush2.bf16.msra.mxu0 0
    %4477 = vmatprep.subr.bf16.mxu0 0
    %4478 = vmatpush2.bf16.msra.mxu0 0
    %4479 = vmatprep.subr.bf16.mxu0 0
    %4480 = vmatpush2.bf16.msra.mxu0 0
    %4481 = vmatprep.subr.bf16.mxu0 0
    %4482 = vmatpush2.bf16.msra.mxu0 0
    %4483 = vmatprep.subr.bf16.mxu0 0
    %4484 = vmatpush2.bf16.msra.mxu0 0
    %4485 = vmatprep.subr.bf16.mxu0 0
    %4486 = vmatpush2.bf16.msra.mxu0 0
    %4487 = vmatprep.subr.bf16.mxu0 0
    %4488 = vmatpush2.bf16.msra.mxu0 0
    %4489 = vmatprep.mubr.bf16.mxu0 0
    %4490 = vmatmul.mubr.bf16.gmra.mxu0 %v4415
    %v4491 = vpop.f32.mrf.mxu0
    %v4492 = vadd.f32 0.0, %v4491
    %v4493 = vpop.f32.mrf.mxu0
    %v4494 = vadd.f32 0.0, %v4493
    %v4495 = vpop.f32.mrf.mxu0
    %v4496 = vpop.f32.mrf.mxu0
    %4497 = vdwg.mxu0
    %v4498 = vadd.f32 %v4411, %v4451
    %v4499 = vadd.f32 %v4412, %v4453
    %v4500 = vadd.f32 %v4413, %v4492
    %v4501 = vadd.f32 %v4414, %v4494
    %v4502 = vxor.u32 %v4498, 2147483648
    %v4503 = vxor.u32 %v4499, 2147483648
    %v4504 = vxor.u32 %v4500, 2147483648
    %v4505 = vmul.f32 %v4502, 1.442695
    %v4506 = vpow.pop %v4505
    %v4507 = vmul.f32 %v4503, 1.442695
    %v4508 = vpow.pop %v4507
    %v4509 = vmul.f32 %v4504, 1.442695
    %v4510 = vpow.pop %v4509
    %v4511 = vadd.f32 %v4506, 1.0
    %v4512 = vadd.f32 %v4508, 1.0
    %v4513 = vadd.f32 %v4510, 1.0
    %v4514 = vrcp.pop %v4511
    %v4515 = vmul.f32 1.0, %v4514
    %v4516 = vrcp.pop %v4512
    %v4517 = vmul.f32 1.0, %v4516
    %v4518 = vrcp.pop %v4513
    %v4519 = vmul.f32 1.0, %v4518
    %v4520 = vtanh.pop %v4501
    %v4521 = vmul.f32 %v4517, %v4407
    %v4522 = vmul.f32 %v4515, %v4520
    %v4523 = vadd.f32 %v4521, %v4522
    %v4524 = vtanh.pop %v4523
    %v4525 = vmul.f32 %v4519, %v4524
    %4526 = vst [vmem:[%s1471] sm:$0xff] %v4525
    %v4527 = vld [vmem:[%s1473] sm:$0xff]
    %v4528 = vld [vmem:[%s1473 + $0x8] sm:$0xff]
    %v4529 = vld [vmem:[%s1473 + $0x10] sm:$0xff]
    %v4530 = vld [vmem:[%s1473 + $0x18] sm:$0xff]
    %v4531 = vpack.c.bf16 %v4525, %v4525
    %4532 = vmatprep.subr.bf16.mxu0 %v3685
    %4533 = vmatpush1.bf16.msra.mxu0 %v3684
    %4534 = vmatprep.subr.bf16.mxu0 %v3681
    %4535 = vmatpush1.bf16.msra.mxu0 %v3680
    %4536 = vmatprep.subr.bf16.mxu0 %v3677
    %4537 = vmatpush1.bf16.msra.mxu0 %v3676
    %4538 = vmatprep.subr.bf16.mxu0 %v3673
    %4539 = vmatpush1.bf16.msra.mxu0 %v3672
    %4540 = vmatprep.subr.bf16.mxu0 %v3669
    %4541 = vmatpush1.bf16.msra.mxu0 %v3668
    %4542 = vmatprep.subr.bf16.mxu0 %v3665
    %4543 = vmatpush1.bf16.msra.mxu0 %v3664
    %4544 = vmatprep.subr.bf16.mxu0 %v3661
    %4545 = vmatpush1.bf16.msra.mxu0 %v3660
    %4546 = vmatprep.subr.bf16.mxu0 %v3657
    %4547 = vmatpush1.bf16.msra.mxu0 %v3656
    %4548 = vmatprep.subr.bf16.mxu0 0
    %4549 = vmatpush2.bf16.msra.mxu0 0
    %4550 = vmatprep.subr.bf16.mxu0 0
    %4551 = vmatpush2.bf16.msra.mxu0 0
    %4552 = vmatprep.subr.bf16.mxu0 0
    %4553 = vmatpush2.bf16.msra.mxu0 0
    %4554 = vmatprep.subr.bf16.mxu0 0
    %4555 = vmatpush2.bf16.msra.mxu0 0
    %4556 = vmatprep.subr.bf16.mxu0 0
    %4557 = vmatpush2.bf16.msra.mxu0 0
    %4558 = vmatprep.subr.bf16.mxu0 0
    %4559 = vmatpush2.bf16.msra.mxu0 0
    %4560 = vmatprep.subr.bf16.mxu0 0
    %4561 = vmatpush2.bf16.msra.mxu0 0
    %4562 = vmatprep.subr.bf16.mxu0 0
    %4563 = vmatpush2.bf16.msra.mxu0 0
    %4564 = vmatprep.mubr.bf16.mxu0 0
    %4565 = vmatmul.mubr.bf16.gmra.mxu0 %v4531
    %v4566 = vpop.f32.mrf.mxu0
    %v4567 = vadd.f32 0.0, %v4566
    %v4568 = vpop.f32.mrf.mxu0
    %v4569 = vadd.f32 0.0, %v4568
    %v4570 = vpop.f32.mrf.mxu0
    %v4571 = vpop.f32.mrf.mxu0
    %4572 = vdwg.mxu0
    %4573 = vmatprep.subr.bf16.mxu0 %v3687
    %4574 = vmatpush1.bf16.msra.mxu0 %v3686
    %4575 = vmatprep.subr.bf16.mxu0 %v3683
    %4576 = vmatpush1.bf16.msra.mxu0 %v3682
    %4577 = vmatprep.subr.bf16.mxu0 %v3679
    %4578 = vmatpush1.bf16.msra.mxu0 %v3678
    %4579 = vmatprep.subr.bf16.mxu0 %v3675
    %4580 = vmatpush1.bf16.msra.mxu0 %v3674
    %4581 = vmatprep.subr.bf16.mxu0 %v3671
    %4582 = vmatpush1.bf16.msra.mxu0 %v3670
    %4583 = vmatprep.subr.bf16.mxu0 %v3667
    %4584 = vmatpush1.bf16.msra.mxu0 %v3666
    %4585 = vmatprep.subr.bf16.mxu0 %v3663
    %4586 = vmatpush1.bf16.msra.mxu0 %v3662
    %4587 = vmatprep.subr.bf16.mxu0 %v3659
    %4588 = vmatpush1.bf16.msra.mxu0 %v3658
    %4589 = vmatprep.subr.bf16.mxu0 0
    %4590 = vmatpush2.bf16.msra.mxu0 0
    %4591 = vmatprep.subr.bf16.mxu0 0
    %4592 = vmatpush2.bf16.msra.mxu0 0
    %4593 = vmatprep.subr.bf16.mxu0 0
    %4594 = vmatpush2.bf16.msra.mxu0 0
    %4595 = vmatprep.subr.bf16.mxu0 0
    %4596 = vmatpush2.bf16.msra.mxu0 0
    %4597 = vmatprep.subr.bf16.mxu0 0
    %4598 = vmatpush2.bf16.msra.mxu0 0
    %4599 = vmatprep.subr.bf16.mxu0 0
    %4600 = vmatpush2.bf16.msra.mxu0 0
    %4601 = vmatprep.subr.bf16.mxu0 0
    %4602 = vmatpush2.bf16.msra.mxu0 0
    %4603 = vmatprep.subr.bf16.mxu0 0
    %4604 = vmatpush2.bf16.msra.mxu0 0
    %4605 = vmatprep.mubr.bf16.mxu0 0
    %4606 = vmatmul.mubr.bf16.gmra.mxu0 %v4531
    %v4607 = vpop.f32.mrf.mxu0
    %v4608 = vadd.f32 0.0, %v4607
    %v4609 = vpop.f32.mrf.mxu0
    %v4610 = vadd.f32 0.0, %v4609
    %v4611 = vpop.f32.mrf.mxu0
    %v4612 = vpop.f32.mrf.mxu0
    %4613 = vdwg.mxu0
    %v4614 = vadd.f32 %v4527, %v4567
    %v4615 = vadd.f32 %v4528, %v4569
    %v4616 = vadd.f32 %v4529, %v4608
    %v4617 = vadd.f32 %v4530, %v4610
    %v4618 = vxor.u32 %v4614, 2147483648
    %v4619 = vxor.u32 %v4615, 2147483648
    %v4620 = vxor.u32 %v4616, 2147483648
    %v4621 = vmul.f32 %v4618, 1.442695
    %v4622 = vpow.pop %v4621
    %v4623 = vmul.f32 %v4619, 1.442695
    %v4624 = vpow.pop %v4623
    %v4625 = vmul.f32 %v4620, 1.442695
    %v4626 = vpow.pop %v4625
    %v4627 = vadd.f32 %v4622, 1.0
    %v4628 = vadd.f32 %v4624, 1.0
    %v4629 = vadd.f32 %v4626, 1.0
    %v4630 = vrcp.pop %v4627
    %v4631 = vmul.f32 1.0, %v4630
    %v4632 = vrcp.pop %v4628
    %v4633 = vmul.f32 1.0, %v4632
    %v4634 = vrcp.pop %v4629
    %v4635 = vmul.f32 1.0, %v4634
    %v4636 = vtanh.pop %v4617
    %v4637 = vmul.f32 %v4633, %v4523
    %v4638 = vmul.f32 %v4631, %v4636
    %v4639 = vadd.f32 %v4637, %v4638
    %v4640 = vtanh.pop %v4639
    %v4641 = vmul.f32 %v4635, %v4640
    %4642 = vst [vmem:[%s1589] sm:$0xff] %v4641
    %v4643 = vld [vmem:[#allocation2] sm:$0xff]
    %v4644 = vld [vmem:[#allocation2 + $0x8] sm:$0xff]
    %v4645 = vld [vmem:[#allocation2 + $0x10] sm:$0xff]
    %v4646 = vld [vmem:[#allocation2 + $0x18] sm:$0xff]
    %v4647 = vld [vmem:[#allocation2 + $0x20] sm:$0xff]
    %v4648 = vld [vmem:[#allocation2 + $0x28] sm:$0xff]
    %v4649 = vld [vmem:[#allocation2 + $0x30] sm:$0xff]
    %v4650 = vld [vmem:[#allocation2 + $0x38] sm:$0xff]
    %v4651 = vpack.c.bf16 %v4644, %v4643
    %v4652 = vpack.c.bf16 %v4646, %v4645
    %v4653 = vpack.c.bf16 %v4648, %v4647
    %v4654 = vpack.c.bf16 %v4650, %v4649
    %s4655 = scalar_lea.vmem [#allocation5], 768
    %v4656 = vld [vmem:[%s4655] sm:$0xff]
    %v4657 = vld [vmem:[%s4655 + $0x8] sm:$0xff]
    %v4658 = vld [vmem:[%s4655 + $0x10] sm:$0xff]
    %v4659 = vld [vmem:[%s4655 + $0x18] sm:$0xff]
    %v4660 = vld [vmem:[%s4655 + $0x20] sm:$0xff]
    %v4661 = vld [vmem:[%s4655 + $0x28] sm:$0xff]
    %v4662 = vld [vmem:[%s4655 + $0x30] sm:$0xff]
    %v4663 = vld [vmem:[%s4655 + $0x38] sm:$0xff]
    %v4664 = vld [vmem:[%s4655 + $0x40] sm:$0xff]
    %v4665 = vld [vmem:[%s4655 + $0x48] sm:$0xff]
    %v4666 = vld [vmem:[%s4655 + $0x50] sm:$0xff]
    %v4667 = vld [vmem:[%s4655 + $0x58] sm:$0xff]
    %v4668 = vld [vmem:[%s4655 + $0x60] sm:$0xff]
    %v4669 = vld [vmem:[%s4655 + $0x68] sm:$0xff]
    %v4670 = vld [vmem:[%s4655 + $0x70] sm:$0xff]
    %v4671 = vld [vmem:[%s4655 + $0x78] sm:$0xff]
    %v4672 = vld [vmem:[%s4655 + $0x80] sm:$0xff]
    %v4673 = vld [vmem:[%s4655 + $0x88] sm:$0xff]
    %v4674 = vld [vmem:[%s4655 + $0x90] sm:$0xff]
    %v4675 = vld [vmem:[%s4655 + $0x98] sm:$0xff]
    %v4676 = vld [vmem:[%s4655 + $0xa0] sm:$0xff]
    %v4677 = vld [vmem:[%s4655 + $0xa8] sm:$0xff]
    %v4678 = vld [vmem:[%s4655 + $0xb0] sm:$0xff]
    %v4679 = vld [vmem:[%s4655 + $0xb8] sm:$0xff]
    %v4680 = vld [vmem:[%s4655 + $0xc0] sm:$0xff]
    %v4681 = vld [vmem:[%s4655 + $0xc8] sm:$0xff]
    %v4682 = vld [vmem:[%s4655 + $0xd0] sm:$0xff]
    %v4683 = vld [vmem:[%s4655 + $0xd8] sm:$0xff]
    %v4684 = vld [vmem:[%s4655 + $0xe0] sm:$0xff]
    %v4685 = vld [vmem:[%s4655 + $0xe8] sm:$0xff]
    %v4686 = vld [vmem:[%s4655 + $0xf0] sm:$0xff]
    %v4687 = vld [vmem:[%s4655 + $0xf8] sm:$0xff]
    %s4688 = scalar_lea.vmem %s3, 12
    %v4689 = vld [vmem:[%s4688] sm:$0xf]
    %v4691 = vlaneseq
    %v4692 = vshrl.u32 %v4691, 7
    %v4693 = vsub.s32 0, %v4692
    %v4694 = vrot.slane %v4689, %v4693
    %v4695 = vlaneseq
    %v4696 = vshrl.u32 %v4695, 7
    %v4697 = vsub.s32 1, %v4696
    %v4698 = vrot.slane %v4689, %v4697
    %v4699 = vlaneseq
    %v4700 = vshrl.u32 %v4699, 7
    %v4701 = vsub.s32 2, %v4700
    %v4702 = vrot.slane %v4689, %v4701
    %v4703 = vlaneseq
    %v4704 = vshrl.u32 %v4703, 7
    %v4705 = vsub.s32 3, %v4704
    %v4706 = vrot.slane %v4689, %v4705
    %v4743 = vunpack.c.l.b16 %v4656
    %v4744 = vunpack.c.h.b16 %v4656
    %v4745 = vunpack.c.l.b16 %v4657
    %v4746 = vunpack.c.h.b16 %v4657
    %v4747 = vunpack.c.l.b16 %v4658
    %v4748 = vunpack.c.h.b16 %v4658
    %v4749 = vunpack.c.l.b16 %v4659
    %v4750 = vunpack.c.h.b16 %v4659
    %v4751 = vunpack.c.l.b16 %v4660
    %v4752 = vunpack.c.h.b16 %v4660
    %v4753 = vunpack.c.l.b16 %v4661
    %v4754 = vunpack.c.h.b16 %v4661
    %v4755 = vunpack.c.l.b16 %v4662
    %v4756 = vunpack.c.h.b16 %v4662
    %v4757 = vunpack.c.l.b16 %v4663
    %v4758 = vunpack.c.h.b16 %v4663
    %v4759 = vunpack.c.l.b16 %v4664
    %v4760 = vunpack.c.h.b16 %v4664
    %v4761 = vunpack.c.l.b16 %v4665
    %v4762 = vunpack.c.h.b16 %v4665
    %v4763 = vunpack.c.l.b16 %v4666
    %v4764 = vunpack.c.h.b16 %v4666
    %v4765 = vunpack.c.l.b16 %v4667
    %v4766 = vunpack.c.h.b16 %v4667
    %v4767 = vunpack.c.l.b16 %v4668
    %v4768 = vunpack.c.h.b16 %v4668
    %v4769 = vunpack.c.l.b16 %v4669
    %v4770 = vunpack.c.h.b16 %v4669
    %v4771 = vunpack.c.l.b16 %v4670
    %v4772 = vunpack.c.h.b16 %v4670
    %v4773 = vunpack.c.l.b16 %v4671
    %v4774 = vunpack.c.h.b16 %v4671
    %v4775 = vunpack.c.l.b16 %v4672
    %v4776 = vunpack.c.h.b16 %v4672
    %v4777 = vunpack.c.l.b16 %v4673
    %v4778 = vunpack.c.h.b16 %v4673
    %v4779 = vunpack.c.l.b16 %v4674
    %v4780 = vunpack.c.h.b16 %v4674
    %v4781 = vunpack.c.l.b16 %v4675
    %v4782 = vunpack.c.h.b16 %v4675
    %v4783 = vunpack.c.l.b16 %v4676
    %v4784 = vunpack.c.h.b16 %v4676
    %v4785 = vunpack.c.l.b16 %v4677
    %v4786 = vunpack.c.h.b16 %v4677
    %v4787 = vunpack.c.l.b16 %v4678
    %v4788 = vunpack.c.h.b16 %v4678
    %v4789 = vunpack.c.l.b16 %v4679
    %v4790 = vunpack.c.h.b16 %v4679
    %v4791 = vunpack.c.l.b16 %v4680
    %v4792 = vunpack.c.h.b16 %v4680
    %v4793 = vunpack.c.l.b16 %v4681
    %v4794 = vunpack.c.h.b16 %v4681
    %v4795 = vunpack.c.l.b16 %v4682
    %v4796 = vunpack.c.h.b16 %v4682
    %v4797 = vunpack.c.l.b16 %v4683
    %v4798 = vunpack.c.h.b16 %v4683
    %v4799 = vunpack.c.l.b16 %v4684
    %v4800 = vunpack.c.h.b16 %v4684
    %v4801 = vunpack.c.l.b16 %v4685
    %v4802 = vunpack.c.h.b16 %v4685
    %v4803 = vunpack.c.l.b16 %v4686
    %v4804 = vunpack.c.h.b16 %v4686
    %v4805 = vunpack.c.l.b16 %v4687
    %v4806 = vunpack.c.h.b16 %v4687
    %v4807 = vpack.c.b16 %v4747, %v4743
    %v4808 = vpack.c.b16 %v4748, %v4744
    %v4809 = vpack.c.b16 %v4749, %v4745
    %v4810 = vpack.c.b16 %v4750, %v4746
    %v4811 = vpack.c.b16 %v4755, %v4751
    %v4812 = vpack.c.b16 %v4756, %v4752
    %v4813 = vpack.c.b16 %v4757, %v4753
    %v4814 = vpack.c.b16 %v4758, %v4754
    %v4815 = vpack.c.b16 %v4763, %v4759
    %v4816 = vpack.c.b16 %v4764, %v4760
    %v4817 = vpack.c.b16 %v4765, %v4761
    %v4818 = vpack.c.b16 %v4766, %v4762
    %v4819 = vpack.c.b16 %v4771, %v4767
    %v4820 = vpack.c.b16 %v4772, %v4768
    %v4821 = vpack.c.b16 %v4773, %v4769
    %v4822 = vpack.c.b16 %v4774, %v4770
    %v4823 = vpack.c.b16 %v4779, %v4775
    %v4824 = vpack.c.b16 %v4780, %v4776
    %v4825 = vpack.c.b16 %v4781, %v4777
    %v4826 = vpack.c.b16 %v4782, %v4778
    %v4827 = vpack.c.b16 %v4787, %v4783
    %v4828 = vpack.c.b16 %v4788, %v4784
    %v4829 = vpack.c.b16 %v4789, %v4785
    %v4830 = vpack.c.b16 %v4790, %v4786
    %v4831 = vpack.c.b16 %v4795, %v4791
    %v4832 = vpack.c.b16 %v4796, %v4792
    %v4833 = vpack.c.b16 %v4797, %v4793
    %v4834 = vpack.c.b16 %v4798, %v4794
    %v4835 = vpack.c.b16 %v4803, %v4799
    %v4836 = vpack.c.b16 %v4804, %v4800
    %v4837 = vpack.c.b16 %v4805, %v4801
    %v4838 = vpack.c.b16 %v4806, %v4802
    %4871 = vmatprep.subr.bf16.mxu0 %v4836
    %4872 = vmatpush1.bf16.msra.mxu0 %v4835
    %4873 = vmatprep.subr.bf16.mxu0 %v4832
    %4874 = vmatpush1.bf16.msra.mxu0 %v4831
    %4875 = vmatprep.subr.bf16.mxu0 %v4828
    %4876 = vmatpush1.bf16.msra.mxu0 %v4827
    %4877 = vmatprep.subr.bf16.mxu0 %v4824
    %4878 = vmatpush1.bf16.msra.mxu0 %v4823
    %4879 = vmatprep.subr.bf16.mxu0 %v4820
    %4880 = vmatpush1.bf16.msra.mxu0 %v4819
    %4881 = vmatprep.subr.bf16.mxu0 %v4816
    %4882 = vmatpush1.bf16.msra.mxu0 %v4815
    %4883 = vmatprep.subr.bf16.mxu0 %v4812
    %4884 = vmatpush1.bf16.msra.mxu0 %v4811
    %4885 = vmatprep.subr.bf16.mxu0 %v4808
    %4886 = vmatpush1.bf16.msra.mxu0 %v4807
    %4887 = vmatprep.subr.bf16.mxu0 0
    %4888 = vmatpush2.bf16.msra.mxu0 0
    %4889 = vmatprep.subr.bf16.mxu0 0
    %4890 = vmatpush2.bf16.msra.mxu0 0
    %4891 = vmatprep.subr.bf16.mxu0 0
    %4892 = vmatpush2.bf16.msra.mxu0 0
    %4893 = vmatprep.subr.bf16.mxu0 0
    %4894 = vmatpush2.bf16.msra.mxu0 0
    %4895 = vmatprep.subr.bf16.mxu0 0
    %4896 = vmatpush2.bf16.msra.mxu0 0
    %4897 = vmatprep.subr.bf16.mxu0 0
    %4898 = vmatpush2.bf16.msra.mxu0 0
    %4899 = vmatprep.subr.bf16.mxu0 0
    %4900 = vmatpush2.bf16.msra.mxu0 0
    %4901 = vmatprep.subr.bf16.mxu0 0
    %4902 = vmatpush2.bf16.msra.mxu0 0
    %4903 = vmatprep.mubr.bf16.mxu0 0
    %4904 = vmatmul.mubr.bf16.gmra.mxu0 %v4651
    %v4905 = vpop.f32.mrf.mxu0
    %v4906 = vadd.f32 %v4694, %v4905
    %v4907 = vpop.f32.mrf.mxu0
    %v4908 = vadd.f32 %v4698, %v4907
    %v4909 = vpop.f32.mrf.mxu0
    %v4910 = vadd.f32 %v4694, %v4909
    %v4911 = vpop.f32.mrf.mxu0
    %v4912 = vadd.f32 %v4698, %v4911
    %4913 = vmatprep.mubr.bf16.mxu0 0
    %4914 = vmatmul.mubr.bf16.gmra.mxu0 %v4652
    %v4915 = vpop.f32.mrf.mxu0
    %v4916 = vadd.f32 %v4694, %v4915
    %v4917 = vpop.f32.mrf.mxu0
    %v4918 = vadd.f32 %v4698, %v4917
    %v4919 = vpop.f32.mrf.mxu0
    %v4920 = vadd.f32 %v4694, %v4919
    %v4921 = vpop.f32.mrf.mxu0
    %v4922 = vadd.f32 %v4698, %v4921
    %4923 = vmatprep.mubr.bf16.mxu0 0
    %4924 = vmatmul.mubr.bf16.gmra.mxu0 %v4653
    %v4925 = vpop.f32.mrf.mxu0
    %v4926 = vadd.f32 %v4694, %v4925
    %v4927 = vpop.f32.mrf.mxu0
    %v4928 = vadd.f32 %v4698, %v4927
    %v4929 = vpop.f32.mrf.mxu0
    %v4930 = vadd.f32 %v4694, %v4929
    %v4931 = vpop.f32.mrf.mxu0
    %v4932 = vadd.f32 %v4698, %v4931
    %4933 = vmatprep.mubr.bf16.mxu0 0
    %4934 = vmatmul.mubr.bf16.gmra.mxu0 %v4654
    %v4935 = vpop.f32.mrf.mxu0
    %v4936 = vadd.f32 %v4694, %v4935
    %v4937 = vpop.f32.mrf.mxu0
    %v4938 = vadd.f32 %v4698, %v4937
    %v4939 = vpop.f32.mrf.mxu0
    %v4940 = vadd.f32 %v4694, %v4939
    %v4941 = vpop.f32.mrf.mxu0
    %v4942 = vadd.f32 %v4698, %v4941
    %4943 = vdwg.mxu0
    %4944 = vmatprep.subr.bf16.mxu0 %v4838
    %4945 = vmatpush1.bf16.msra.mxu0 %v4837
    %4946 = vmatprep.subr.bf16.mxu0 %v4834
    %4947 = vmatpush1.bf16.msra.mxu0 %v4833
    %4948 = vmatprep.subr.bf16.mxu0 %v4830
    %4949 = vmatpush1.bf16.msra.mxu0 %v4829
    %4950 = vmatprep.subr.bf16.mxu0 %v4826
    %4951 = vmatpush1.bf16.msra.mxu0 %v4825
    %4952 = vmatprep.subr.bf16.mxu0 %v4822
    %4953 = vmatpush1.bf16.msra.mxu0 %v4821
    %4954 = vmatprep.subr.bf16.mxu0 %v4818
    %4955 = vmatpush1.bf16.msra.mxu0 %v4817
    %4956 = vmatprep.subr.bf16.mxu0 %v4814
    %4957 = vmatpush1.bf16.msra.mxu0 %v4813
    %4958 = vmatprep.subr.bf16.mxu0 %v4810
    %4959 = vmatpush1.bf16.msra.mxu0 %v4809
    %4960 = vmatprep.subr.bf16.mxu0 0
    %4961 = vmatpush2.bf16.msra.mxu0 0
    %4962 = vmatprep.subr.bf16.mxu0 0
    %4963 = vmatpush2.bf16.msra.mxu0 0
    %4964 = vmatprep.subr.bf16.mxu0 0
    %4965 = vmatpush2.bf16.msra.mxu0 0
    %4966 = vmatprep.subr.bf16.mxu0 0
    %4967 = vmatpush2.bf16.msra.mxu0 0
    %4968 = vmatprep.subr.bf16.mxu0 0
    %4969 = vmatpush2.bf16.msra.mxu0 0
    %4970 = vmatprep.subr.bf16.mxu0 0
    %4971 = vmatpush2.bf16.msra.mxu0 0
    %4972 = vmatprep.subr.bf16.mxu0 0
    %4973 = vmatpush2.bf16.msra.mxu0 0
    %4974 = vmatprep.subr.bf16.mxu0 0
    %4975 = vmatpush2.bf16.msra.mxu0 0
    %4976 = vmatprep.mubr.bf16.mxu0 0
    %4977 = vmatmul.mubr.bf16.gmra.mxu0 %v4651
    %v4978 = vpop.f32.mrf.mxu0
    %v4979 = vadd.f32 %v4702, %v4978
    %v4980 = vpop.f32.mrf.mxu0
    %v4981 = vadd.f32 %v4706, %v4980
    %v4982 = vpop.f32.mrf.mxu0
    %v4983 = vadd.f32 %v4702, %v4982
    %v4984 = vpop.f32.mrf.mxu0
    %v4985 = vadd.f32 %v4706, %v4984
    %4986 = vmatprep.mubr.bf16.mxu0 0
    %4987 = vmatmul.mubr.bf16.gmra.mxu0 %v4652
    %v4988 = vpop.f32.mrf.mxu0
    %v4989 = vadd.f32 %v4702, %v4988
    %v4990 = vpop.f32.mrf.mxu0
    %v4991 = vadd.f32 %v4706, %v4990
    %v4992 = vpop.f32.mrf.mxu0
    %v4993 = vadd.f32 %v4702, %v4992
    %v4994 = vpop.f32.mrf.mxu0
    %v4995 = vadd.f32 %v4706, %v4994
    %4996 = vmatprep.mubr.bf16.mxu0 0
    %4997 = vmatmul.mubr.bf16.gmra.mxu0 %v4653
    %v4998 = vpop.f32.mrf.mxu0
    %v4999 = vadd.f32 %v4702, %v4998
    %v5000 = vpop.f32.mrf.mxu0
    %v5001 = vadd.f32 %v4706, %v5000
    %v5002 = vpop.f32.mrf.mxu0
    %v5003 = vadd.f32 %v4702, %v5002
    %v5004 = vpop.f32.mrf.mxu0
    %v5005 = vadd.f32 %v4706, %v5004
    %5006 = vmatprep.mubr.bf16.mxu0 0
    %5007 = vmatmul.mubr.bf16.gmra.mxu0 %v4654
    %v5008 = vpop.f32.mrf.mxu0
    %v5009 = vadd.f32 %v4702, %v5008
    %v5010 = vpop.f32.mrf.mxu0
    %v5011 = vadd.f32 %v4706, %v5010
    %v5012 = vpop.f32.mrf.mxu0
    %v5013 = vadd.f32 %v4702, %v5012
    %v5014 = vpop.f32.mrf.mxu0
    %v5015 = vadd.f32 %v4706, %v5014
    %5016 = vdwg.mxu0
    %5017 = vst [vmem:[#allocation3] sm:$0xff] %v4906
    %5018 = vst [vmem:[#allocation3 + $0x8] sm:$0xff] %v4908
    %5019 = vst [vmem:[#allocation3 + $0x10] sm:$0xff] %v4979
    %5020 = vst [vmem:[#allocation3 + $0x18] sm:$0xff] %v4981
    %5021 = vst [vmem:[#allocation3 + $0x20] sm:$0xff] %v4910
    %5022 = vst [vmem:[#allocation3 + $0x28] sm:$0xff] %v4912
    %5023 = vst [vmem:[#allocation3 + $0x30] sm:$0xff] %v4983
    %5024 = vst [vmem:[#allocation3 + $0x38] sm:$0xff] %v4985
    %5025 = vst [vmem:[#allocation3 + $0x40] sm:$0xff] %v4916
    %5026 = vst [vmem:[#allocation3 + $0x48] sm:$0xff] %v4918
    %5027 = vst [vmem:[#allocation3 + $0x50] sm:$0xff] %v4989
    %5028 = vst [vmem:[#allocation3 + $0x58] sm:$0xff] %v4991
    %5029 = vst [vmem:[#allocation3 + $0x60] sm:$0xff] %v4920
    %5030 = vst [vmem:[#allocation3 + $0x68] sm:$0xff] %v4922
    %5031 = vst [vmem:[#allocation3 + $0x70] sm:$0xff] %v4993
    %5032 = vst [vmem:[#allocation3 + $0x78] sm:$0xff] %v4995
    %5033 = vst [vmem:[#allocation3 + $0x80] sm:$0xff] %v4926
    %5034 = vst [vmem:[#allocation3 + $0x88] sm:$0xff] %v4928
    %5035 = vst [vmem:[#allocation3 + $0x90] sm:$0xff] %v4999
    %5036 = vst [vmem:[#allocation3 + $0x98] sm:$0xff] %v5001
    %5037 = vst [vmem:[#allocation3 + $0xa0] sm:$0xff] %v4930
    %5038 = vst [vmem:[#allocation3 + $0xa8] sm:$0xff] %v4932
    %5039 = vst [vmem:[#allocation3 + $0xb0] sm:$0xff] %v5003
    %5040 = vst [vmem:[#allocation3 + $0xb8] sm:$0xff] %v5005
    %5041 = vst [vmem:[#allocation3 + $0xc0] sm:$0xff] %v4936
    %5042 = vst [vmem:[#allocation3 + $0xc8] sm:$0xff] %v4938
    %5043 = vst [vmem:[#allocation3 + $0xd0] sm:$0xff] %v5009
    %5044 = vst [vmem:[#allocation3 + $0xd8] sm:$0xff] %v5011
    %5045 = vst [vmem:[#allocation3 + $0xe0] sm:$0xff] %v4940
    %5046 = vst [vmem:[#allocation3 + $0xe8] sm:$0xff] %v4942
    %5047 = vst [vmem:[#allocation3 + $0xf0] sm:$0xff] %v5013
    %5048 = vst [vmem:[#allocation3 + $0xf8] sm:$0xff] %v5015
    %s5049 = scalar_lea.vmem [#allocation7], 768
    %v5050 = vld [vmem:[%s5049] sm:$0xff]
    %v5051 = vld [vmem:[%s5049 + $0x8] sm:$0xff]
    %v5052 = vld [vmem:[%s5049 + $0x10] sm:$0xff]
    %v5053 = vld [vmem:[%s5049 + $0x18] sm:$0xff]
    %v5054 = vld [vmem:[%s5049 + $0x20] sm:$0xff]
    %v5055 = vld [vmem:[%s5049 + $0x28] sm:$0xff]
    %v5056 = vld [vmem:[%s5049 + $0x30] sm:$0xff]
    %v5057 = vld [vmem:[%s5049 + $0x38] sm:$0xff]
    %v5058 = vld [vmem:[%s5049 + $0x40] sm:$0xff]
    %v5059 = vld [vmem:[%s5049 + $0x48] sm:$0xff]
    %v5060 = vld [vmem:[%s5049 + $0x50] sm:$0xff]
    %v5061 = vld [vmem:[%s5049 + $0x58] sm:$0xff]
    %v5062 = vld [vmem:[%s5049 + $0x60] sm:$0xff]
    %v5063 = vld [vmem:[%s5049 + $0x68] sm:$0xff]
    %v5064 = vld [vmem:[%s5049 + $0x70] sm:$0xff]
    %v5065 = vld [vmem:[%s5049 + $0x78] sm:$0xff]
    %v5066 = vld [vmem:[%s5049 + $0x80] sm:$0xff]
    %v5067 = vld [vmem:[%s5049 + $0x88] sm:$0xff]
    %v5068 = vld [vmem:[%s5049 + $0x90] sm:$0xff]
    %v5069 = vld [vmem:[%s5049 + $0x98] sm:$0xff]
    %v5070 = vld [vmem:[%s5049 + $0xa0] sm:$0xff]
    %v5071 = vld [vmem:[%s5049 + $0xa8] sm:$0xff]
    %v5072 = vld [vmem:[%s5049 + $0xb0] sm:$0xff]
    %v5073 = vld [vmem:[%s5049 + $0xb8] sm:$0xff]
    %v5074 = vld [vmem:[%s5049 + $0xc0] sm:$0xff]
    %v5075 = vld [vmem:[%s5049 + $0xc8] sm:$0xff]
    %v5076 = vld [vmem:[%s5049 + $0xd0] sm:$0xff]
    %v5077 = vld [vmem:[%s5049 + $0xd8] sm:$0xff]
    %v5078 = vld [vmem:[%s5049 + $0xe0] sm:$0xff]
    %v5079 = vld [vmem:[%s5049 + $0xe8] sm:$0xff]
    %v5080 = vld [vmem:[%s5049 + $0xf0] sm:$0xff]
    %v5081 = vld [vmem:[%s5049 + $0xf8] sm:$0xff]
    %v5082 = vld [vmem:[#allocation3] sm:$0xff]
    %v5083 = vld [vmem:[#allocation3 + $0x8] sm:$0xff]
    %v5084 = vld [vmem:[#allocation3 + $0x10] sm:$0xff]
    %v5085 = vld [vmem:[#allocation3 + $0x18] sm:$0xff]
    %v5118 = vunpack.c.l.b16 %v5050
    %v5119 = vunpack.c.h.b16 %v5050
    %v5120 = vunpack.c.l.b16 %v5051
    %v5121 = vunpack.c.h.b16 %v5051
    %v5122 = vunpack.c.l.b16 %v5052
    %v5123 = vunpack.c.h.b16 %v5052
    %v5124 = vunpack.c.l.b16 %v5053
    %v5125 = vunpack.c.h.b16 %v5053
    %v5126 = vunpack.c.l.b16 %v5054
    %v5127 = vunpack.c.h.b16 %v5054
    %v5128 = vunpack.c.l.b16 %v5055
    %v5129 = vunpack.c.h.b16 %v5055
    %v5130 = vunpack.c.l.b16 %v5056
    %v5131 = vunpack.c.h.b16 %v5056
    %v5132 = vunpack.c.l.b16 %v5057
    %v5133 = vunpack.c.h.b16 %v5057
    %v5134 = vunpack.c.l.b16 %v5058
    %v5135 = vunpack.c.h.b16 %v5058
    %v5136 = vunpack.c.l.b16 %v5059
    %v5137 = vunpack.c.h.b16 %v5059
    %v5138 = vunpack.c.l.b16 %v5060
    %v5139 = vunpack.c.h.b16 %v5060
    %v5140 = vunpack.c.l.b16 %v5061
    %v5141 = vunpack.c.h.b16 %v5061
    %v5142 = vunpack.c.l.b16 %v5062
    %v5143 = vunpack.c.h.b16 %v5062
    %v5144 = vunpack.c.l.b16 %v5063
    %v5145 = vunpack.c.h.b16 %v5063
    %v5146 = vunpack.c.l.b16 %v5064
    %v5147 = vunpack.c.h.b16 %v5064
    %v5148 = vunpack.c.l.b16 %v5065
    %v5149 = vunpack.c.h.b16 %v5065
    %v5150 = vunpack.c.l.b16 %v5066
    %v5151 = vunpack.c.h.b16 %v5066
    %v5152 = vunpack.c.l.b16 %v5067
    %v5153 = vunpack.c.h.b16 %v5067
    %v5154 = vunpack.c.l.b16 %v5068
    %v5155 = vunpack.c.h.b16 %v5068
    %v5156 = vunpack.c.l.b16 %v5069
    %v5157 = vunpack.c.h.b16 %v5069
    %v5158 = vunpack.c.l.b16 %v5070
    %v5159 = vunpack.c.h.b16 %v5070
    %v5160 = vunpack.c.l.b16 %v5071
    %v5161 = vunpack.c.h.b16 %v5071
    %v5162 = vunpack.c.l.b16 %v5072
    %v5163 = vunpack.c.h.b16 %v5072
    %v5164 = vunpack.c.l.b16 %v5073
    %v5165 = vunpack.c.h.b16 %v5073
    %v5166 = vunpack.c.l.b16 %v5074
    %v5167 = vunpack.c.h.b16 %v5074
    %v5168 = vunpack.c.l.b16 %v5075
    %v5169 = vunpack.c.h.b16 %v5075
    %v5170 = vunpack.c.l.b16 %v5076
    %v5171 = vunpack.c.h.b16 %v5076
    %v5172 = vunpack.c.l.b16 %v5077
    %v5173 = vunpack.c.h.b16 %v5077
    %v5174 = vunpack.c.l.b16 %v5078
    %v5175 = vunpack.c.h.b16 %v5078
    %v5176 = vunpack.c.l.b16 %v5079
    %v5177 = vunpack.c.h.b16 %v5079
    %v5178 = vunpack.c.l.b16 %v5080
    %v5179 = vunpack.c.h.b16 %v5080
    %v5180 = vunpack.c.l.b16 %v5081
    %v5181 = vunpack.c.h.b16 %v5081
    %v5182 = vpack.c.b16 %v5122, %v5118
    %v5183 = vpack.c.b16 %v5123, %v5119
    %v5184 = vpack.c.b16 %v5124, %v5120
    %v5185 = vpack.c.b16 %v5125, %v5121
    %v5186 = vpack.c.b16 %v5130, %v5126
    %v5187 = vpack.c.b16 %v5131, %v5127
    %v5188 = vpack.c.b16 %v5132, %v5128
    %v5189 = vpack.c.b16 %v5133, %v5129
    %v5190 = vpack.c.b16 %v5138, %v5134
    %v5191 = vpack.c.b16 %v5139, %v5135
    %v5192 = vpack.c.b16 %v5140, %v5136
    %v5193 = vpack.c.b16 %v5141, %v5137
    %v5194 = vpack.c.b16 %v5146, %v5142
    %v5195 = vpack.c.b16 %v5147, %v5143
    %v5196 = vpack.c.b16 %v5148, %v5144
    %v5197 = vpack.c.b16 %v5149, %v5145
    %v5198 = vpack.c.b16 %v5154, %v5150
    %v5199 = vpack.c.b16 %v5155, %v5151
    %v5200 = vpack.c.b16 %v5156, %v5152
    %v5201 = vpack.c.b16 %v5157, %v5153
    %v5202 = vpack.c.b16 %v5162, %v5158
    %v5203 = vpack.c.b16 %v5163, %v5159
    %v5204 = vpack.c.b16 %v5164, %v5160
    %v5205 = vpack.c.b16 %v5165, %v5161
    %v5206 = vpack.c.b16 %v5170, %v5166
    %v5207 = vpack.c.b16 %v5171, %v5167
    %v5208 = vpack.c.b16 %v5172, %v5168
    %v5209 = vpack.c.b16 %v5173, %v5169
    %v5210 = vpack.c.b16 %v5178, %v5174
    %v5211 = vpack.c.b16 %v5179, %v5175
    %v5212 = vpack.c.b16 %v5180, %v5176
    %v5213 = vpack.c.b16 %v5181, %v5177
    %5246 = vmatprep.subr.bf16.mxu0 %v5211
    %5247 = vmatpush1.bf16.msra.mxu0 %v5210
    %5248 = vmatprep.subr.bf16.mxu0 %v5207
    %5249 = vmatpush1.bf16.msra.mxu0 %v5206
    %5250 = vmatprep.subr.bf16.mxu0 %v5203
    %5251 = vmatpush1.bf16.msra.mxu0 %v5202
    %5252 = vmatprep.subr.bf16.mxu0 %v5199
    %5253 = vmatpush1.bf16.msra.mxu0 %v5198
    %5254 = vmatprep.subr.bf16.mxu0 %v5195
    %5255 = vmatpush1.bf16.msra.mxu0 %v5194
    %5256 = vmatprep.subr.bf16.mxu0 %v5191
    %5257 = vmatpush1.bf16.msra.mxu0 %v5190
    %5258 = vmatprep.subr.bf16.mxu0 %v5187
    %5259 = vmatpush1.bf16.msra.mxu0 %v5186
    %5260 = vmatprep.subr.bf16.mxu0 %v5183
    %5261 = vmatpush1.bf16.msra.mxu0 %v5182
    %5262 = vmatprep.subr.bf16.mxu0 0
    %5263 = vmatpush2.bf16.msra.mxu0 0
    %5264 = vmatprep.subr.bf16.mxu0 0
    %5265 = vmatpush2.bf16.msra.mxu0 0
    %5266 = vmatprep.subr.bf16.mxu0 0
    %5267 = vmatpush2.bf16.msra.mxu0 0
    %5268 = vmatprep.subr.bf16.mxu0 0
    %5269 = vmatpush2.bf16.msra.mxu0 0
    %5270 = vmatprep.subr.bf16.mxu0 0
    %5271 = vmatpush2.bf16.msra.mxu0 0
    %5272 = vmatprep.subr.bf16.mxu0 0
    %5273 = vmatpush2.bf16.msra.mxu0 0
    %5274 = vmatprep.subr.bf16.mxu0 0
    %5275 = vmatpush2.bf16.msra.mxu0 0
    %5276 = vmatprep.subr.bf16.mxu0 0
    %5277 = vmatpush2.bf16.msra.mxu0 0
    %5278 = vmatprep.mubr.bf16.mxu0 0
    %5279 = vmatmul.mubr.bf16.gmra.mxu0 0
    %v5280 = vpop.f32.mrf.mxu0
    %v5281 = vadd.f32 0.0, %v5280
    %v5282 = vpop.f32.mrf.mxu0
    %v5283 = vadd.f32 0.0, %v5282
    %v5284 = vpop.f32.mrf.mxu0
    %v5285 = vpop.f32.mrf.mxu0
    %5286 = vdwg.mxu0
    %5287 = vmatprep.subr.bf16.mxu0 %v5213
    %5288 = vmatpush1.bf16.msra.mxu0 %v5212
    %5289 = vmatprep.subr.bf16.mxu0 %v5209
    %5290 = vmatpush1.bf16.msra.mxu0 %v5208
    %5291 = vmatprep.subr.bf16.mxu0 %v5205
    %5292 = vmatpush1.bf16.msra.mxu0 %v5204
    %5293 = vmatprep.subr.bf16.mxu0 %v5201
    %5294 = vmatpush1.bf16.msra.mxu0 %v5200
    %5295 = vmatprep.subr.bf16.mxu0 %v5197
    %5296 = vmatpush1.bf16.msra.mxu0 %v5196
    %5297 = vmatprep.subr.bf16.mxu0 %v5193
    %5298 = vmatpush1.bf16.msra.mxu0 %v5192
    %5299 = vmatprep.subr.bf16.mxu0 %v5189
    %5300 = vmatpush1.bf16.msra.mxu0 %v5188
    %5301 = vmatprep.subr.bf16.mxu0 %v5185
    %5302 = vmatpush1.bf16.msra.mxu0 %v5184
    %5303 = vmatprep.subr.bf16.mxu0 0
    %5304 = vmatpush2.bf16.msra.mxu0 0
    %5305 = vmatprep.subr.bf16.mxu0 0
    %5306 = vmatpush2.bf16.msra.mxu0 0
    %5307 = vmatprep.subr.bf16.mxu0 0
    %5308 = vmatpush2.bf16.msra.mxu0 0
    %5309 = vmatprep.subr.bf16.mxu0 0
    %5310 = vmatpush2.bf16.msra.mxu0 0
    %5311 = vmatprep.subr.bf16.mxu0 0
    %5312 = vmatpush2.bf16.msra.mxu0 0
    %5313 = vmatprep.subr.bf16.mxu0 0
    %5314 = vmatpush2.bf16.msra.mxu0 0
    %5315 = vmatprep.subr.bf16.mxu0 0
    %5316 = vmatpush2.bf16.msra.mxu0 0
    %5317 = vmatprep.subr.bf16.mxu0 0
    %5318 = vmatpush2.bf16.msra.mxu0 0
    %5319 = vmatprep.mubr.bf16.mxu0 0
    %5320 = vmatmul.mubr.bf16.gmra.mxu0 0
    %v5321 = vpop.f32.mrf.mxu0
    %v5322 = vadd.f32 0.0, %v5321
    %v5323 = vpop.f32.mrf.mxu0
    %v5324 = vadd.f32 0.0, %v5323
    %v5325 = vpop.f32.mrf.mxu0
    %v5326 = vpop.f32.mrf.mxu0
    %5327 = vdwg.mxu0
    %v5328 = vadd.f32 %v5082, %v5281
    %v5329 = vadd.f32 %v5083, %v5283
    %v5330 = vadd.f32 %v5084, %v5322
    %v5331 = vadd.f32 %v5085, %v5324
    %v5332 = vxor.u32 %v5328, 2147483648
    %v5333 = vxor.u32 %v5329, 2147483648
    %v5334 = vxor.u32 %v5330, 2147483648
    %v5335 = vmul.f32 %v5332, 1.442695
    %v5336 = vpow.pop %v5335
    %v5337 = vmul.f32 %v5333, 1.442695
    %v5338 = vpow.pop %v5337
    %v5339 = vmul.f32 %v5334, 1.442695
    %v5340 = vpow.pop %v5339
    %v5341 = vadd.f32 %v5336, 1.0
    %v5342 = vadd.f32 %v5338, 1.0
    %v5343 = vadd.f32 %v5340, 1.0
    %v5344 = vrcp.pop %v5341
    %v5345 = vmul.f32 1.0, %v5344
    %v5346 = vrcp.pop %v5342
    %v5347 = vmul.f32 1.0, %v5346
    %v5348 = vrcp.pop %v5343
    %v5349 = vmul.f32 1.0, %v5348
    %v5350 = vtanh.pop %v5331
    %v5351 = vmul.f32 %v5347, 0.0
    %v5352 = vmul.f32 %v5345, %v5350
    %v5353 = vadd.f32 %v5351, %v5352
    %v5354 = vtanh.pop %v5353
    %v5355 = vmul.f32 %v5349, %v5354
    %5356 = vst [vmem:[#allocation2] sm:$0xff] %v5355
    %v5357 = vld [vmem:[%s765] sm:$0xff]
    %v5358 = vld [vmem:[%s765 + $0x8] sm:$0xff]
    %v5359 = vld [vmem:[%s765 + $0x10] sm:$0xff]
    %v5360 = vld [vmem:[%s765 + $0x18] sm:$0xff]
    %v5361 = vpack.c.bf16 %v5355, %v5355
    %5362 = vmatprep.subr.bf16.mxu0 %v5211
    %5363 = vmatpush1.bf16.msra.mxu0 %v5210
    %5364 = vmatprep.subr.bf16.mxu0 %v5207
    %5365 = vmatpush1.bf16.msra.mxu0 %v5206
    %5366 = vmatprep.subr.bf16.mxu0 %v5203
    %5367 = vmatpush1.bf16.msra.mxu0 %v5202
    %5368 = vmatprep.subr.bf16.mxu0 %v5199
    %5369 = vmatpush1.bf16.msra.mxu0 %v5198
    %5370 = vmatprep.subr.bf16.mxu0 %v5195
    %5371 = vmatpush1.bf16.msra.mxu0 %v5194
    %5372 = vmatprep.subr.bf16.mxu0 %v5191
    %5373 = vmatpush1.bf16.msra.mxu0 %v5190
    %5374 = vmatprep.subr.bf16.mxu0 %v5187
    %5375 = vmatpush1.bf16.msra.mxu0 %v5186
    %5376 = vmatprep.subr.bf16.mxu0 %v5183
    %5377 = vmatpush1.bf16.msra.mxu0 %v5182
    %5378 = vmatprep.subr.bf16.mxu0 0
    %5379 = vmatpush2.bf16.msra.mxu0 0
    %5380 = vmatprep.subr.bf16.mxu0 0
    %5381 = vmatpush2.bf16.msra.mxu0 0
    %5382 = vmatprep.subr.bf16.mxu0 0
    %5383 = vmatpush2.bf16.msra.mxu0 0
    %5384 = vmatprep.subr.bf16.mxu0 0
    %5385 = vmatpush2.bf16.msra.mxu0 0
    %5386 = vmatprep.subr.bf16.mxu0 0
    %5387 = vmatpush2.bf16.msra.mxu0 0
    %5388 = vmatprep.subr.bf16.mxu0 0
    %5389 = vmatpush2.bf16.msra.mxu0 0
    %5390 = vmatprep.subr.bf16.mxu0 0
    %5391 = vmatpush2.bf16.msra.mxu0 0
    %5392 = vmatprep.subr.bf16.mxu0 0
    %5393 = vmatpush2.bf16.msra.mxu0 0
    %5394 = vmatprep.mubr.bf16.mxu0 0
    %5395 = vmatmul.mubr.bf16.gmra.mxu0 %v5361
    %v5396 = vpop.f32.mrf.mxu0
    %v5397 = vadd.f32 0.0, %v5396
    %v5398 = vpop.f32.mrf.mxu0
    %v5399 = vadd.f32 0.0, %v5398
    %v5400 = vpop.f32.mrf.mxu0
    %v5401 = vpop.f32.mrf.mxu0
    %5402 = vdwg.mxu0
    %5403 = vmatprep.subr.bf16.mxu0 %v5213
    %5404 = vmatpush1.bf16.msra.mxu0 %v5212
    %5405 = vmatprep.subr.bf16.mxu0 %v5209
    %5406 = vmatpush1.bf16.msra.mxu0 %v5208
    %5407 = vmatprep.subr.bf16.mxu0 %v5205
    %5408 = vmatpush1.bf16.msra.mxu0 %v5204
    %5409 = vmatprep.subr.bf16.mxu0 %v5201
    %5410 = vmatpush1.bf16.msra.mxu0 %v5200
    %5411 = vmatprep.subr.bf16.mxu0 %v5197
    %5412 = vmatpush1.bf16.msra.mxu0 %v5196
    %5413 = vmatprep.subr.bf16.mxu0 %v5193
    %5414 = vmatpush1.bf16.msra.mxu0 %v5192
    %5415 = vmatprep.subr.bf16.mxu0 %v5189
    %5416 = vmatpush1.bf16.msra.mxu0 %v5188
    %5417 = vmatprep.subr.bf16.mxu0 %v5185
    %5418 = vmatpush1.bf16.msra.mxu0 %v5184
    %5419 = vmatprep.subr.bf16.mxu0 0
    %5420 = vmatpush2.bf16.msra.mxu0 0
    %5421 = vmatprep.subr.bf16.mxu0 0
    %5422 = vmatpush2.bf16.msra.mxu0 0
    %5423 = vmatprep.subr.bf16.mxu0 0
    %5424 = vmatpush2.bf16.msra.mxu0 0
    %5425 = vmatprep.subr.bf16.mxu0 0
    %5426 = vmatpush2.bf16.msra.mxu0 0
    %5427 = vmatprep.subr.bf16.mxu0 0
    %5428 = vmatpush2.bf16.msra.mxu0 0
    %5429 = vmatprep.subr.bf16.mxu0 0
    %5430 = vmatpush2.bf16.msra.mxu0 0
    %5431 = vmatprep.subr.bf16.mxu0 0
    %5432 = vmatpush2.bf16.msra.mxu0 0
    %5433 = vmatprep.subr.bf16.mxu0 0
    %5434 = vmatpush2.bf16.msra.mxu0 0
    %5435 = vmatprep.mubr.bf16.mxu0 0
    %5436 = vmatmul.mubr.bf16.gmra.mxu0 %v5361
    %v5437 = vpop.f32.mrf.mxu0
    %v5438 = vadd.f32 0.0, %v5437
    %v5439 = vpop.f32.mrf.mxu0
    %v5440 = vadd.f32 0.0, %v5439
    %v5441 = vpop.f32.mrf.mxu0
    %v5442 = vpop.f32.mrf.mxu0
    %5443 = vdwg.mxu0
    %v5444 = vadd.f32 %v5357, %v5397
    %v5445 = vadd.f32 %v5358, %v5399
    %v5446 = vadd.f32 %v5359, %v5438
    %v5447 = vadd.f32 %v5360, %v5440
    %v5448 = vxor.u32 %v5444, 2147483648
    %v5449 = vxor.u32 %v5445, 2147483648
    %v5450 = vxor.u32 %v5446, 2147483648
    %v5451 = vmul.f32 %v5448, 1.442695
    %v5452 = vpow.pop %v5451
    %v5453 = vmul.f32 %v5449, 1.442695
    %v5454 = vpow.pop %v5453
    %v5455 = vmul.f32 %v5450, 1.442695
    %v5456 = vpow.pop %v5455
    %v5457 = vadd.f32 %v5452, 1.0
    %v5458 = vadd.f32 %v5454, 1.0
    %v5459 = vadd.f32 %v5456, 1.0
    %v5460 = vrcp.pop %v5457
    %v5461 = vmul.f32 1.0, %v5460
    %v5462 = vrcp.pop %v5458
    %v5463 = vmul.f32 1.0, %v5462
    %v5464 = vrcp.pop %v5459
    %v5465 = vmul.f32 1.0, %v5464
    %v5466 = vtanh.pop %v5447
    %v5467 = vmul.f32 %v5463, %v5353
    %v5468 = vmul.f32 %v5461, %v5466
    %v5469 = vadd.f32 %v5467, %v5468
    %v5470 = vtanh.pop %v5469
    %v5471 = vmul.f32 %v5465, %v5470
    %5472 = vst [vmem:[%s881] sm:$0xff] %v5471
    %v5473 = vld [vmem:[%s883] sm:$0xff]
    %v5474 = vld [vmem:[%s883 + $0x8] sm:$0xff]
    %v5475 = vld [vmem:[%s883 + $0x10] sm:$0xff]
    %v5476 = vld [vmem:[%s883 + $0x18] sm:$0xff]
    %v5477 = vpack.c.bf16 %v5471, %v5471
    %5478 = vmatprep.subr.bf16.mxu0 %v5211
    %5479 = vmatpush1.bf16.msra.mxu0 %v5210
    %5480 = vmatprep.subr.bf16.mxu0 %v5207
    %5481 = vmatpush1.bf16.msra.mxu0 %v5206
    %5482 = vmatprep.subr.bf16.mxu0 %v5203
    %5483 = vmatpush1.bf16.msra.mxu0 %v5202
    %5484 = vmatprep.subr.bf16.mxu0 %v5199
    %5485 = vmatpush1.bf16.msra.mxu0 %v5198
    %5486 = vmatprep.subr.bf16.mxu0 %v5195
    %5487 = vmatpush1.bf16.msra.mxu0 %v5194
    %5488 = vmatprep.subr.bf16.mxu0 %v5191
    %5489 = vmatpush1.bf16.msra.mxu0 %v5190
    %5490 = vmatprep.subr.bf16.mxu0 %v5187
    %5491 = vmatpush1.bf16.msra.mxu0 %v5186
    %5492 = vmatprep.subr.bf16.mxu0 %v5183
    %5493 = vmatpush1.bf16.msra.mxu0 %v5182
    %5494 = vmatprep.subr.bf16.mxu0 0
    %5495 = vmatpush2.bf16.msra.mxu0 0
    %5496 = vmatprep.subr.bf16.mxu0 0
    %5497 = vmatpush2.bf16.msra.mxu0 0
    %5498 = vmatprep.subr.bf16.mxu0 0
    %5499 = vmatpush2.bf16.msra.mxu0 0
    %5500 = vmatprep.subr.bf16.mxu0 0
    %5501 = vmatpush2.bf16.msra.mxu0 0
    %5502 = vmatprep.subr.bf16.mxu0 0
    %5503 = vmatpush2.bf16.msra.mxu0 0
    %5504 = vmatprep.subr.bf16.mxu0 0
    %5505 = vmatpush2.bf16.msra.mxu0 0
    %5506 = vmatprep.subr.bf16.mxu0 0
    %5507 = vmatpush2.bf16.msra.mxu0 0
    %5508 = vmatprep.subr.bf16.mxu0 0
    %5509 = vmatpush2.bf16.msra.mxu0 0
    %5510 = vmatprep.mubr.bf16.mxu0 0
    %5511 = vmatmul.mubr.bf16.gmra.mxu0 %v5477
    %v5512 = vpop.f32.mrf.mxu0
    %v5513 = vadd.f32 0.0, %v5512
    %v5514 = vpop.f32.mrf.mxu0
    %v5515 = vadd.f32 0.0, %v5514
    %v5516 = vpop.f32.mrf.mxu0
    %v5517 = vpop.f32.mrf.mxu0
    %5518 = vdwg.mxu0
    %5519 = vmatprep.subr.bf16.mxu0 %v5213
    %5520 = vmatpush1.bf16.msra.mxu0 %v5212
    %5521 = vmatprep.subr.bf16.mxu0 %v5209
    %5522 = vmatpush1.bf16.msra.mxu0 %v5208
    %5523 = vmatprep.subr.bf16.mxu0 %v5205
    %5524 = vmatpush1.bf16.msra.mxu0 %v5204
    %5525 = vmatprep.subr.bf16.mxu0 %v5201
    %5526 = vmatpush1.bf16.msra.mxu0 %v5200
    %5527 = vmatprep.subr.bf16.mxu0 %v5197
    %5528 = vmatpush1.bf16.msra.mxu0 %v5196
    %5529 = vmatprep.subr.bf16.mxu0 %v5193
    %5530 = vmatpush1.bf16.msra.mxu0 %v5192
    %5531 = vmatprep.subr.bf16.mxu0 %v5189
    %5532 = vmatpush1.bf16.msra.mxu0 %v5188
    %5533 = vmatprep.subr.bf16.mxu0 %v5185
    %5534 = vmatpush1.bf16.msra.mxu0 %v5184
    %5535 = vmatprep.subr.bf16.mxu0 0
    %5536 = vmatpush2.bf16.msra.mxu0 0
    %5537 = vmatprep.subr.bf16.mxu0 0
    %5538 = vmatpush2.bf16.msra.mxu0 0
    %5539 = vmatprep.subr.bf16.mxu0 0
    %5540 = vmatpush2.bf16.msra.mxu0 0
    %5541 = vmatprep.subr.bf16.mxu0 0
    %5542 = vmatpush2.bf16.msra.mxu0 0
    %5543 = vmatprep.subr.bf16.mxu0 0
    %5544 = vmatpush2.bf16.msra.mxu0 0
    %5545 = vmatprep.subr.bf16.mxu0 0
    %5546 = vmatpush2.bf16.msra.mxu0 0
    %5547 = vmatprep.subr.bf16.mxu0 0
    %5548 = vmatpush2.bf16.msra.mxu0 0
    %5549 = vmatprep.subr.bf16.mxu0 0
    %5550 = vmatpush2.bf16.msra.mxu0 0
    %5551 = vmatprep.mubr.bf16.mxu0 0
    %5552 = vmatmul.mubr.bf16.gmra.mxu0 %v5477
    %v5553 = vpop.f32.mrf.mxu0
    %v5554 = vadd.f32 0.0, %v5553
    %v5555 = vpop.f32.mrf.mxu0
    %v5556 = vadd.f32 0.0, %v5555
    %v5557 = vpop.f32.mrf.mxu0
    %v5558 = vpop.f32.mrf.mxu0
    %5559 = vdwg.mxu0
    %v5560 = vadd.f32 %v5473, %v5513
    %v5561 = vadd.f32 %v5474, %v5515
    %v5562 = vadd.f32 %v5475, %v5554
    %v5563 = vadd.f32 %v5476, %v5556
    %v5564 = vxor.u32 %v5560, 2147483648
    %v5565 = vxor.u32 %v5561, 2147483648
    %v5566 = vxor.u32 %v5562, 2147483648
    %v5567 = vmul.f32 %v5564, 1.442695
    %v5568 = vpow.pop %v5567
    %v5569 = vmul.f32 %v5565, 1.442695
    %v5570 = vpow.pop %v5569
    %v5571 = vmul.f32 %v5566, 1.442695
    %v5572 = vpow.pop %v5571
    %v5573 = vadd.f32 %v5568, 1.0
    %v5574 = vadd.f32 %v5570, 1.0
    %v5575 = vadd.f32 %v5572, 1.0
    %v5576 = vrcp.pop %v5573
    %v5577 = vmul.f32 1.0, %v5576
    %v5578 = vrcp.pop %v5574
    %v5579 = vmul.f32 1.0, %v5578
    %v5580 = vrcp.pop %v5575
    %v5581 = vmul.f32 1.0, %v5580
    %v5582 = vtanh.pop %v5563
    %v5583 = vmul.f32 %v5579, %v5469
    %v5584 = vmul.f32 %v5577, %v5582
    %v5585 = vadd.f32 %v5583, %v5584
    %v5586 = vtanh.pop %v5585
    %v5587 = vmul.f32 %v5581, %v5586
    %5588 = vst [vmem:[%s999] sm:$0xff] %v5587
    %v5589 = vld [vmem:[%s1001] sm:$0xff]
    %v5590 = vld [vmem:[%s1001 + $0x8] sm:$0xff]
    %v5591 = vld [vmem:[%s1001 + $0x10] sm:$0xff]
    %v5592 = vld [vmem:[%s1001 + $0x18] sm:$0xff]
    %v5593 = vpack.c.bf16 %v5587, %v5587
    %5594 = vmatprep.subr.bf16.mxu0 %v5211
    %5595 = vmatpush1.bf16.msra.mxu0 %v5210
    %5596 = vmatprep.subr.bf16.mxu0 %v5207
    %5597 = vmatpush1.bf16.msra.mxu0 %v5206
    %5598 = vmatprep.subr.bf16.mxu0 %v5203
    %5599 = vmatpush1.bf16.msra.mxu0 %v5202
    %5600 = vmatprep.subr.bf16.mxu0 %v5199
    %5601 = vmatpush1.bf16.msra.mxu0 %v5198
    %5602 = vmatprep.subr.bf16.mxu0 %v5195
    %5603 = vmatpush1.bf16.msra.mxu0 %v5194
    %5604 = vmatprep.subr.bf16.mxu0 %v5191
    %5605 = vmatpush1.bf16.msra.mxu0 %v5190
    %5606 = vmatprep.subr.bf16.mxu0 %v5187
    %5607 = vmatpush1.bf16.msra.mxu0 %v5186
    %5608 = vmatprep.subr.bf16.mxu0 %v5183
    %5609 = vmatpush1.bf16.msra.mxu0 %v5182
    %5610 = vmatprep.subr.bf16.mxu0 0
    %5611 = vmatpush2.bf16.msra.mxu0 0
    %5612 = vmatprep.subr.bf16.mxu0 0
    %5613 = vmatpush2.bf16.msra.mxu0 0
    %5614 = vmatprep.subr.bf16.mxu0 0
    %5615 = vmatpush2.bf16.msra.mxu0 0
    %5616 = vmatprep.subr.bf16.mxu0 0
    %5617 = vmatpush2.bf16.msra.mxu0 0
    %5618 = vmatprep.subr.bf16.mxu0 0
    %5619 = vmatpush2.bf16.msra.mxu0 0
    %5620 = vmatprep.subr.bf16.mxu0 0
    %5621 = vmatpush2.bf16.msra.mxu0 0
    %5622 = vmatprep.subr.bf16.mxu0 0
    %5623 = vmatpush2.bf16.msra.mxu0 0
    %5624 = vmatprep.subr.bf16.mxu0 0
    %5625 = vmatpush2.bf16.msra.mxu0 0
    %5626 = vmatprep.mubr.bf16.mxu0 0
    %5627 = vmatmul.mubr.bf16.gmra.mxu0 %v5593
    %v5628 = vpop.f32.mrf.mxu0
    %v5629 = vadd.f32 0.0, %v5628
    %v5630 = vpop.f32.mrf.mxu0
    %v5631 = vadd.f32 0.0, %v5630
    %v5632 = vpop.f32.mrf.mxu0
    %v5633 = vpop.f32.mrf.mxu0
    %5634 = vdwg.mxu0
    %5635 = vmatprep.subr.bf16.mxu0 %v5213
    %5636 = vmatpush1.bf16.msra.mxu0 %v5212
    %5637 = vmatprep.subr.bf16.mxu0 %v5209
    %5638 = vmatpush1.bf16.msra.mxu0 %v5208
    %5639 = vmatprep.subr.bf16.mxu0 %v5205
    %5640 = vmatpush1.bf16.msra.mxu0 %v5204
    %5641 = vmatprep.subr.bf16.mxu0 %v5201
    %5642 = vmatpush1.bf16.msra.mxu0 %v5200
    %5643 = vmatprep.subr.bf16.mxu0 %v5197
    %5644 = vmatpush1.bf16.msra.mxu0 %v5196
    %5645 = vmatprep.subr.bf16.mxu0 %v5193
    %5646 = vmatpush1.bf16.msra.mxu0 %v5192
    %5647 = vmatprep.subr.bf16.mxu0 %v5189
    %5648 = vmatpush1.bf16.msra.mxu0 %v5188
    %5649 = vmatprep.subr.bf16.mxu0 %v5185
    %5650 = vmatpush1.bf16.msra.mxu0 %v5184
    %5651 = vmatprep.subr.bf16.mxu0 0
    %5652 = vmatpush2.bf16.msra.mxu0 0
    %5653 = vmatprep.subr.bf16.mxu0 0
    %5654 = vmatpush2.bf16.msra.mxu0 0
    %5655 = vmatprep.subr.bf16.mxu0 0
    %5656 = vmatpush2.bf16.msra.mxu0 0
    %5657 = vmatprep.subr.bf16.mxu0 0
    %5658 = vmatpush2.bf16.msra.mxu0 0
    %5659 = vmatprep.subr.bf16.mxu0 0
    %5660 = vmatpush2.bf16.msra.mxu0 0
    %5661 = vmatprep.subr.bf16.mxu0 0
    %5662 = vmatpush2.bf16.msra.mxu0 0
    %5663 = vmatprep.subr.bf16.mxu0 0
    %5664 = vmatpush2.bf16.msra.mxu0 0
    %5665 = vmatprep.subr.bf16.mxu0 0
    %5666 = vmatpush2.bf16.msra.mxu0 0
    %5667 = vmatprep.mubr.bf16.mxu0 0
    %5668 = vmatmul.mubr.bf16.gmra.mxu0 %v5593
    %v5669 = vpop.f32.mrf.mxu0
    %v5670 = vadd.f32 0.0, %v5669
    %v5671 = vpop.f32.mrf.mxu0
    %v5672 = vadd.f32 0.0, %v5671
    %v5673 = vpop.f32.mrf.mxu0
    %v5674 = vpop.f32.mrf.mxu0
    %5675 = vdwg.mxu0
    %v5676 = vadd.f32 %v5589, %v5629
    %v5677 = vadd.f32 %v5590, %v5631
    %v5678 = vadd.f32 %v5591, %v5670
    %v5679 = vadd.f32 %v5592, %v5672
    %v5680 = vxor.u32 %v5676, 2147483648
    %v5681 = vxor.u32 %v5677, 2147483648
    %v5682 = vxor.u32 %v5678, 2147483648
    %v5683 = vmul.f32 %v5680, 1.442695
    %v5684 = vpow.pop %v5683
    %v5685 = vmul.f32 %v5681, 1.442695
    %v5686 = vpow.pop %v5685
    %v5687 = vmul.f32 %v5682, 1.442695
    %v5688 = vpow.pop %v5687
    %v5689 = vadd.f32 %v5684, 1.0
    %v5690 = vadd.f32 %v5686, 1.0
    %v5691 = vadd.f32 %v5688, 1.0
    %v5692 = vrcp.pop %v5689
    %v5693 = vmul.f32 1.0, %v5692
    %v5694 = vrcp.pop %v5690
    %v5695 = vmul.f32 1.0, %v5694
    %v5696 = vrcp.pop %v5691
    %v5697 = vmul.f32 1.0, %v5696
    %v5698 = vtanh.pop %v5679
    %v5699 = vmul.f32 %v5695, %v5585
    %v5700 = vmul.f32 %v5693, %v5698
    %v5701 = vadd.f32 %v5699, %v5700
    %v5702 = vtanh.pop %v5701
    %v5703 = vmul.f32 %v5697, %v5702
    %5704 = vst [vmem:[%s1117] sm:$0xff] %v5703
    %v5705 = vld [vmem:[%s1119] sm:$0xff]
    %v5706 = vld [vmem:[%s1119 + $0x8] sm:$0xff]
    %v5707 = vld [vmem:[%s1119 + $0x10] sm:$0xff]
    %v5708 = vld [vmem:[%s1119 + $0x18] sm:$0xff]
    %v5709 = vpack.c.bf16 %v5703, %v5703
    %5710 = vmatprep.subr.bf16.mxu0 %v5211
    %5711 = vmatpush1.bf16.msra.mxu0 %v5210
    %5712 = vmatprep.subr.bf16.mxu0 %v5207
    %5713 = vmatpush1.bf16.msra.mxu0 %v5206
    %5714 = vmatprep.subr.bf16.mxu0 %v5203
    %5715 = vmatpush1.bf16.msra.mxu0 %v5202
    %5716 = vmatprep.subr.bf16.mxu0 %v5199
    %5717 = vmatpush1.bf16.msra.mxu0 %v5198
    %5718 = vmatprep.subr.bf16.mxu0 %v5195
    %5719 = vmatpush1.bf16.msra.mxu0 %v5194
    %5720 = vmatprep.subr.bf16.mxu0 %v5191
    %5721 = vmatpush1.bf16.msra.mxu0 %v5190
    %5722 = vmatprep.subr.bf16.mxu0 %v5187
    %5723 = vmatpush1.bf16.msra.mxu0 %v5186
    %5724 = vmatprep.subr.bf16.mxu0 %v5183
    %5725 = vmatpush1.bf16.msra.mxu0 %v5182
    %5726 = vmatprep.subr.bf16.mxu0 0
    %5727 = vmatpush2.bf16.msra.mxu0 0
    %5728 = vmatprep.subr.bf16.mxu0 0
    %5729 = vmatpush2.bf16.msra.mxu0 0
    %5730 = vmatprep.subr.bf16.mxu0 0
    %5731 = vmatpush2.bf16.msra.mxu0 0
    %5732 = vmatprep.subr.bf16.mxu0 0
    %5733 = vmatpush2.bf16.msra.mxu0 0
    %5734 = vmatprep.subr.bf16.mxu0 0
    %5735 = vmatpush2.bf16.msra.mxu0 0
    %5736 = vmatprep.subr.bf16.mxu0 0
    %5737 = vmatpush2.bf16.msra.mxu0 0
    %5738 = vmatprep.subr.bf16.mxu0 0
    %5739 = vmatpush2.bf16.msra.mxu0 0
    %5740 = vmatprep.subr.bf16.mxu0 0
    %5741 = vmatpush2.bf16.msra.mxu0 0
    %5742 = vmatprep.mubr.bf16.mxu0 0
    %5743 = vmatmul.mubr.bf16.gmra.mxu0 %v5709
    %v5744 = vpop.f32.mrf.mxu0
    %v5745 = vadd.f32 0.0, %v5744
    %v5746 = vpop.f32.mrf.mxu0
    %v5747 = vadd.f32 0.0, %v5746
    %v5748 = vpop.f32.mrf.mxu0
    %v5749 = vpop.f32.mrf.mxu0
    %5750 = vdwg.mxu0
    %5751 = vmatprep.subr.bf16.mxu0 %v5213
    %5752 = vmatpush1.bf16.msra.mxu0 %v5212
    %5753 = vmatprep.subr.bf16.mxu0 %v5209
    %5754 = vmatpush1.bf16.msra.mxu0 %v5208
    %5755 = vmatprep.subr.bf16.mxu0 %v5205
    %5756 = vmatpush1.bf16.msra.mxu0 %v5204
    %5757 = vmatprep.subr.bf16.mxu0 %v5201
    %5758 = vmatpush1.bf16.msra.mxu0 %v5200
    %5759 = vmatprep.subr.bf16.mxu0 %v5197
    %5760 = vmatpush1.bf16.msra.mxu0 %v5196
    %5761 = vmatprep.subr.bf16.mxu0 %v5193
    %5762 = vmatpush1.bf16.msra.mxu0 %v5192
    %5763 = vmatprep.subr.bf16.mxu0 %v5189
    %5764 = vmatpush1.bf16.msra.mxu0 %v5188
    %5765 = vmatprep.subr.bf16.mxu0 %v5185
    %5766 = vmatpush1.bf16.msra.mxu0 %v5184
    %5767 = vmatprep.subr.bf16.mxu0 0
    %5768 = vmatpush2.bf16.msra.mxu0 0
    %5769 = vmatprep.subr.bf16.mxu0 0
    %5770 = vmatpush2.bf16.msra.mxu0 0
    %5771 = vmatprep.subr.bf16.mxu0 0
    %5772 = vmatpush2.bf16.msra.mxu0 0
    %5773 = vmatprep.subr.bf16.mxu0 0
    %5774 = vmatpush2.bf16.msra.mxu0 0
    %5775 = vmatprep.subr.bf16.mxu0 0
    %5776 = vmatpush2.bf16.msra.mxu0 0
    %5777 = vmatprep.subr.bf16.mxu0 0
    %5778 = vmatpush2.bf16.msra.mxu0 0
    %5779 = vmatprep.subr.bf16.mxu0 0
    %5780 = vmatpush2.bf16.msra.mxu0 0
    %5781 = vmatprep.subr.bf16.mxu0 0
    %5782 = vmatpush2.bf16.msra.mxu0 0
    %5783 = vmatprep.mubr.bf16.mxu0 0
    %5784 = vmatmul.mubr.bf16.gmra.mxu0 %v5709
    %v5785 = vpop.f32.mrf.mxu0
    %v5786 = vadd.f32 0.0, %v5785
    %v5787 = vpop.f32.mrf.mxu0
    %v5788 = vadd.f32 0.0, %v5787
    %v5789 = vpop.f32.mrf.mxu0
    %v5790 = vpop.f32.mrf.mxu0
    %5791 = vdwg.mxu0
    %v5792 = vadd.f32 %v5705, %v5745
    %v5793 = vadd.f32 %v5706, %v5747
    %v5794 = vadd.f32 %v5707, %v5786
    %v5795 = vadd.f32 %v5708, %v5788
    %v5796 = vxor.u32 %v5792, 2147483648
    %v5797 = vxor.u32 %v5793, 2147483648
    %v5798 = vxor.u32 %v5794, 2147483648
    %v5799 = vmul.f32 %v5796, 1.442695
    %v5800 = vpow.pop %v5799
    %v5801 = vmul.f32 %v5797, 1.442695
    %v5802 = vpow.pop %v5801
    %v5803 = vmul.f32 %v5798, 1.442695
    %v5804 = vpow.pop %v5803
    %v5805 = vadd.f32 %v5800, 1.0
    %v5806 = vadd.f32 %v5802, 1.0
    %v5807 = vadd.f32 %v5804, 1.0
    %v5808 = vrcp.pop %v5805
    %v5809 = vmul.f32 1.0, %v5808
    %v5810 = vrcp.pop %v5806
    %v5811 = vmul.f32 1.0, %v5810
    %v5812 = vrcp.pop %v5807
    %v5813 = vmul.f32 1.0, %v5812
    %v5814 = vtanh.pop %v5795
    %v5815 = vmul.f32 %v5811, %v5701
    %v5816 = vmul.f32 %v5809, %v5814
    %v5817 = vadd.f32 %v5815, %v5816
    %v5818 = vtanh.pop %v5817
    %v5819 = vmul.f32 %v5813, %v5818
    %5820 = vst [vmem:[%s1235] sm:$0xff] %v5819
    %v5821 = vld [vmem:[%s1237] sm:$0xff]
    %v5822 = vld [vmem:[%s1237 + $0x8] sm:$0xff]
    %v5823 = vld [vmem:[%s1237 + $0x10] sm:$0xff]
    %v5824 = vld [vmem:[%s1237 + $0x18] sm:$0xff]
    %v5825 = vpack.c.bf16 %v5819, %v5819
    %5826 = vmatprep.subr.bf16.mxu0 %v5211
    %5827 = vmatpush1.bf16.msra.mxu0 %v5210
    %5828 = vmatprep.subr.bf16.mxu0 %v5207
    %5829 = vmatpush1.bf16.msra.mxu0 %v5206
    %5830 = vmatprep.subr.bf16.mxu0 %v5203
    %5831 = vmatpush1.bf16.msra.mxu0 %v5202
    %5832 = vmatprep.subr.bf16.mxu0 %v5199
    %5833 = vmatpush1.bf16.msra.mxu0 %v5198
    %5834 = vmatprep.subr.bf16.mxu0 %v5195
    %5835 = vmatpush1.bf16.msra.mxu0 %v5194
    %5836 = vmatprep.subr.bf16.mxu0 %v5191
    %5837 = vmatpush1.bf16.msra.mxu0 %v5190
    %5838 = vmatprep.subr.bf16.mxu0 %v5187
    %5839 = vmatpush1.bf16.msra.mxu0 %v5186
    %5840 = vmatprep.subr.bf16.mxu0 %v5183
    %5841 = vmatpush1.bf16.msra.mxu0 %v5182
    %5842 = vmatprep.subr.bf16.mxu0 0
    %5843 = vmatpush2.bf16.msra.mxu0 0
    %5844 = vmatprep.subr.bf16.mxu0 0
    %5845 = vmatpush2.bf16.msra.mxu0 0
    %5846 = vmatprep.subr.bf16.mxu0 0
    %5847 = vmatpush2.bf16.msra.mxu0 0
    %5848 = vmatprep.subr.bf16.mxu0 0
    %5849 = vmatpush2.bf16.msra.mxu0 0
    %5850 = vmatprep.subr.bf16.mxu0 0
    %5851 = vmatpush2.bf16.msra.mxu0 0
    %5852 = vmatprep.subr.bf16.mxu0 0
    %5853 = vmatpush2.bf16.msra.mxu0 0
    %5854 = vmatprep.subr.bf16.mxu0 0
    %5855 = vmatpush2.bf16.msra.mxu0 0
    %5856 = vmatprep.subr.bf16.mxu0 0
    %5857 = vmatpush2.bf16.msra.mxu0 0
    %5858 = vmatprep.mubr.bf16.mxu0 0
    %5859 = vmatmul.mubr.bf16.gmra.mxu0 %v5825
    %v5860 = vpop.f32.mrf.mxu0
    %v5861 = vadd.f32 0.0, %v5860
    %v5862 = vpop.f32.mrf.mxu0
    %v5863 = vadd.f32 0.0, %v5862
    %v5864 = vpop.f32.mrf.mxu0
    %v5865 = vpop.f32.mrf.mxu0
    %5866 = vdwg.mxu0
    %5867 = vmatprep.subr.bf16.mxu0 %v5213
    %5868 = vmatpush1.bf16.msra.mxu0 %v5212
    %5869 = vmatprep.subr.bf16.mxu0 %v5209
    %5870 = vmatpush1.bf16.msra.mxu0 %v5208
    %5871 = vmatprep.subr.bf16.mxu0 %v5205
    %5872 = vmatpush1.bf16.msra.mxu0 %v5204
    %5873 = vmatprep.subr.bf16.mxu0 %v5201
    %5874 = vmatpush1.bf16.msra.mxu0 %v5200
    %5875 = vmatprep.subr.bf16.mxu0 %v5197
    %5876 = vmatpush1.bf16.msra.mxu0 %v5196
    %5877 = vmatprep.subr.bf16.mxu0 %v5193
    %5878 = vmatpush1.bf16.msra.mxu0 %v5192
    %5879 = vmatprep.subr.bf16.mxu0 %v5189
    %5880 = vmatpush1.bf16.msra.mxu0 %v5188
    %5881 = vmatprep.subr.bf16.mxu0 %v5185
    %5882 = vmatpush1.bf16.msra.mxu0 %v5184
    %5883 = vmatprep.subr.bf16.mxu0 0
    %5884 = vmatpush2.bf16.msra.mxu0 0
    %5885 = vmatprep.subr.bf16.mxu0 0
    %5886 = vmatpush2.bf16.msra.mxu0 0
    %5887 = vmatprep.subr.bf16.mxu0 0
    %5888 = vmatpush2.bf16.msra.mxu0 0
    %5889 = vmatprep.subr.bf16.mxu0 0
    %5890 = vmatpush2.bf16.msra.mxu0 0
    %5891 = vmatprep.subr.bf16.mxu0 0
    %5892 = vmatpush2.bf16.msra.mxu0 0
    %5893 = vmatprep.subr.bf16.mxu0 0
    %5894 = vmatpush2.bf16.msra.mxu0 0
    %5895 = vmatprep.subr.bf16.mxu0 0
    %5896 = vmatpush2.bf16.msra.mxu0 0
    %5897 = vmatprep.subr.bf16.mxu0 0
    %5898 = vmatpush2.bf16.msra.mxu0 0
    %5899 = vmatprep.mubr.bf16.mxu0 0
    %5900 = vmatmul.mubr.bf16.gmra.mxu0 %v5825
    %v5901 = vpop.f32.mrf.mxu0
    %v5902 = vadd.f32 0.0, %v5901
    %v5903 = vpop.f32.mrf.mxu0
    %v5904 = vadd.f32 0.0, %v5903
    %v5905 = vpop.f32.mrf.mxu0
    %v5906 = vpop.f32.mrf.mxu0
    %5907 = vdwg.mxu0
    %v5908 = vadd.f32 %v5821, %v5861
    %v5909 = vadd.f32 %v5822, %v5863
    %v5910 = vadd.f32 %v5823, %v5902
    %v5911 = vadd.f32 %v5824, %v5904
    %v5912 = vxor.u32 %v5908, 2147483648
    %v5913 = vxor.u32 %v5909, 2147483648
    %v5914 = vxor.u32 %v5910, 2147483648
    %v5915 = vmul.f32 %v5912, 1.442695
    %v5916 = vpow.pop %v5915
    %v5917 = vmul.f32 %v5913, 1.442695
    %v5918 = vpow.pop %v5917
    %v5919 = vmul.f32 %v5914, 1.442695
    %v5920 = vpow.pop %v5919
    %v5921 = vadd.f32 %v5916, 1.0
    %v5922 = vadd.f32 %v5918, 1.0
    %v5923 = vadd.f32 %v5920, 1.0
    %v5924 = vrcp.pop %v5921
    %v5925 = vmul.f32 1.0, %v5924
    %v5926 = vrcp.pop %v5922
    %v5927 = vmul.f32 1.0, %v5926
    %v5928 = vrcp.pop %v5923
    %v5929 = vmul.f32 1.0, %v5928
    %v5930 = vtanh.pop %v5911
    %v5931 = vmul.f32 %v5927, %v5817
    %v5932 = vmul.f32 %v5925, %v5930
    %v5933 = vadd.f32 %v5931, %v5932
    %v5934 = vtanh.pop %v5933
    %v5935 = vmul.f32 %v5929, %v5934
    %5936 = vst [vmem:[%s1353] sm:$0xff] %v5935
    %v5937 = vld [vmem:[%s1355] sm:$0xff]
    %v5938 = vld [vmem:[%s1355 + $0x8] sm:$0xff]
    %v5939 = vld [vmem:[%s1355 + $0x10] sm:$0xff]
    %v5940 = vld [vmem:[%s1355 + $0x18] sm:$0xff]
    %v5941 = vpack.c.bf16 %v5935, %v5935
    %5942 = vmatprep.subr.bf16.mxu0 %v5211
    %5943 = vmatpush1.bf16.msra.mxu0 %v5210
    %5944 = vmatprep.subr.bf16.mxu0 %v5207
    %5945 = vmatpush1.bf16.msra.mxu0 %v5206
    %5946 = vmatprep.subr.bf16.mxu0 %v5203
    %5947 = vmatpush1.bf16.msra.mxu0 %v5202
    %5948 = vmatprep.subr.bf16.mxu0 %v5199
    %5949 = vmatpush1.bf16.msra.mxu0 %v5198
    %5950 = vmatprep.subr.bf16.mxu0 %v5195
    %5951 = vmatpush1.bf16.msra.mxu0 %v5194
    %5952 = vmatprep.subr.bf16.mxu0 %v5191
    %5953 = vmatpush1.bf16.msra.mxu0 %v5190
    %5954 = vmatprep.subr.bf16.mxu0 %v5187
    %5955 = vmatpush1.bf16.msra.mxu0 %v5186
    %5956 = vmatprep.subr.bf16.mxu0 %v5183
    %5957 = vmatpush1.bf16.msra.mxu0 %v5182
    %5958 = vmatprep.subr.bf16.mxu0 0
    %5959 = vmatpush2.bf16.msra.mxu0 0
    %5960 = vmatprep.subr.bf16.mxu0 0
    %5961 = vmatpush2.bf16.msra.mxu0 0
    %5962 = vmatprep.subr.bf16.mxu0 0
    %5963 = vmatpush2.bf16.msra.mxu0 0
    %5964 = vmatprep.subr.bf16.mxu0 0
    %5965 = vmatpush2.bf16.msra.mxu0 0
    %5966 = vmatprep.subr.bf16.mxu0 0
    %5967 = vmatpush2.bf16.msra.mxu0 0
    %5968 = vmatprep.subr.bf16.mxu0 0
    %5969 = vmatpush2.bf16.msra.mxu0 0
    %5970 = vmatprep.subr.bf16.mxu0 0
    %5971 = vmatpush2.bf16.msra.mxu0 0
    %5972 = vmatprep.subr.bf16.mxu0 0
    %5973 = vmatpush2.bf16.msra.mxu0 0
    %5974 = vmatprep.mubr.bf16.mxu0 0
    %5975 = vmatmul.mubr.bf16.gmra.mxu0 %v5941
    %v5976 = vpop.f32.mrf.mxu0
    %v5977 = vadd.f32 0.0, %v5976
    %v5978 = vpop.f32.mrf.mxu0
    %v5979 = vadd.f32 0.0, %v5978
    %v5980 = vpop.f32.mrf.mxu0
    %v5981 = vpop.f32.mrf.mxu0
    %5982 = vdwg.mxu0
    %5983 = vmatprep.subr.bf16.mxu0 %v5213
    %5984 = vmatpush1.bf16.msra.mxu0 %v5212
    %5985 = vmatprep.subr.bf16.mxu0 %v5209
    %5986 = vmatpush1.bf16.msra.mxu0 %v5208
    %5987 = vmatprep.subr.bf16.mxu0 %v5205
    %5988 = vmatpush1.bf16.msra.mxu0 %v5204
    %5989 = vmatprep.subr.bf16.mxu0 %v5201
    %5990 = vmatpush1.bf16.msra.mxu0 %v5200
    %5991 = vmatprep.subr.bf16.mxu0 %v5197
    %5992 = vmatpush1.bf16.msra.mxu0 %v5196
    %5993 = vmatprep.subr.bf16.mxu0 %v5193
    %5994 = vmatpush1.bf16.msra.mxu0 %v5192
    %5995 = vmatprep.subr.bf16.mxu0 %v5189
    %5996 = vmatpush1.bf16.msra.mxu0 %v5188
    %5997 = vmatprep.subr.bf16.mxu0 %v5185
    %5998 = vmatpush1.bf16.msra.mxu0 %v5184
    %5999 = vmatprep.subr.bf16.mxu0 0
    %6000 = vmatpush2.bf16.msra.mxu0 0
    %6001 = vmatprep.subr.bf16.mxu0 0
    %6002 = vmatpush2.bf16.msra.mxu0 0
    %6003 = vmatprep.subr.bf16.mxu0 0
    %6004 = vmatpush2.bf16.msra.mxu0 0
    %6005 = vmatprep.subr.bf16.mxu0 0
    %6006 = vmatpush2.bf16.msra.mxu0 0
    %6007 = vmatprep.subr.bf16.mxu0 0
    %6008 = vmatpush2.bf16.msra.mxu0 0
    %6009 = vmatprep.subr.bf16.mxu0 0
    %6010 = vmatpush2.bf16.msra.mxu0 0
    %6011 = vmatprep.subr.bf16.mxu0 0
    %6012 = vmatpush2.bf16.msra.mxu0 0
    %6013 = vmatprep.subr.bf16.mxu0 0
    %6014 = vmatpush2.bf16.msra.mxu0 0
    %6015 = vmatprep.mubr.bf16.mxu0 0
    %6016 = vmatmul.mubr.bf16.gmra.mxu0 %v5941
    %v6017 = vpop.f32.mrf.mxu0
    %v6018 = vadd.f32 0.0, %v6017
    %v6019 = vpop.f32.mrf.mxu0
    %v6020 = vadd.f32 0.0, %v6019
    %v6021 = vpop.f32.mrf.mxu0
    %v6022 = vpop.f32.mrf.mxu0
    %6023 = vdwg.mxu0
    %v6024 = vadd.f32 %v5937, %v5977
    %v6025 = vadd.f32 %v5938, %v5979
    %v6026 = vadd.f32 %v5939, %v6018
    %v6027 = vadd.f32 %v5940, %v6020
    %v6028 = vxor.u32 %v6024, 2147483648
    %v6029 = vxor.u32 %v6025, 2147483648
    %v6030 = vxor.u32 %v6026, 2147483648
    %v6031 = vmul.f32 %v6028, 1.442695
    %v6032 = vpow.pop %v6031
    %v6033 = vmul.f32 %v6029, 1.442695
    %v6034 = vpow.pop %v6033
    %v6035 = vmul.f32 %v6030, 1.442695
    %v6036 = vpow.pop %v6035
    %v6037 = vadd.f32 %v6032, 1.0
    %v6038 = vadd.f32 %v6034, 1.0
    %v6039 = vadd.f32 %v6036, 1.0
    %v6040 = vrcp.pop %v6037
    %v6041 = vmul.f32 1.0, %v6040
    %v6042 = vrcp.pop %v6038
    %v6043 = vmul.f32 1.0, %v6042
    %v6044 = vrcp.pop %v6039
    %v6045 = vmul.f32 1.0, %v6044
    %v6046 = vtanh.pop %v6027
    %v6047 = vmul.f32 %v6043, %v5933
    %v6048 = vmul.f32 %v6041, %v6046
    %v6049 = vadd.f32 %v6047, %v6048
    %v6050 = vtanh.pop %v6049
    %v6051 = vmul.f32 %v6045, %v6050
    %6052 = vst [vmem:[%s1471] sm:$0xff] %v6051
    %v6053 = vld [vmem:[%s1473] sm:$0xff]
    %v6054 = vld [vmem:[%s1473 + $0x8] sm:$0xff]
    %v6055 = vld [vmem:[%s1473 + $0x10] sm:$0xff]
    %v6056 = vld [vmem:[%s1473 + $0x18] sm:$0xff]
    %v6057 = vpack.c.bf16 %v6051, %v6051
    %6058 = vmatprep.subr.bf16.mxu0 %v5211
    %6059 = vmatpush1.bf16.msra.mxu0 %v5210
    %6060 = vmatprep.subr.bf16.mxu0 %v5207
    %6061 = vmatpush1.bf16.msra.mxu0 %v5206
    %6062 = vmatprep.subr.bf16.mxu0 %v5203
    %6063 = vmatpush1.bf16.msra.mxu0 %v5202
    %6064 = vmatprep.subr.bf16.mxu0 %v5199
    %6065 = vmatpush1.bf16.msra.mxu0 %v5198
    %6066 = vmatprep.subr.bf16.mxu0 %v5195
    %6067 = vmatpush1.bf16.msra.mxu0 %v5194
    %6068 = vmatprep.subr.bf16.mxu0 %v5191
    %6069 = vmatpush1.bf16.msra.mxu0 %v5190
    %6070 = vmatprep.subr.bf16.mxu0 %v5187
    %6071 = vmatpush1.bf16.msra.mxu0 %v5186
    %6072 = vmatprep.subr.bf16.mxu0 %v5183
    %6073 = vmatpush1.bf16.msra.mxu0 %v5182
    %6074 = vmatprep.subr.bf16.mxu0 0
    %6075 = vmatpush2.bf16.msra.mxu0 0
    %6076 = vmatprep.subr.bf16.mxu0 0
    %6077 = vmatpush2.bf16.msra.mxu0 0
    %6078 = vmatprep.subr.bf16.mxu0 0
    %6079 = vmatpush2.bf16.msra.mxu0 0
    %6080 = vmatprep.subr.bf16.mxu0 0
    %6081 = vmatpush2.bf16.msra.mxu0 0
    %6082 = vmatprep.subr.bf16.mxu0 0
    %6083 = vmatpush2.bf16.msra.mxu0 0
    %6084 = vmatprep.subr.bf16.mxu0 0
    %6085 = vmatpush2.bf16.msra.mxu0 0
    %6086 = vmatprep.subr.bf16.mxu0 0
    %6087 = vmatpush2.bf16.msra.mxu0 0
    %6088 = vmatprep.subr.bf16.mxu0 0
    %6089 = vmatpush2.bf16.msra.mxu0 0
    %6090 = vmatprep.mubr.bf16.mxu0 0
    %6091 = vmatmul.mubr.bf16.gmra.mxu0 %v6057
    %v6092 = vpop.f32.mrf.mxu0
    %v6093 = vadd.f32 0.0, %v6092
    %v6094 = vpop.f32.mrf.mxu0
    %v6095 = vadd.f32 0.0, %v6094
    %v6096 = vpop.f32.mrf.mxu0
    %v6097 = vpop.f32.mrf.mxu0
    %6098 = vdwg.mxu0
    %6099 = vmatprep.subr.bf16.mxu0 %v5213
    %6100 = vmatpush1.bf16.msra.mxu0 %v5212
    %6101 = vmatprep.subr.bf16.mxu0 %v5209
    %6102 = vmatpush1.bf16.msra.mxu0 %v5208
    %6103 = vmatprep.subr.bf16.mxu0 %v5205
    %6104 = vmatpush1.bf16.msra.mxu0 %v5204
    %6105 = vmatprep.subr.bf16.mxu0 %v5201
    %6106 = vmatpush1.bf16.msra.mxu0 %v5200
    %6107 = vmatprep.subr.bf16.mxu0 %v5197
    %6108 = vmatpush1.bf16.msra.mxu0 %v5196
    %6109 = vmatprep.subr.bf16.mxu0 %v5193
    %6110 = vmatpush1.bf16.msra.mxu0 %v5192
    %6111 = vmatprep.subr.bf16.mxu0 %v5189
    %6112 = vmatpush1.bf16.msra.mxu0 %v5188
    %6113 = vmatprep.subr.bf16.mxu0 %v5185
    %6114 = vmatpush1.bf16.msra.mxu0 %v5184
    %6115 = vmatprep.subr.bf16.mxu0 0
    %6116 = vmatpush2.bf16.msra.mxu0 0
    %6117 = vmatprep.subr.bf16.mxu0 0
    %6118 = vmatpush2.bf16.msra.mxu0 0
    %6119 = vmatprep.subr.bf16.mxu0 0
    %6120 = vmatpush2.bf16.msra.mxu0 0
    %6121 = vmatprep.subr.bf16.mxu0 0
    %6122 = vmatpush2.bf16.msra.mxu0 0
    %6123 = vmatprep.subr.bf16.mxu0 0
    %6124 = vmatpush2.bf16.msra.mxu0 0
    %6125 = vmatprep.subr.bf16.mxu0 0
    %6126 = vmatpush2.bf16.msra.mxu0 0
    %6127 = vmatprep.subr.bf16.mxu0 0
    %6128 = vmatpush2.bf16.msra.mxu0 0
    %6129 = vmatprep.subr.bf16.mxu0 0
    %6130 = vmatpush2.bf16.msra.mxu0 0
    %6131 = vmatprep.mubr.bf16.mxu0 0
    %6132 = vmatmul.mubr.bf16.gmra.mxu0 %v6057
    %v6133 = vpop.f32.mrf.mxu0
    %v6134 = vadd.f32 0.0, %v6133
    %v6135 = vpop.f32.mrf.mxu0
    %v6136 = vadd.f32 0.0, %v6135
    %v6137 = vpop.f32.mrf.mxu0
    %v6138 = vpop.f32.mrf.mxu0
    %6139 = vdwg.mxu0
    %v6140 = vadd.f32 %v6053, %v6093
    %v6141 = vadd.f32 %v6054, %v6095
    %v6142 = vadd.f32 %v6055, %v6134
    %v6143 = vadd.f32 %v6056, %v6136
    %v6144 = vxor.u32 %v6140, 2147483648
    %v6145 = vxor.u32 %v6141, 2147483648
    %v6146 = vxor.u32 %v6142, 2147483648
    %v6147 = vmul.f32 %v6144, 1.442695
    %v6148 = vpow.pop %v6147
    %v6149 = vmul.f32 %v6145, 1.442695
    %v6150 = vpow.pop %v6149
    %v6151 = vmul.f32 %v6146, 1.442695
    %v6152 = vpow.pop %v6151
    %v6153 = vadd.f32 %v6148, 1.0
    %v6154 = vadd.f32 %v6150, 1.0
    %v6155 = vadd.f32 %v6152, 1.0
    %v6156 = vrcp.pop %v6153
    %v6157 = vmul.f32 1.0, %v6156
    %v6158 = vrcp.pop %v6154
    %v6159 = vmul.f32 1.0, %v6158
    %v6160 = vrcp.pop %v6155
    %v6161 = vmul.f32 1.0, %v6160
    %v6162 = vtanh.pop %v6143
    %v6163 = vmul.f32 %v6159, %v6049
    %v6164 = vmul.f32 %v6157, %v6162
    %v6165 = vadd.f32 %v6163, %v6164
    %v6166 = vtanh.pop %v6165
    %v6167 = vmul.f32 %v6161, %v6166
    %6168 = vst [vmem:[%s1589] sm:$0xff] %v6167
    %v6169 = vld [vmem:[#allocation2] sm:$0xff]
    %v6170 = vld [vmem:[#allocation2 + $0x8] sm:$0xff]
    %v6171 = vld [vmem:[#allocation2 + $0x10] sm:$0xff]
    %v6172 = vld [vmem:[#allocation2 + $0x18] sm:$0xff]
    %v6173 = vld [vmem:[#allocation2 + $0x20] sm:$0xff]
    %v6174 = vld [vmem:[#allocation2 + $0x28] sm:$0xff]
    %v6175 = vld [vmem:[#allocation2 + $0x30] sm:$0xff]
    %v6176 = vld [vmem:[#allocation2 + $0x38] sm:$0xff]
    %v6177 = vadd.f32 %v6169, %v6170
    %v6178 = vadd.f32 %v6177, %v6171
    %v6179 = vadd.f32 %v6178, %v6172
    %v6180 = vadd.f32 %v6179, %v6173
    %v6181 = vadd.f32 %v6180, %v6174
    %v6182 = vadd.f32 %v6181, %v6175
    %v6183 = vadd.f32 %v6182, %v6176
    %v6184 = vrcp.pop 8.0
    %v6185 = vmul.f32 %v6183, %v6184
    %v6186 = vld [vmem:[%s4] sm:$0xff]
    %v6187 = vld [vmem:[%s4 + $0x8] sm:$0xff]
    %v6188 = vld [vmem:[%s4 + $0x10] sm:$0xff]
    %v6189 = vld [vmem:[%s4 + $0x18] sm:$0xff]
    %v6190 = vld [vmem:[%s4 + $0x20] sm:$0xff]
    %v6191 = vld [vmem:[%s4 + $0x28] sm:$0xff]
    %v6192 = vld [vmem:[%s4 + $0x30] sm:$0xff]
    %v6193 = vld [vmem:[%s4 + $0x38] sm:$0xff]
    %v6194 = vld [vmem:[%s4 + $0x40] sm:$0xff]
    %v6195 = vld [vmem:[%s4 + $0x48] sm:$0xff]
    %v6196 = vld [vmem:[%s4 + $0x50] sm:$0xff]
    %v6197 = vld [vmem:[%s4 + $0x58] sm:$0xff]
    %v6198 = vld [vmem:[%s4 + $0x60] sm:$0xff]
    %v6199 = vld [vmem:[%s4 + $0x68] sm:$0xff]
    %v6200 = vld [vmem:[%s4 + $0x70] sm:$0xff]
    %v6201 = vld [vmem:[%s4 + $0x78] sm:$0xff]
    %v6202 = vld [vmem:[#allocation4] sm:$0x1]
    %v6204 = vlaneseq
    %v6205 = vshrl.u32 %v6204, 7
    %v6206 = vsub.s32 0, %v6205
    %v6207 = vrot.slane %v6202, %v6206
    %6209 = vmatprep.subr.mxu0 0.0
    %6210 = vmatpush1.msra.mxu0 %v6201
    %6211 = vmatprep.subr.mxu0 0.0
    %6212 = vmatpush1.msra.mxu0 %v6200
    %6213 = vmatprep.subr.mxu0 0.0
    %6214 = vmatpush1.msra.mxu0 %v6199
    %6215 = vmatprep.subr.mxu0 0.0
    %6216 = vmatpush1.msra.mxu0 %v6198
    %6217 = vmatprep.subr.mxu0 0.0
    %6218 = vmatpush1.msra.mxu0 %v6197
    %6219 = vmatprep.subr.mxu0 0.0
    %6220 = vmatpush1.msra.mxu0 %v6196
    %6221 = vmatprep.subr.mxu0 0.0
    %6222 = vmatpush1.msra.mxu0 %v6195
    %6223 = vmatprep.subr.mxu0 0.0
    %6224 = vmatpush1.msra.mxu0 %v6194
    %6225 = vmatprep.subr.mxu0 0.0
    %6226 = vmatpush1.msra.mxu0 %v6193
    %6227 = vmatprep.subr.mxu0 0.0
    %6228 = vmatpush1.msra.mxu0 %v6192
    %6229 = vmatprep.subr.mxu0 0.0
    %6230 = vmatpush1.msra.mxu0 %v6191
    %6231 = vmatprep.subr.mxu0 0.0
    %6232 = vmatpush1.msra.mxu0 %v6190
    %6233 = vmatprep.subr.mxu0 0.0
    %6234 = vmatpush1.msra.mxu0 %v6189
    %6235 = vmatprep.subr.mxu0 0.0
    %6236 = vmatpush1.msra.mxu0 %v6188
    %6237 = vmatprep.subr.mxu0 0.0
    %6238 = vmatpush1.msra.mxu0 %v6187
    %6239 = vmatprep.subr.mxu0 0.0
    %6240 = vmatpush1.msra.mxu0 %v6186
    %6241 = vmatprep.subr.mxu0 0.0
    %6242 = vmatpush2.msra.mxu0 0.0
    %6243 = vmatprep.subr.mxu0 0.0
    %6244 = vmatpush2.msra.mxu0 0.0
    %6245 = vmatprep.subr.mxu0 0.0
    %6246 = vmatpush2.msra.mxu0 0.0
    %6247 = vmatprep.subr.mxu0 0.0
    %6248 = vmatpush2.msra.mxu0 0.0
    %6249 = vmatprep.subr.mxu0 0.0
    %6250 = vmatpush2.msra.mxu0 0.0
    %6251 = vmatprep.subr.mxu0 0.0
    %6252 = vmatpush2.msra.mxu0 0.0
    %6253 = vmatprep.subr.mxu0 0.0
    %6254 = vmatpush2.msra.mxu0 0.0
    %6255 = vmatprep.subr.mxu0 0.0
    %6256 = vmatpush2.msra.mxu0 0.0
    %6257 = vmatprep.subr.mxu0 0.0
    %6258 = vmatpush2.msra.mxu0 0.0
    %6259 = vmatprep.subr.mxu0 0.0
    %6260 = vmatpush2.msra.mxu0 0.0
    %6261 = vmatprep.subr.mxu0 0.0
    %6262 = vmatpush2.msra.mxu0 0.0
    %6263 = vmatprep.subr.mxu0 0.0
    %6264 = vmatpush2.msra.mxu0 0.0
    %6265 = vmatprep.subr.mxu0 0.0
    %6266 = vmatpush2.msra.mxu0 0.0
    %6267 = vmatprep.subr.mxu0 0.0
    %6268 = vmatpush2.msra.mxu0 0.0
    %6269 = vmatprep.subr.mxu0 0.0
    %6270 = vmatpush2.msra.mxu0 0.0
    %6271 = vmatprep.subr.mxu0 0.0
    %6272 = vmatpush2.msra.mxu0 0.0
    %6273 = vmatprep.mubr.f32.mxu0 0.0
    %6274 = vmatmul.mubr.f32.gmra.mxu0 %v6185
    %v6275 = vpop.f32.mrf.mxu0
    %v6276 = vadd.f32 %v6207, %v6275
    %v6277 = vpop.f32.mrf.mxu0
    %6278 = vdwg.mxu0
    %v6279 = vxor.u32 %v6276, 2147483648
    %v6280 = vmul.f32 %v6279, 1.442695
    %v6281 = vpow.pop %v6280
    %v6282 = vadd.f32 %v6281, 1.0
    %v6283 = vrcp.pop %v6282
    %v6284 = vmul.f32 1.0, %v6283
    %vm6285 = vcmask 7168
    %6286 = vst.msk [vmem:[%s6] sm:$0xff] %vm6285, %v6284
    // Predicated region
    $region34: #{tpu_custom_call.1} parent=1 // pred_check
      _
    $region35: #{tpu_custom_call.1} parent=1 // pred_check_branch
      %6288 = sbr.rel (0) target = $region37
    $region36: #{tpu_custom_call.1} parent=1 // pred_region
      _
    $region37: #{tpu_custom_call.1} parent=1 // pred_fallthru
      _
    // Predicated region
    $region38: #{tpu_custom_call.1} parent=1 // pred_check
      _
    $region39: #{tpu_custom_call.1} parent=1 // pred_check_branch
      %6290 = sbr.rel (0) target = $region41
    $region40: #{tpu_custom_call.1} parent=1 // pred_region
      _
    $region41: #{tpu_custom_call.1} parent=1 // pred_fallthru
      _
    %6291 = vsyncpa [#allocation6], 1
    %6292 = vsyncpa [#allocation8], 1

</llo_original>
